<compile_context>
chip_gen: v5e
topology: v5e:2x2
jax: 0.10.0
libtpu: 0.0.40
codegen_flags: <defaults>
</compile_context>

<pallas_src>
import functools

import jax
import jax.numpy as jnp
import numpy as np
from jax.experimental import pallas as pl
from jax.experimental.pallas import tpu as pltpu


# ----------------------------------------------------------------------------
# Device / VMEM budget helper (generation-aware, safe fallback)
# ----------------------------------------------------------------------------
def _vmem_limit_bytes():
    # v5e/v6e: 128 MiB VMEM -> allow up to 96 MiB; v7x: 64 MiB -> ~48 MiB.
    try:
        cap = pltpu.get_tpu_info().vmem_capacity_bytes
        return int(min(96 * 2 ** 20, max(32 * 2 ** 20, cap - 16 * 2 ** 20)))
    except Exception:  # pragma: no cover - defensive fallback
        return 48 * 2 ** 20


# ----------------------------------------------------------------------------
# In-kernel math helpers
# ----------------------------------------------------------------------------
def _gelu(x):
    # tanh-form GELU: tanh lowers to the EUP slot (off the VALU critical path).
    c = 0.7978845608028654  # sqrt(2/pi)
    return 0.5 * x * (1.0 + jnp.tanh(c * (x + 0.044715 * x * x * x)))


def _apply_act(y, act):
    if act == "gelu":
        return _gelu(y)
    if act == "gelu_relu":          # nn.GELU() followed by F.relu
        return jnp.maximum(_gelu(y), 0.0)
    if act == "relu":
        return jnp.maximum(y, 0.0)
    return y


# ----------------------------------------------------------------------------
# "Padded-flat" conv geometry.
# Activations between kernels are (num_images, (H+2)*(W+2), C) bf16 with
# zeroed padding positions.  In this layout, tap (dy, dx) of a 3x3/stride-1
# conv is the flat row window [dy*Wp + dx, dy*Wp + dx + span).
# ----------------------------------------------------------------------------
def _geom(hs, ws):
    wp = ws + 2
    p = (hs + 2) * wp
    base = wp + 1                      # flat index of output pixel (0, 0)
    span = (hs - 1) * wp + ws          # flat window covering all real outputs
    return wp, p, base, span


def _span_mask(hs, ws):
    """(span, 1) f32 mask: 1 at real output pixels, 0 at inter-row padding."""
    wp, _, base, span = _geom(hs, ws)
    col = (np.arange(span) + base) % wp
    valid = (col >= 1) & (col <= ws)
    return jnp.asarray(valid.astype(np.float32).reshape(span, 1))


def _conv3x3_flat(src, w_ref, wp, span):
    """Direct 3x3/s1 conv: src (P, Cin) ref/array, w_ref (9, Cin, Cout).
    Returns (span, Cout) f32 accumulated over the 9 shifted-window GEMMs."""
    cout = w_ref.shape[2]
    acc = jnp.zeros((span, cout), jnp.float32)
    for dy in range(3):
        for dx in range(3):
            st = dy * wp + dx
            acc += jnp.dot(src[st:st + span, :], w_ref[dy * 3 + dx],
                           preferred_element_type=jnp.float32)
    return acc


# ----------------------------------------------------------------------------
# Fused downsample-block kernel:
#   conv5x5/s2 (as 3x3/s1 on space-to-depth input) + BN + GELU
#   -> conv3x3/s1 + BN + GELU + ReLU  [-> mean over T for the last block]
# One pallas_call per block; the intermediate activation lives in VMEM.
# ----------------------------------------------------------------------------
def _make_ds_block_kernel(hs, ws, pooled, inv_t=None):
    wp, p, base, span = _geom(hs, ws)

    def block_body(x_src, mask, w1_ref, s1_ref, sh1_ref, w2_ref, s2_ref,
                   sh2_ref, hpad_ref):
        # conv1 + folded BN + GELU
        y1 = _conv3x3_flat(x_src, w1_ref, wp, span)
        h = _apply_act(y1 * s1_ref[...] + sh1_ref[...], "gelu") * mask
        # stage h in a zero-padded flat VMEM buffer for conv2
        hpad_ref[...] = jnp.zeros_like(hpad_ref)
        hpad_ref[base:base + span, :] = h.astype(hpad_ref.dtype)
        # conv2 + folded BN + GELU + ReLU
        y2 = _conv3x3_flat(hpad_ref, w2_ref, wp, span)
        return _apply_act(y2 * s2_ref[...] + sh2_ref[...], "gelu_relu")

    if not pooled:
        def kernel(x_ref, mask_ref, w1_ref, s1_ref, sh1_ref, w2_ref, s2_ref,
                   sh2_ref, o_ref, hpad_ref):
            mask = mask_ref[...]
            y2 = block_body(x_ref, mask, w1_ref, s1_ref, sh1_ref,
                            w2_ref, s2_ref, sh2_ref, hpad_ref)
            o_ref[...] = jnp.zeros_like(o_ref)
            o_ref[base:base + span, :] = (y2 * mask).astype(o_ref.dtype)
        return kernel

    def kernel(x_ref, mask_ref, w1_ref, s1_ref, sh1_ref, w2_ref, s2_ref,
               sh2_ref, o_ref, hpad_ref, acc_ref):
        t = pl.program_id(1)
        mask = mask_ref[...]
        y2 = block_body(x_ref, mask, w1_ref, s1_ref, sh1_ref,
                        w2_ref, s2_ref, sh2_ref, hpad_ref)

        @pl.when(t == 0)
        def _():
            acc_ref[...] = jnp.zeros_like(acc_ref)

        acc_ref[...] += y2 * inv_t

        @pl.when(t == pl.num_programs(1) - 1)
        def _():
            o_ref[...] = jnp.zeros_like(o_ref)
            o_ref[base:base + span, :] = (acc_ref[...] * mask).astype(o_ref.dtype)

    return kernel


def ds_block(xf, mask, w1, s1, sh1, w2, s2, sh2, *, hs, ws):
    """xf: (N, P, C1) padded-flat -> (N, P, Cout) padded-flat."""
    n, p, c1 = xf.shape
    cmid, cout = w1.shape[2], w2.shape[2]
    span = mask.shape[0]
    return pl.pallas_call(
        _make_ds_block_kernel(hs, ws, pooled=False),
        out_shape=jax.ShapeDtypeStruct((n, p, cout), jnp.bfloat16),
        grid=(n,),
        in_specs=[
            pl.BlockSpec((None, p, c1), lambda i: (i, 0, 0)),
            pl.BlockSpec((span, 1), lambda i: (0, 0)),
            pl.BlockSpec((9, c1, cmid), lambda i: (0, 0, 0)),
            pl.BlockSpec((1, cmid), lambda i: (0, 0)),
            pl.BlockSpec((1, cmid), lambda i: (0, 0)),
            pl.BlockSpec((9, cmid, cout), lambda i: (0, 0, 0)),
            pl.BlockSpec((1, cout), lambda i: (0, 0)),
            pl.BlockSpec((1, cout), lambda i: (0, 0)),
        ],
        out_specs=pl.BlockSpec((None, p, cout), lambda i: (i, 0, 0)),
        scratch_shapes=[pltpu.VMEM((p, cmid), jnp.bfloat16)],
        compiler_params=pltpu.CompilerParams(
            dimension_semantics=("parallel",),
            vmem_limit_bytes=_vmem_limit_bytes()),
    )(xf, mask, w1, s1, sh1, w2, s2, sh2)


def ds_block_pool(xf, mask, w1, s1, sh1, w2, s2, sh2, *, hs, ws):
    """xf: (B, T, P, C1) padded-flat -> (B, P, Cout) averaged over T."""
    b, t, p, c1 = xf.shape
    cmid, cout = w1.shape[2], w2.shape[2]
    span = mask.shape[0]
    return pl.pallas_call(
        _make_ds_block_kernel(hs, ws, pooled=True, inv_t=1.0 / t),
        out_shape=jax.ShapeDtypeStruct((b, p, cout), jnp.bfloat16),
        grid=(b, t),
        in_specs=[
            pl.BlockSpec((None, None, p, c1), lambda i, j: (i, j, 0, 0)),
            pl.BlockSpec((span, 1), lambda i, j: (0, 0)),
            pl.BlockSpec((9, c1, cmid), lambda i, j: (0, 0, 0)),
            pl.BlockSpec((1, cmid), lambda i, j: (0, 0)),
            pl.BlockSpec((1, cmid), lambda i, j: (0, 0)),
            pl.BlockSpec((9, cmid, cout), lambda i, j: (0, 0, 0)),
            pl.BlockSpec((1, cout), lambda i, j: (0, 0)),
            pl.BlockSpec((1, cout), lambda i, j: (0, 0)),
        ],
        out_specs=pl.BlockSpec((None, p, cout), lambda i, j: (i, 0, 0)),
        scratch_shapes=[pltpu.VMEM((p, cmid), jnp.bfloat16),
                        pltpu.VMEM((span, cout), jnp.float32)],
        compiler_params=pltpu.CompilerParams(
            dimension_semantics=("parallel", "arbitrary"),
            vmem_limit_bytes=_vmem_limit_bytes()),
    )(xf, mask, w1, s1, sh1, w2, s2, sh2)


# ----------------------------------------------------------------------------
# Fused residual layer:  z + Conv1x1(ReLU(Conv3x3(ReLU(z)))) [-> ReLU]
# ----------------------------------------------------------------------------
def _make_res_kernel(hs, ws, final_relu):
    wp, p, base, span = _geom(hs, ws)

    def kernel(z_ref, mask_ref, w3_ref, w1_ref, o_ref):
        mask = mask_ref[...]
        z = z_ref[...]                               # (P, D) bf16, zero padding
        zr = jnp.maximum(z, 0).astype(z.dtype)       # ReLU; padding stays zero
        y1 = _conv3x3_flat(zr, w3_ref, wp, span)     # conv3x3 (bias-free)
        y1 = jnp.maximum(y1, 0.0)
        y2 = jnp.dot(y1.astype(w1_ref.dtype), w1_ref[...],
                     preferred_element_type=jnp.float32)   # conv1x1 (bias-free)
        res = z[base:base + span, :].astype(jnp.float32) + y2 * mask
        if final_relu:
            res = jnp.maximum(res, 0.0)
        o_ref[...] = jnp.zeros_like(o_ref)
        o_ref[base:base + span, :] = res.astype(o_ref.dtype)

    return kernel


def res_block(z, mask, w3, w1x1, *, hs, ws, final_relu):
    b, p, d = z.shape
    r = w3.shape[2]
    span = mask.shape[0]
    return pl.pallas_call(
        _make_res_kernel(hs, ws, final_relu),
        out_shape=jax.ShapeDtypeStruct((b, p, d), jnp.bfloat16),
        grid=(b,),
        in_specs=[
            pl.BlockSpec((None, p, d), lambda i: (i, 0, 0)),
            pl.BlockSpec((span, 1), lambda i: (0, 0)),
            pl.BlockSpec((9, d, r), lambda i: (0, 0, 0)),
            pl.BlockSpec((r, d), lambda i: (0, 0)),
        ],
        out_specs=pl.BlockSpec((None, p, d), lambda i: (i, 0, 0)),
        input_output_aliases={0: 0},
        compiler_params=pltpu.CompilerParams(
            dimension_semantics=("parallel",),
            vmem_limit_bytes=_vmem_limit_bytes()),
    )(z, mask, w3, w1x1)


# ----------------------------------------------------------------------------
# Plain-JAX glue (small, O(activation) layout ops between fused kernels)
# ----------------------------------------------------------------------------
def _s2d(x):
    """(N, H, W, C) -> (N, H//2, W//2, 4C); channel order (row-phase, col-phase, c)."""
    n, h, w, c = x.shape
    x = x.reshape(n, h // 2, 2, w // 2, 2, c)
    x = x.transpose(0, 1, 3, 2, 4, 5)
    return x.reshape(n, h // 2, w // 2, 4 * c)


def _pad_flat(x):
    """(N, h, w, C) -> padded-flat (N, (h+2)*(w+2), C) with zero borders."""
    n, h, w, c = x.shape
    xp = jnp.pad(x, ((0, 0), (1, 1), (1, 1), (0, 0)))
    return xp.reshape(n, (h + 2) * (w + 2), c)


def _unflat_crop(x, h, w):
    """padded-flat (N, (h+2)*(w+2), C) -> (N, h, w, C)."""
    n, _, c = x.shape
    return x.reshape(n, h + 2, w + 2, c)[:, 1:1 + h, 1:1 + w, :]


def _conv5s2_to_s2d_taps(w):
    """(5,5,Cin,Cout) HWIO, stride 2, pad 2 -> (9, 4*Cin, Cout) taps of the
    exactly-equivalent 3x3/stride-1 conv on the space-to-depth input."""
    cin, cout = w.shape[2], w.shape[3]
    wp = jnp.pad(w, ((0, 1), (0, 1), (0, 0), (0, 0)))            # (6,6,Cin,Cout)
    wp = wp.reshape(3, 2, 3, 2, cin, cout).transpose(0, 2, 1, 3, 4, 5)
    return wp.reshape(9, 4 * cin, cout)


def _conv3_taps(w):
    """(3,3,Cin,Cout) HWIO -> (9, Cin, Cout)."""
    return w.reshape(9, w.shape[2], w.shape[3])


def _fold_bn(gamma, beta, conv_bias, eps=1e-5):
    # Inference-mode BN (running_mean=0, running_var=1) fused with conv bias.
    scale = gamma / jnp.sqrt(1.0 + eps)
    shift = beta + conv_bias * scale
    return (scale.reshape(1, -1).astype(jnp.float32),
            shift.reshape(1, -1).astype(jnp.float32))


# ----------------------------------------------------------------------------
# Parameter init (deterministic, synthetic)
# ----------------------------------------------------------------------------
def init_params(key, num_hiddens, num_residual_layers, num_residual_hiddens,
                ds_content):
    params = {"ds": [], "res": []}
    n_keys = 8 * ds_content + 2 * num_residual_layers + 4
    keys = iter(jax.random.split(key, n_keys))
    cin = 3
    for _ in range(ds_content):
        w1 = 0.05 * jax.random.normal(next(keys), (5, 5, cin, num_hiddens), jnp.float32)
        b1 = 0.05 * jax.random.normal(next(keys), (num_hiddens,), jnp.float32)
        g1 = 1.0 + 0.1 * jax.random.normal(next(keys), (num_hiddens,), jnp.float32)
        be1 = 0.1 * jax.random.normal(next(keys), (num_hiddens,), jnp.float32)
        w2 = 0.05 * jax.random.normal(next(keys), (3, 3, num_hiddens, num_hiddens), jnp.float32)
        b2 = 0.05 * jax.random.normal(next(keys), (num_hiddens,), jnp.float32)
        g2 = 1.0 + 0.1 * jax.random.normal(next(keys), (num_hiddens,), jnp.float32)
        be2 = 0.1 * jax.random.normal(next(keys), (num_hiddens,), jnp.float32)
        s1, sh1 = _fold_bn(g1, be1, b1)
        s2, sh2 = _fold_bn(g2, be2, b2)
        params["ds"].append(dict(
            w1=_conv5s2_to_s2d_taps(w1).astype(jnp.bfloat16),
            s1=s1, sh1=sh1,
            w2=_conv3_taps(w2).astype(jnp.bfloat16),
            s2=s2, sh2=sh2))
        cin = num_hiddens
    for _ in range(num_residual_layers):
        w3 = 0.05 * jax.random.normal(
            next(keys), (3, 3, num_hiddens, num_residual_hiddens), jnp.float32)
        w1x1 = 0.05 * jax.random.normal(
            next(keys), (1, 1, num_residual_hiddens, num_hiddens), jnp.float32)
        params["res"].append(
            (_conv3_taps(w3).astype(jnp.bfloat16),
             w1x1.reshape(num_residual_hiddens, num_hiddens).astype(jnp.bfloat16)))
    return params


# ----------------------------------------------------------------------------
# Forward pass (mirrors Encoder_Identity.forward, suf_method='avg_pool')
# ----------------------------------------------------------------------------
@functools.partial(jax.jit, static_argnames=("ds_content", "num_residual_layers"))
def encoder_identity_forward(x_id, params, *, ds_content, num_residual_layers):
    """x_id: [B, T, C, H, W] (PyTorch layout) -> [B, 1, D, H', W']."""
    b, t, c, h, w = x_id.shape
    xs = x_id.reshape(b * t, c, h, w).transpose(0, 2, 3, 1).astype(jnp.bfloat16)

    cur, ch, cw = xs, h, w
    zf = None
    for i in range(ds_content):
        assert ch % 2 == 0 and cw % 2 == 0
        p = params["ds"][i]
        hs, ws = ch // 2, cw // 2
        xf = _pad_flat(_s2d(cur))                       # (N, (hs+2)*(ws+2), 4*Cin)
        mask = _span_mask(hs, ws)
        if i < ds_content - 1:
            of = ds_block(xf, mask, p["w1"], p["s1"], p["sh1"],
                          p["w2"], p["s2"], p["sh2"], hs=hs, ws=ws)
            cur = _unflat_crop(of, hs, ws)
        else:
            # last ds block: fused with the AvgPool1d(T) over the time axis
            xf = xf.reshape(b, t, xf.shape[1], xf.shape[2])
            zf = ds_block_pool(xf, mask, p["w1"], p["s1"], p["sh1"],
                               p["w2"], p["s2"], p["sh2"], hs=hs, ws=ws)
        ch, cw = hs, ws

    # ResidualStack on the padded-flat activation (no glue between layers)
    mask = _span_mask(ch, cw)
    for j in range(num_residual_layers):
        w3, w1x1 = params["res"][j]
        zf = res_block(zf, mask, w3, w1x1, hs=ch, ws=cw,
                       final_relu=(j == num_residual_layers - 1))

    z = _unflat_crop(zf, ch, cw)                        # (B, hs, ws, D)
    # back to PyTorch convention, unsqueeze(1): [B, 1, D, HS, WS]
    return z.astype(jnp.float32).transpose(0, 3, 1, 2)[:, None, :, :, :]


# ----------------------------------------------------------------------------
if __name__ == "__main__":
    B, T, C, H, W = 2, 4, 3, 16, 16
    num_hiddens = 32
    num_residual_layers = 2
    num_residual_hiddens = 16
    ds_content = 2

    key = jax.random.PRNGKey(0)
    kx, kp = jax.random.split(key)
    x_id = jax.random.normal(kx, (B, T, C, H, W), jnp.float32)
    params = init_params(kp, num_hiddens, num_residual_layers,
                         num_residual_hiddens, ds_content)

    out = encoder_identity_forward(
        x_id, params, ds_content=ds_content,
        num_residual_layers=num_residual_layers)
    out = jax.block_until_ready(out)

    expected = (B, 1, num_hiddens, H // (2 ** ds_content), W // (2 ** ds_content))
    assert out.shape == expected, (out.shape, expected)
    assert bool(jnp.all(jnp.isfinite(out)))
    print("KERNEL_OK")
</pallas_src>

<mosaic_0001>
module attributes {stable_mosaic.version = 11 : i64} {
  func.func @kernel(%arg0: i32, %arg1: memref<1x100x12xbf16, #tpu.memory_space<vmem>>, %arg2: memref<78x1xf32, #tpu.memory_space<vmem>>, %arg3: memref<9x12x32xbf16, #tpu.memory_space<vmem>>, %arg4: memref<1x32xf32, #tpu.memory_space<vmem>>, %arg5: memref<1x32xf32, #tpu.memory_space<vmem>>, %arg6: memref<9x32x32xbf16, #tpu.memory_space<vmem>>, %arg7: memref<1x32xf32, #tpu.memory_space<vmem>>, %arg8: memref<1x32xf32, #tpu.memory_space<vmem>>, %arg9: memref<1x100x32xbf16, #tpu.memory_space<vmem>>, %arg10: memref<100x32xbf16, #tpu.memory_space<vmem>>) attributes {dimension_semantics = [#tpu.dimension_semantics<parallel>], iteration_bounds = array<i64: 8>, scalar_prefetch = 0 : i64, scratch_operands = 1 : i64, tpu.core_type = #tpu.core_type<tc>, window_params = [{transform_indices = @transform_0, window_bounds = array<i64: 1, 100, 12>}, {pipeline_mode = #tpu.pipeline_mode<synchronous>, transform_indices = @transform_1, window_bounds = array<i64: 78, 1>}, {pipeline_mode = #tpu.pipeline_mode<synchronous>, transform_indices = @transform_2, window_bounds = array<i64: 9, 12, 32>}, {pipeline_mode = #tpu.pipeline_mode<synchronous>, transform_indices = @transform_3, window_bounds = array<i64: 1, 32>}, {pipeline_mode = #tpu.pipeline_mode<synchronous>, transform_indices = @transform_4, window_bounds = array<i64: 1, 32>}, {pipeline_mode = #tpu.pipeline_mode<synchronous>, transform_indices = @transform_5, window_bounds = array<i64: 9, 32, 32>}, {pipeline_mode = #tpu.pipeline_mode<synchronous>, transform_indices = @transform_6, window_bounds = array<i64: 1, 32>}, {pipeline_mode = #tpu.pipeline_mode<synchronous>, transform_indices = @transform_7, window_bounds = array<i64: 1, 32>}, {transform_indices = @transform_8, window_bounds = array<i64: 1, 100, 32>}]} {
    %c0 = arith.constant 0 : index
    %c0_0 = arith.constant 0 : index
    %0 = vector.load %arg2[%c0, %c0_0] : memref<78x1xf32, #tpu.memory_space<vmem>>, vector<78x1xf32>
    %cst = arith.constant 0.000000e+00 : f32
    %1 = vector.broadcast %cst : f32 to vector<78x32xf32>
    %c0_1 = arith.constant 0 : index
    %c0_2 = arith.constant 0 : index
    %c0_3 = arith.constant 0 : index
    %2 = vector.load %arg1[%c0_1, %c0_2, %c0_3] : memref<1x100x12xbf16, #tpu.memory_space<vmem>>, vector<1x78x12xbf16>
    %3 = vector.shape_cast %2 : vector<1x78x12xbf16> to vector<78x12xbf16>
    %c0_4 = arith.constant 0 : index
    %c0_5 = arith.constant 0 : index
    %c0_6 = arith.constant 0 : index
    %4 = vector.load %arg3[%c0_4, %c0_5, %c0_6] : memref<9x12x32xbf16, #tpu.memory_space<vmem>>, vector<1x12x32xbf16>
    %5 = vector.shape_cast %4 : vector<1x12x32xbf16> to vector<12x32xbf16>
    %cst_7 = arith.constant dense<0.000000e+00> : vector<78x32xf32>
    %6 = tpu.matmul %3, %5, %cst_7 {dimension_numbers = #tpu.dot_dimension_numbers<[1], [0], [0], [1], [0, 0, 1, 1], [], []>} : vector<78x12xbf16>, vector<12x32xbf16>, vector<78x32xf32> -> vector<78x32xf32>
    %7 = arith.addf %1, %6 : vector<78x32xf32>
    %c0_8 = arith.constant 0 : index
    %c1 = arith.constant 1 : index
    %c0_9 = arith.constant 0 : index
    %8 = vector.load %arg1[%c0_8, %c1, %c0_9] : memref<1x100x12xbf16, #tpu.memory_space<vmem>>, vector<1x78x12xbf16>
    %9 = vector.shape_cast %8 : vector<1x78x12xbf16> to vector<78x12xbf16>
    %c1_10 = arith.constant 1 : index
    %c0_11 = arith.constant 0 : index
    %c0_12 = arith.constant 0 : index
    %10 = vector.load %arg3[%c1_10, %c0_11, %c0_12] : memref<9x12x32xbf16, #tpu.memory_space<vmem>>, vector<1x12x32xbf16>
    %11 = vector.shape_cast %10 : vector<1x12x32xbf16> to vector<12x32xbf16>
    %cst_13 = arith.constant dense<0.000000e+00> : vector<78x32xf32>
    %12 = tpu.matmul %9, %11, %cst_13 {dimension_numbers = #tpu.dot_dimension_numbers<[1], [0], [0], [1], [0, 0, 1, 1], [], []>} : vector<78x12xbf16>, vector<12x32xbf16>, vector<78x32xf32> -> vector<78x32xf32>
    %13 = arith.addf %7, %12 : vector<78x32xf32>
    %c0_14 = arith.constant 0 : index
    %c2 = arith.constant 2 : index
    %c0_15 = arith.constant 0 : index
    %14 = vector.load %arg1[%c0_14, %c2, %c0_15] : memref<1x100x12xbf16, #tpu.memory_space<vmem>>, vector<1x78x12xbf16>
    %15 = vector.shape_cast %14 : vector<1x78x12xbf16> to vector<78x12xbf16>
    %c2_16 = arith.constant 2 : index
    %c0_17 = arith.constant 0 : index
    %c0_18 = arith.constant 0 : index
    %16 = vector.load %arg3[%c2_16, %c0_17, %c0_18] : memref<9x12x32xbf16, #tpu.memory_space<vmem>>, vector<1x12x32xbf16>
    %17 = vector.shape_cast %16 : vector<1x12x32xbf16> to vector<12x32xbf16>
    %cst_19 = arith.constant dense<0.000000e+00> : vector<78x32xf32>
    %18 = tpu.matmul %15, %17, %cst_19 {dimension_numbers = #tpu.dot_dimension_numbers<[1], [0], [0], [1], [0, 0, 1, 1], [], []>} : vector<78x12xbf16>, vector<12x32xbf16>, vector<78x32xf32> -> vector<78x32xf32>
    %19 = arith.addf %13, %18 : vector<78x32xf32>
    %c0_20 = arith.constant 0 : index
    %c10 = arith.constant 10 : index
    %c0_21 = arith.constant 0 : index
    %20 = vector.load %arg1[%c0_20, %c10, %c0_21] : memref<1x100x12xbf16, #tpu.memory_space<vmem>>, vector<1x78x12xbf16>
    %21 = vector.shape_cast %20 : vector<1x78x12xbf16> to vector<78x12xbf16>
    %c3 = arith.constant 3 : index
    %c0_22 = arith.constant 0 : index
    %c0_23 = arith.constant 0 : index
    %22 = vector.load %arg3[%c3, %c0_22, %c0_23] : memref<9x12x32xbf16, #tpu.memory_space<vmem>>, vector<1x12x32xbf16>
    %23 = vector.shape_cast %22 : vector<1x12x32xbf16> to vector<12x32xbf16>
    %cst_24 = arith.constant dense<0.000000e+00> : vector<78x32xf32>
    %24 = tpu.matmul %21, %23, %cst_24 {dimension_numbers = #tpu.dot_dimension_numbers<[1], [0], [0], [1], [0, 0, 1, 1], [], []>} : vector<78x12xbf16>, vector<12x32xbf16>, vector<78x32xf32> -> vector<78x32xf32>
    %25 = arith.addf %19, %24 : vector<78x32xf32>
    %c0_25 = arith.constant 0 : index
    %c11 = arith.constant 11 : index
    %c0_26 = arith.constant 0 : index
    %26 = vector.load %arg1[%c0_25, %c11, %c0_26] : memref<1x100x12xbf16, #tpu.memory_space<vmem>>, vector<1x78x12xbf16>
    %27 = vector.shape_cast %26 : vector<1x78x12xbf16> to vector<78x12xbf16>
    %c4 = arith.constant 4 : index
    %c0_27 = arith.constant 0 : index
    %c0_28 = arith.constant 0 : index
    %28 = vector.load %arg3[%c4, %c0_27, %c0_28] : memref<9x12x32xbf16, #tpu.memory_space<vmem>>, vector<1x12x32xbf16>
    %29 = vector.shape_cast %28 : vector<1x12x32xbf16> to vector<12x32xbf16>
    %cst_29 = arith.constant dense<0.000000e+00> : vector<78x32xf32>
    %30 = tpu.matmul %27, %29, %cst_29 {dimension_numbers = #tpu.dot_dimension_numbers<[1], [0], [0], [1], [0, 0, 1, 1], [], []>} : vector<78x12xbf16>, vector<12x32xbf16>, vector<78x32xf32> -> vector<78x32xf32>
    %31 = arith.addf %25, %30 : vector<78x32xf32>
    %c0_30 = arith.constant 0 : index
    %c12 = arith.constant 12 : index
    %c0_31 = arith.constant 0 : index
    %32 = vector.load %arg1[%c0_30, %c12, %c0_31] : memref<1x100x12xbf16, #tpu.memory_space<vmem>>, vector<1x78x12xbf16>
    %33 = vector.shape_cast %32 : vector<1x78x12xbf16> to vector<78x12xbf16>
    %c5 = arith.constant 5 : index
    %c0_32 = arith.constant 0 : index
    %c0_33 = arith.constant 0 : index
    %34 = vector.load %arg3[%c5, %c0_32, %c0_33] : memref<9x12x32xbf16, #tpu.memory_space<vmem>>, vector<1x12x32xbf16>
    %35 = vector.shape_cast %34 : vector<1x12x32xbf16> to vector<12x32xbf16>
    %cst_34 = arith.constant dense<0.000000e+00> : vector<78x32xf32>
    %36 = tpu.matmul %33, %35, %cst_34 {dimension_numbers = #tpu.dot_dimension_numbers<[1], [0], [0], [1], [0, 0, 1, 1], [], []>} : vector<78x12xbf16>, vector<12x32xbf16>, vector<78x32xf32> -> vector<78x32xf32>
    %37 = arith.addf %31, %36 : vector<78x32xf32>
    %c0_35 = arith.constant 0 : index
    %c20 = arith.constant 20 : index
    %c0_36 = arith.constant 0 : index
    %38 = vector.load %arg1[%c0_35, %c20, %c0_36] : memref<1x100x12xbf16, #tpu.memory_space<vmem>>, vector<1x78x12xbf16>
    %39 = vector.shape_cast %38 : vector<1x78x12xbf16> to vector<78x12xbf16>
    %c6 = arith.constant 6 : index
    %c0_37 = arith.constant 0 : index
    %c0_38 = arith.constant 0 : index
    %40 = vector.load %arg3[%c6, %c0_37, %c0_38] : memref<9x12x32xbf16, #tpu.memory_space<vmem>>, vector<1x12x32xbf16>
    %41 = vector.shape_cast %40 : vector<1x12x32xbf16> to vector<12x32xbf16>
    %cst_39 = arith.constant dense<0.000000e+00> : vector<78x32xf32>
    %42 = tpu.matmul %39, %41, %cst_39 {dimension_numbers = #tpu.dot_dimension_numbers<[1], [0], [0], [1], [0, 0, 1, 1], [], []>} : vector<78x12xbf16>, vector<12x32xbf16>, vector<78x32xf32> -> vector<78x32xf32>
    %43 = arith.addf %37, %42 : vector<78x32xf32>
    %c0_40 = arith.constant 0 : index
    %c21 = arith.constant 21 : index
    %c0_41 = arith.constant 0 : index
    %44 = vector.load %arg1[%c0_40, %c21, %c0_41] : memref<1x100x12xbf16, #tpu.memory_space<vmem>>, vector<1x78x12xbf16>
    %45 = vector.shape_cast %44 : vector<1x78x12xbf16> to vector<78x12xbf16>
    %c7 = arith.constant 7 : index
    %c0_42 = arith.constant 0 : index
    %c0_43 = arith.constant 0 : index
    %46 = vector.load %arg3[%c7, %c0_42, %c0_43] : memref<9x12x32xbf16, #tpu.memory_space<vmem>>, vector<1x12x32xbf16>
    %47 = vector.shape_cast %46 : vector<1x12x32xbf16> to vector<12x32xbf16>
    %cst_44 = arith.constant dense<0.000000e+00> : vector<78x32xf32>
    %48 = tpu.matmul %45, %47, %cst_44 {dimension_numbers = #tpu.dot_dimension_numbers<[1], [0], [0], [1], [0, 0, 1, 1], [], []>} : vector<78x12xbf16>, vector<12x32xbf16>, vector<78x32xf32> -> vector<78x32xf32>
    %49 = arith.addf %43, %48 : vector<78x32xf32>
    %c0_45 = arith.constant 0 : index
    %c22 = arith.constant 22 : index
    %c0_46 = arith.constant 0 : index
    %50 = vector.load %arg1[%c0_45, %c22, %c0_46] : memref<1x100x12xbf16, #tpu.memory_space<vmem>>, vector<1x78x12xbf16>
    %51 = vector.shape_cast %50 : vector<1x78x12xbf16> to vector<78x12xbf16>
    %c8 = arith.constant 8 : index
    %c0_47 = arith.constant 0 : index
    %c0_48 = arith.constant 0 : index
    %52 = vector.load %arg3[%c8, %c0_47, %c0_48] : memref<9x12x32xbf16, #tpu.memory_space<vmem>>, vector<1x12x32xbf16>
    %53 = vector.shape_cast %52 : vector<1x12x32xbf16> to vector<12x32xbf16>
    %cst_49 = arith.constant dense<0.000000e+00> : vector<78x32xf32>
    %54 = tpu.matmul %51, %53, %cst_49 {dimension_numbers = #tpu.dot_dimension_numbers<[1], [0], [0], [1], [0, 0, 1, 1], [], []>} : vector<78x12xbf16>, vector<12x32xbf16>, vector<78x32xf32> -> vector<78x32xf32>
    %55 = arith.addf %49, %54 : vector<78x32xf32>
    %c0_50 = arith.constant 0 : index
    %c0_51 = arith.constant 0 : index
    %56 = vector.load %arg4[%c0_50, %c0_51] : memref<1x32xf32, #tpu.memory_space<vmem>>, vector<1x32xf32>
    %57 = vector.broadcast %56 : vector<1x32xf32> to vector<78x32xf32>
    %58 = arith.mulf %55, %57 : vector<78x32xf32>
    %c0_52 = arith.constant 0 : index
    %c0_53 = arith.constant 0 : index
    %59 = vector.load %arg5[%c0_52, %c0_53] : memref<1x32xf32, #tpu.memory_space<vmem>>, vector<1x32xf32>
    %60 = vector.broadcast %59 : vector<1x32xf32> to vector<78x32xf32>
    %61 = arith.addf %58, %60 : vector<78x32xf32>
    %cst_54 = arith.constant 5.000000e-01 : f32
    %62 = vector.broadcast %cst_54 : f32 to vector<78x32xf32>
    %63 = arith.mulf %62, %61 : vector<78x32xf32>
    %cst_55 = arith.constant 4.471500e-02 : f32
    %64 = vector.broadcast %cst_55 : f32 to vector<78x32xf32>
    %65 = arith.mulf %64, %61 : vector<78x32xf32>
    %66 = arith.mulf %65, %61 : vector<78x32xf32>
    %67 = arith.mulf %66, %61 : vector<78x32xf32>
    %68 = arith.addf %61, %67 : vector<78x32xf32>
    %cst_56 = arith.constant 0.797884583 : f32
    %69 = vector.broadcast %cst_56 : f32 to vector<78x32xf32>
    %70 = arith.mulf %69, %68 : vector<78x32xf32>
    %71 = math.tanh %70 : vector<78x32xf32>
    %cst_57 = arith.constant 1.000000e+00 : f32
    %72 = vector.broadcast %cst_57 : f32 to vector<78x32xf32>
    %73 = arith.addf %72, %71 : vector<78x32xf32>
    %74 = arith.mulf %63, %73 : vector<78x32xf32>
    %75 = vector.broadcast %0 : vector<78x1xf32> to vector<78x32xf32>
    %76 = arith.mulf %74, %75 : vector<78x32xf32>
    %cst_58 = arith.constant 0.000000e+00 : bf16
    %77 = vector.broadcast %cst_58 : bf16 to vector<100x32xbf16>
    %c0_59 = arith.constant 0 : index
    %c0_60 = arith.constant 0 : index
    %78 = vector.load %arg10[%c0_59, %c0_60] : memref<100x32xbf16, #tpu.memory_space<vmem>>, vector<100x32xbf16>
    tpu.vector_store %arg10[%c0_59, %c0_60], %77 {strides = array<i32>} : memref<100x32xbf16, #tpu.memory_space<vmem>>, vector<100x32xbf16>,
    %79 = arith.truncf %76 : vector<78x32xf32> to vector<78x32xbf16>
    %c11_61 = arith.constant 11 : index
    %c0_62 = arith.constant 0 : index
    %80 = vector.load %arg10[%c11_61, %c0_62] : memref<100x32xbf16, #tpu.memory_space<vmem>>, vector<78x32xbf16>
    tpu.vector_store %arg10[%c11_61, %c0_62], %79 {strides = array<i32>} : memref<100x32xbf16, #tpu.memory_space<vmem>>, vector<78x32xbf16>,
    %cst_63 = arith.constant 0.000000e+00 : f32
    %81 = vector.broadcast %cst_63 : f32 to vector<78x32xf32>
    %c0_64 = arith.constant 0 : index
    %c0_65 = arith.constant 0 : index
    %82 = vector.load %arg10[%c0_64, %c0_65] : memref<100x32xbf16, #tpu.memory_space<vmem>>, vector<78x32xbf16>
    %c0_66 = arith.constant 0 : index
    %c0_67 = arith.constant 0 : index
    %c0_68 = arith.constant 0 : index
    %83 = vector.load %arg6[%c0_66, %c0_67, %c0_68] : memref<9x32x32xbf16, #tpu.memory_space<vmem>>, vector<1x32x32xbf16>
    %84 = vector.shape_cast %83 : vector<1x32x32xbf16> to vector<32x32xbf16>
    %cst_69 = arith.constant dense<0.000000e+00> : vector<78x32xf32>
    %85 = tpu.matmul %82, %84, %cst_69 {dimension_numbers = #tpu.dot_dimension_numbers<[1], [0], [0], [1], [0, 0, 1, 1], [], []>} : vector<78x32xbf16>, vector<32x32xbf16>, vector<78x32xf32> -> vector<78x32xf32>
    %86 = arith.addf %81, %85 : vector<78x32xf32>
    %c1_70 = arith.constant 1 : index
    %c0_71 = arith.constant 0 : index
    %87 = vector.load %arg10[%c1_70, %c0_71] : memref<100x32xbf16, #tpu.memory_space<vmem>>, vector<78x32xbf16>
    %c1_72 = arith.constant 1 : index
    %c0_73 = arith.constant 0 : index
    %c0_74 = arith.constant 0 : index
    %88 = vector.load %arg6[%c1_72, %c0_73, %c0_74] : memref<9x32x32xbf16, #tpu.memory_space<vmem>>, vector<1x32x32xbf16>
    %89 = vector.shape_cast %88 : vector<1x32x32xbf16> to vector<32x32xbf16>
    %cst_75 = arith.constant dense<0.000000e+00> : vector<78x32xf32>
    %90 = tpu.matmul %87, %89, %cst_75 {dimension_numbers = #tpu.dot_dimension_numbers<[1], [0], [0], [1], [0, 0, 1, 1], [], []>} : vector<78x32xbf16>, vector<32x32xbf16>, vector<78x32xf32> -> vector<78x32xf32>
    %91 = arith.addf %86, %90 : vector<78x32xf32>
    %c2_76 = arith.constant 2 : index
    %c0_77 = arith.constant 0 : index
    %92 = vector.load %arg10[%c2_76, %c0_77] : memref<100x32xbf16, #tpu.memory_space<vmem>>, vector<78x32xbf16>
    %c2_78 = arith.constant 2 : index
    %c0_79 = arith.constant 0 : index
    %c0_80 = arith.constant 0 : index
    %93 = vector.load %arg6[%c2_78, %c0_79, %c0_80] : memref<9x32x32xbf16, #tpu.memory_space<vmem>>, vector<1x32x32xbf16>
    %94 = vector.shape_cast %93 : vector<1x32x32xbf16> to vector<32x32xbf16>
    %cst_81 = arith.constant dense<0.000000e+00> : vector<78x32xf32>
    %95 = tpu.matmul %92, %94, %cst_81 {dimension_numbers = #tpu.dot_dimension_numbers<[1], [0], [0], [1], [0, 0, 1, 1], [], []>} : vector<78x32xbf16>, vector<32x32xbf16>, vector<78x32xf32> -> vector<78x32xf32>
    %96 = arith.addf %91, %95 : vector<78x32xf32>
    %c10_82 = arith.constant 10 : index
    %c0_83 = arith.constant 0 : index
    %97 = vector.load %arg10[%c10_82, %c0_83] : memref<100x32xbf16, #tpu.memory_space<vmem>>, vector<78x32xbf16>
    %c3_84 = arith.constant 3 : index
    %c0_85 = arith.constant 0 : index
    %c0_86 = arith.constant 0 : index
    %98 = vector.load %arg6[%c3_84, %c0_85, %c0_86] : memref<9x32x32xbf16, #tpu.memory_space<vmem>>, vector<1x32x32xbf16>
    %99 = vector.shape_cast %98 : vector<1x32x32xbf16> to vector<32x32xbf16>
    %cst_87 = arith.constant dense<0.000000e+00> : vector<78x32xf32>
    %100 = tpu.matmul %97, %99, %cst_87 {dimension_numbers = #tpu.dot_dimension_numbers<[1], [0], [0], [1], [0, 0, 1, 1], [], []>} : vector<78x32xbf16>, vector<32x32xbf16>, vector<78x32xf32> -> vector<78x32xf32>
    %101 = arith.addf %96, %100 : vector<78x32xf32>
    %c11_88 = arith.constant 11 : index
    %c0_89 = arith.constant 0 : index
    %102 = vector.load %arg10[%c11_88, %c0_89] : memref<100x32xbf16, #tpu.memory_space<vmem>>, vector<78x32xbf16>
    %c4_90 = arith.constant 4 : index
    %c0_91 = arith.constant 0 : index
    %c0_92 = arith.constant 0 : index
    %103 = vector.load %arg6[%c4_90, %c0_91, %c0_92] : memref<9x32x32xbf16, #tpu.memory_space<vmem>>, vector<1x32x32xbf16>
    %104 = vector.shape_cast %103 : vector<1x32x32xbf16> to vector<32x32xbf16>
    %cst_93 = arith.constant dense<0.000000e+00> : vector<78x32xf32>
    %105 = tpu.matmul %102, %104, %cst_93 {dimension_numbers = #tpu.dot_dimension_numbers<[1], [0], [0], [1], [0, 0, 1, 1], [], []>} : vector<78x32xbf16>, vector<32x32xbf16>, vector<78x32xf32> -> vector<78x32xf32>
    %106 = arith.addf %101, %105 : vector<78x32xf32>
    %c12_94 = arith.constant 12 : index
    %c0_95 = arith.constant 0 : index
    %107 = vector.load %arg10[%c12_94, %c0_95] : memref<100x32xbf16, #tpu.memory_space<vmem>>, vector<78x32xbf16>
    %c5_96 = arith.constant 5 : index
    %c0_97 = arith.constant 0 : index
    %c0_98 = arith.constant 0 : index
    %108 = vector.load %arg6[%c5_96, %c0_97, %c0_98] : memref<9x32x32xbf16, #tpu.memory_space<vmem>>, vector<1x32x32xbf16>
    %109 = vector.shape_cast %108 : vector<1x32x32xbf16> to vector<32x32xbf16>
    %cst_99 = arith.constant dense<0.000000e+00> : vector<78x32xf32>
    %110 = tpu.matmul %107, %109, %cst_99 {dimension_numbers = #tpu.dot_dimension_numbers<[1], [0], [0], [1], [0, 0, 1, 1], [], []>} : vector<78x32xbf16>, vector<32x32xbf16>, vector<78x32xf32> -> vector<78x32xf32>
    %111 = arith.addf %106, %110 : vector<78x32xf32>
    %c20_100 = arith.constant 20 : index
    %c0_101 = arith.constant 0 : index
    %112 = vector.load %arg10[%c20_100, %c0_101] : memref<100x32xbf16, #tpu.memory_space<vmem>>, vector<78x32xbf16>
    %c6_102 = arith.constant 6 : index
    %c0_103 = arith.constant 0 : index
    %c0_104 = arith.constant 0 : index
    %113 = vector.load %arg6[%c6_102, %c0_103, %c0_104] : memref<9x32x32xbf16, #tpu.memory_space<vmem>>, vector<1x32x32xbf16>
    %114 = vector.shape_cast %113 : vector<1x32x32xbf16> to vector<32x32xbf16>
    %cst_105 = arith.constant dense<0.000000e+00> : vector<78x32xf32>
    %115 = tpu.matmul %112, %114, %cst_105 {dimension_numbers = #tpu.dot_dimension_numbers<[1], [0], [0], [1], [0, 0, 1, 1], [], []>} : vector<78x32xbf16>, vector<32x32xbf16>, vector<78x32xf32> -> vector<78x32xf32>
    %116 = arith.addf %111, %115 : vector<78x32xf32>
    %c21_106 = arith.constant 21 : index
    %c0_107 = arith.constant 0 : index
    %117 = vector.load %arg10[%c21_106, %c0_107] : memref<100x32xbf16, #tpu.memory_space<vmem>>, vector<78x32xbf16>
    %c7_108 = arith.constant 7 : index
    %c0_109 = arith.constant 0 : index
    %c0_110 = arith.constant 0 : index
    %118 = vector.load %arg6[%c7_108, %c0_109, %c0_110] : memref<9x32x32xbf16, #tpu.memory_space<vmem>>, vector<1x32x32xbf16>
    %119 = vector.shape_cast %118 : vector<1x32x32xbf16> to vector<32x32xbf16>
    %cst_111 = arith.constant dense<0.000000e+00> : vector<78x32xf32>
    %120 = tpu.matmul %117, %119, %cst_111 {dimension_numbers = #tpu.dot_dimension_numbers<[1], [0], [0], [1], [0, 0, 1, 1], [], []>} : vector<78x32xbf16>, vector<32x32xbf16>, vector<78x32xf32> -> vector<78x32xf32>
    %121 = arith.addf %116, %120 : vector<78x32xf32>
    %c22_112 = arith.constant 22 : index
    %c0_113 = arith.constant 0 : index
    %122 = vector.load %arg10[%c22_112, %c0_113] : memref<100x32xbf16, #tpu.memory_space<vmem>>, vector<78x32xbf16>
    %c8_114 = arith.constant 8 : index
    %c0_115 = arith.constant 0 : index
    %c0_116 = arith.constant 0 : index
    %123 = vector.load %arg6[%c8_114, %c0_115, %c0_116] : memref<9x32x32xbf16, #tpu.memory_space<vmem>>, vector<1x32x32xbf16>
    %124 = vector.shape_cast %123 : vector<1x32x32xbf16> to vector<32x32xbf16>
    %cst_117 = arith.constant dense<0.000000e+00> : vector<78x32xf32>
    %125 = tpu.matmul %122, %124, %cst_117 {dimension_numbers = #tpu.dot_dimension_numbers<[1], [0], [0], [1], [0, 0, 1, 1], [], []>} : vector<78x32xbf16>, vector<32x32xbf16>, vector<78x32xf32> -> vector<78x32xf32>
    %126 = arith.addf %121, %125 : vector<78x32xf32>
    %c0_118 = arith.constant 0 : index
    %c0_119 = arith.constant 0 : index
    %127 = vector.load %arg7[%c0_118, %c0_119] : memref<1x32xf32, #tpu.memory_space<vmem>>, vector<1x32xf32>
    %128 = vector.broadcast %127 : vector<1x32xf32> to vector<78x32xf32>
    %129 = arith.mulf %126, %128 : vector<78x32xf32>
    %c0_120 = arith.constant 0 : index
    %c0_121 = arith.constant 0 : index
    %130 = vector.load %arg8[%c0_120, %c0_121] : memref<1x32xf32, #tpu.memory_space<vmem>>, vector<1x32xf32>
    %131 = vector.broadcast %130 : vector<1x32xf32> to vector<78x32xf32>
    %132 = arith.addf %129, %131 : vector<78x32xf32>
    %cst_122 = arith.constant 5.000000e-01 : f32
    %133 = vector.broadcast %cst_122 : f32 to vector<78x32xf32>
    %134 = arith.mulf %133, %132 : vector<78x32xf32>
    %cst_123 = arith.constant 4.471500e-02 : f32
    %135 = vector.broadcast %cst_123 : f32 to vector<78x32xf32>
    %136 = arith.mulf %135, %132 : vector<78x32xf32>
    %137 = arith.mulf %136, %132 : vector<78x32xf32>
    %138 = arith.mulf %137, %132 : vector<78x32xf32>
    %139 = arith.addf %132, %138 : vector<78x32xf32>
    %cst_124 = arith.constant 0.797884583 : f32
    %140 = vector.broadcast %cst_124 : f32 to vector<78x32xf32>
    %141 = arith.mulf %140, %139 : vector<78x32xf32>
    %142 = math.tanh %141 : vector<78x32xf32>
    %cst_125 = arith.constant 1.000000e+00 : f32
    %143 = vector.broadcast %cst_125 : f32 to vector<78x32xf32>
    %144 = arith.addf %143, %142 : vector<78x32xf32>
    %145 = arith.mulf %134, %144 : vector<78x32xf32>
    %cst_126 = arith.constant 0.000000e+00 : f32
    %146 = vector.broadcast %cst_126 : f32 to vector<78x32xf32>
    %147 = arith.maximumf %145, %146 : vector<78x32xf32>
    %cst_127 = arith.constant 0.000000e+00 : bf16
    %148 = vector.broadcast %cst_127 : bf16 to vector<100x32xbf16>
    %c0_128 = arith.constant 0 : index
    %c0_129 = arith.constant 0 : index
    %c0_130 = arith.constant 0 : index
    %149 = vector.load %arg9[%c0_128, %c0_129, %c0_130] : memref<1x100x32xbf16, #tpu.memory_space<vmem>>, vector<1x100x32xbf16>
    %150 = vector.shape_cast %149 : vector<1x100x32xbf16> to vector<100x32xbf16>
    %151 = vector.shape_cast %148 : vector<100x32xbf16> to vector<1x100x32xbf16>
    tpu.vector_store %arg9[%c0_128, %c0_129, %c0_130], %151 {strides = array<i32>} : memref<1x100x32xbf16, #tpu.memory_space<vmem>>, vector<1x100x32xbf16>,
    %152 = vector.broadcast %0 : vector<78x1xf32> to vector<78x32xf32>
    %153 = arith.mulf %147, %152 : vector<78x32xf32>
    %154 = arith.truncf %153 : vector<78x32xf32> to vector<78x32xbf16>
    %c0_131 = arith.constant 0 : index
    %c11_132 = arith.constant 11 : index
    %c0_133 = arith.constant 0 : index
    %155 = vector.load %arg9[%c0_131, %c11_132, %c0_133] : memref<1x100x32xbf16, #tpu.memory_space<vmem>>, vector<1x78x32xbf16>
    %156 = vector.shape_cast %155 : vector<1x78x32xbf16> to vector<78x32xbf16>
    %157 = vector.shape_cast %154 : vector<78x32xbf16> to vector<1x78x32xbf16>
    tpu.vector_store %arg9[%c0_131, %c11_132, %c0_133], %157 {strides = array<i32>} : memref<1x100x32xbf16, #tpu.memory_space<vmem>>, vector<1x78x32xbf16>,
    return
  }
  func.func @transform_0(%arg0: i32) -> (i32, i32, i32) {
    %c0_i32 = arith.constant 0 : i32
    %c0_i32_0 = arith.constant 0 : i32
    %c0_i32_1 = arith.constant 0 : i32
    return %arg0, %c0_i32, %c0_i32_0 : i32, i32, i32
  }
  func.func @transform_1(%arg0: i32) -> (i32, i32) {
    %c0_i32 = arith.constant 0 : i32
    %c0_i32_0 = arith.constant 0 : i32
    %c0_i32_1 = arith.constant 0 : i32
    return %c0_i32, %c0_i32_0 : i32, i32
  }
  func.func @transform_2(%arg0: i32) -> (i32, i32, i32) {
    %c0_i32 = arith.constant 0 : i32
    %c0_i32_0 = arith.constant 0 : i32
    %c0_i32_1 = arith.constant 0 : i32
    %c0_i32_2 = arith.constant 0 : i32
    return %c0_i32, %c0_i32_0, %c0_i32_1 : i32, i32, i32
  }
  func.func @transform_3(%arg0: i32) -> (i32, i32) {
    %c0_i32 = arith.constant 0 : i32
    %c0_i32_0 = arith.constant 0 : i32
    %c0_i32_1 = arith.constant 0 : i32
    return %c0_i32, %c0_i32_0 : i32, i32
  }
  func.func @transform_4(%arg0: i32) -> (i32, i32) {
    %c0_i32 = arith.constant 0 : i32
    %c0_i32_0 = arith.constant 0 : i32
    %c0_i32_1 = arith.constant 0 : i32
    return %c0_i32, %c0_i32_0 : i32, i32
  }
  func.func @transform_5(%arg0: i32) -> (i32, i32, i32) {
    %c0_i32 = arith.constant 0 : i32
    %c0_i32_0 = arith.constant 0 : i32
    %c0_i32_1 = arith.constant 0 : i32
    %c0_i32_2 = arith.constant 0 : i32
    return %c0_i32, %c0_i32_0, %c0_i32_1 : i32, i32, i32
  }
  func.func @transform_6(%arg0: i32) -> (i32, i32) {
    %c0_i32 = arith.constant 0 : i32
    %c0_i32_0 = arith.constant 0 : i32
    %c0_i32_1 = arith.constant 0 : i32
    return %c0_i32, %c0_i32_0 : i32, i32
  }
  func.func @transform_7(%arg0: i32) -> (i32, i32) {
    %c0_i32 = arith.constant 0 : i32
    %c0_i32_0 = arith.constant 0 : i32
    %c0_i32_1 = arith.constant 0 : i32
    return %c0_i32, %c0_i32_0 : i32, i32
  }
  func.func @transform_8(%arg0: i32) -> (i32, i32, i32) {
    %c0_i32 = arith.constant 0 : i32
    %c0_i32_0 = arith.constant 0 : i32
    %c0_i32_1 = arith.constant 0 : i32
    return %arg0, %c0_i32, %c0_i32_0 : i32, i32, i32
  }
}

module attributes {stable_mosaic.version = 11 : i64} {
  func.func @kernel(%arg0: i32, %arg1: i32, %arg2: memref<1x1x36x128xbf16, #tpu.memory_space<vmem>>, %arg3: memref<22x1xf32, #tpu.memory_space<vmem>>, %arg4: memref<9x128x32xbf16, #tpu.memory_space<vmem>>, %arg5: memref<1x32xf32, #tpu.memory_space<vmem>>, %arg6: memref<1x32xf32, #tpu.memory_space<vmem>>, %arg7: memref<9x32x32xbf16, #tpu.memory_space<vmem>>, %arg8: memref<1x32xf32, #tpu.memory_space<vmem>>, %arg9: memref<1x32xf32, #tpu.memory_space<vmem>>, %arg10: memref<1x36x32xbf16, #tpu.memory_space<vmem>>, %arg11: memref<36x32xbf16, #tpu.memory_space<vmem>>, %arg12: memref<22x32xf32, #tpu.memory_space<vmem>>) attributes {dimension_semantics = [#tpu.dimension_semantics<parallel>, #tpu.dimension_semantics<arbitrary>], iteration_bounds = array<i64: 2, 4>, scalar_prefetch = 0 : i64, scratch_operands = 2 : i64, tpu.core_type = #tpu.core_type<tc>, window_params = [{transform_indices = @transform_0, window_bounds = array<i64: 1, 1, 36, 128>}, {pipeline_mode = #tpu.pipeline_mode<synchronous>, transform_indices = @transform_1, window_bounds = array<i64: 22, 1>}, {pipeline_mode = #tpu.pipeline_mode<synchronous>, transform_indices = @transform_2, window_bounds = array<i64: 9, 128, 32>}, {pipeline_mode = #tpu.pipeline_mode<synchronous>, transform_indices = @transform_3, window_bounds = array<i64: 1, 32>}, {pipeline_mode = #tpu.pipeline_mode<synchronous>, transform_indices = @transform_4, window_bounds = array<i64: 1, 32>}, {pipeline_mode = #tpu.pipeline_mode<synchronous>, transform_indices = @transform_5, window_bounds = array<i64: 9, 32, 32>}, {pipeline_mode = #tpu.pipeline_mode<synchronous>, transform_indices = @transform_6, window_bounds = array<i64: 1, 32>}, {pipeline_mode = #tpu.pipeline_mode<synchronous>, transform_indices = @transform_7, window_bounds = array<i64: 1, 32>}, {transform_indices = @transform_8, window_bounds = array<i64: 1, 36, 32>}]} {
    %c0 = arith.constant 0 : index
    %c0_0 = arith.constant 0 : index
    %0 = vector.load %arg3[%c0, %c0_0] : memref<22x1xf32, #tpu.memory_space<vmem>>, vector<22x1xf32>
    %cst = arith.constant 0.000000e+00 : f32
    %1 = vector.broadcast %cst : f32 to vector<22x32xf32>
    %c0_1 = arith.constant 0 : index
    %c0_2 = arith.constant 0 : index
    %c0_3 = arith.constant 0 : index
    %c0_4 = arith.constant 0 : index
    %2 = vector.load %arg2[%c0_1, %c0_2, %c0_3, %c0_4] : memref<1x1x36x128xbf16, #tpu.memory_space<vmem>>, vector<1x1x22x128xbf16>
    %3 = vector.shape_cast %2 : vector<1x1x22x128xbf16> to vector<22x128xbf16>
    %c0_5 = arith.constant 0 : index
    %c0_6 = arith.constant 0 : index
    %c0_7 = arith.constant 0 : index
    %4 = vector.load %arg4[%c0_5, %c0_6, %c0_7] : memref<9x128x32xbf16, #tpu.memory_space<vmem>>, vector<1x128x32xbf16>
    %5 = vector.shape_cast %4 : vector<1x128x32xbf16> to vector<128x32xbf16>
    %cst_8 = arith.constant dense<0.000000e+00> : vector<22x32xf32>
    %6 = tpu.matmul %3, %5, %cst_8 {dimension_numbers = #tpu.dot_dimension_numbers<[1], [0], [0], [1], [0, 0, 1, 1], [], []>} : vector<22x128xbf16>, vector<128x32xbf16>, vector<22x32xf32> -> vector<22x32xf32>
    %7 = arith.addf %1, %6 : vector<22x32xf32>
    %c0_9 = arith.constant 0 : index
    %c0_10 = arith.constant 0 : index
    %c1 = arith.constant 1 : index
    %c0_11 = arith.constant 0 : index
    %8 = vector.load %arg2[%c0_9, %c0_10, %c1, %c0_11] : memref<1x1x36x128xbf16, #tpu.memory_space<vmem>>, vector<1x1x22x128xbf16>
    %9 = vector.shape_cast %8 : vector<1x1x22x128xbf16> to vector<22x128xbf16>
    %c1_12 = arith.constant 1 : index
    %c0_13 = arith.constant 0 : index
    %c0_14 = arith.constant 0 : index
    %10 = vector.load %arg4[%c1_12, %c0_13, %c0_14] : memref<9x128x32xbf16, #tpu.memory_space<vmem>>, vector<1x128x32xbf16>
    %11 = vector.shape_cast %10 : vector<1x128x32xbf16> to vector<128x32xbf16>
    %cst_15 = arith.constant dense<0.000000e+00> : vector<22x32xf32>
    %12 = tpu.matmul %9, %11, %cst_15 {dimension_numbers = #tpu.dot_dimension_numbers<[1], [0], [0], [1], [0, 0, 1, 1], [], []>} : vector<22x128xbf16>, vector<128x32xbf16>, vector<22x32xf32> -> vector<22x32xf32>
    %13 = arith.addf %7, %12 : vector<22x32xf32>
    %c0_16 = arith.constant 0 : index
    %c0_17 = arith.constant 0 : index
    %c2 = arith.constant 2 : index
    %c0_18 = arith.constant 0 : index
    %14 = vector.load %arg2[%c0_16, %c0_17, %c2, %c0_18] : memref<1x1x36x128xbf16, #tpu.memory_space<vmem>>, vector<1x1x22x128xbf16>
    %15 = vector.shape_cast %14 : vector<1x1x22x128xbf16> to vector<22x128xbf16>
    %c2_19 = arith.constant 2 : index
    %c0_20 = arith.constant 0 : index
    %c0_21 = arith.constant 0 : index
    %16 = vector.load %arg4[%c2_19, %c0_20, %c0_21] : memref<9x128x32xbf16, #tpu.memory_space<vmem>>, vector<1x128x32xbf16>
    %17 = vector.shape_cast %16 : vector<1x128x32xbf16> to vector<128x32xbf16>
    %cst_22 = arith.constant dense<0.000000e+00> : vector<22x32xf32>
    %18 = tpu.matmul %15, %17, %cst_22 {dimension_numbers = #tpu.dot_dimension_numbers<[1], [0], [0], [1], [0, 0, 1, 1], [], []>} : vector<22x128xbf16>, vector<128x32xbf16>, vector<22x32xf32> -> vector<22x32xf32>
    %19 = arith.addf %13, %18 : vector<22x32xf32>
    %c0_23 = arith.constant 0 : index
    %c0_24 = arith.constant 0 : index
    %c6 = arith.constant 6 : index
    %c0_25 = arith.constant 0 : index
    %20 = vector.load %arg2[%c0_23, %c0_24, %c6, %c0_25] : memref<1x1x36x128xbf16, #tpu.memory_space<vmem>>, vector<1x1x22x128xbf16>
    %21 = vector.shape_cast %20 : vector<1x1x22x128xbf16> to vector<22x128xbf16>
    %c3 = arith.constant 3 : index
    %c0_26 = arith.constant 0 : index
    %c0_27 = arith.constant 0 : index
    %22 = vector.load %arg4[%c3, %c0_26, %c0_27] : memref<9x128x32xbf16, #tpu.memory_space<vmem>>, vector<1x128x32xbf16>
    %23 = vector.shape_cast %22 : vector<1x128x32xbf16> to vector<128x32xbf16>
    %cst_28 = arith.constant dense<0.000000e+00> : vector<22x32xf32>
    %24 = tpu.matmul %21, %23, %cst_28 {dimension_numbers = #tpu.dot_dimension_numbers<[1], [0], [0], [1], [0, 0, 1, 1], [], []>} : vector<22x128xbf16>, vector<128x32xbf16>, vector<22x32xf32> -> vector<22x32xf32>
    %25 = arith.addf %19, %24 : vector<22x32xf32>
    %c0_29 = arith.constant 0 : index
    %c0_30 = arith.constant 0 : index
    %c7 = arith.constant 7 : index
    %c0_31 = arith.constant 0 : index
    %26 = vector.load %arg2[%c0_29, %c0_30, %c7, %c0_31] : memref<1x1x36x128xbf16, #tpu.memory_space<vmem>>, vector<1x1x22x128xbf16>
    %27 = vector.shape_cast %26 : vector<1x1x22x128xbf16> to vector<22x128xbf16>
    %c4 = arith.constant 4 : index
    %c0_32 = arith.constant 0 : index
    %c0_33 = arith.constant 0 : index
    %28 = vector.load %arg4[%c4, %c0_32, %c0_33] : memref<9x128x32xbf16, #tpu.memory_space<vmem>>, vector<1x128x32xbf16>
    %29 = vector.shape_cast %28 : vector<1x128x32xbf16> to vector<128x32xbf16>
    %cst_34 = arith.constant dense<0.000000e+00> : vector<22x32xf32>
    %30 = tpu.matmul %27, %29, %cst_34 {dimension_numbers = #tpu.dot_dimension_numbers<[1], [0], [0], [1], [0, 0, 1, 1], [], []>} : vector<22x128xbf16>, vector<128x32xbf16>, vector<22x32xf32> -> vector<22x32xf32>
    %31 = arith.addf %25, %30 : vector<22x32xf32>
    %c0_35 = arith.constant 0 : index
    %c0_36 = arith.constant 0 : index
    %c8 = arith.constant 8 : index
    %c0_37 = arith.constant 0 : index
    %32 = vector.load %arg2[%c0_35, %c0_36, %c8, %c0_37] : memref<1x1x36x128xbf16, #tpu.memory_space<vmem>>, vector<1x1x22x128xbf16>
    %33 = vector.shape_cast %32 : vector<1x1x22x128xbf16> to vector<22x128xbf16>
    %c5 = arith.constant 5 : index
    %c0_38 = arith.constant 0 : index
    %c0_39 = arith.constant 0 : index
    %34 = vector.load %arg4[%c5, %c0_38, %c0_39] : memref<9x128x32xbf16, #tpu.memory_space<vmem>>, vector<1x128x32xbf16>
    %35 = vector.shape_cast %34 : vector<1x128x32xbf16> to vector<128x32xbf16>
    %cst_40 = arith.constant dense<0.000000e+00> : vector<22x32xf32>
    %36 = tpu.matmul %33, %35, %cst_40 {dimension_numbers = #tpu.dot_dimension_numbers<[1], [0], [0], [1], [0, 0, 1, 1], [], []>} : vector<22x128xbf16>, vector<128x32xbf16>, vector<22x32xf32> -> vector<22x32xf32>
    %37 = arith.addf %31, %36 : vector<22x32xf32>
    %c0_41 = arith.constant 0 : index
    %c0_42 = arith.constant 0 : index
    %c12 = arith.constant 12 : index
    %c0_43 = arith.constant 0 : index
    %38 = vector.load %arg2[%c0_41, %c0_42, %c12, %c0_43] : memref<1x1x36x128xbf16, #tpu.memory_space<vmem>>, vector<1x1x22x128xbf16>
    %39 = vector.shape_cast %38 : vector<1x1x22x128xbf16> to vector<22x128xbf16>
    %c6_44 = arith.constant 6 : index
    %c0_45 = arith.constant 0 : index
    %c0_46 = arith.constant 0 : index
    %40 = vector.load %arg4[%c6_44, %c0_45, %c0_46] : memref<9x128x32xbf16, #tpu.memory_space<vmem>>, vector<1x128x32xbf16>
    %41 = vector.shape_cast %40 : vector<1x128x32xbf16> to vector<128x32xbf16>
    %cst_47 = arith.constant dense<0.000000e+00> : vector<22x32xf32>
    %42 = tpu.matmul %39, %41, %cst_47 {dimension_numbers = #tpu.dot_dimension_numbers<[1], [0], [0], [1], [0, 0, 1, 1], [], []>} : vector<22x128xbf16>, vector<128x32xbf16>, vector<22x32xf32> -> vector<22x32xf32>
    %43 = arith.addf %37, %42 : vector<22x32xf32>
    %c0_48 = arith.constant 0 : index
    %c0_49 = arith.constant 0 : index
    %c13 = arith.constant 13 : index
    %c0_50 = arith.constant 0 : index
    %44 = vector.load %arg2[%c0_48, %c0_49, %c13, %c0_50] : memref<1x1x36x128xbf16, #tpu.memory_space<vmem>>, vector<1x1x22x128xbf16>
    %45 = vector.shape_cast %44 : vector<1x1x22x128xbf16> to vector<22x128xbf16>
    %c7_51 = arith.constant 7 : index
    %c0_52 = arith.constant 0 : index
    %c0_53 = arith.constant 0 : index
    %46 = vector.load %arg4[%c7_51, %c0_52, %c0_53] : memref<9x128x32xbf16, #tpu.memory_space<vmem>>, vector<1x128x32xbf16>
    %47 = vector.shape_cast %46 : vector<1x128x32xbf16> to vector<128x32xbf16>
    %cst_54 = arith.constant dense<0.000000e+00> : vector<22x32xf32>
    %48 = tpu.matmul %45, %47, %cst_54 {dimension_numbers = #tpu.dot_dimension_numbers<[1], [0], [0], [1], [0, 0, 1, 1], [], []>} : vector<22x128xbf16>, vector<128x32xbf16>, vector<22x32xf32> -> vector<22x32xf32>
    %49 = arith.addf %43, %48 : vector<22x32xf32>
    %c0_55 = arith.constant 0 : index
    %c0_56 = arith.constant 0 : index
    %c14 = arith.constant 14 : index
    %c0_57 = arith.constant 0 : index
    %50 = vector.load %arg2[%c0_55, %c0_56, %c14, %c0_57] : memref<1x1x36x128xbf16, #tpu.memory_space<vmem>>, vector<1x1x22x128xbf16>
    %51 = vector.shape_cast %50 : vector<1x1x22x128xbf16> to vector<22x128xbf16>
    %c8_58 = arith.constant 8 : index
    %c0_59 = arith.constant 0 : index
    %c0_60 = arith.constant 0 : index
    %52 = vector.load %arg4[%c8_58, %c0_59, %c0_60] : memref<9x128x32xbf16, #tpu.memory_space<vmem>>, vector<1x128x32xbf16>
    %53 = vector.shape_cast %52 : vector<1x128x32xbf16> to vector<128x32xbf16>
    %cst_61 = arith.constant dense<0.000000e+00> : vector<22x32xf32>
    %54 = tpu.matmul %51, %53, %cst_61 {dimension_numbers = #tpu.dot_dimension_numbers<[1], [0], [0], [1], [0, 0, 1, 1], [], []>} : vector<22x128xbf16>, vector<128x32xbf16>, vector<22x32xf32> -> vector<22x32xf32>
    %55 = arith.addf %49, %54 : vector<22x32xf32>
    %c0_62 = arith.constant 0 : index
    %c0_63 = arith.constant 0 : index
    %56 = vector.load %arg5[%c0_62, %c0_63] : memref<1x32xf32, #tpu.memory_space<vmem>>, vector<1x32xf32>
    %57 = vector.broadcast %56 : vector<1x32xf32> to vector<22x32xf32>
    %58 = arith.mulf %55, %57 : vector<22x32xf32>
    %c0_64 = arith.constant 0 : index
    %c0_65 = arith.constant 0 : index
    %59 = vector.load %arg6[%c0_64, %c0_65] : memref<1x32xf32, #tpu.memory_space<vmem>>, vector<1x32xf32>
    %60 = vector.broadcast %59 : vector<1x32xf32> to vector<22x32xf32>
    %61 = arith.addf %58, %60 : vector<22x32xf32>
    %cst_66 = arith.constant 5.000000e-01 : f32
    %62 = vector.broadcast %cst_66 : f32 to vector<22x32xf32>
    %63 = arith.mulf %62, %61 : vector<22x32xf32>
    %cst_67 = arith.constant 4.471500e-02 : f32
    %64 = vector.broadcast %cst_67 : f32 to vector<22x32xf32>
    %65 = arith.mulf %64, %61 : vector<22x32xf32>
    %66 = arith.mulf %65, %61 : vector<22x32xf32>
    %67 = arith.mulf %66, %61 : vector<22x32xf32>
    %68 = arith.addf %61, %67 : vector<22x32xf32>
    %cst_68 = arith.constant 0.797884583 : f32
    %69 = vector.broadcast %cst_68 : f32 to vector<22x32xf32>
    %70 = arith.mulf %69, %68 : vector<22x32xf32>
    %71 = math.tanh %70 : vector<22x32xf32>
    %cst_69 = arith.constant 1.000000e+00 : f32
    %72 = vector.broadcast %cst_69 : f32 to vector<22x32xf32>
    %73 = arith.addf %72, %71 : vector<22x32xf32>
    %74 = arith.mulf %63, %73 : vector<22x32xf32>
    %75 = vector.broadcast %0 : vector<22x1xf32> to vector<22x32xf32>
    %76 = arith.mulf %74, %75 : vector<22x32xf32>
    %cst_70 = arith.constant 0.000000e+00 : bf16
    %77 = vector.broadcast %cst_70 : bf16 to vector<36x32xbf16>
    %c0_71 = arith.constant 0 : index
    %c0_72 = arith.constant 0 : index
    %78 = vector.load %arg11[%c0_71, %c0_72] : memref<36x32xbf16, #tpu.memory_space<vmem>>, vector<36x32xbf16>
    tpu.vector_store %arg11[%c0_71, %c0_72], %77 {strides = array<i32>} : memref<36x32xbf16, #tpu.memory_space<vmem>>, vector<36x32xbf16>,
    %79 = arith.truncf %76 : vector<22x32xf32> to vector<22x32xbf16>
    %c7_73 = arith.constant 7 : index
    %c0_74 = arith.constant 0 : index
    %80 = vector.load %arg11[%c7_73, %c0_74] : memref<36x32xbf16, #tpu.memory_space<vmem>>, vector<22x32xbf16>
    tpu.vector_store %arg11[%c7_73, %c0_74], %79 {strides = array<i32>} : memref<36x32xbf16, #tpu.memory_space<vmem>>, vector<22x32xbf16>,
    %cst_75 = arith.constant 0.000000e+00 : f32
    %81 = vector.broadcast %cst_75 : f32 to vector<22x32xf32>
    %c0_76 = arith.constant 0 : index
    %c0_77 = arith.constant 0 : index
    %82 = vector.load %arg11[%c0_76, %c0_77] : memref<36x32xbf16, #tpu.memory_space<vmem>>, vector<22x32xbf16>
    %c0_78 = arith.constant 0 : index
    %c0_79 = arith.constant 0 : index
    %c0_80 = arith.constant 0 : index
    %83 = vector.load %arg7[%c0_78, %c0_79, %c0_80] : memref<9x32x32xbf16, #tpu.memory_space<vmem>>, vector<1x32x32xbf16>
    %84 = vector.shape_cast %83 : vector<1x32x32xbf16> to vector<32x32xbf16>
    %cst_81 = arith.constant dense<0.000000e+00> : vector<22x32xf32>
    %85 = tpu.matmul %82, %84, %cst_81 {dimension_numbers = #tpu.dot_dimension_numbers<[1], [0], [0], [1], [0, 0, 1, 1], [], []>} : vector<22x32xbf16>, vector<32x32xbf16>, vector<22x32xf32> -> vector<22x32xf32>
    %86 = arith.addf %81, %85 : vector<22x32xf32>
    %c1_82 = arith.constant 1 : index
    %c0_83 = arith.constant 0 : index
    %87 = vector.load %arg11[%c1_82, %c0_83] : memref<36x32xbf16, #tpu.memory_space<vmem>>, vector<22x32xbf16>
    %c1_84 = arith.constant 1 : index
    %c0_85 = arith.constant 0 : index
    %c0_86 = arith.constant 0 : index
    %88 = vector.load %arg7[%c1_84, %c0_85, %c0_86] : memref<9x32x32xbf16, #tpu.memory_space<vmem>>, vector<1x32x32xbf16>
    %89 = vector.shape_cast %88 : vector<1x32x32xbf16> to vector<32x32xbf16>
    %cst_87 = arith.constant dense<0.000000e+00> : vector<22x32xf32>
    %90 = tpu.matmul %87, %89, %cst_87 {dimension_numbers = #tpu.dot_dimension_numbers<[1], [0], [0], [1], [0, 0, 1, 1], [], []>} : vector<22x32xbf16>, vector<32x32xbf16>, vector<22x32xf32> -> vector<22x32xf32>
    %91 = arith.addf %86, %90 : vector<22x32xf32>
    %c2_88 = arith.constant 2 : index
    %c0_89 = arith.constant 0 : index
    %92 = vector.load %arg11[%c2_88, %c0_89] : memref<36x32xbf16, #tpu.memory_space<vmem>>, vector<22x32xbf16>
    %c2_90 = arith.constant 2 : index
    %c0_91 = arith.constant 0 : index
    %c0_92 = arith.constant 0 : index
    %93 = vector.load %arg7[%c2_90, %c0_91, %c0_92] : memref<9x32x32xbf16, #tpu.memory_space<vmem>>, vector<1x32x32xbf16>
    %94 = vector.shape_cast %93 : vector<1x32x32xbf16> to vector<32x32xbf16>
    %cst_93 = arith.constant dense<0.000000e+00> : vector<22x32xf32>
    %95 = tpu.matmul %92, %94, %cst_93 {dimension_numbers = #tpu.dot_dimension_numbers<[1], [0], [0], [1], [0, 0, 1, 1], [], []>} : vector<22x32xbf16>, vector<32x32xbf16>, vector<22x32xf32> -> vector<22x32xf32>
    %96 = arith.addf %91, %95 : vector<22x32xf32>
    %c6_94 = arith.constant 6 : index
    %c0_95 = arith.constant 0 : index
    %97 = vector.load %arg11[%c6_94, %c0_95] : memref<36x32xbf16, #tpu.memory_space<vmem>>, vector<22x32xbf16>
    %c3_96 = arith.constant 3 : index
    %c0_97 = arith.constant 0 : index
    %c0_98 = arith.constant 0 : index
    %98 = vector.load %arg7[%c3_96, %c0_97, %c0_98] : memref<9x32x32xbf16, #tpu.memory_space<vmem>>, vector<1x32x32xbf16>
    %99 = vector.shape_cast %98 : vector<1x32x32xbf16> to vector<32x32xbf16>
    %cst_99 = arith.constant dense<0.000000e+00> : vector<22x32xf32>
    %100 = tpu.matmul %97, %99, %cst_99 {dimension_numbers = #tpu.dot_dimension_numbers<[1], [0], [0], [1], [0, 0, 1, 1], [], []>} : vector<22x32xbf16>, vector<32x32xbf16>, vector<22x32xf32> -> vector<22x32xf32>
    %101 = arith.addf %96, %100 : vector<22x32xf32>
    %c7_100 = arith.constant 7 : index
    %c0_101 = arith.constant 0 : index
    %102 = vector.load %arg11[%c7_100, %c0_101] : memref<36x32xbf16, #tpu.memory_space<vmem>>, vector<22x32xbf16>
    %c4_102 = arith.constant 4 : index
    %c0_103 = arith.constant 0 : index
    %c0_104 = arith.constant 0 : index
    %103 = vector.load %arg7[%c4_102, %c0_103, %c0_104] : memref<9x32x32xbf16, #tpu.memory_space<vmem>>, vector<1x32x32xbf16>
    %104 = vector.shape_cast %103 : vector<1x32x32xbf16> to vector<32x32xbf16>
    %cst_105 = arith.constant dense<0.000000e+00> : vector<22x32xf32>
    %105 = tpu.matmul %102, %104, %cst_105 {dimension_numbers = #tpu.dot_dimension_numbers<[1], [0], [0], [1], [0, 0, 1, 1], [], []>} : vector<22x32xbf16>, vector<32x32xbf16>, vector<22x32xf32> -> vector<22x32xf32>
    %106 = arith.addf %101, %105 : vector<22x32xf32>
    %c8_106 = arith.constant 8 : index
    %c0_107 = arith.constant 0 : index
    %107 = vector.load %arg11[%c8_106, %c0_107] : memref<36x32xbf16, #tpu.memory_space<vmem>>, vector<22x32xbf16>
    %c5_108 = arith.constant 5 : index
    %c0_109 = arith.constant 0 : index
    %c0_110 = arith.constant 0 : index
    %108 = vector.load %arg7[%c5_108, %c0_109, %c0_110] : memref<9x32x32xbf16, #tpu.memory_space<vmem>>, vector<1x32x32xbf16>
    %109 = vector.shape_cast %108 : vector<1x32x32xbf16> to vector<32x32xbf16>
    %cst_111 = arith.constant dense<0.000000e+00> : vector<22x32xf32>
    %110 = tpu.matmul %107, %109, %cst_111 {dimension_numbers = #tpu.dot_dimension_numbers<[1], [0], [0], [1], [0, 0, 1, 1], [], []>} : vector<22x32xbf16>, vector<32x32xbf16>, vector<22x32xf32> -> vector<22x32xf32>
    %111 = arith.addf %106, %110 : vector<22x32xf32>
    %c12_112 = arith.constant 12 : index
    %c0_113 = arith.constant 0 : index
    %112 = vector.load %arg11[%c12_112, %c0_113] : memref<36x32xbf16, #tpu.memory_space<vmem>>, vector<22x32xbf16>
    %c6_114 = arith.constant 6 : index
    %c0_115 = arith.constant 0 : index
    %c0_116 = arith.constant 0 : index
    %113 = vector.load %arg7[%c6_114, %c0_115, %c0_116] : memref<9x32x32xbf16, #tpu.memory_space<vmem>>, vector<1x32x32xbf16>
    %114 = vector.shape_cast %113 : vector<1x32x32xbf16> to vector<32x32xbf16>
    %cst_117 = arith.constant dense<0.000000e+00> : vector<22x32xf32>
    %115 = tpu.matmul %112, %114, %cst_117 {dimension_numbers = #tpu.dot_dimension_numbers<[1], [0], [0], [1], [0, 0, 1, 1], [], []>} : vector<22x32xbf16>, vector<32x32xbf16>, vector<22x32xf32> -> vector<22x32xf32>
    %116 = arith.addf %111, %115 : vector<22x32xf32>
    %c13_118 = arith.constant 13 : index
    %c0_119 = arith.constant 0 : index
    %117 = vector.load %arg11[%c13_118, %c0_119] : memref<36x32xbf16, #tpu.memory_space<vmem>>, vector<22x32xbf16>
    %c7_120 = arith.constant 7 : index
    %c0_121 = arith.constant 0 : index
    %c0_122 = arith.constant 0 : index
    %118 = vector.load %arg7[%c7_120, %c0_121, %c0_122] : memref<9x32x32xbf16, #tpu.memory_space<vmem>>, vector<1x32x32xbf16>
    %119 = vector.shape_cast %118 : vector<1x32x32xbf16> to vector<32x32xbf16>
    %cst_123 = arith.constant dense<0.000000e+00> : vector<22x32xf32>
    %120 = tpu.matmul %117, %119, %cst_123 {dimension_numbers = #tpu.dot_dimension_numbers<[1], [0], [0], [1], [0, 0, 1, 1], [], []>} : vector<22x32xbf16>, vector<32x32xbf16>, vector<22x32xf32> -> vector<22x32xf32>
    %121 = arith.addf %116, %120 : vector<22x32xf32>
    %c14_124 = arith.constant 14 : index
    %c0_125 = arith.constant 0 : index
    %122 = vector.load %arg11[%c14_124, %c0_125] : memref<36x32xbf16, #tpu.memory_space<vmem>>, vector<22x32xbf16>
    %c8_126 = arith.constant 8 : index
    %c0_127 = arith.constant 0 : index
    %c0_128 = arith.constant 0 : index
    %123 = vector.load %arg7[%c8_126, %c0_127, %c0_128] : memref<9x32x32xbf16, #tpu.memory_space<vmem>>, vector<1x32x32xbf16>
    %124 = vector.shape_cast %123 : vector<1x32x32xbf16> to vector<32x32xbf16>
    %cst_129 = arith.constant dense<0.000000e+00> : vector<22x32xf32>
    %125 = tpu.matmul %122, %124, %cst_129 {dimension_numbers = #tpu.dot_dimension_numbers<[1], [0], [0], [1], [0, 0, 1, 1], [], []>} : vector<22x32xbf16>, vector<32x32xbf16>, vector<22x32xf32> -> vector<22x32xf32>
    %126 = arith.addf %121, %125 : vector<22x32xf32>
    %c0_130 = arith.constant 0 : index
    %c0_131 = arith.constant 0 : index
    %127 = vector.load %arg8[%c0_130, %c0_131] : memref<1x32xf32, #tpu.memory_space<vmem>>, vector<1x32xf32>
    %128 = vector.broadcast %127 : vector<1x32xf32> to vector<22x32xf32>
    %129 = arith.mulf %126, %128 : vector<22x32xf32>
    %c0_132 = arith.constant 0 : index
    %c0_133 = arith.constant 0 : index
    %130 = vector.load %arg9[%c0_132, %c0_133] : memref<1x32xf32, #tpu.memory_space<vmem>>, vector<1x32xf32>
    %131 = vector.broadcast %130 : vector<1x32xf32> to vector<22x32xf32>
    %132 = arith.addf %129, %131 : vector<22x32xf32>
    %cst_134 = arith.constant 5.000000e-01 : f32
    %133 = vector.broadcast %cst_134 : f32 to vector<22x32xf32>
    %134 = arith.mulf %133, %132 : vector<22x32xf32>
    %cst_135 = arith.constant 4.471500e-02 : f32
    %135 = vector.broadcast %cst_135 : f32 to vector<22x32xf32>
    %136 = arith.mulf %135, %132 : vector<22x32xf32>
    %137 = arith.mulf %136, %132 : vector<22x32xf32>
    %138 = arith.mulf %137, %132 : vector<22x32xf32>
    %139 = arith.addf %132, %138 : vector<22x32xf32>
    %cst_136 = arith.constant 0.797884583 : f32
    %140 = vector.broadcast %cst_136 : f32 to vector<22x32xf32>
    %141 = arith.mulf %140, %139 : vector<22x32xf32>
    %142 = math.tanh %141 : vector<22x32xf32>
    %cst_137 = arith.constant 1.000000e+00 : f32
    %143 = vector.broadcast %cst_137 : f32 to vector<22x32xf32>
    %144 = arith.addf %143, %142 : vector<22x32xf32>
    %145 = arith.mulf %134, %144 : vector<22x32xf32>
    %cst_138 = arith.constant 0.000000e+00 : f32
    %146 = vector.broadcast %cst_138 : f32 to vector<22x32xf32>
    %147 = arith.maximumf %145, %146 : vector<22x32xf32>
    %c0_i32 = arith.constant 0 : i32
    %148 = arith.cmpi eq, %arg1, %c0_i32 : i32
    %149 = arith.extui %148 : i1 to i32
    %c0_i32_139 = arith.constant 0 : i32
    %150 = arith.cmpi ne, %149, %c0_i32_139 : i32
    scf.if %150 {
      %cst_146 = arith.constant 0.000000e+00 : f32
      %159 = vector.broadcast %cst_146 : f32 to vector<22x32xf32>
      %c0_147 = arith.constant 0 : index
      %c0_148 = arith.constant 0 : index
      %160 = vector.load %arg12[%c0_147, %c0_148] : memref<22x32xf32, #tpu.memory_space<vmem>>, vector<22x32xf32>
      tpu.vector_store %arg12[%c0_147, %c0_148], %159 {strides = array<i32>} : memref<22x32xf32, #tpu.memory_space<vmem>>, vector<22x32xf32>,
    } else {
    }
    %c0_140 = arith.constant 0 : index
    %c0_141 = arith.constant 0 : index
    %151 = vector.load %arg12[%c0_140, %c0_141] : memref<22x32xf32, #tpu.memory_space<vmem>>, vector<22x32xf32>
    %cst_142 = arith.constant 2.500000e-01 : f32
    %152 = vector.broadcast %cst_142 : f32 to vector<22x32xf32>
    %153 = arith.mulf %147, %152 : vector<22x32xf32>
    %154 = arith.addf %151, %153 : vector<22x32xf32>
    %c0_143 = arith.constant 0 : index
    %c0_144 = arith.constant 0 : index
    %155 = vector.load %arg12[%c0_143, %c0_144] : memref<22x32xf32, #tpu.memory_space<vmem>>, vector<22x32xf32>
    tpu.vector_store %arg12[%c0_143, %c0_144], %154 {strides = array<i32>} : memref<22x32xf32, #tpu.memory_space<vmem>>, vector<22x32xf32>,
    %c3_i32 = arith.constant 3 : i32
    %156 = arith.cmpi eq, %arg1, %c3_i32 : i32
    %157 = arith.extui %156 : i1 to i32
    %c0_i32_145 = arith.constant 0 : i32
    %158 = arith.cmpi ne, %157, %c0_i32_145 : i32
    scf.if %158 {
      %cst_146 = arith.constant 0.000000e+00 : bf16
      %159 = vector.broadcast %cst_146 : bf16 to vector<36x32xbf16>
      %c0_147 = arith.constant 0 : index
      %c0_148 = arith.constant 0 : index
      %c0_149 = arith.constant 0 : index
      %160 = vector.load %arg10[%c0_147, %c0_148, %c0_149] : memref<1x36x32xbf16, #tpu.memory_space<vmem>>, vector<1x36x32xbf16>
      %161 = vector.shape_cast %160 : vector<1x36x32xbf16> to vector<36x32xbf16>
      %162 = vector.shape_cast %159 : vector<36x32xbf16> to vector<1x36x32xbf16>
      tpu.vector_store %arg10[%c0_147, %c0_148, %c0_149], %162 {strides = array<i32>} : memref<1x36x32xbf16, #tpu.memory_space<vmem>>, vector<1x36x32xbf16>,
      %c0_150 = arith.constant 0 : index
      %c0_151 = arith.constant 0 : index
      %163 = vector.load %arg12[%c0_150, %c0_151] : memref<22x32xf32, #tpu.memory_space<vmem>>, vector<22x32xf32>
      %164 = vector.broadcast %0 : vector<22x1xf32> to vector<22x32xf32>
      %165 = arith.mulf %163, %164 : vector<22x32xf32>
      %166 = arith.truncf %165 : vector<22x32xf32> to vector<22x32xbf16>
      %c0_152 = arith.constant 0 : index
      %c7_153 = arith.constant 7 : index
      %c0_154 = arith.constant 0 : index
      %167 = vector.load %arg10[%c0_152, %c7_153, %c0_154] : memref<1x36x32xbf16, #tpu.memory_space<vmem>>, vector<1x22x32xbf16>
      %168 = vector.shape_cast %167 : vector<1x22x32xbf16> to vector<22x32xbf16>
      %169 = vector.shape_cast %166 : vector<22x32xbf16> to vector<1x22x32xbf16>
      tpu.vector_store %arg10[%c0_152, %c7_153, %c0_154], %169 {strides = array<i32>} : memref<1x36x32xbf16, #tpu.memory_space<vmem>>, vector<1x22x32xbf16>,
    } else {
    }
    return
  }
  func.func @transform_0(%arg0: i32, %arg1: i32) -> (i32, i32, i32, i32) {
    %c0_i32 = arith.constant 0 : i32
    %c0_i32_0 = arith.constant 0 : i32
    %c0_i32_1 = arith.constant 0 : i32
    return %arg0, %arg1, %c0_i32, %c0_i32_0 : i32, i32, i32, i32
  }
  func.func @transform_1(%arg0: i32, %arg1: i32) -> (i32, i32) {
    %c0_i32 = arith.constant 0 : i32
    %c0_i32_0 = arith.constant 0 : i32
    %c0_i32_1 = arith.constant 0 : i32
    return %c0_i32, %c0_i32_0 : i32, i32
  }
  func.func @transform_2(%arg0: i32, %arg1: i32) -> (i32, i32, i32) {
    %c0_i32 = arith.constant 0 : i32
    %c0_i32_0 = arith.constant 0 : i32
    %c0_i32_1 = arith.constant 0 : i32
    %c0_i32_2 = arith.constant 0 : i32
    return %c0_i32, %c0_i32_0, %c0_i32_1 : i32, i32, i32
  }
  func.func @transform_3(%arg0: i32, %arg1: i32) -> (i32, i32) {
    %c0_i32 = arith.constant 0 : i32
    %c0_i32_0 = arith.constant 0 : i32
    %c0_i32_1 = arith.constant 0 : i32
    return %c0_i32, %c0_i32_0 : i32, i32
  }
  func.func @transform_4(%arg0: i32, %arg1: i32) -> (i32, i32) {
    %c0_i32 = arith.constant 0 : i32
    %c0_i32_0 = arith.constant 0 : i32
    %c0_i32_1 = arith.constant 0 : i32
    return %c0_i32, %c0_i32_0 : i32, i32
  }
  func.func @transform_5(%arg0: i32, %arg1: i32) -> (i32, i32, i32) {
    %c0_i32 = arith.constant 0 : i32
    %c0_i32_0 = arith.constant 0 : i32
    %c0_i32_1 = arith.constant 0 : i32
    %c0_i32_2 = arith.constant 0 : i32
    return %c0_i32, %c0_i32_0, %c0_i32_1 : i32, i32, i32
  }
  func.func @transform_6(%arg0: i32, %arg1: i32) -> (i32, i32) {
    %c0_i32 = arith.constant 0 : i32
    %c0_i32_0 = arith.constant 0 : i32
    %c0_i32_1 = arith.constant 0 : i32
    return %c0_i32, %c0_i32_0 : i32, i32
  }
  func.func @transform_7(%arg0: i32, %arg1: i32) -> (i32, i32) {
    %c0_i32 = arith.constant 0 : i32
    %c0_i32_0 = arith.constant 0 : i32
    %c0_i32_1 = arith.constant 0 : i32
    return %c0_i32, %c0_i32_0 : i32, i32
  }
  func.func @transform_8(%arg0: i32, %arg1: i32) -> (i32, i32, i32) {
    %c0_i32 = arith.constant 0 : i32
    %c0_i32_0 = arith.constant 0 : i32
    %c0_i32_1 = arith.constant 0 : i32
    return %arg0, %c0_i32, %c0_i32_0 : i32, i32, i32
  }
}

module attributes {stable_mosaic.version = 11 : i64} {
  func.func @kernel(%arg0: i32, %arg1: memref<1x36x32xbf16, #tpu.memory_space<vmem>>, %arg2: memref<22x1xf32, #tpu.memory_space<vmem>>, %arg3: memref<9x32x16xbf16, #tpu.memory_space<vmem>>, %arg4: memref<16x32xbf16, #tpu.memory_space<vmem>>, %arg5: memref<1x36x32xbf16, #tpu.memory_space<vmem>>) attributes {dimension_semantics = [#tpu.dimension_semantics<parallel>], iteration_bounds = array<i64: 2>, scalar_prefetch = 0 : i64, scratch_operands = 0 : i64, tpu.core_type = #tpu.core_type<tc>, window_params = [{transform_indices = @transform_0, window_bounds = array<i64: 1, 36, 32>}, {pipeline_mode = #tpu.pipeline_mode<synchronous>, transform_indices = @transform_1, window_bounds = array<i64: 22, 1>}, {pipeline_mode = #tpu.pipeline_mode<synchronous>, transform_indices = @transform_2, window_bounds = array<i64: 9, 32, 16>}, {pipeline_mode = #tpu.pipeline_mode<synchronous>, transform_indices = @transform_3, window_bounds = array<i64: 16, 32>}, {transform_indices = @transform_4, window_bounds = array<i64: 1, 36, 32>}]} {
    %c0 = arith.constant 0 : index
    %c0_0 = arith.constant 0 : index
    %0 = vector.load %arg2[%c0, %c0_0] : memref<22x1xf32, #tpu.memory_space<vmem>>, vector<22x1xf32>
    %c0_1 = arith.constant 0 : index
    %c0_2 = arith.constant 0 : index
    %c0_3 = arith.constant 0 : index
    %1 = vector.load %arg1[%c0_1, %c0_2, %c0_3] : memref<1x36x32xbf16, #tpu.memory_space<vmem>>, vector<1x36x32xbf16>
    %2 = vector.shape_cast %1 : vector<1x36x32xbf16> to vector<36x32xbf16>
    %cst = arith.constant 0.000000e+00 : bf16
    %3 = vector.broadcast %cst : bf16 to vector<36x32xbf16>
    %4 = arith.maximumf %2, %3 : vector<36x32xbf16>
    %cst_4 = arith.constant 0.000000e+00 : f32
    %5 = vector.broadcast %cst_4 : f32 to vector<22x16xf32>
    %6 = vector.extract_strided_slice %4 {offsets = [0, 0], sizes = [22, 32], strides = [1, 1]} : vector<36x32xbf16> to vector<22x32xbf16>
    %c0_5 = arith.constant 0 : index
    %c0_6 = arith.constant 0 : index
    %c0_7 = arith.constant 0 : index
    %7 = vector.load %arg3[%c0_5, %c0_6, %c0_7] : memref<9x32x16xbf16, #tpu.memory_space<vmem>>, vector<1x32x16xbf16>
    %8 = vector.shape_cast %7 : vector<1x32x16xbf16> to vector<32x16xbf16>
    %cst_8 = arith.constant dense<0.000000e+00> : vector<22x16xf32>
    %9 = tpu.matmul %6, %8, %cst_8 {dimension_numbers = #tpu.dot_dimension_numbers<[1], [0], [0], [1], [0, 0, 1, 1], [], []>} : vector<22x32xbf16>, vector<32x16xbf16>, vector<22x16xf32> -> vector<22x16xf32>
    %10 = arith.addf %5, %9 : vector<22x16xf32>
    %11 = vector.extract_strided_slice %4 {offsets = [1, 0], sizes = [22, 32], strides = [1, 1]} : vector<36x32xbf16> to vector<22x32xbf16>
    %c1 = arith.constant 1 : index
    %c0_9 = arith.constant 0 : index
    %c0_10 = arith.constant 0 : index
    %12 = vector.load %arg3[%c1, %c0_9, %c0_10] : memref<9x32x16xbf16, #tpu.memory_space<vmem>>, vector<1x32x16xbf16>
    %13 = vector.shape_cast %12 : vector<1x32x16xbf16> to vector<32x16xbf16>
    %cst_11 = arith.constant dense<0.000000e+00> : vector<22x16xf32>
    %14 = tpu.matmul %11, %13, %cst_11 {dimension_numbers = #tpu.dot_dimension_numbers<[1], [0], [0], [1], [0, 0, 1, 1], [], []>} : vector<22x32xbf16>, vector<32x16xbf16>, vector<22x16xf32> -> vector<22x16xf32>
    %15 = arith.addf %10, %14 : vector<22x16xf32>
    %16 = vector.extract_strided_slice %4 {offsets = [2, 0], sizes = [22, 32], strides = [1, 1]} : vector<36x32xbf16> to vector<22x32xbf16>
    %c2 = arith.constant 2 : index
    %c0_12 = arith.constant 0 : index
    %c0_13 = arith.constant 0 : index
    %17 = vector.load %arg3[%c2, %c0_12, %c0_13] : memref<9x32x16xbf16, #tpu.memory_space<vmem>>, vector<1x32x16xbf16>
    %18 = vector.shape_cast %17 : vector<1x32x16xbf16> to vector<32x16xbf16>
    %cst_14 = arith.constant dense<0.000000e+00> : vector<22x16xf32>
    %19 = tpu.matmul %16, %18, %cst_14 {dimension_numbers = #tpu.dot_dimension_numbers<[1], [0], [0], [1], [0, 0, 1, 1], [], []>} : vector<22x32xbf16>, vector<32x16xbf16>, vector<22x16xf32> -> vector<22x16xf32>
    %20 = arith.addf %15, %19 : vector<22x16xf32>
    %21 = vector.extract_strided_slice %4 {offsets = [6, 0], sizes = [22, 32], strides = [1, 1]} : vector<36x32xbf16> to vector<22x32xbf16>
    %c3 = arith.constant 3 : index
    %c0_15 = arith.constant 0 : index
    %c0_16 = arith.constant 0 : index
    %22 = vector.load %arg3[%c3, %c0_15, %c0_16] : memref<9x32x16xbf16, #tpu.memory_space<vmem>>, vector<1x32x16xbf16>
    %23 = vector.shape_cast %22 : vector<1x32x16xbf16> to vector<32x16xbf16>
    %cst_17 = arith.constant dense<0.000000e+00> : vector<22x16xf32>
    %24 = tpu.matmul %21, %23, %cst_17 {dimension_numbers = #tpu.dot_dimension_numbers<[1], [0], [0], [1], [0, 0, 1, 1], [], []>} : vector<22x32xbf16>, vector<32x16xbf16>, vector<22x16xf32> -> vector<22x16xf32>
    %25 = arith.addf %20, %24 : vector<22x16xf32>
    %26 = vector.extract_strided_slice %4 {offsets = [7, 0], sizes = [22, 32], strides = [1, 1]} : vector<36x32xbf16> to vector<22x32xbf16>
    %c4 = arith.constant 4 : index
    %c0_18 = arith.constant 0 : index
    %c0_19 = arith.constant 0 : index
    %27 = vector.load %arg3[%c4, %c0_18, %c0_19] : memref<9x32x16xbf16, #tpu.memory_space<vmem>>, vector<1x32x16xbf16>
    %28 = vector.shape_cast %27 : vector<1x32x16xbf16> to vector<32x16xbf16>
    %cst_20 = arith.constant dense<0.000000e+00> : vector<22x16xf32>
    %29 = tpu.matmul %26, %28, %cst_20 {dimension_numbers = #tpu.dot_dimension_numbers<[1], [0], [0], [1], [0, 0, 1, 1], [], []>} : vector<22x32xbf16>, vector<32x16xbf16>, vector<22x16xf32> -> vector<22x16xf32>
    %30 = arith.addf %25, %29 : vector<22x16xf32>
    %31 = vector.extract_strided_slice %4 {offsets = [8, 0], sizes = [22, 32], strides = [1, 1]} : vector<36x32xbf16> to vector<22x32xbf16>
    %c5 = arith.constant 5 : index
    %c0_21 = arith.constant 0 : index
    %c0_22 = arith.constant 0 : index
    %32 = vector.load %arg3[%c5, %c0_21, %c0_22] : memref<9x32x16xbf16, #tpu.memory_space<vmem>>, vector<1x32x16xbf16>
    %33 = vector.shape_cast %32 : vector<1x32x16xbf16> to vector<32x16xbf16>
    %cst_23 = arith.constant dense<0.000000e+00> : vector<22x16xf32>
    %34 = tpu.matmul %31, %33, %cst_23 {dimension_numbers = #tpu.dot_dimension_numbers<[1], [0], [0], [1], [0, 0, 1, 1], [], []>} : vector<22x32xbf16>, vector<32x16xbf16>, vector<22x16xf32> -> vector<22x16xf32>
    %35 = arith.addf %30, %34 : vector<22x16xf32>
    %36 = vector.extract_strided_slice %4 {offsets = [12, 0], sizes = [22, 32], strides = [1, 1]} : vector<36x32xbf16> to vector<22x32xbf16>
    %c6 = arith.constant 6 : index
    %c0_24 = arith.constant 0 : index
    %c0_25 = arith.constant 0 : index
    %37 = vector.load %arg3[%c6, %c0_24, %c0_25] : memref<9x32x16xbf16, #tpu.memory_space<vmem>>, vector<1x32x16xbf16>
    %38 = vector.shape_cast %37 : vector<1x32x16xbf16> to vector<32x16xbf16>
    %cst_26 = arith.constant dense<0.000000e+00> : vector<22x16xf32>
    %39 = tpu.matmul %36, %38, %cst_26 {dimension_numbers = #tpu.dot_dimension_numbers<[1], [0], [0], [1], [0, 0, 1, 1], [], []>} : vector<22x32xbf16>, vector<32x16xbf16>, vector<22x16xf32> -> vector<22x16xf32>
    %40 = arith.addf %35, %39 : vector<22x16xf32>
    %41 = vector.extract_strided_slice %4 {offsets = [13, 0], sizes = [22, 32], strides = [1, 1]} : vector<36x32xbf16> to vector<22x32xbf16>
    %c7 = arith.constant 7 : index
    %c0_27 = arith.constant 0 : index
    %c0_28 = arith.constant 0 : index
    %42 = vector.load %arg3[%c7, %c0_27, %c0_28] : memref<9x32x16xbf16, #tpu.memory_space<vmem>>, vector<1x32x16xbf16>
    %43 = vector.shape_cast %42 : vector<1x32x16xbf16> to vector<32x16xbf16>
    %cst_29 = arith.constant dense<0.000000e+00> : vector<22x16xf32>
    %44 = tpu.matmul %41, %43, %cst_29 {dimension_numbers = #tpu.dot_dimension_numbers<[1], [0], [0], [1], [0, 0, 1, 1], [], []>} : vector<22x32xbf16>, vector<32x16xbf16>, vector<22x16xf32> -> vector<22x16xf32>
    %45 = arith.addf %40, %44 : vector<22x16xf32>
    %46 = vector.extract_strided_slice %4 {offsets = [14, 0], sizes = [22, 32], strides = [1, 1]} : vector<36x32xbf16> to vector<22x32xbf16>
    %c8 = arith.constant 8 : index
    %c0_30 = arith.constant 0 : index
    %c0_31 = arith.constant 0 : index
    %47 = vector.load %arg3[%c8, %c0_30, %c0_31] : memref<9x32x16xbf16, #tpu.memory_space<vmem>>, vector<1x32x16xbf16>
    %48 = vector.shape_cast %47 : vector<1x32x16xbf16> to vector<32x16xbf16>
    %cst_32 = arith.constant dense<0.000000e+00> : vector<22x16xf32>
    %49 = tpu.matmul %46, %48, %cst_32 {dimension_numbers = #tpu.dot_dimension_numbers<[1], [0], [0], [1], [0, 0, 1, 1], [], []>} : vector<22x32xbf16>, vector<32x16xbf16>, vector<22x16xf32> -> vector<22x16xf32>
    %50 = arith.addf %45, %49 : vector<22x16xf32>
    %cst_33 = arith.constant 0.000000e+00 : f32
    %51 = vector.broadcast %cst_33 : f32 to vector<22x16xf32>
    %52 = arith.maximumf %50, %51 : vector<22x16xf32>
    %53 = arith.truncf %52 : vector<22x16xf32> to vector<22x16xbf16>
    %c0_34 = arith.constant 0 : index
    %c0_35 = arith.constant 0 : index
    %54 = vector.load %arg4[%c0_34, %c0_35] : memref<16x32xbf16, #tpu.memory_space<vmem>>, vector<16x32xbf16>
    %cst_36 = arith.constant dense<0.000000e+00> : vector<22x32xf32>
    %55 = tpu.matmul %53, %54, %cst_36 {dimension_numbers = #tpu.dot_dimension_numbers<[1], [0], [0], [1], [0, 0, 1, 1], [], []>} : vector<22x16xbf16>, vector<16x32xbf16>, vector<22x32xf32> -> vector<22x32xf32>
    %56 = vector.extract_strided_slice %2 {offsets = [7, 0], sizes = [22, 32], strides = [1, 1]} : vector<36x32xbf16> to vector<22x32xbf16>
    %57 = arith.extf %56 : vector<22x32xbf16> to vector<22x32xf32>
    %58 = vector.broadcast %0 : vector<22x1xf32> to vector<22x32xf32>
    %59 = arith.mulf %55, %58 : vector<22x32xf32>
    %60 = arith.addf %57, %59 : vector<22x32xf32>
    %cst_37 = arith.constant 0.000000e+00 : bf16
    %61 = vector.broadcast %cst_37 : bf16 to vector<36x32xbf16>
    %c0_38 = arith.constant 0 : index
    %c0_39 = arith.constant 0 : index
    %c0_40 = arith.constant 0 : index
    %62 = vector.load %arg5[%c0_38, %c0_39, %c0_40] : memref<1x36x32xbf16, #tpu.memory_space<vmem>>, vector<1x36x32xbf16>
    %63 = vector.shape_cast %62 : vector<1x36x32xbf16> to vector<36x32xbf16>
    %64 = vector.shape_cast %61 : vector<36x32xbf16> to vector<1x36x32xbf16>
    tpu.vector_store %arg5[%c0_38, %c0_39, %c0_40], %64 {strides = array<i32>} : memref<1x36x32xbf16, #tpu.memory_space<vmem>>, vector<1x36x32xbf16>,
    %65 = arith.truncf %60 : vector<22x32xf32> to vector<22x32xbf16>
    %c0_41 = arith.constant 0 : index
    %c7_42 = arith.constant 7 : index
    %c0_43 = arith.constant 0 : index
    %66 = vector.load %arg5[%c0_41, %c7_42, %c0_43] : memref<1x36x32xbf16, #tpu.memory_space<vmem>>, vector<1x22x32xbf16>
    %67 = vector.shape_cast %66 : vector<1x22x32xbf16> to vector<22x32xbf16>
    %68 = vector.shape_cast %65 : vector<22x32xbf16> to vector<1x22x32xbf16>
    tpu.vector_store %arg5[%c0_41, %c7_42, %c0_43], %68 {strides = array<i32>} : memref<1x36x32xbf16, #tpu.memory_space<vmem>>, vector<1x22x32xbf16>,
    return
  }
  func.func @transform_0(%arg0: i32) -> (i32, i32, i32) {
    %c0_i32 = arith.constant 0 : i32
    %c0_i32_0 = arith.constant 0 : i32
    %c0_i32_1 = arith.constant 0 : i32
    return %arg0, %c0_i32, %c0_i32_0 : i32, i32, i32
  }
  func.func @transform_1(%arg0: i32) -> (i32, i32) {
    %c0_i32 = arith.constant 0 : i32
    %c0_i32_0 = arith.constant 0 : i32
    %c0_i32_1 = arith.constant 0 : i32
    return %c0_i32, %c0_i32_0 : i32, i32
  }
  func.func @transform_2(%arg0: i32) -> (i32, i32, i32) {
    %c0_i32 = arith.constant 0 : i32
    %c0_i32_0 = arith.constant 0 : i32
    %c0_i32_1 = arith.constant 0 : i32
    %c0_i32_2 = arith.constant 0 : i32
    return %c0_i32, %c0_i32_0, %c0_i32_1 : i32, i32, i32
  }
  func.func @transform_3(%arg0: i32) -> (i32, i32) {
    %c0_i32 = arith.constant 0 : i32
    %c0_i32_0 = arith.constant 0 : i32
    %c0_i32_1 = arith.constant 0 : i32
    return %c0_i32, %c0_i32_0 : i32, i32
  }
  func.func @transform_4(%arg0: i32) -> (i32, i32, i32) {
    %c0_i32 = arith.constant 0 : i32
    %c0_i32_0 = arith.constant 0 : i32
    %c0_i32_1 = arith.constant 0 : i32
    return %arg0, %c0_i32, %c0_i32_0 : i32, i32, i32
  }
}

module attributes {stable_mosaic.version = 11 : i64} {
  func.func @kernel(%arg0: i32, %arg1: memref<1x36x32xbf16, #tpu.memory_space<vmem>>, %arg2: memref<22x1xf32, #tpu.memory_space<vmem>>, %arg3: memref<9x32x16xbf16, #tpu.memory_space<vmem>>, %arg4: memref<16x32xbf16, #tpu.memory_space<vmem>>, %arg5: memref<1x36x32xbf16, #tpu.memory_space<vmem>>) attributes {dimension_semantics = [#tpu.dimension_semantics<parallel>], iteration_bounds = array<i64: 2>, scalar_prefetch = 0 : i64, scratch_operands = 0 : i64, tpu.core_type = #tpu.core_type<tc>, window_params = [{transform_indices = @transform_0, window_bounds = array<i64: 1, 36, 32>}, {pipeline_mode = #tpu.pipeline_mode<synchronous>, transform_indices = @transform_1, window_bounds = array<i64: 22, 1>}, {pipeline_mode = #tpu.pipeline_mode<synchronous>, transform_indices = @transform_2, window_bounds = array<i64: 9, 32, 16>}, {pipeline_mode = #tpu.pipeline_mode<synchronous>, transform_indices = @transform_3, window_bounds = array<i64: 16, 32>}, {transform_indices = @transform_4, window_bounds = array<i64: 1, 36, 32>}]} {
    %c0 = arith.constant 0 : index
    %c0_0 = arith.constant 0 : index
    %0 = vector.load %arg2[%c0, %c0_0] : memref<22x1xf32, #tpu.memory_space<vmem>>, vector<22x1xf32>
    %c0_1 = arith.constant 0 : index
    %c0_2 = arith.constant 0 : index
    %c0_3 = arith.constant 0 : index
    %1 = vector.load %arg1[%c0_1, %c0_2, %c0_3] : memref<1x36x32xbf16, #tpu.memory_space<vmem>>, vector<1x36x32xbf16>
    %2 = vector.shape_cast %1 : vector<1x36x32xbf16> to vector<36x32xbf16>
    %cst = arith.constant 0.000000e+00 : bf16
    %3 = vector.broadcast %cst : bf16 to vector<36x32xbf16>
    %4 = arith.maximumf %2, %3 : vector<36x32xbf16>
    %cst_4 = arith.constant 0.000000e+00 : f32
    %5 = vector.broadcast %cst_4 : f32 to vector<22x16xf32>
    %6 = vector.extract_strided_slice %4 {offsets = [0, 0], sizes = [22, 32], strides = [1, 1]} : vector<36x32xbf16> to vector<22x32xbf16>
    %c0_5 = arith.constant 0 : index
    %c0_6 = arith.constant 0 : index
    %c0_7 = arith.constant 0 : index
    %7 = vector.load %arg3[%c0_5, %c0_6, %c0_7] : memref<9x32x16xbf16, #tpu.memory_space<vmem>>, vector<1x32x16xbf16>
    %8 = vector.shape_cast %7 : vector<1x32x16xbf16> to vector<32x16xbf16>
    %cst_8 = arith.constant dense<0.000000e+00> : vector<22x16xf32>
    %9 = tpu.matmul %6, %8, %cst_8 {dimension_numbers = #tpu.dot_dimension_numbers<[1], [0], [0], [1], [0, 0, 1, 1], [], []>} : vector<22x32xbf16>, vector<32x16xbf16>, vector<22x16xf32> -> vector<22x16xf32>
    %10 = arith.addf %5, %9 : vector<22x16xf32>
    %11 = vector.extract_strided_slice %4 {offsets = [1, 0], sizes = [22, 32], strides = [1, 1]} : vector<36x32xbf16> to vector<22x32xbf16>
    %c1 = arith.constant 1 : index
    %c0_9 = arith.constant 0 : index
    %c0_10 = arith.constant 0 : index
    %12 = vector.load %arg3[%c1, %c0_9, %c0_10] : memref<9x32x16xbf16, #tpu.memory_space<vmem>>, vector<1x32x16xbf16>
    %13 = vector.shape_cast %12 : vector<1x32x16xbf16> to vector<32x16xbf16>
    %cst_11 = arith.constant dense<0.000000e+00> : vector<22x16xf32>
    %14 = tpu.matmul %11, %13, %cst_11 {dimension_numbers = #tpu.dot_dimension_numbers<[1], [0], [0], [1], [0, 0, 1, 1], [], []>} : vector<22x32xbf16>, vector<32x16xbf16>, vector<22x16xf32> -> vector<22x16xf32>
    %15 = arith.addf %10, %14 : vector<22x16xf32>
    %16 = vector.extract_strided_slice %4 {offsets = [2, 0], sizes = [22, 32], strides = [1, 1]} : vector<36x32xbf16> to vector<22x32xbf16>
    %c2 = arith.constant 2 : index
    %c0_12 = arith.constant 0 : index
    %c0_13 = arith.constant 0 : index
    %17 = vector.load %arg3[%c2, %c0_12, %c0_13] : memref<9x32x16xbf16, #tpu.memory_space<vmem>>, vector<1x32x16xbf16>
    %18 = vector.shape_cast %17 : vector<1x32x16xbf16> to vector<32x16xbf16>
    %cst_14 = arith.constant dense<0.000000e+00> : vector<22x16xf32>
    %19 = tpu.matmul %16, %18, %cst_14 {dimension_numbers = #tpu.dot_dimension_numbers<[1], [0], [0], [1], [0, 0, 1, 1], [], []>} : vector<22x32xbf16>, vector<32x16xbf16>, vector<22x16xf32> -> vector<22x16xf32>
    %20 = arith.addf %15, %19 : vector<22x16xf32>
    %21 = vector.extract_strided_slice %4 {offsets = [6, 0], sizes = [22, 32], strides = [1, 1]} : vector<36x32xbf16> to vector<22x32xbf16>
    %c3 = arith.constant 3 : index
    %c0_15 = arith.constant 0 : index
    %c0_16 = arith.constant 0 : index
    %22 = vector.load %arg3[%c3, %c0_15, %c0_16] : memref<9x32x16xbf16, #tpu.memory_space<vmem>>, vector<1x32x16xbf16>
    %23 = vector.shape_cast %22 : vector<1x32x16xbf16> to vector<32x16xbf16>
    %cst_17 = arith.constant dense<0.000000e+00> : vector<22x16xf32>
    %24 = tpu.matmul %21, %23, %cst_17 {dimension_numbers = #tpu.dot_dimension_numbers<[1], [0], [0], [1], [0, 0, 1, 1], [], []>} : vector<22x32xbf16>, vector<32x16xbf16>, vector<22x16xf32> -> vector<22x16xf32>
    %25 = arith.addf %20, %24 : vector<22x16xf32>
    %26 = vector.extract_strided_slice %4 {offsets = [7, 0], sizes = [22, 32], strides = [1, 1]} : vector<36x32xbf16> to vector<22x32xbf16>
    %c4 = arith.constant 4 : index
    %c0_18 = arith.constant 0 : index
    %c0_19 = arith.constant 0 : index
    %27 = vector.load %arg3[%c4, %c0_18, %c0_19] : memref<9x32x16xbf16, #tpu.memory_space<vmem>>, vector<1x32x16xbf16>
    %28 = vector.shape_cast %27 : vector<1x32x16xbf16> to vector<32x16xbf16>
    %cst_20 = arith.constant dense<0.000000e+00> : vector<22x16xf32>
    %29 = tpu.matmul %26, %28, %cst_20 {dimension_numbers = #tpu.dot_dimension_numbers<[1], [0], [0], [1], [0, 0, 1, 1], [], []>} : vector<22x32xbf16>, vector<32x16xbf16>, vector<22x16xf32> -> vector<22x16xf32>
    %30 = arith.addf %25, %29 : vector<22x16xf32>
    %31 = vector.extract_strided_slice %4 {offsets = [8, 0], sizes = [22, 32], strides = [1, 1]} : vector<36x32xbf16> to vector<22x32xbf16>
    %c5 = arith.constant 5 : index
    %c0_21 = arith.constant 0 : index
    %c0_22 = arith.constant 0 : index
    %32 = vector.load %arg3[%c5, %c0_21, %c0_22] : memref<9x32x16xbf16, #tpu.memory_space<vmem>>, vector<1x32x16xbf16>
    %33 = vector.shape_cast %32 : vector<1x32x16xbf16> to vector<32x16xbf16>
    %cst_23 = arith.constant dense<0.000000e+00> : vector<22x16xf32>
    %34 = tpu.matmul %31, %33, %cst_23 {dimension_numbers = #tpu.dot_dimension_numbers<[1], [0], [0], [1], [0, 0, 1, 1], [], []>} : vector<22x32xbf16>, vector<32x16xbf16>, vector<22x16xf32> -> vector<22x16xf32>
    %35 = arith.addf %30, %34 : vector<22x16xf32>
    %36 = vector.extract_strided_slice %4 {offsets = [12, 0], sizes = [22, 32], strides = [1, 1]} : vector<36x32xbf16> to vector<22x32xbf16>
    %c6 = arith.constant 6 : index
    %c0_24 = arith.constant 0 : index
    %c0_25 = arith.constant 0 : index
    %37 = vector.load %arg3[%c6, %c0_24, %c0_25] : memref<9x32x16xbf16, #tpu.memory_space<vmem>>, vector<1x32x16xbf16>
    %38 = vector.shape_cast %37 : vector<1x32x16xbf16> to vector<32x16xbf16>
    %cst_26 = arith.constant dense<0.000000e+00> : vector<22x16xf32>
    %39 = tpu.matmul %36, %38, %cst_26 {dimension_numbers = #tpu.dot_dimension_numbers<[1], [0], [0], [1], [0, 0, 1, 1], [], []>} : vector<22x32xbf16>, vector<32x16xbf16>, vector<22x16xf32> -> vector<22x16xf32>
    %40 = arith.addf %35, %39 : vector<22x16xf32>
    %41 = vector.extract_strided_slice %4 {offsets = [13, 0], sizes = [22, 32], strides = [1, 1]} : vector<36x32xbf16> to vector<22x32xbf16>
    %c7 = arith.constant 7 : index
    %c0_27 = arith.constant 0 : index
    %c0_28 = arith.constant 0 : index
    %42 = vector.load %arg3[%c7, %c0_27, %c0_28] : memref<9x32x16xbf16, #tpu.memory_space<vmem>>, vector<1x32x16xbf16>
    %43 = vector.shape_cast %42 : vector<1x32x16xbf16> to vector<32x16xbf16>
    %cst_29 = arith.constant dense<0.000000e+00> : vector<22x16xf32>
    %44 = tpu.matmul %41, %43, %cst_29 {dimension_numbers = #tpu.dot_dimension_numbers<[1], [0], [0], [1], [0, 0, 1, 1], [], []>} : vector<22x32xbf16>, vector<32x16xbf16>, vector<22x16xf32> -> vector<22x16xf32>
    %45 = arith.addf %40, %44 : vector<22x16xf32>
    %46 = vector.extract_strided_slice %4 {offsets = [14, 0], sizes = [22, 32], strides = [1, 1]} : vector<36x32xbf16> to vector<22x32xbf16>
    %c8 = arith.constant 8 : index
    %c0_30 = arith.constant 0 : index
    %c0_31 = arith.constant 0 : index
    %47 = vector.load %arg3[%c8, %c0_30, %c0_31] : memref<9x32x16xbf16, #tpu.memory_space<vmem>>, vector<1x32x16xbf16>
    %48 = vector.shape_cast %47 : vector<1x32x16xbf16> to vector<32x16xbf16>
    %cst_32 = arith.constant dense<0.000000e+00> : vector<22x16xf32>
    %49 = tpu.matmul %46, %48, %cst_32 {dimension_numbers = #tpu.dot_dimension_numbers<[1], [0], [0], [1], [0, 0, 1, 1], [], []>} : vector<22x32xbf16>, vector<32x16xbf16>, vector<22x16xf32> -> vector<22x16xf32>
    %50 = arith.addf %45, %49 : vector<22x16xf32>
    %cst_33 = arith.constant 0.000000e+00 : f32
    %51 = vector.broadcast %cst_33 : f32 to vector<22x16xf32>
    %52 = arith.maximumf %50, %51 : vector<22x16xf32>
    %53 = arith.truncf %52 : vector<22x16xf32> to vector<22x16xbf16>
    %c0_34 = arith.constant 0 : index
    %c0_35 = arith.constant 0 : index
    %54 = vector.load %arg4[%c0_34, %c0_35] : memref<16x32xbf16, #tpu.memory_space<vmem>>, vector<16x32xbf16>
    %cst_36 = arith.constant dense<0.000000e+00> : vector<22x32xf32>
    %55 = tpu.matmul %53, %54, %cst_36 {dimension_numbers = #tpu.dot_dimension_numbers<[1], [0], [0], [1], [0, 0, 1, 1], [], []>} : vector<22x16xbf16>, vector<16x32xbf16>, vector<22x32xf32> -> vector<22x32xf32>
    %56 = vector.extract_strided_slice %2 {offsets = [7, 0], sizes = [22, 32], strides = [1, 1]} : vector<36x32xbf16> to vector<22x32xbf16>
    %57 = arith.extf %56 : vector<22x32xbf16> to vector<22x32xf32>
    %58 = vector.broadcast %0 : vector<22x1xf32> to vector<22x32xf32>
    %59 = arith.mulf %55, %58 : vector<22x32xf32>
    %60 = arith.addf %57, %59 : vector<22x32xf32>
    %cst_37 = arith.constant 0.000000e+00 : f32
    %61 = vector.broadcast %cst_37 : f32 to vector<22x32xf32>
    %62 = arith.maximumf %60, %61 : vector<22x32xf32>
    %cst_38 = arith.constant 0.000000e+00 : bf16
    %63 = vector.broadcast %cst_38 : bf16 to vector<36x32xbf16>
    %c0_39 = arith.constant 0 : index
    %c0_40 = arith.constant 0 : index
    %c0_41 = arith.constant 0 : index
    %64 = vector.load %arg5[%c0_39, %c0_40, %c0_41] : memref<1x36x32xbf16, #tpu.memory_space<vmem>>, vector<1x36x32xbf16>
    %65 = vector.shape_cast %64 : vector<1x36x32xbf16> to vector<36x32xbf16>
    %66 = vector.shape_cast %63 : vector<36x32xbf16> to vector<1x36x32xbf16>
    tpu.vector_store %arg5[%c0_39, %c0_40, %c0_41], %66 {strides = array<i32>} : memref<1x36x32xbf16, #tpu.memory_space<vmem>>, vector<1x36x32xbf16>,
    %67 = arith.truncf %62 : vector<22x32xf32> to vector<22x32xbf16>
    %c0_42 = arith.constant 0 : index
    %c7_43 = arith.constant 7 : index
    %c0_44 = arith.constant 0 : index
    %68 = vector.load %arg5[%c0_42, %c7_43, %c0_44] : memref<1x36x32xbf16, #tpu.memory_space<vmem>>, vector<1x22x32xbf16>
    %69 = vector.shape_cast %68 : vector<1x22x32xbf16> to vector<22x32xbf16>
    %70 = vector.shape_cast %67 : vector<22x32xbf16> to vector<1x22x32xbf16>
    tpu.vector_store %arg5[%c0_42, %c7_43, %c0_44], %70 {strides = array<i32>} : memref<1x36x32xbf16, #tpu.memory_space<vmem>>, vector<1x22x32xbf16>,
    return
  }
  func.func @transform_0(%arg0: i32) -> (i32, i32, i32) {
    %c0_i32 = arith.constant 0 : i32
    %c0_i32_0 = arith.constant 0 : i32
    %c0_i32_1 = arith.constant 0 : i32
    return %arg0, %c0_i32, %c0_i32_0 : i32, i32, i32
  }
  func.func @transform_1(%arg0: i32) -> (i32, i32) {
    %c0_i32 = arith.constant 0 : i32
    %c0_i32_0 = arith.constant 0 : i32
    %c0_i32_1 = arith.constant 0 : i32
    return %c0_i32, %c0_i32_0 : i32, i32
  }
  func.func @transform_2(%arg0: i32) -> (i32, i32, i32) {
    %c0_i32 = arith.constant 0 : i32
    %c0_i32_0 = arith.constant 0 : i32
    %c0_i32_1 = arith.constant 0 : i32
    %c0_i32_2 = arith.constant 0 : i32
    return %c0_i32, %c0_i32_0, %c0_i32_1 : i32, i32, i32
  }
  func.func @transform_3(%arg0: i32) -> (i32, i32) {
    %c0_i32 = arith.constant 0 : i32
    %c0_i32_0 = arith.constant 0 : i32
    %c0_i32_1 = arith.constant 0 : i32
    return %c0_i32, %c0_i32_0 : i32, i32
  }
  func.func @transform_4(%arg0: i32) -> (i32, i32, i32) {
    %c0_i32 = arith.constant 0 : i32
    %c0_i32_0 = arith.constant 0 : i32
    %c0_i32_1 = arith.constant 0 : i32
    return %arg0, %c0_i32, %c0_i32_0 : i32, i32, i32
  }
}

</mosaic_0001>

<llo_original>
// kernel: encoder_identity_forward.4
$region0: #{encoder_identity_forward.4}
  #allocation0 [shape = 'u32[]', space=smem, size = 0x4, offset = 0x4, fixed_abs, tag = 'smem constant byte address 0x4 - core index']
  #allocation1 [shape = 'u32[72,128]{1,0:T(1,128)}', space=vmem, size = 0x9000, scoped, tag = 'internal scratch']
  #allocation2 [shape = 'bf16[100,32]{1,0:T(8,128)(2,1)}', space=vmem, size = 0x6800, scoped, tag = 'scratch operand']
  %s0 = inlined_call_operand.vmem [shape: bf16[8,100,12], index: 0, kind: input, shape index: {}]
  %s1 = inlined_call_operand.vmem [shape: f32[78,1], index: 1, kind: input, shape index: {}]
  %s2 = inlined_call_operand.vmem [shape: bf16[9,12,32], index: 2, kind: input, shape index: {}]
  %s3 = inlined_call_operand.vmem [shape: f32[1,32], index: 3, kind: input, shape index: {}]
  %s4 = inlined_call_operand.vmem [shape: f32[1,32], index: 4, kind: input, shape index: {}]
  %s5 = inlined_call_operand.vmem [shape: bf16[9,32,32], index: 5, kind: input, shape index: {}]
  %s6 = inlined_call_operand.vmem [shape: f32[1,32], index: 6, kind: input, shape index: {}]
  %s7 = inlined_call_operand.vmem [shape: f32[1,32], index: 7, kind: input, shape index: {}]
  %s8 = inlined_call_operand.vmem [shape: bf16[8,100,32], index: 8, kind: output, shape index: {}]
  %s9 = sld [smem:[#allocation0]]
  $region65: #{encoder_identity_forward.4} parent=0
    _
  %s11 = ssub.s32 1, %s9
  %s12 = scalar_select 0, %s11, %s9
  loop: start=0, step=1, limit=10
  $region2: #{encoder_identity_forward.4} parent=0 // loop_pre_header
    _
  $region3: #{encoder_identity_forward.4} parent=0 // loop_header
    %s14 = sphi 0, %s18
    %p15 = scmp.ge.s32.totalorder %s14, 10
    %s24 = sphi 0, %s26
    %s27 = sphi 0, %s24
    %s28 = sphi 0, %s27
    %s44 = sphi 0, %s28
    %s48 = sphi 0, %s48
    %s50 = sphi 0, %s48
    %s51 = sphi 0, %s50
    %s65 = sphi 0, %s51
    %s69 = sphi 0, %s69
    %s71 = sphi 0, %s69
    %s72 = sphi 0, %s71
    %s86 = sphi 0, %s72
    %s90 = sphi 0, %s90
    %s92 = sphi 0, %s90
    %s93 = sphi 0, %s92
    %s107 = sphi 0, %s93
    %s111 = sphi 0, %s111
    %s113 = sphi 0, %s111
    %s114 = sphi 0, %s113
    %s128 = sphi 0, %s114
    %s132 = sphi 0, %s132
    %s134 = sphi 0, %s132
    %s135 = sphi 0, %s134
    %s149 = sphi 0, %s135
    %s153 = sphi 0, %s153
    %s155 = sphi 0, %s153
    %s156 = sphi 0, %s155
    %s170 = sphi 0, %s156
    %s174 = sphi 0, %s174
    %s176 = sphi 0, %s174
    %s177 = sphi 0, %s176
    %s191 = sphi 0, %s177
    %s197 = sphi 0, %s199
    %s200 = sphi 0, %s197
    %s201 = sphi 0, %s200
    %s217 = sphi 0, %s201
  $region4: #{encoder_identity_forward.4} parent=0 // loop_header_branch
    %17 = sbr.rel (%p15) target = $region8
  $region5: #{encoder_identity_forward.4} parent=0 // loop_body
    %s19 = ssub.s32 %s14, 1
    %s20 = ssub.s32 %s14, 2
    %s21 = sadd.s32 %s14, 1
    %s22 = ssub.s32 %s14, %s21
    %p23 = scmp.eq.s32.totalorder %s22, 0
    %s25 = sadd.s32 %s24, 1
    %s26 = scalar_select %p23, %s24, %s25
    %p29 = pneg %p23
    %p30 = scmp.eq.s32.totalorder %s14, 7
    %p31 = por %p29, %p30
    %p32 = scmp.ne.s32.totalorder %s24, %s27
    %p33 = scmp.eq.s32.totalorder %s14, 0
    %p34 = por %p32, %p33
    %p35 = scmp.ne.s32.totalorder %s24, %s27
    %p36 = scmp.eq.s32.totalorder %s19, 7
    %p37 = por %p35, %p36
    %p38 = scmp.ne.s32.totalorder %s27, %s28
    %p39 = scmp.eq.s32.totalorder %s19, 0
    %p40 = por %p38, %p39
    %p41 = scmp.ne.s32.totalorder %s27, %s28
    %p42 = scmp.eq.s32.totalorder %s20, 7
    %p43 = por %p41, %p42
    %p45 = scmp.ne.s32.totalorder %s28, %s44
    %p46 = scmp.eq.s32.totalorder %s20, 0
    %p47 = por %p45, %p46
    %s49 = sadd.s32 %s48, 1
    %p52 = scmp.eq.s32.totalorder %s14, 7
    %p53 = scmp.ne.s32.totalorder %s48, %s50
    %p54 = scmp.eq.s32.totalorder %s14, 0
    %p55 = por %p53, %p54
    %p56 = scmp.ne.s32.totalorder %s48, %s50
    %p57 = scmp.eq.s32.totalorder %s19, 7
    %p58 = por %p56, %p57
    %p59 = scmp.ne.s32.totalorder %s50, %s51
    %p60 = scmp.eq.s32.totalorder %s19, 0
    %p61 = por %p59, %p60
    %p62 = scmp.ne.s32.totalorder %s50, %s51
    %p63 = scmp.eq.s32.totalorder %s20, 7
    %p64 = por %p62, %p63
    %p66 = scmp.ne.s32.totalorder %s51, %s65
    %p67 = scmp.eq.s32.totalorder %s20, 0
    %p68 = por %p66, %p67
    %s70 = sadd.s32 %s69, 1
    %p73 = scmp.eq.s32.totalorder %s14, 7
    %p74 = scmp.ne.s32.totalorder %s69, %s71
    %p75 = scmp.eq.s32.totalorder %s14, 0
    %p76 = por %p74, %p75
    %p77 = scmp.ne.s32.totalorder %s69, %s71
    %p78 = scmp.eq.s32.totalorder %s19, 7
    %p79 = por %p77, %p78
    %p80 = scmp.ne.s32.totalorder %s71, %s72
    %p81 = scmp.eq.s32.totalorder %s19, 0
    %p82 = por %p80, %p81
    %p83 = scmp.ne.s32.totalorder %s71, %s72
    %p84 = scmp.eq.s32.totalorder %s20, 7
    %p85 = por %p83, %p84
    %p87 = scmp.ne.s32.totalorder %s72, %s86
    %p88 = scmp.eq.s32.totalorder %s20, 0
    %p89 = por %p87, %p88
    %s91 = sadd.s32 %s90, 1
    %p94 = scmp.eq.s32.totalorder %s14, 7
    %p95 = scmp.ne.s32.totalorder %s90, %s92
    %p96 = scmp.eq.s32.totalorder %s14, 0
    %p97 = por %p95, %p96
    %p98 = scmp.ne.s32.totalorder %s90, %s92
    %p99 = scmp.eq.s32.totalorder %s19, 7
    %p100 = por %p98, %p99
    %p101 = scmp.ne.s32.totalorder %s92, %s93
    %p102 = scmp.eq.s32.totalorder %s19, 0
    %p103 = por %p101, %p102
    %p104 = scmp.ne.s32.totalorder %s92, %s93
    %p105 = scmp.eq.s32.totalorder %s20, 7
    %p106 = por %p104, %p105
    %p108 = scmp.ne.s32.totalorder %s93, %s107
    %p109 = scmp.eq.s32.totalorder %s20, 0
    %p110 = por %p108, %p109
    %s112 = sadd.s32 %s111, 1
    %p115 = scmp.eq.s32.totalorder %s14, 7
    %p116 = scmp.ne.s32.totalorder %s111, %s113
    %p117 = scmp.eq.s32.totalorder %s14, 0
    %p118 = por %p116, %p117
    %p119 = scmp.ne.s32.totalorder %s111, %s113
    %p120 = scmp.eq.s32.totalorder %s19, 7
    %p121 = por %p119, %p120
    %p122 = scmp.ne.s32.totalorder %s113, %s114
    %p123 = scmp.eq.s32.totalorder %s19, 0
    %p124 = por %p122, %p123
    %p125 = scmp.ne.s32.totalorder %s113, %s114
    %p126 = scmp.eq.s32.totalorder %s20, 7
    %p127 = por %p125, %p126
    %p129 = scmp.ne.s32.totalorder %s114, %s128
    %p130 = scmp.eq.s32.totalorder %s20, 0
    %p131 = por %p129, %p130
    %s133 = sadd.s32 %s132, 1
    %p136 = scmp.eq.s32.totalorder %s14, 7
    %p137 = scmp.ne.s32.totalorder %s132, %s134
    %p138 = scmp.eq.s32.totalorder %s14, 0
    %p139 = por %p137, %p138
    %p140 = scmp.ne.s32.totalorder %s132, %s134
    %p141 = scmp.eq.s32.totalorder %s19, 7
    %p142 = por %p140, %p141
    %p143 = scmp.ne.s32.totalorder %s134, %s135
    %p144 = scmp.eq.s32.totalorder %s19, 0
    %p145 = por %p143, %p144
    %p146 = scmp.ne.s32.totalorder %s134, %s135
    %p147 = scmp.eq.s32.totalorder %s20, 7
    %p148 = por %p146, %p147
    %p150 = scmp.ne.s32.totalorder %s135, %s149
    %p151 = scmp.eq.s32.totalorder %s20, 0
    %p152 = por %p150, %p151
    %s154 = sadd.s32 %s153, 1
    %p157 = scmp.eq.s32.totalorder %s14, 7
    %p158 = scmp.ne.s32.totalorder %s153, %s155
    %p159 = scmp.eq.s32.totalorder %s14, 0
    %p160 = por %p158, %p159
    %p161 = scmp.ne.s32.totalorder %s153, %s155
    %p162 = scmp.eq.s32.totalorder %s19, 7
    %p163 = por %p161, %p162
    %p164 = scmp.ne.s32.totalorder %s155, %s156
    %p165 = scmp.eq.s32.totalorder %s19, 0
    %p166 = por %p164, %p165
    %p167 = scmp.ne.s32.totalorder %s155, %s156
    %p168 = scmp.eq.s32.totalorder %s20, 7
    %p169 = por %p167, %p168
    %p171 = scmp.ne.s32.totalorder %s156, %s170
    %p172 = scmp.eq.s32.totalorder %s20, 0
    %p173 = por %p171, %p172
    %s175 = sadd.s32 %s174, 1
    %p178 = scmp.eq.s32.totalorder %s14, 7
    %p179 = scmp.ne.s32.totalorder %s174, %s176
    %p180 = scmp.eq.s32.totalorder %s14, 0
    %p181 = por %p179, %p180
    %p182 = scmp.ne.s32.totalorder %s174, %s176
    %p183 = scmp.eq.s32.totalorder %s19, 7
    %p184 = por %p182, %p183
    %p185 = scmp.ne.s32.totalorder %s176, %s177
    %p186 = scmp.eq.s32.totalorder %s19, 0
    %p187 = por %p185, %p186
    %p188 = scmp.ne.s32.totalorder %s176, %s177
    %p189 = scmp.eq.s32.totalorder %s20, 7
    %p190 = por %p188, %p189
    %p192 = scmp.ne.s32.totalorder %s177, %s191
    %p193 = scmp.eq.s32.totalorder %s20, 0
    %p194 = por %p192, %p193
    %s195 = ssub.s32 %s14, %s21
    %p196 = scmp.eq.s32.totalorder %s195, 0
    %s198 = sadd.s32 %s197, 1
    %s199 = scalar_select %p196, %s197, %s198
    %p202 = pneg %p196
    %p203 = scmp.eq.s32.totalorder %s14, 7
    %p204 = por %p202, %p203
    %p205 = scmp.ne.s32.totalorder %s197, %s200
    %p206 = scmp.eq.s32.totalorder %s14, 0
    %p207 = por %p205, %p206
    %p208 = scmp.ne.s32.totalorder %s197, %s200
    %p209 = scmp.eq.s32.totalorder %s19, 7
    %p210 = por %p208, %p209
    %p211 = scmp.ne.s32.totalorder %s200, %s201
    %p212 = scmp.eq.s32.totalorder %s19, 0
    %p213 = por %p211, %p212
    %p214 = scmp.ne.s32.totalorder %s200, %s201
    %p215 = scmp.eq.s32.totalorder %s20, 7
    %p216 = por %p214, %p215
    %p218 = scmp.ne.s32.totalorder %s201, %s217
    %p219 = scmp.eq.s32.totalorder %s20, 0
    %p220 = por %p218, %p219
    %p221 = scmp.le.s32.totalorder 1, %s14
    %p222 = scmp.lt.s32.totalorder %s14, 9
    %p223 = pnand %p221, %p222
    %p224 = pneg %p223
    // Predicated region
    $region9: #{encoder_identity_forward.4} parent=5 // pred_check
      _
    $region10: #{encoder_identity_forward.4} parent=5 // pred_check_branch
      %226 = sbr.rel (%p223) target = $region12
    $region11: #{encoder_identity_forward.4} parent=5 // pred_region
      %s227 = ssub.s32 %s14, 1
      // Predicated region
      $region13: #{encoder_identity_forward.4} parent=11 // pred_check
        %p228 = pneg %p61
      $region14: #{encoder_identity_forward.4} parent=11 // pred_check_branch
        %230 = sbr.rel (%p228) target = $region16
      $region15: #{encoder_identity_forward.4} parent=11 // pred_region
        _
      $region16: #{encoder_identity_forward.4} parent=11 // pred_fallthru
        _
      // Predicated region
      $region17: #{encoder_identity_forward.4} parent=11 // pred_check
        %p231 = pneg %p82
      $region18: #{encoder_identity_forward.4} parent=11 // pred_check_branch
        %233 = sbr.rel (%p231) target = $region20
      $region19: #{encoder_identity_forward.4} parent=11 // pred_region
        _
      $region20: #{encoder_identity_forward.4} parent=11 // pred_fallthru
        _
      // Predicated region
      $region21: #{encoder_identity_forward.4} parent=11 // pred_check
        %p234 = pneg %p103
      $region22: #{encoder_identity_forward.4} parent=11 // pred_check_branch
        %236 = sbr.rel (%p234) target = $region24
      $region23: #{encoder_identity_forward.4} parent=11 // pred_region
        _
      $region24: #{encoder_identity_forward.4} parent=11 // pred_fallthru
        _
      // Predicated region
      $region25: #{encoder_identity_forward.4} parent=11 // pred_check
        %p237 = pneg %p124
      $region26: #{encoder_identity_forward.4} parent=11 // pred_check_branch
        %239 = sbr.rel (%p237) target = $region28
      $region27: #{encoder_identity_forward.4} parent=11 // pred_region
        _
      $region28: #{encoder_identity_forward.4} parent=11 // pred_fallthru
        _
      // Predicated region
      $region29: #{encoder_identity_forward.4} parent=11 // pred_check
        %p240 = pneg %p145
      $region30: #{encoder_identity_forward.4} parent=11 // pred_check_branch
        %242 = sbr.rel (%p240) target = $region32
      $region31: #{encoder_identity_forward.4} parent=11 // pred_region
        _
      $region32: #{encoder_identity_forward.4} parent=11 // pred_fallthru
        _
      // Predicated region
      $region33: #{encoder_identity_forward.4} parent=11 // pred_check
        %p243 = pneg %p166
      $region34: #{encoder_identity_forward.4} parent=11 // pred_check_branch
        %245 = sbr.rel (%p243) target = $region36
      $region35: #{encoder_identity_forward.4} parent=11 // pred_region
        _
      $region36: #{encoder_identity_forward.4} parent=11 // pred_fallthru
        _
      // Predicated region
      $region37: #{encoder_identity_forward.4} parent=11 // pred_check
        %p246 = pneg %p187
      $region38: #{encoder_identity_forward.4} parent=11 // pred_check_branch
        %248 = sbr.rel (%p246) target = $region40
      $region39: #{encoder_identity_forward.4} parent=11 // pred_region
        _
      $region40: #{encoder_identity_forward.4} parent=11 // pred_fallthru
        _
    $region12: #{encoder_identity_forward.4} parent=5 // pred_fallthru
      _
    %p249 = scmp.lt.s32.totalorder %s14, 8
    // Predicated region
    $region41: #{encoder_identity_forward.4} parent=5 // pred_check
      %p250 = pneg %p249
    $region42: #{encoder_identity_forward.4} parent=5 // pred_check_branch
      %252 = sbr.rel (%p250) target = $region44
    $region43: #{encoder_identity_forward.4} parent=5 // pred_region
      // Predicated region
      $region45: #{encoder_identity_forward.4} parent=43 // pred_check
        %p253 = pneg %p34
      $region46: #{encoder_identity_forward.4} parent=43 // pred_check_branch
        %255 = sbr.rel (%p253) target = $region48
      $region47: #{encoder_identity_forward.4} parent=43 // pred_region
        %p256 = scmp.lt.s32.totalorder %s14, 7
        %s257 = scalar_select %p256, %s14, 7
        %s258 = smul.addr %s257, 13
        %s259 = smul.addr %s258, 4
        %s260 = scalar_lea.vmem %s0, %s259
      $region48: #{encoder_identity_forward.4} parent=43 // pred_fallthru
        _
    $region44: #{encoder_identity_forward.4} parent=5 // pred_fallthru
      _
    %p261 = scmp.le.s32.totalorder 1, %s14
    %p262 = scmp.lt.s32.totalorder %s14, 9
    %p263 = pnand %p261, %p262
    %p264 = pneg %p263
    // Predicated region
    $region49: #{encoder_identity_forward.4} parent=5 // pred_check
      _
    $region50: #{encoder_identity_forward.4} parent=5 // pred_check_branch
      %266 = sbr.rel (%p263) target = $region52
    $region51: #{encoder_identity_forward.4} parent=5 // pred_region
      %s267 = ssub.s32 %s14, 1
      %p268 = scmp.lt.s32.totalorder %s19, 7
      %s269 = scalar_select %p268, %s19, 7
      %s270 = smul.addr %s269, 13
      %s271 = smul.addr %s270, 4
      %s272 = scalar_lea.vmem %s0, %s271
      %p273 = pneg %p40
      %p274 = pneg %p37
      %p275 = pneg %p61
      %p276 = pneg %p58
      %p277 = pneg %p82
      %p278 = pneg %p79
      %p279 = pneg %p103
      %p280 = pneg %p100
      %p281 = pneg %p124
      %p282 = pneg %p121
      %p283 = pneg %p145
      %p284 = pneg %p142
      %p285 = pneg %p166
      %p286 = pneg %p163
      %p287 = pneg %p187
      %p288 = pneg %p184
      %p289 = pneg %p213
      %p290 = pneg %p210
      %p291 = scmp.lt.s32.totalorder %s19, 7
      %s292 = scalar_select %p291, %s19, 7
      %s293 = smul.addr %s292, 13
      %s294 = smul.addr %s293, 4
      %s295 = scalar_lea.vmem %s8, %s294
      %p296 = scmp.lt.s32.totalorder %s19, 7
      %s297 = scalar_select %p296, %s19, 7
      %s298 = smul.addr %s297, 13
      %s299 = smul.addr %s298, 4
      %s300 = scalar_lea.vmem %s0, %s299
      %p301 = scmp.lt.s32.totalorder %s19, 7
      %s302 = scalar_select %p301, %s19, 7
      %s303 = smul.addr %s302, 13
      %s304 = smul.addr %s303, 4
      %s305 = scalar_lea.vmem %s8, %s304
      %v307 = vld [vmem:[%s1] sm:$0xff]
      %v308 = vld [vmem:[%s1 + $0x8] sm:$0xff]
      %v309 = vld [vmem:[%s1 + $0x10] sm:$0xff]
      %v310 = vld [vmem:[%s1 + $0x18] sm:$0xff]
      %v311 = vld [vmem:[%s1 + $0x20] sm:$0xff]
      %v312 = vld [vmem:[%s1 + $0x28] sm:$0xff]
      %v313 = vld [vmem:[%s1 + $0x30] sm:$0xff]
      %v314 = vld [vmem:[%s1 + $0x38] sm:$0xff]
      %v315 = vld [vmem:[%s1 + $0x40] sm:$0xff]
      %v316 = vld [vmem:[%s1 + $0x48] sm:$0x3f]
      %v317 = vld [vmem:[%s300] sm:$0xf]
      %v318 = vld [vmem:[%s300 + $0x4] sm:$0xf]
      %v319 = vld [vmem:[%s300 + $0x8] sm:$0xf]
      %v320 = vld [vmem:[%s300 + $0xc] sm:$0xf]
      %v321 = vld [vmem:[%s300 + $0x10] sm:$0xf]
      %v322 = vld [vmem:[%s300 + $0x14] sm:$0xf]
      %v323 = vld [vmem:[%s300 + $0x18] sm:$0xf]
      %v324 = vld [vmem:[%s300 + $0x1c] sm:$0xf]
      %v325 = vld [vmem:[%s300 + $0x20] sm:$0xf]
      %v326 = vld [vmem:[%s300 + $0x24] sm:$0x7]
      %v327 = vld [vmem:[%s2] sm:$0xf]
      %v328 = vld [vmem:[%s2 + $0x4] sm:$0x3]
      %v329 = vld [vmem:[%s300 + $0x24] sm:$0xf]
      %s330 = scalar_lea.vmem %s2, 8
      %v331 = vld [vmem:[%s330] sm:$0xf]
      %v332 = vld [vmem:[%s330 + $0x4] sm:$0x3]
      %v343 = vunpack.c.l.b16 %v317
      %v344 = vunpack.c.l.b16 %v318
      %v345 = vunpack.c.l.b16 %v319
      %v346 = vunpack.c.l.b16 %v320
      %v347 = vunpack.c.l.b16 %v321
      %v348 = vunpack.c.l.b16 %v322
      %v349 = vunpack.c.l.b16 %v323
      %v350 = vunpack.c.l.b16 %v324
      %v351 = vunpack.c.l.b16 %v325
      %v352 = vunpack.c.l.b16 %v329
      %v353 = vpack.c.b16 %v344, %v343
      %v354 = vpack.c.b16 %v346, %v345
      %v355 = vpack.c.b16 %v348, %v347
      %v356 = vpack.c.b16 %v350, %v349
      %v357 = vpack.c.b16 %v352, %v351
      %vm358 = vsmask.f32 7424
      %v360 = vshrl.u32 %v353, 16
      %v362 = vshll.u32 %v353, 16
      %v364 = vrot.slane %v362, 1
      %v365 = vor.u32 %v360, %v364
      %v367 = vshll.u32 %v354, 16
      %v369 = vrot.slane %v367, 1
      %v370 = vsel %vm358, %v365, %v369
      %v371 = vshrl.u32 %v354, 16
      %v373 = vor.u32 %v371, %v369
      %v375 = vshll.u32 %v355, 16
      %v377 = vrot.slane %v375, 1
      %v378 = vsel %vm358, %v373, %v377
      %v379 = vshrl.u32 %v355, 16
      %v381 = vor.u32 %v379, %v377
      %v383 = vshll.u32 %v356, 16
      %v385 = vrot.slane %v383, 1
      %v386 = vsel %vm358, %v381, %v385
      %v387 = vshrl.u32 %v356, 16
      %v389 = vor.u32 %v387, %v385
      %v391 = vshll.u32 %v357, 16
      %v393 = vrot.slane %v391, 1
      %v394 = vsel %vm358, %v389, %v393
      %v395 = vshrl.u32 %v357, 16
      %v397 = vor.u32 %v395, %v393
      %v400 = vunpack.c.l.b16 %v331
      %v401 = vunpack.c.l.b16 %v332
      %v402 = vpack.c.b16 %v401, %v400
      %vm403 = vcmask 97280
      %v405 = vsel %vm403, %v370, 0
      %v408 = vsel %vm403, %v378, 0
      %v411 = vsel %vm403, %v386, 0
      %v414 = vsel %vm403, %v394, 0
      %v417 = vsel %vm403, %v397, 0
      %vm419 = vcmask 1045504
      %v421 = vsel %vm419, %v402, 0
      %423 = vmatpush.bf16.msra.mxu0 0
      %424 = vmatpush.bf16.msra.mxu0 0
      %425 = vmatpush.bf16.msra.mxu0 0
      %426 = vmatpush.bf16.msra.mxu0 0
      %427 = vmatpush.bf16.msra.mxu0 0
      %428 = vmatpush.bf16.msra.mxu0 0
      %429 = vmatpush.bf16.msra.mxu0 0
      %430 = vmatpush.bf16.msra.mxu0 %v421
      %431 = vmatmul.bf16.gmra.mxu0 %v405
      %v432 = vpop.f32.mrf.mxu0
      %v433 = vadd.f32 0.0, %v432
      %v434 = vpop.f32.mrf.mxu0
      %v435 = vadd.f32 0.0, %v434
      %436 = vmatmul.bf16.gmra.mxu0 %v408
      %v437 = vpop.f32.mrf.mxu0
      %v438 = vadd.f32 0.0, %v437
      %v439 = vpop.f32.mrf.mxu0
      %v440 = vadd.f32 0.0, %v439
      %441 = vmatmul.bf16.gmra.mxu0 %v411
      %v442 = vpop.f32.mrf.mxu0
      %v443 = vadd.f32 0.0, %v442
      %v444 = vpop.f32.mrf.mxu0
      %v445 = vadd.f32 0.0, %v444
      %446 = vmatmul.bf16.gmra.mxu0 %v414
      %v447 = vpop.f32.mrf.mxu0
      %v448 = vadd.f32 0.0, %v447
      %v449 = vpop.f32.mrf.mxu0
      %v450 = vadd.f32 0.0, %v449
      %451 = vmatmul.bf16.gmra.mxu0 %v417
      %v452 = vpop.f32.mrf.mxu0
      %v453 = vadd.f32 0.0, %v452
      %v454 = vpop.f32.mrf.mxu0
      %v455 = vadd.f32 0.0, %v454
      %456 = vdwg.mxu0
      %v458 = vunpack.c.l.b16 %v326
      %v459 = vpack.c.b16 %v458, %v351
      %v462 = vunpack.c.l.b16 %v327
      %v463 = vunpack.c.l.b16 %v328
      %v464 = vpack.c.b16 %v463, %v462
      %v465 = vsel %vm403, %v353, 0
      %v467 = vsel %vm403, %v354, 0
      %v469 = vsel %vm403, %v355, 0
      %v471 = vsel %vm403, %v356, 0
      %v474 = vsel %vm403, %v459, 0
      %v477 = vsel %vm419, %v464, 0
      %479 = vmatpush.bf16.msra.mxu0 0
      %480 = vmatpush.bf16.msra.mxu0 0
      %481 = vmatpush.bf16.msra.mxu0 0
      %482 = vmatpush.bf16.msra.mxu0 0
      %483 = vmatpush.bf16.msra.mxu0 0
      %484 = vmatpush.bf16.msra.mxu0 0
      %485 = vmatpush.bf16.msra.mxu0 0
      %486 = vmatpush.bf16.msra.mxu0 %v477
      %487 = vmatmul.bf16.gmra.mxu0 %v465
      %v488 = vpop.f32.mrf.mxu0
      %v489 = vadd.f32 %v433, %v488
      %v490 = vpop.f32.mrf.mxu0
      %v491 = vadd.f32 %v435, %v490
      %492 = vmatmul.bf16.gmra.mxu0 %v467
      %v493 = vpop.f32.mrf.mxu0
      %v494 = vadd.f32 %v438, %v493
      %v495 = vpop.f32.mrf.mxu0
      %v496 = vadd.f32 %v440, %v495
      %497 = vmatmul.bf16.gmra.mxu0 %v469
      %v498 = vpop.f32.mrf.mxu0
      %v499 = vadd.f32 %v443, %v498
      %v500 = vpop.f32.mrf.mxu0
      %v501 = vadd.f32 %v445, %v500
      %502 = vmatmul.bf16.gmra.mxu0 %v471
      %v503 = vpop.f32.mrf.mxu0
      %v504 = vadd.f32 %v448, %v503
      %v505 = vpop.f32.mrf.mxu0
      %v506 = vadd.f32 %v450, %v505
      %507 = vmatmul.bf16.gmra.mxu0 %v474
      %v508 = vpop.f32.mrf.mxu0
      %v509 = vadd.f32 %v453, %v508
      %v510 = vpop.f32.mrf.mxu0
      %v511 = vadd.f32 %v455, %v510
      %512 = vdwg.mxu0
      %v513 = vld [vmem:[%s300] sm:$0xe]
      %s514 = scalar_lea.vmem %s2, 16
      %v515 = vld [vmem:[%s514] sm:$0xf]
      %v516 = vld [vmem:[%s514 + $0x4] sm:$0x3]
      %v518 = vunpack.c.l.b16 %v513
      %v519 = vpack.c.b16 %v344, %v518
      %vm520 = vcmask 1046528
      %v521 = vrot.slane %v519, 1
      %v522 = vrot.slane %v354, 1
      %v523 = vsel %vm520, %v521, %v522
      %v524 = vrot.slane %v355, 1
      %v525 = vsel %vm520, %v522, %v524
      %v526 = vrot.slane %v356, 1
      %v527 = vsel %vm520, %v524, %v526
      %v528 = vrot.slane %v357, 1
      %v529 = vsel %vm520, %v526, %v528
      %v532 = vunpack.c.l.b16 %v515
      %v533 = vunpack.c.l.b16 %v516
      %v534 = vpack.c.b16 %v533, %v532
      %v536 = vsel %vm403, %v523, 0
      %v539 = vsel %vm403, %v525, 0
      %v542 = vsel %vm403, %v527, 0
      %v545 = vsel %vm403, %v529, 0
      %v548 = vsel %vm403, %v528, 0
      %v551 = vsel %vm419, %v534, 0
      %553 = vmatpush.bf16.msra.mxu0 0
      %554 = vmatpush.bf16.msra.mxu0 0
      %555 = vmatpush.bf16.msra.mxu0 0
      %556 = vmatpush.bf16.msra.mxu0 0
      %557 = vmatpush.bf16.msra.mxu0 0
      %558 = vmatpush.bf16.msra.mxu0 0
      %559 = vmatpush.bf16.msra.mxu0 0
      %560 = vmatpush.bf16.msra.mxu0 %v551
      %561 = vmatmul.bf16.gmra.mxu0 %v536
      %v562 = vpop.f32.mrf.mxu0
      %v563 = vadd.f32 0.0, %v562
      %v564 = vpop.f32.mrf.mxu0
      %v565 = vadd.f32 0.0, %v564
      %566 = vmatmul.bf16.gmra.mxu0 %v539
      %v567 = vpop.f32.mrf.mxu0
      %v568 = vadd.f32 0.0, %v567
      %v569 = vpop.f32.mrf.mxu0
      %v570 = vadd.f32 0.0, %v569
      %571 = vmatmul.bf16.gmra.mxu0 %v542
      %v572 = vpop.f32.mrf.mxu0
      %v573 = vadd.f32 0.0, %v572
      %v574 = vpop.f32.mrf.mxu0
      %v575 = vadd.f32 0.0, %v574
      %576 = vmatmul.bf16.gmra.mxu0 %v545
      %v577 = vpop.f32.mrf.mxu0
      %v578 = vadd.f32 0.0, %v577
      %v579 = vpop.f32.mrf.mxu0
      %v580 = vadd.f32 0.0, %v579
      %581 = vmatmul.bf16.gmra.mxu0 %v548
      %v582 = vpop.f32.mrf.mxu0
      %v583 = vadd.f32 0.0, %v582
      %v584 = vpop.f32.mrf.mxu0
      %v585 = vadd.f32 0.0, %v584
      %586 = vdwg.mxu0
      %v587 = vadd.f32 %v489, %v563
      %v588 = vadd.f32 %v491, %v565
      %v589 = vadd.f32 %v494, %v568
      %v590 = vadd.f32 %v496, %v570
      %v591 = vadd.f32 %v499, %v573
      %v592 = vadd.f32 %v501, %v575
      %v593 = vadd.f32 %v504, %v578
      %v594 = vadd.f32 %v506, %v580
      %v595 = vadd.f32 %v509, %v583
      %v596 = vadd.f32 %v511, %v585
      %v597 = vld [vmem:[%s300 + $0x4] sm:$0xe]
      %v598 = vld [vmem:[%s300 + $0x8] sm:$0xf]
      %v599 = vld [vmem:[%s300 + $0xc] sm:$0xf]
      %v600 = vld [vmem:[%s300 + $0x10] sm:$0xf]
      %v601 = vld [vmem:[%s300 + $0x14] sm:$0xf]
      %v602 = vld [vmem:[%s300 + $0x18] sm:$0xf]
      %v603 = vld [vmem:[%s300 + $0x1c] sm:$0xf]
      %v604 = vld [vmem:[%s300 + $0x20] sm:$0xf]
      %v605 = vld [vmem:[%s300 + $0x24] sm:$0xf]
      %v606 = vld [vmem:[%s300 + $0x28] sm:$0xf]
      %s607 = scalar_lea.vmem %s2, 24
      %v608 = vld [vmem:[%s607] sm:$0xf]
      %v609 = vld [vmem:[%s607 + $0x4] sm:$0x3]
      %v620 = vunpack.c.l.b16 %v597
      %v621 = vunpack.c.l.b16 %v598
      %v622 = vunpack.c.l.b16 %v599
      %v623 = vunpack.c.l.b16 %v600
      %v624 = vunpack.c.l.b16 %v601
      %v625 = vunpack.c.l.b16 %v602
      %v626 = vunpack.c.l.b16 %v603
      %v627 = vunpack.c.l.b16 %v604
      %v628 = vunpack.c.l.b16 %v605
      %v629 = vunpack.c.l.b16 %v606
      %v630 = vpack.c.b16 %v621, %v620
      %v631 = vpack.c.b16 %v623, %v622
      %v632 = vpack.c.b16 %v625, %v624
      %v633 = vpack.c.b16 %v627, %v626
      %v634 = vpack.c.b16 %v629, %v628
      %v635 = vrot.slane %v630, 1
      %v636 = vrot.slane %v631, 1
      %v637 = vsel %vm520, %v635, %v636
      %v638 = vrot.slane %v632, 1
      %v639 = vsel %vm520, %v636, %v638
      %v640 = vrot.slane %v633, 1
      %v641 = vsel %vm520, %v638, %v640
      %v642 = vrot.slane %v634, 1
      %v643 = vsel %vm520, %v640, %v642
      %v646 = vunpack.c.l.b16 %v608
      %v647 = vunpack.c.l.b16 %v609
      %v648 = vpack.c.b16 %v647, %v646
      %v650 = vsel %vm403, %v637, 0
      %v653 = vsel %vm403, %v639, 0
      %v656 = vsel %vm403, %v641, 0
      %v659 = vsel %vm403, %v643, 0
      %v662 = vsel %vm403, %v642, 0
      %v665 = vsel %vm419, %v648, 0
      %667 = vmatpush.bf16.msra.mxu0 0
      %668 = vmatpush.bf16.msra.mxu0 0
      %669 = vmatpush.bf16.msra.mxu0 0
      %670 = vmatpush.bf16.msra.mxu0 0
      %671 = vmatpush.bf16.msra.mxu0 0
      %672 = vmatpush.bf16.msra.mxu0 0
      %673 = vmatpush.bf16.msra.mxu0 0
      %674 = vmatpush.bf16.msra.mxu0 %v665
      %675 = vmatmul.bf16.gmra.mxu0 %v650
      %v676 = vpop.f32.mrf.mxu0
      %v677 = vadd.f32 0.0, %v676
      %v678 = vpop.f32.mrf.mxu0
      %v679 = vadd.f32 0.0, %v678
      %680 = vmatmul.bf16.gmra.mxu0 %v653
      %v681 = vpop.f32.mrf.mxu0
      %v682 = vadd.f32 0.0, %v681
      %v683 = vpop.f32.mrf.mxu0
      %v684 = vadd.f32 0.0, %v683
      %685 = vmatmul.bf16.gmra.mxu0 %v656
      %v686 = vpop.f32.mrf.mxu0
      %v687 = vadd.f32 0.0, %v686
      %v688 = vpop.f32.mrf.mxu0
      %v689 = vadd.f32 0.0, %v688
      %690 = vmatmul.bf16.gmra.mxu0 %v659
      %v691 = vpop.f32.mrf.mxu0
      %v692 = vadd.f32 0.0, %v691
      %v693 = vpop.f32.mrf.mxu0
      %v694 = vadd.f32 0.0, %v693
      %695 = vmatmul.bf16.gmra.mxu0 %v662
      %v696 = vpop.f32.mrf.mxu0
      %v697 = vadd.f32 0.0, %v696
      %v698 = vpop.f32.mrf.mxu0
      %v699 = vadd.f32 0.0, %v698
      %700 = vdwg.mxu0
      %v701 = vadd.f32 %v587, %v677
      %v702 = vadd.f32 %v588, %v679
      %v703 = vadd.f32 %v589, %v682
      %v704 = vadd.f32 %v590, %v684
      %v705 = vadd.f32 %v591, %v687
      %v706 = vadd.f32 %v592, %v689
      %v707 = vadd.f32 %v593, %v692
      %v708 = vadd.f32 %v594, %v694
      %v709 = vadd.f32 %v595, %v697
      %v710 = vadd.f32 %v596, %v699
      %v711 = vld [vmem:[%s300 + $0x4] sm:$0xe]
      %v712 = vld [vmem:[%s300 + $0x8] sm:$0xf]
      %v713 = vld [vmem:[%s300 + $0xc] sm:$0xf]
      %v714 = vld [vmem:[%s300 + $0x10] sm:$0xf]
      %v715 = vld [vmem:[%s300 + $0x14] sm:$0xf]
      %v716 = vld [vmem:[%s300 + $0x18] sm:$0xf]
      %v717 = vld [vmem:[%s300 + $0x1c] sm:$0xf]
      %v718 = vld [vmem:[%s300 + $0x20] sm:$0xf]
      %v719 = vld [vmem:[%s300 + $0x24] sm:$0xf]
      %v720 = vld [vmem:[%s300 + $0x28] sm:$0xf]
      %v721 = vld [vmem:[%s300 + $0x2c] sm:$0x1]
      %s722 = scalar_lea.vmem %s2, 32
      %v723 = vld [vmem:[%s722] sm:$0xf]
      %v724 = vld [vmem:[%s722 + $0x4] sm:$0x3]
      %v736 = vunpack.c.l.b16 %v711
      %v737 = vunpack.c.l.b16 %v712
      %v738 = vunpack.c.l.b16 %v713
      %v739 = vunpack.c.l.b16 %v714
      %v740 = vunpack.c.l.b16 %v715
      %v741 = vunpack.c.l.b16 %v716
      %v742 = vunpack.c.l.b16 %v717
      %v743 = vunpack.c.l.b16 %v718
      %v744 = vunpack.c.l.b16 %v719
      %v745 = vunpack.c.l.b16 %v720
      %v746 = vunpack.c.l.b16 %v721
      %v747 = vpack.c.b16 %v737, %v736
      %v748 = vpack.c.b16 %v739, %v738
      %v749 = vpack.c.b16 %v741, %v740
      %v750 = vpack.c.b16 %v743, %v742
      %v751 = vpack.c.b16 %v745, %v744
      %v752 = vpack.c.b16 %v746, %v746
      %vm753 = vsmask.f32 6400
      %v755 = vshrl.u32 %v747, 16
      %v757 = vrot.slane %v755, 1
      %v758 = vshll.u32 %v747, 16
      %v760 = vrot.slane %v758, 2
      %v761 = vor.u32 %v757, %v760
      %v763 = vshrl.u32 %v748, 16
      %v765 = vrot.slane %v763, 1
      %v766 = vshll.u32 %v748, 16
      %v768 = vrot.slane %v766, 2
      %v769 = vor.u32 %v765, %v768
      %v770 = vsel %vm753, %v761, %v769
      %v772 = vshrl.u32 %v749, 16
      %v774 = vrot.slane %v772, 1
      %v775 = vshll.u32 %v749, 16
      %v777 = vrot.slane %v775, 2
      %v778 = vor.u32 %v774, %v777
      %v779 = vsel %vm753, %v769, %v778
      %v781 = vshrl.u32 %v750, 16
      %v783 = vrot.slane %v781, 1
      %v784 = vshll.u32 %v750, 16
      %v786 = vrot.slane %v784, 2
      %v787 = vor.u32 %v783, %v786
      %v788 = vsel %vm753, %v778, %v787
      %v790 = vshrl.u32 %v751, 16
      %v792 = vrot.slane %v790, 1
      %v793 = vshll.u32 %v751, 16
      %v795 = vrot.slane %v793, 2
      %v796 = vor.u32 %v792, %v795
      %v797 = vsel %vm753, %v787, %v796
      %v799 = vshll.u32 %v752, 16
      %v801 = vrot.slane %v799, 2
      %v802 = vsel %vm753, %v796, %v801
      %v805 = vunpack.c.l.b16 %v723
      %v806 = vunpack.c.l.b16 %v724
      %v807 = vpack.c.b16 %v806, %v805
      %v809 = vsel %vm403, %v770, 0
      %v812 = vsel %vm403, %v779, 0
      %v815 = vsel %vm403, %v788, 0
      %v818 = vsel %vm403, %v797, 0
      %v821 = vsel %vm403, %v802, 0
      %v824 = vsel %vm419, %v807, 0
      %826 = vmatpush.bf16.msra.mxu0 0
      %827 = vmatpush.bf16.msra.mxu0 0
      %828 = vmatpush.bf16.msra.mxu0 0
      %829 = vmatpush.bf16.msra.mxu0 0
      %830 = vmatpush.bf16.msra.mxu0 0
      %831 = vmatpush.bf16.msra.mxu0 0
      %832 = vmatpush.bf16.msra.mxu0 0
      %833 = vmatpush.bf16.msra.mxu0 %v824
      %834 = vmatmul.bf16.gmra.mxu0 %v809
      %v835 = vpop.f32.mrf.mxu0
      %v836 = vadd.f32 0.0, %v835
      %v837 = vpop.f32.mrf.mxu0
      %v838 = vadd.f32 0.0, %v837
      %839 = vmatmul.bf16.gmra.mxu0 %v812
      %v840 = vpop.f32.mrf.mxu0
      %v841 = vadd.f32 0.0, %v840
      %v842 = vpop.f32.mrf.mxu0
      %v843 = vadd.f32 0.0, %v842
      %844 = vmatmul.bf16.gmra.mxu0 %v815
      %v845 = vpop.f32.mrf.mxu0
      %v846 = vadd.f32 0.0, %v845
      %v847 = vpop.f32.mrf.mxu0
      %v848 = vadd.f32 0.0, %v847
      %849 = vmatmul.bf16.gmra.mxu0 %v818
      %v850 = vpop.f32.mrf.mxu0
      %v851 = vadd.f32 0.0, %v850
      %v852 = vpop.f32.mrf.mxu0
      %v853 = vadd.f32 0.0, %v852
      %854 = vmatmul.bf16.gmra.mxu0 %v821
      %v855 = vpop.f32.mrf.mxu0
      %v856 = vadd.f32 0.0, %v855
      %v857 = vpop.f32.mrf.mxu0
      %v858 = vadd.f32 0.0, %v857
      %859 = vdwg.mxu0
      %v860 = vadd.f32 %v701, %v836
      %v861 = vadd.f32 %v702, %v838
      %v862 = vadd.f32 %v703, %v841
      %v863 = vadd.f32 %v704, %v843
      %v864 = vadd.f32 %v705, %v846
      %v865 = vadd.f32 %v706, %v848
      %v866 = vadd.f32 %v707, %v851
      %v867 = vadd.f32 %v708, %v853
      %v868 = vadd.f32 %v709, %v856
      %v869 = vadd.f32 %v710, %v858
      %v870 = vld [vmem:[%s300 + $0x4] sm:$0xc]
      %s871 = scalar_lea.vmem %s2, 40
      %v872 = vld [vmem:[%s871] sm:$0xf]
      %v873 = vld [vmem:[%s871 + $0x4] sm:$0x3]
      %v875 = vunpack.c.l.b16 %v870
      %v876 = vpack.c.b16 %v737, %v875
      %vm877 = vcmask 1045504
      %v878 = vrot.slane %v876, 2
      %v879 = vrot.slane %v748, 2
      %v880 = vsel %vm877, %v878, %v879
      %v881 = vrot.slane %v749, 2
      %v882 = vsel %vm877, %v879, %v881
      %v883 = vrot.slane %v750, 2
      %v884 = vsel %vm877, %v881, %v883
      %v885 = vrot.slane %v751, 2
      %v886 = vsel %vm877, %v883, %v885
      %v887 = vrot.slane %v752, 2
      %v888 = vsel %vm877, %v885, %v887
      %v891 = vunpack.c.l.b16 %v872
      %v892 = vunpack.c.l.b16 %v873
      %v893 = vpack.c.b16 %v892, %v891
      %v895 = vsel %vm403, %v880, 0
      %v898 = vsel %vm403, %v882, 0
      %v901 = vsel %vm403, %v884, 0
      %v904 = vsel %vm403, %v886, 0
      %v907 = vsel %vm403, %v888, 0
      %v910 = vsel %vm419, %v893, 0
      %912 = vmatpush.bf16.msra.mxu0 0
      %913 = vmatpush.bf16.msra.mxu0 0
      %914 = vmatpush.bf16.msra.mxu0 0
      %915 = vmatpush.bf16.msra.mxu0 0
      %916 = vmatpush.bf16.msra.mxu0 0
      %917 = vmatpush.bf16.msra.mxu0 0
      %918 = vmatpush.bf16.msra.mxu0 0
      %919 = vmatpush.bf16.msra.mxu0 %v910
      %920 = vmatmul.bf16.gmra.mxu0 %v895
      %v921 = vpop.f32.mrf.mxu0
      %v922 = vadd.f32 0.0, %v921
      %v923 = vpop.f32.mrf.mxu0
      %v924 = vadd.f32 0.0, %v923
      %925 = vmatmul.bf16.gmra.mxu0 %v898
      %v926 = vpop.f32.mrf.mxu0
      %v927 = vadd.f32 0.0, %v926
      %v928 = vpop.f32.mrf.mxu0
      %v929 = vadd.f32 0.0, %v928
      %930 = vmatmul.bf16.gmra.mxu0 %v901
      %v931 = vpop.f32.mrf.mxu0
      %v932 = vadd.f32 0.0, %v931
      %v933 = vpop.f32.mrf.mxu0
      %v934 = vadd.f32 0.0, %v933
      %935 = vmatmul.bf16.gmra.mxu0 %v904
      %v936 = vpop.f32.mrf.mxu0
      %v937 = vadd.f32 0.0, %v936
      %v938 = vpop.f32.mrf.mxu0
      %v939 = vadd.f32 0.0, %v938
      %940 = vmatmul.bf16.gmra.mxu0 %v907
      %v941 = vpop.f32.mrf.mxu0
      %v942 = vadd.f32 0.0, %v941
      %v943 = vpop.f32.mrf.mxu0
      %v944 = vadd.f32 0.0, %v943
      %945 = vdwg.mxu0
      %v946 = vadd.f32 %v860, %v922
      %v947 = vadd.f32 %v861, %v924
      %v948 = vadd.f32 %v862, %v927
      %v949 = vadd.f32 %v863, %v929
      %v950 = vadd.f32 %v864, %v932
      %v951 = vadd.f32 %v865, %v934
      %v952 = vadd.f32 %v866, %v937
      %v953 = vadd.f32 %v867, %v939
      %v954 = vadd.f32 %v868, %v942
      %v955 = vadd.f32 %v869, %v944
      %v956 = vld [vmem:[%s300 + $0x8] sm:$0xc]
      %v957 = vld [vmem:[%s300 + $0xc] sm:$0xf]
      %v958 = vld [vmem:[%s300 + $0x10] sm:$0xf]
      %v959 = vld [vmem:[%s300 + $0x14] sm:$0xf]
      %v960 = vld [vmem:[%s300 + $0x18] sm:$0xf]
      %v961 = vld [vmem:[%s300 + $0x1c] sm:$0xf]
      %v962 = vld [vmem:[%s300 + $0x20] sm:$0xf]
      %v963 = vld [vmem:[%s300 + $0x24] sm:$0xf]
      %v964 = vld [vmem:[%s300 + $0x28] sm:$0xf]
      %v965 = vld [vmem:[%s300 + $0x2c] sm:$0xf]
      %v966 = vld [vmem:[%s300 + $0x30] sm:$0x1]
      %s967 = scalar_lea.vmem %s2, 48
      %v968 = vld [vmem:[%s967] sm:$0xf]
      %v969 = vld [vmem:[%s967 + $0x4] sm:$0x3]
      %v981 = vunpack.c.l.b16 %v956
      %v982 = vunpack.c.l.b16 %v957
      %v983 = vunpack.c.l.b16 %v958
      %v984 = vunpack.c.l.b16 %v959
      %v985 = vunpack.c.l.b16 %v960
      %v986 = vunpack.c.l.b16 %v961
      %v987 = vunpack.c.l.b16 %v962
      %v988 = vunpack.c.l.b16 %v963
      %v989 = vunpack.c.l.b16 %v964
      %v990 = vunpack.c.l.b16 %v965
      %v991 = vunpack.c.l.b16 %v966
      %v992 = vpack.c.b16 %v982, %v981
      %v993 = vpack.c.b16 %v984, %v983
      %v994 = vpack.c.b16 %v986, %v985
      %v995 = vpack.c.b16 %v988, %v987
      %v996 = vpack.c.b16 %v990, %v989
      %v997 = vpack.c.b16 %v991, %v991
      %v998 = vrot.slane %v992, 2
      %v999 = vrot.slane %v993, 2
      %v1000 = vsel %vm877, %v998, %v999
      %v1001 = vrot.slane %v994, 2
      %v1002 = vsel %vm877, %v999, %v1001
      %v1003 = vrot.slane %v995, 2
      %v1004 = vsel %vm877, %v1001, %v1003
      %v1005 = vrot.slane %v996, 2
      %v1006 = vsel %vm877, %v1003, %v1005
      %v1007 = vrot.slane %v997, 2
      %v1008 = vsel %vm877, %v1005, %v1007
      %v1011 = vunpack.c.l.b16 %v968
      %v1012 = vunpack.c.l.b16 %v969
      %v1013 = vpack.c.b16 %v1012, %v1011
      %v1015 = vsel %vm403, %v1000, 0
      %v1018 = vsel %vm403, %v1002, 0
      %v1021 = vsel %vm403, %v1004, 0
      %v1024 = vsel %vm403, %v1006, 0
      %v1027 = vsel %vm403, %v1008, 0
      %v1030 = vsel %vm419, %v1013, 0
      %1032 = vmatpush.bf16.msra.mxu0 0
      %1033 = vmatpush.bf16.msra.mxu0 0
      %1034 = vmatpush.bf16.msra.mxu0 0
      %1035 = vmatpush.bf16.msra.mxu0 0
      %1036 = vmatpush.bf16.msra.mxu0 0
      %1037 = vmatpush.bf16.msra.mxu0 0
      %1038 = vmatpush.bf16.msra.mxu0 0
      %1039 = vmatpush.bf16.msra.mxu0 %v1030
      %1040 = vmatmul.bf16.gmra.mxu0 %v1015
      %v1041 = vpop.f32.mrf.mxu0
      %v1042 = vadd.f32 0.0, %v1041
      %v1043 = vpop.f32.mrf.mxu0
      %v1044 = vadd.f32 0.0, %v1043
      %1045 = vmatmul.bf16.gmra.mxu0 %v1018
      %v1046 = vpop.f32.mrf.mxu0
      %v1047 = vadd.f32 0.0, %v1046
      %v1048 = vpop.f32.mrf.mxu0
      %v1049 = vadd.f32 0.0, %v1048
      %1050 = vmatmul.bf16.gmra.mxu0 %v1021
      %v1051 = vpop.f32.mrf.mxu0
      %v1052 = vadd.f32 0.0, %v1051
      %v1053 = vpop.f32.mrf.mxu0
      %v1054 = vadd.f32 0.0, %v1053
      %1055 = vmatmul.bf16.gmra.mxu0 %v1024
      %v1056 = vpop.f32.mrf.mxu0
      %v1057 = vadd.f32 0.0, %v1056
      %v1058 = vpop.f32.mrf.mxu0
      %v1059 = vadd.f32 0.0, %v1058
      %1060 = vmatmul.bf16.gmra.mxu0 %v1027
      %v1061 = vpop.f32.mrf.mxu0
      %v1062 = vadd.f32 0.0, %v1061
      %v1063 = vpop.f32.mrf.mxu0
      %v1064 = vadd.f32 0.0, %v1063
      %1065 = vdwg.mxu0
      %v1066 = vadd.f32 %v946, %v1042
      %v1067 = vadd.f32 %v947, %v1044
      %v1068 = vadd.f32 %v948, %v1047
      %v1069 = vadd.f32 %v949, %v1049
      %v1070 = vadd.f32 %v950, %v1052
      %v1071 = vadd.f32 %v951, %v1054
      %v1072 = vadd.f32 %v952, %v1057
      %v1073 = vadd.f32 %v953, %v1059
      %v1074 = vadd.f32 %v954, %v1062
      %v1075 = vadd.f32 %v955, %v1064
      %v1076 = vld [vmem:[%s300 + $0x30] sm:$0x3]
      %s1077 = scalar_lea.vmem %s2, 56
      %v1078 = vld [vmem:[%s1077] sm:$0xf]
      %v1079 = vld [vmem:[%s1077 + $0x4] sm:$0x3]
      %v1081 = vunpack.c.l.b16 %v1076
      %v1082 = vpack.c.b16 %v1081, %v1081
      %vm1083 = vsmask.f32 5376
      %v1085 = vshrl.u32 %v992, 16
      %v1087 = vrot.slane %v1085, 2
      %v1088 = vshll.u32 %v992, 16
      %v1090 = vrot.slane %v1088, 3
      %v1091 = vor.u32 %v1087, %v1090
      %v1093 = vshrl.u32 %v993, 16
      %v1095 = vrot.slane %v1093, 2
      %v1096 = vshll.u32 %v993, 16
      %v1098 = vrot.slane %v1096, 3
      %v1099 = vor.u32 %v1095, %v1098
      %v1100 = vsel %vm1083, %v1091, %v1099
      %v1102 = vshrl.u32 %v994, 16
      %v1104 = vrot.slane %v1102, 2
      %v1105 = vshll.u32 %v994, 16
      %v1107 = vrot.slane %v1105, 3
      %v1108 = vor.u32 %v1104, %v1107
      %v1109 = vsel %vm1083, %v1099, %v1108
      %v1111 = vshrl.u32 %v995, 16
      %v1113 = vrot.slane %v1111, 2
      %v1114 = vshll.u32 %v995, 16
      %v1116 = vrot.slane %v1114, 3
      %v1117 = vor.u32 %v1113, %v1116
      %v1118 = vsel %vm1083, %v1108, %v1117
      %v1120 = vshrl.u32 %v996, 16
      %v1122 = vrot.slane %v1120, 2
      %v1123 = vshll.u32 %v996, 16
      %v1125 = vrot.slane %v1123, 3
      %v1126 = vor.u32 %v1122, %v1125
      %v1127 = vsel %vm1083, %v1117, %v1126
      %v1129 = vshrl.u32 %v1082, 16
      %v1131 = vrot.slane %v1129, 2
      %v1132 = vshll.u32 %v1082, 16
      %v1134 = vrot.slane %v1132, 3
      %v1135 = vor.u32 %v1131, %v1134
      %v1136 = vsel %vm1083, %v1126, %v1135
      %v1139 = vunpack.c.l.b16 %v1078
      %v1140 = vunpack.c.l.b16 %v1079
      %v1141 = vpack.c.b16 %v1140, %v1139
      %v1143 = vsel %vm403, %v1100, 0
      %v1146 = vsel %vm403, %v1109, 0
      %v1149 = vsel %vm403, %v1118, 0
      %v1152 = vsel %vm403, %v1127, 0
      %v1155 = vsel %vm403, %v1136, 0
      %v1158 = vsel %vm419, %v1141, 0
      %1160 = vmatpush.bf16.msra.mxu0 0
      %1161 = vmatpush.bf16.msra.mxu0 0
      %1162 = vmatpush.bf16.msra.mxu0 0
      %1163 = vmatpush.bf16.msra.mxu0 0
      %1164 = vmatpush.bf16.msra.mxu0 0
      %1165 = vmatpush.bf16.msra.mxu0 0
      %1166 = vmatpush.bf16.msra.mxu0 0
      %1167 = vmatpush.bf16.msra.mxu0 %v1158
      %1168 = vmatmul.bf16.gmra.mxu0 %v1143
      %v1169 = vpop.f32.mrf.mxu0
      %v1170 = vadd.f32 0.0, %v1169
      %v1171 = vpop.f32.mrf.mxu0
      %v1172 = vadd.f32 0.0, %v1171
      %1173 = vmatmul.bf16.gmra.mxu0 %v1146
      %v1174 = vpop.f32.mrf.mxu0
      %v1175 = vadd.f32 0.0, %v1174
      %v1176 = vpop.f32.mrf.mxu0
      %v1177 = vadd.f32 0.0, %v1176
      %1178 = vmatmul.bf16.gmra.mxu0 %v1149
      %v1179 = vpop.f32.mrf.mxu0
      %v1180 = vadd.f32 0.0, %v1179
      %v1181 = vpop.f32.mrf.mxu0
      %v1182 = vadd.f32 0.0, %v1181
      %1183 = vmatmul.bf16.gmra.mxu0 %v1152
      %v1184 = vpop.f32.mrf.mxu0
      %v1185 = vadd.f32 0.0, %v1184
      %v1186 = vpop.f32.mrf.mxu0
      %v1187 = vadd.f32 0.0, %v1186
      %1188 = vmatmul.bf16.gmra.mxu0 %v1155
      %v1189 = vpop.f32.mrf.mxu0
      %v1190 = vadd.f32 0.0, %v1189
      %v1191 = vpop.f32.mrf.mxu0
      %v1192 = vadd.f32 0.0, %v1191
      %1193 = vdwg.mxu0
      %v1194 = vadd.f32 %v1066, %v1170
      %v1195 = vadd.f32 %v1067, %v1172
      %v1196 = vadd.f32 %v1068, %v1175
      %v1197 = vadd.f32 %v1069, %v1177
      %v1198 = vadd.f32 %v1070, %v1180
      %v1199 = vadd.f32 %v1071, %v1182
      %v1200 = vadd.f32 %v1072, %v1185
      %v1201 = vadd.f32 %v1073, %v1187
      %v1202 = vadd.f32 %v1074, %v1190
      %v1203 = vadd.f32 %v1075, %v1192
      %v1204 = vld [vmem:[%s300 + $0x8] sm:$0x8]
      %s1205 = scalar_lea.vmem %s2, 64
      %v1206 = vld [vmem:[%s1205] sm:$0xf]
      %v1207 = vld [vmem:[%s1205 + $0x4] sm:$0x3]
      %v1209 = vunpack.c.l.b16 %v1204
      %v1210 = vpack.c.b16 %v982, %v1209
      %vm1211 = vcmask 1044480
      %v1212 = vrot.slane %v1210, 3
      %v1213 = vrot.slane %v993, 3
      %v1214 = vsel %vm1211, %v1212, %v1213
      %v1215 = vrot.slane %v994, 3
      %v1216 = vsel %vm1211, %v1213, %v1215
      %v1217 = vrot.slane %v995, 3
      %v1218 = vsel %vm1211, %v1215, %v1217
      %v1219 = vrot.slane %v996, 3
      %v1220 = vsel %vm1211, %v1217, %v1219
      %v1221 = vrot.slane %v1082, 3
      %v1222 = vsel %vm1211, %v1219, %v1221
      %v1225 = vunpack.c.l.b16 %v1206
      %v1226 = vunpack.c.l.b16 %v1207
      %v1227 = vpack.c.b16 %v1226, %v1225
      %v1229 = vsel %vm403, %v1214, 0
      %v1232 = vsel %vm403, %v1216, 0
      %v1235 = vsel %vm403, %v1218, 0
      %v1238 = vsel %vm403, %v1220, 0
      %v1241 = vsel %vm403, %v1222, 0
      %v1244 = vsel %vm419, %v1227, 0
      %1246 = vmatpush.bf16.msra.mxu0 0
      %1247 = vmatpush.bf16.msra.mxu0 0
      %1248 = vmatpush.bf16.msra.mxu0 0
      %1249 = vmatpush.bf16.msra.mxu0 0
      %1250 = vmatpush.bf16.msra.mxu0 0
      %1251 = vmatpush.bf16.msra.mxu0 0
      %1252 = vmatpush.bf16.msra.mxu0 0
      %1253 = vmatpush.bf16.msra.mxu0 %v1244
      %1254 = vmatmul.bf16.gmra.mxu0 %v1229
      %v1255 = vpop.f32.mrf.mxu0
      %v1256 = vadd.f32 0.0, %v1255
      %v1257 = vpop.f32.mrf.mxu0
      %v1258 = vadd.f32 0.0, %v1257
      %1259 = vmatmul.bf16.gmra.mxu0 %v1232
      %v1260 = vpop.f32.mrf.mxu0
      %v1261 = vadd.f32 0.0, %v1260
      %v1262 = vpop.f32.mrf.mxu0
      %v1263 = vadd.f32 0.0, %v1262
      %1264 = vmatmul.bf16.gmra.mxu0 %v1235
      %v1265 = vpop.f32.mrf.mxu0
      %v1266 = vadd.f32 0.0, %v1265
      %v1267 = vpop.f32.mrf.mxu0
      %v1268 = vadd.f32 0.0, %v1267
      %1269 = vmatmul.bf16.gmra.mxu0 %v1238
      %v1270 = vpop.f32.mrf.mxu0
      %v1271 = vadd.f32 0.0, %v1270
      %v1272 = vpop.f32.mrf.mxu0
      %v1273 = vadd.f32 0.0, %v1272
      %1274 = vmatmul.bf16.gmra.mxu0 %v1241
      %v1275 = vpop.f32.mrf.mxu0
      %v1276 = vadd.f32 0.0, %v1275
      %v1277 = vpop.f32.mrf.mxu0
      %v1278 = vadd.f32 0.0, %v1277
      %1279 = vdwg.mxu0
      %v1280 = vadd.f32 %v1194, %v1256
      %v1281 = vadd.f32 %v1195, %v1258
      %v1282 = vadd.f32 %v1196, %v1261
      %v1283 = vadd.f32 %v1197, %v1263
      %v1284 = vadd.f32 %v1198, %v1266
      %v1285 = vadd.f32 %v1199, %v1268
      %v1286 = vadd.f32 %v1200, %v1271
      %v1287 = vadd.f32 %v1201, %v1273
      %v1288 = vadd.f32 %v1202, %v1276
      %v1289 = vadd.f32 %v1203, %v1278
      %v1290 = vld [vmem:[%s3] sm:$0x1]
      %v1292 = vperm.slane %v1290, 0
      %v1294 = vmul.f32 %v1280, %v1292
      %v1295 = vmul.f32 %v1281, %v1292
      %v1296 = vmul.f32 %v1282, %v1292
      %v1297 = vmul.f32 %v1283, %v1292
      %v1298 = vmul.f32 %v1284, %v1292
      %v1299 = vmul.f32 %v1285, %v1292
      %v1300 = vmul.f32 %v1286, %v1292
      %v1301 = vmul.f32 %v1287, %v1292
      %v1302 = vmul.f32 %v1288, %v1292
      %v1303 = vmul.f32 %v1289, %v1292
      %v1304 = vld [vmem:[%s4] sm:$0x1]
      %v1306 = vperm.slane %v1304, 0
      %v1308 = vadd.f32 %v1294, %v1306
      %v1309 = vadd.f32 %v1295, %v1306
      %v1310 = vadd.f32 %v1296, %v1306
      %v1311 = vadd.f32 %v1297, %v1306
      %v1312 = vadd.f32 %v1298, %v1306
      %v1313 = vadd.f32 %v1299, %v1306
      %v1314 = vadd.f32 %v1300, %v1306
      %v1315 = vadd.f32 %v1301, %v1306
      %v1316 = vadd.f32 %v1302, %v1306
      %v1317 = vadd.f32 %v1303, %v1306
      %v1318 = vmul.f32 %v1308, 0.5
      %v1319 = vmul.f32 %v1309, 0.5
      %v1320 = vmul.f32 %v1310, 0.5
      %v1321 = vmul.f32 %v1311, 0.5
      %v1322 = vmul.f32 %v1312, 0.5
      %v1323 = vmul.f32 %v1313, 0.5
      %v1324 = vmul.f32 %v1314, 0.5
      %v1325 = vmul.f32 %v1315, 0.5
      %v1326 = vmul.f32 %v1316, 0.5
      %v1327 = vmul.f32 %v1317, 0.5
      %v1328 = vmul.f32 %v1308, 0.044715
      %v1329 = vmul.f32 %v1309, 0.044715
      %v1330 = vmul.f32 %v1310, 0.044715
      %v1331 = vmul.f32 %v1311, 0.044715
      %v1332 = vmul.f32 %v1312, 0.044715
      %v1333 = vmul.f32 %v1313, 0.044715
      %v1334 = vmul.f32 %v1314, 0.044715
      %v1335 = vmul.f32 %v1315, 0.044715
      %v1336 = vmul.f32 %v1316, 0.044715
      %v1337 = vmul.f32 %v1317, 0.044715
      %v1338 = vmul.f32 %v1328, %v1308
      %v1339 = vmul.f32 %v1329, %v1309
      %v1340 = vmul.f32 %v1330, %v1310
      %v1341 = vmul.f32 %v1331, %v1311
      %v1342 = vmul.f32 %v1332, %v1312
      %v1343 = vmul.f32 %v1333, %v1313
      %v1344 = vmul.f32 %v1334, %v1314
      %v1345 = vmul.f32 %v1335, %v1315
      %v1346 = vmul.f32 %v1336, %v1316
      %v1347 = vmul.f32 %v1337, %v1317
      %v1348 = vmul.f32 %v1338, %v1308
      %v1349 = vmul.f32 %v1339, %v1309
      %v1350 = vmul.f32 %v1340, %v1310
      %v1351 = vmul.f32 %v1341, %v1311
      %v1352 = vmul.f32 %v1342, %v1312
      %v1353 = vmul.f32 %v1343, %v1313
      %v1354 = vmul.f32 %v1344, %v1314
      %v1355 = vmul.f32 %v1345, %v1315
      %v1356 = vmul.f32 %v1346, %v1316
      %v1357 = vmul.f32 %v1347, %v1317
      %v1358 = vadd.f32 %v1308, %v1348
      %v1359 = vadd.f32 %v1309, %v1349
      %v1360 = vadd.f32 %v1310, %v1350
      %v1361 = vadd.f32 %v1311, %v1351
      %v1362 = vadd.f32 %v1312, %v1352
      %v1363 = vadd.f32 %v1313, %v1353
      %v1364 = vadd.f32 %v1314, %v1354
      %v1365 = vadd.f32 %v1315, %v1355
      %v1366 = vadd.f32 %v1316, %v1356
      %v1367 = vadd.f32 %v1317, %v1357
      %v1368 = vmul.f32 %v1358, 0.7978846
      %v1369 = vmul.f32 %v1359, 0.7978846
      %v1370 = vmul.f32 %v1360, 0.7978846
      %v1371 = vmul.f32 %v1361, 0.7978846
      %v1372 = vmul.f32 %v1362, 0.7978846
      %v1373 = vmul.f32 %v1363, 0.7978846
      %v1374 = vmul.f32 %v1364, 0.7978846
      %v1375 = vmul.f32 %v1365, 0.7978846
      %v1376 = vmul.f32 %v1366, 0.7978846
      %v1377 = vmul.f32 %v1367, 0.7978846
      %v1378 = vtanh.pop %v1368
      %v1379 = vtanh.pop %v1369
      %v1380 = vtanh.pop %v1370
      %v1381 = vtanh.pop %v1371
      %v1382 = vtanh.pop %v1372
      %v1383 = vtanh.pop %v1373
      %v1384 = vtanh.pop %v1374
      %v1385 = vtanh.pop %v1375
      %v1386 = vtanh.pop %v1376
      %v1387 = vtanh.pop %v1377
      %v1388 = vadd.f32 %v1378, 1.0
      %v1389 = vadd.f32 %v1379, 1.0
      %v1390 = vadd.f32 %v1380, 1.0
      %v1391 = vadd.f32 %v1381, 1.0
      %v1392 = vadd.f32 %v1382, 1.0
      %v1393 = vadd.f32 %v1383, 1.0
      %v1394 = vadd.f32 %v1384, 1.0
      %v1395 = vadd.f32 %v1385, 1.0
      %v1396 = vadd.f32 %v1386, 1.0
      %v1397 = vadd.f32 %v1387, 1.0
      %v1398 = vmul.f32 %v1318, %v1388
      %v1399 = vmul.f32 %v1319, %v1389
      %v1400 = vmul.f32 %v1320, %v1390
      %v1401 = vmul.f32 %v1321, %v1391
      %v1402 = vmul.f32 %v1322, %v1392
      %v1403 = vmul.f32 %v1323, %v1393
      %v1404 = vmul.f32 %v1324, %v1394
      %v1405 = vmul.f32 %v1325, %v1395
      %v1406 = vmul.f32 %v1326, %v1396
      %v1407 = vmul.f32 %v1327, %v1397
      %1409 = vset.pattern.permute.xlu0 0
      %1410 = vperm.xlu0 %1409, %v307
      %v1411 = vpop.permute.xlu0 %1410
      %1414 = vset.pattern.permute.xlu0 0
      %1415 = vperm.xlu0 %1414, %v308
      %v1416 = vpop.permute.xlu0 %1415
      %1419 = vset.pattern.permute.xlu0 0
      %1420 = vperm.xlu0 %1419, %v309
      %v1421 = vpop.permute.xlu0 %1420
      %1424 = vset.pattern.permute.xlu0 0
      %1425 = vperm.xlu0 %1424, %v310
      %v1426 = vpop.permute.xlu0 %1425
      %1429 = vset.pattern.permute.xlu0 0
      %1430 = vperm.xlu0 %1429, %v311
      %v1431 = vpop.permute.xlu0 %1430
      %1434 = vset.pattern.permute.xlu0 0
      %1435 = vperm.xlu0 %1434, %v312
      %v1436 = vpop.permute.xlu0 %1435
      %1439 = vset.pattern.permute.xlu0 0
      %1440 = vperm.xlu0 %1439, %v313
      %v1441 = vpop.permute.xlu0 %1440
      %1444 = vset.pattern.permute.xlu0 0
      %1445 = vperm.xlu0 %1444, %v314
      %v1446 = vpop.permute.xlu0 %1445
      %1449 = vset.pattern.permute.xlu0 0
      %1450 = vperm.xlu0 %1449, %v315
      %v1451 = vpop.permute.xlu0 %1450
      %1454 = vset.pattern.permute.xlu0 0
      %1455 = vperm.xlu0 %1454, %v316
      %v1456 = vpop.permute.xlu0 %1455
      %v1458 = vmul.f32 %v1398, %v1411
      %v1459 = vmul.f32 %v1399, %v1416
      %v1460 = vmul.f32 %v1400, %v1421
      %v1461 = vmul.f32 %v1401, %v1426
      %v1462 = vmul.f32 %v1402, %v1431
      %v1463 = vmul.f32 %v1403, %v1436
      %v1464 = vmul.f32 %v1404, %v1441
      %v1465 = vmul.f32 %v1405, %v1446
      %v1466 = vmul.f32 %v1406, %v1451
      %v1467 = vmul.f32 %v1407, %v1456
      %vm1468 = vcmask 257024
      %1469 = vst.msk [vmem:[#allocation2] sm:$0xf] %vm1468, 0
      %1470 = vst.msk [vmem:[#allocation2 + $0x4] sm:$0xf] %vm1468, 0
      %1471 = vst.msk [vmem:[#allocation2 + $0x8] sm:$0xf] %vm1468, 0
      %1472 = vst.msk [vmem:[#allocation2 + $0xc] sm:$0xf] %vm1468, 0
      %1473 = vst.msk [vmem:[#allocation2 + $0x10] sm:$0xf] %vm1468, 0
      %1474 = vst.msk [vmem:[#allocation2 + $0x14] sm:$0xf] %vm1468, 0
      %1475 = vst.msk [vmem:[#allocation2 + $0x18] sm:$0xf] %vm1468, 0
      %1476 = vst.msk [vmem:[#allocation2 + $0x1c] sm:$0xf] %vm1468, 0
      %1477 = vst.msk [vmem:[#allocation2 + $0x20] sm:$0xf] %vm1468, 0
      %1478 = vst.msk [vmem:[#allocation2 + $0x24] sm:$0xf] %vm1468, 0
      %1479 = vst.msk [vmem:[#allocation2 + $0x28] sm:$0xf] %vm1468, 0
      %1480 = vst.msk [vmem:[#allocation2 + $0x2c] sm:$0xf] %vm1468, 0
      %vm1481 = vcmask 254976
      %1482 = vst.msk [vmem:[#allocation2 + $0x30] sm:$0x3] %vm1481, 0
      %v1483 = vpack.c.bf16 %v1458, %v1458
      %v1484 = vpack.c.bf16 %v1459, %v1459
      %v1485 = vpack.c.bf16 %v1460, %v1460
      %v1486 = vpack.c.bf16 %v1461, %v1461
      %v1487 = vpack.c.bf16 %v1462, %v1462
      %v1488 = vpack.c.bf16 %v1463, %v1463
      %v1489 = vpack.c.bf16 %v1464, %v1464
      %v1490 = vpack.c.bf16 %v1465, %v1465
      %v1491 = vpack.c.bf16 %v1466, %v1466
      %v1492 = vpack.c.bf16 %v1467, %v1467
      %vm1493 = vsmask.f32 1280
      %vm1494 = vsmask.f32 5392
      %vm1495 = vmor %vm1493, %vm1494
      %v1497 = vshrl.u32 %v1483, 16
      %v1499 = vrot.slane %v1497, 6
      %v1500 = vshll.u32 %v1483, 16
      %v1502 = vrot.slane %v1500, 7
      %v1503 = vor.u32 %v1499, %v1502
      %v1504 = vrot.slane %v1503, 4
      %v1506 = vshrl.u32 %v1484, 16
      %v1508 = vrot.slane %v1506, 6
      %v1509 = vshll.u32 %v1484, 16
      %v1511 = vrot.slane %v1509, 7
      %v1512 = vor.u32 %v1508, %v1511
      %v1513 = vsel %vm1495, %v1504, %v1512
      %v1514 = vrot.slane %v1512, 4
      %v1516 = vshrl.u32 %v1485, 16
      %v1518 = vrot.slane %v1516, 6
      %v1519 = vshll.u32 %v1485, 16
      %v1521 = vrot.slane %v1519, 7
      %v1522 = vor.u32 %v1518, %v1521
      %v1523 = vsel %vm1495, %v1514, %v1522
      %v1524 = vrot.slane %v1522, 4
      %v1526 = vshrl.u32 %v1486, 16
      %v1528 = vrot.slane %v1526, 6
      %v1529 = vshll.u32 %v1486, 16
      %v1531 = vrot.slane %v1529, 7
      %v1532 = vor.u32 %v1528, %v1531
      %v1533 = vsel %vm1495, %v1524, %v1532
      %v1534 = vrot.slane %v1532, 4
      %v1536 = vshrl.u32 %v1487, 16
      %v1538 = vrot.slane %v1536, 6
      %v1539 = vshll.u32 %v1487, 16
      %v1541 = vrot.slane %v1539, 7
      %v1542 = vor.u32 %v1538, %v1541
      %v1543 = vsel %vm1495, %v1534, %v1542
      %v1544 = vrot.slane %v1542, 4
      %v1546 = vshrl.u32 %v1488, 16
      %v1548 = vrot.slane %v1546, 6
      %v1549 = vshll.u32 %v1488, 16
      %v1551 = vrot.slane %v1549, 7
      %v1552 = vor.u32 %v1548, %v1551
      %v1553 = vsel %vm1495, %v1544, %v1552
      %v1554 = vrot.slane %v1552, 4
      %v1556 = vshrl.u32 %v1489, 16
      %v1558 = vrot.slane %v1556, 6
      %v1559 = vshll.u32 %v1489, 16
      %v1561 = vrot.slane %v1559, 7
      %v1562 = vor.u32 %v1558, %v1561
      %v1563 = vsel %vm1495, %v1554, %v1562
      %v1564 = vrot.slane %v1562, 4
      %v1566 = vshrl.u32 %v1490, 16
      %v1568 = vrot.slane %v1566, 6
      %v1569 = vshll.u32 %v1490, 16
      %v1571 = vrot.slane %v1569, 7
      %v1572 = vor.u32 %v1568, %v1571
      %v1573 = vsel %vm1495, %v1564, %v1572
      %v1574 = vrot.slane %v1572, 4
      %v1576 = vshrl.u32 %v1491, 16
      %v1578 = vrot.slane %v1576, 6
      %v1579 = vshll.u32 %v1491, 16
      %v1581 = vrot.slane %v1579, 7
      %v1582 = vor.u32 %v1578, %v1581
      %v1583 = vsel %vm1495, %v1574, %v1582
      %v1584 = vrot.slane %v1582, 4
      %v1586 = vshrl.u32 %v1492, 16
      %v1588 = vrot.slane %v1586, 6
      %v1589 = vshll.u32 %v1492, 16
      %v1591 = vrot.slane %v1589, 7
      %v1592 = vor.u32 %v1588, %v1591
      %v1593 = vsel %vm1495, %v1584, %v1592
      %v1594 = vrot.slane %v1588, 4
      %vm1606 = vcmask 257025
      %vm1607 = vsmask.f32 7942
      %vm1608 = vmand %vm1606, %vm1607
      %v1609 = vld [vmem:[#allocation2 + $0x4] sm:$0xe]
      %v1610 = vsel %vm1608, %v1503, %v1609
      %1611 = vst [vmem:[#allocation2 + $0x4] sm:$0xe] %v1610
      %1612 = vst.msk [vmem:[#allocation2 + $0x8] sm:$0xf] %vm1468, %v1513
      %1613 = vst.msk [vmem:[#allocation2 + $0xc] sm:$0xf] %vm1468, %v1523
      %1614 = vst.msk [vmem:[#allocation2 + $0x10] sm:$0xf] %vm1468, %v1533
      %1615 = vst.msk [vmem:[#allocation2 + $0x14] sm:$0xf] %vm1468, %v1543
      %1616 = vst.msk [vmem:[#allocation2 + $0x18] sm:$0xf] %vm1468, %v1553
      %1617 = vst.msk [vmem:[#allocation2 + $0x1c] sm:$0xf] %vm1468, %v1563
      %1618 = vst.msk [vmem:[#allocation2 + $0x20] sm:$0xf] %vm1468, %v1573
      %1619 = vst.msk [vmem:[#allocation2 + $0x24] sm:$0xf] %vm1468, %v1583
      %1620 = vst.msk [vmem:[#allocation2 + $0x28] sm:$0xf] %vm1468, %v1593
      %vm1621 = vcmask 253952
      %vm1622 = vsmask.f32 256
      %vm1623 = vmand %vm1621, %vm1622
      %v1624 = vld [vmem:[#allocation2 + $0x2c] sm:$0x1]
      %v1625 = vsel %vm1623, %v1594, %v1624
      %1626 = vst [vmem:[#allocation2 + $0x2c] sm:$0x1] %v1625
      %v1627 = vld [vmem:[#allocation2] sm:$0xf]
      %v1628 = vld [vmem:[#allocation2 + $0x4] sm:$0xf]
      %v1629 = vld [vmem:[#allocation2 + $0x8] sm:$0xf]
      %v1630 = vld [vmem:[#allocation2 + $0xc] sm:$0xf]
      %v1631 = vld [vmem:[#allocation2 + $0x10] sm:$0xf]
      %v1632 = vld [vmem:[#allocation2 + $0x14] sm:$0xf]
      %v1633 = vld [vmem:[#allocation2 + $0x18] sm:$0xf]
      %v1634 = vld [vmem:[#allocation2 + $0x1c] sm:$0xf]
      %v1635 = vld [vmem:[#allocation2 + $0x20] sm:$0xf]
      %v1636 = vld [vmem:[#allocation2 + $0x24] sm:$0x7]
      %v1637 = vld [vmem:[%s5] sm:$0xf]
      %v1638 = vld [vmem:[%s5 + $0x4] sm:$0xf]
      %v1639 = vld [vmem:[%s5 + $0x8] sm:$0xf]
      %v1640 = vld [vmem:[%s5 + $0xc] sm:$0xf]
      %v1641 = vld [vmem:[#allocation2 + $0x24] sm:$0xf]
      %s1642 = scalar_lea.vmem %s5, 16
      %v1643 = vld [vmem:[%s1642] sm:$0xf]
      %v1644 = vld [vmem:[%s1642 + $0x4] sm:$0xf]
      %v1645 = vld [vmem:[%s1642 + $0x8] sm:$0xf]
      %v1646 = vld [vmem:[%s1642 + $0xc] sm:$0xf]
      %v1657 = vunpack.c.l.b16 %v1627
      %v1658 = vunpack.c.l.b16 %v1628
      %v1659 = vunpack.c.l.b16 %v1629
      %v1660 = vunpack.c.l.b16 %v1630
      %v1661 = vunpack.c.l.b16 %v1631
      %v1662 = vunpack.c.l.b16 %v1632
      %v1663 = vunpack.c.l.b16 %v1633
      %v1664 = vunpack.c.l.b16 %v1634
      %v1665 = vunpack.c.l.b16 %v1635
      %v1666 = vunpack.c.l.b16 %v1641
      %v1667 = vpack.c.b16 %v1658, %v1657
      %v1668 = vpack.c.b16 %v1660, %v1659
      %v1669 = vpack.c.b16 %v1662, %v1661
      %v1670 = vpack.c.b16 %v1664, %v1663
      %v1671 = vpack.c.b16 %v1666, %v1665
      %v1673 = vshrl.u32 %v1667, 16
      %v1675 = vshll.u32 %v1667, 16
      %v1677 = vrot.slane %v1675, 1
      %v1678 = vor.u32 %v1673, %v1677
      %v1680 = vshll.u32 %v1668, 16
      %v1682 = vrot.slane %v1680, 1
      %v1683 = vsel %vm358, %v1678, %v1682
      %v1684 = vshrl.u32 %v1668, 16
      %v1686 = vor.u32 %v1684, %v1682
      %v1688 = vshll.u32 %v1669, 16
      %v1690 = vrot.slane %v1688, 1
      %v1691 = vsel %vm358, %v1686, %v1690
      %v1692 = vshrl.u32 %v1669, 16
      %v1694 = vor.u32 %v1692, %v1690
      %v1696 = vshll.u32 %v1670, 16
      %v1698 = vrot.slane %v1696, 1
      %v1699 = vsel %vm358, %v1694, %v1698
      %v1700 = vshrl.u32 %v1670, 16
      %v1702 = vor.u32 %v1700, %v1698
      %v1704 = vshll.u32 %v1671, 16
      %v1706 = vrot.slane %v1704, 1
      %v1707 = vsel %vm358, %v1702, %v1706
      %v1708 = vshrl.u32 %v1671, 16
      %v1710 = vor.u32 %v1708, %v1706
      %v1715 = vunpack.c.l.b16 %v1643
      %v1716 = vunpack.c.l.b16 %v1644
      %v1717 = vunpack.c.l.b16 %v1645
      %v1718 = vunpack.c.l.b16 %v1646
      %v1719 = vpack.c.b16 %v1716, %v1715
      %v1720 = vpack.c.b16 %v1718, %v1717
      %vm1723 = vcmask 261120
      %v1725 = vsel %vm1723, %v1683, 0
      %v1728 = vsel %vm1723, %v1691, 0
      %v1731 = vsel %vm1723, %v1699, 0
      %v1734 = vsel %vm1723, %v1707, 0
      %v1737 = vsel %vm1723, %v1710, 0
      %1739 = vmatpush.bf16.msra.mxu0 0
      %1740 = vmatpush.bf16.msra.mxu0 0
      %1741 = vmatpush.bf16.msra.mxu0 0
      %1742 = vmatpush.bf16.msra.mxu0 0
      %1743 = vmatpush.bf16.msra.mxu0 0
      %1744 = vmatpush.bf16.msra.mxu0 0
      %1745 = vmatpush.bf16.msra.mxu0 %v1720
      %1746 = vmatpush.bf16.msra.mxu0 %v1719
      %1747 = vmatmul.bf16.gmra.mxu0 %v1725
      %v1748 = vpop.f32.mrf.mxu0
      %v1749 = vadd.f32 0.0, %v1748
      %v1750 = vpop.f32.mrf.mxu0
      %v1751 = vadd.f32 0.0, %v1750
      %1752 = vmatmul.bf16.gmra.mxu0 %v1728
      %v1753 = vpop.f32.mrf.mxu0
      %v1754 = vadd.f32 0.0, %v1753
      %v1755 = vpop.f32.mrf.mxu0
      %v1756 = vadd.f32 0.0, %v1755
      %1757 = vmatmul.bf16.gmra.mxu0 %v1731
      %v1758 = vpop.f32.mrf.mxu0
      %v1759 = vadd.f32 0.0, %v1758
      %v1760 = vpop.f32.mrf.mxu0
      %v1761 = vadd.f32 0.0, %v1760
      %1762 = vmatmul.bf16.gmra.mxu0 %v1734
      %v1763 = vpop.f32.mrf.mxu0
      %v1764 = vadd.f32 0.0, %v1763
      %v1765 = vpop.f32.mrf.mxu0
      %v1766 = vadd.f32 0.0, %v1765
      %1767 = vmatmul.bf16.gmra.mxu0 %v1737
      %v1768 = vpop.f32.mrf.mxu0
      %v1769 = vadd.f32 0.0, %v1768
      %v1770 = vpop.f32.mrf.mxu0
      %v1771 = vadd.f32 0.0, %v1770
      %1772 = vdwg.mxu0
      %v1774 = vunpack.c.l.b16 %v1636
      %v1775 = vpack.c.b16 %v1774, %v1665
      %v1780 = vunpack.c.l.b16 %v1637
      %v1781 = vunpack.c.l.b16 %v1638
      %v1782 = vunpack.c.l.b16 %v1639
      %v1783 = vunpack.c.l.b16 %v1640
      %v1784 = vpack.c.b16 %v1781, %v1780
      %v1785 = vpack.c.b16 %v1783, %v1782
      %v1788 = vsel %vm1723, %v1667, 0
      %v1790 = vsel %vm1723, %v1668, 0
      %v1792 = vsel %vm1723, %v1669, 0
      %v1794 = vsel %vm1723, %v1670, 0
      %v1797 = vsel %vm1723, %v1775, 0
      %1799 = vmatpush.bf16.msra.mxu0 0
      %1800 = vmatpush.bf16.msra.mxu0 0
      %1801 = vmatpush.bf16.msra.mxu0 0
      %1802 = vmatpush.bf16.msra.mxu0 0
      %1803 = vmatpush.bf16.msra.mxu0 0
      %1804 = vmatpush.bf16.msra.mxu0 0
      %1805 = vmatpush.bf16.msra.mxu0 %v1785
      %1806 = vmatpush.bf16.msra.mxu0 %v1784
      %1807 = vmatmul.bf16.gmra.mxu0 %v1788
      %v1808 = vpop.f32.mrf.mxu0
      %v1809 = vadd.f32 %v1749, %v1808
      %v1810 = vpop.f32.mrf.mxu0
      %v1811 = vadd.f32 %v1751, %v1810
      %1812 = vmatmul.bf16.gmra.mxu0 %v1790
      %v1813 = vpop.f32.mrf.mxu0
      %v1814 = vadd.f32 %v1754, %v1813
      %v1815 = vpop.f32.mrf.mxu0
      %v1816 = vadd.f32 %v1756, %v1815
      %1817 = vmatmul.bf16.gmra.mxu0 %v1792
      %v1818 = vpop.f32.mrf.mxu0
      %v1819 = vadd.f32 %v1759, %v1818
      %v1820 = vpop.f32.mrf.mxu0
      %v1821 = vadd.f32 %v1761, %v1820
      %1822 = vmatmul.bf16.gmra.mxu0 %v1794
      %v1823 = vpop.f32.mrf.mxu0
      %v1824 = vadd.f32 %v1764, %v1823
      %v1825 = vpop.f32.mrf.mxu0
      %v1826 = vadd.f32 %v1766, %v1825
      %1827 = vmatmul.bf16.gmra.mxu0 %v1797
      %v1828 = vpop.f32.mrf.mxu0
      %v1829 = vadd.f32 %v1769, %v1828
      %v1830 = vpop.f32.mrf.mxu0
      %v1831 = vadd.f32 %v1771, %v1830
      %1832 = vdwg.mxu0
      %v1833 = vld [vmem:[#allocation2] sm:$0xe]
      %s1834 = scalar_lea.vmem %s5, 32
      %v1835 = vld [vmem:[%s1834] sm:$0xf]
      %v1836 = vld [vmem:[%s1834 + $0x4] sm:$0xf]
      %v1837 = vld [vmem:[%s1834 + $0x8] sm:$0xf]
      %v1838 = vld [vmem:[%s1834 + $0xc] sm:$0xf]
      %v1840 = vunpack.c.l.b16 %v1833
      %v1841 = vpack.c.b16 %v1658, %v1840
      %v1842 = vrot.slane %v1841, 1
      %v1843 = vrot.slane %v1668, 1
      %v1844 = vsel %vm520, %v1842, %v1843
      %v1845 = vrot.slane %v1669, 1
      %v1846 = vsel %vm520, %v1843, %v1845
      %v1847 = vrot.slane %v1670, 1
      %v1848 = vsel %vm520, %v1845, %v1847
      %v1849 = vrot.slane %v1671, 1
      %v1850 = vsel %vm520, %v1847, %v1849
      %v1855 = vunpack.c.l.b16 %v1835
      %v1856 = vunpack.c.l.b16 %v1836
      %v1857 = vunpack.c.l.b16 %v1837
      %v1858 = vunpack.c.l.b16 %v1838
      %v1859 = vpack.c.b16 %v1856, %v1855
      %v1860 = vpack.c.b16 %v1858, %v1857
      %v1864 = vsel %vm1723, %v1844, 0
      %v1867 = vsel %vm1723, %v1846, 0
      %v1870 = vsel %vm1723, %v1848, 0
      %v1873 = vsel %vm1723, %v1850, 0
      %v1876 = vsel %vm1723, %v1849, 0
      %1878 = vmatpush.bf16.msra.mxu0 0
      %1879 = vmatpush.bf16.msra.mxu0 0
      %1880 = vmatpush.bf16.msra.mxu0 0
      %1881 = vmatpush.bf16.msra.mxu0 0
      %1882 = vmatpush.bf16.msra.mxu0 0
      %1883 = vmatpush.bf16.msra.mxu0 0
      %1884 = vmatpush.bf16.msra.mxu0 %v1860
      %1885 = vmatpush.bf16.msra.mxu0 %v1859
      %1886 = vmatmul.bf16.gmra.mxu0 %v1864
      %v1887 = vpop.f32.mrf.mxu0
      %v1888 = vadd.f32 0.0, %v1887
      %v1889 = vpop.f32.mrf.mxu0
      %v1890 = vadd.f32 0.0, %v1889
      %1891 = vmatmul.bf16.gmra.mxu0 %v1867
      %v1892 = vpop.f32.mrf.mxu0
      %v1893 = vadd.f32 0.0, %v1892
      %v1894 = vpop.f32.mrf.mxu0
      %v1895 = vadd.f32 0.0, %v1894
      %1896 = vmatmul.bf16.gmra.mxu0 %v1870
      %v1897 = vpop.f32.mrf.mxu0
      %v1898 = vadd.f32 0.0, %v1897
      %v1899 = vpop.f32.mrf.mxu0
      %v1900 = vadd.f32 0.0, %v1899
      %1901 = vmatmul.bf16.gmra.mxu0 %v1873
      %v1902 = vpop.f32.mrf.mxu0
      %v1903 = vadd.f32 0.0, %v1902
      %v1904 = vpop.f32.mrf.mxu0
      %v1905 = vadd.f32 0.0, %v1904
      %1906 = vmatmul.bf16.gmra.mxu0 %v1876
      %v1907 = vpop.f32.mrf.mxu0
      %v1908 = vadd.f32 0.0, %v1907
      %v1909 = vpop.f32.mrf.mxu0
      %v1910 = vadd.f32 0.0, %v1909
      %1911 = vdwg.mxu0
      %v1912 = vadd.f32 %v1809, %v1888
      %v1913 = vadd.f32 %v1811, %v1890
      %v1914 = vadd.f32 %v1814, %v1893
      %v1915 = vadd.f32 %v1816, %v1895
      %v1916 = vadd.f32 %v1819, %v1898
      %v1917 = vadd.f32 %v1821, %v1900
      %v1918 = vadd.f32 %v1824, %v1903
      %v1919 = vadd.f32 %v1826, %v1905
      %v1920 = vadd.f32 %v1829, %v1908
      %v1921 = vadd.f32 %v1831, %v1910
      %v1922 = vld [vmem:[#allocation2 + $0x4] sm:$0xe]
      %v1923 = vld [vmem:[#allocation2 + $0x8] sm:$0xf]
      %v1924 = vld [vmem:[#allocation2 + $0xc] sm:$0xf]
      %v1925 = vld [vmem:[#allocation2 + $0x10] sm:$0xf]
      %v1926 = vld [vmem:[#allocation2 + $0x14] sm:$0xf]
      %v1927 = vld [vmem:[#allocation2 + $0x18] sm:$0xf]
      %v1928 = vld [vmem:[#allocation2 + $0x1c] sm:$0xf]
      %v1929 = vld [vmem:[#allocation2 + $0x20] sm:$0xf]
      %v1930 = vld [vmem:[#allocation2 + $0x24] sm:$0xf]
      %v1931 = vld [vmem:[#allocation2 + $0x28] sm:$0xf]
      %s1932 = scalar_lea.vmem %s5, 48
      %v1933 = vld [vmem:[%s1932] sm:$0xf]
      %v1934 = vld [vmem:[%s1932 + $0x4] sm:$0xf]
      %v1935 = vld [vmem:[%s1932 + $0x8] sm:$0xf]
      %v1936 = vld [vmem:[%s1932 + $0xc] sm:$0xf]
      %v1947 = vunpack.c.l.b16 %v1922
      %v1948 = vunpack.c.l.b16 %v1923
      %v1949 = vunpack.c.l.b16 %v1924
      %v1950 = vunpack.c.l.b16 %v1925
      %v1951 = vunpack.c.l.b16 %v1926
      %v1952 = vunpack.c.l.b16 %v1927
      %v1953 = vunpack.c.l.b16 %v1928
      %v1954 = vunpack.c.l.b16 %v1929
      %v1955 = vunpack.c.l.b16 %v1930
      %v1956 = vunpack.c.l.b16 %v1931
      %v1957 = vpack.c.b16 %v1948, %v1947
      %v1958 = vpack.c.b16 %v1950, %v1949
      %v1959 = vpack.c.b16 %v1952, %v1951
      %v1960 = vpack.c.b16 %v1954, %v1953
      %v1961 = vpack.c.b16 %v1956, %v1955
      %v1962 = vrot.slane %v1957, 1
      %v1963 = vrot.slane %v1958, 1
      %v1964 = vsel %vm520, %v1962, %v1963
      %v1965 = vrot.slane %v1959, 1
      %v1966 = vsel %vm520, %v1963, %v1965
      %v1967 = vrot.slane %v1960, 1
      %v1968 = vsel %vm520, %v1965, %v1967
      %v1969 = vrot.slane %v1961, 1
      %v1970 = vsel %vm520, %v1967, %v1969
      %v1975 = vunpack.c.l.b16 %v1933
      %v1976 = vunpack.c.l.b16 %v1934
      %v1977 = vunpack.c.l.b16 %v1935
      %v1978 = vunpack.c.l.b16 %v1936
      %v1979 = vpack.c.b16 %v1976, %v1975
      %v1980 = vpack.c.b16 %v1978, %v1977
      %v1984 = vsel %vm1723, %v1964, 0
      %v1987 = vsel %vm1723, %v1966, 0
      %v1990 = vsel %vm1723, %v1968, 0
      %v1993 = vsel %vm1723, %v1970, 0
      %v1996 = vsel %vm1723, %v1969, 0
      %1998 = vmatpush.bf16.msra.mxu0 0
      %1999 = vmatpush.bf16.msra.mxu0 0
      %2000 = vmatpush.bf16.msra.mxu0 0
      %2001 = vmatpush.bf16.msra.mxu0 0
      %2002 = vmatpush.bf16.msra.mxu0 0
      %2003 = vmatpush.bf16.msra.mxu0 0
      %2004 = vmatpush.bf16.msra.mxu0 %v1980
      %2005 = vmatpush.bf16.msra.mxu0 %v1979
      %2006 = vmatmul.bf16.gmra.mxu0 %v1984
      %v2007 = vpop.f32.mrf.mxu0
      %v2008 = vadd.f32 0.0, %v2007
      %v2009 = vpop.f32.mrf.mxu0
      %v2010 = vadd.f32 0.0, %v2009
      %2011 = vmatmul.bf16.gmra.mxu0 %v1987
      %v2012 = vpop.f32.mrf.mxu0
      %v2013 = vadd.f32 0.0, %v2012
      %v2014 = vpop.f32.mrf.mxu0
      %v2015 = vadd.f32 0.0, %v2014
      %2016 = vmatmul.bf16.gmra.mxu0 %v1990
      %v2017 = vpop.f32.mrf.mxu0
      %v2018 = vadd.f32 0.0, %v2017
      %v2019 = vpop.f32.mrf.mxu0
      %v2020 = vadd.f32 0.0, %v2019
      %2021 = vmatmul.bf16.gmra.mxu0 %v1993
      %v2022 = vpop.f32.mrf.mxu0
      %v2023 = vadd.f32 0.0, %v2022
      %v2024 = vpop.f32.mrf.mxu0
      %v2025 = vadd.f32 0.0, %v2024
      %2026 = vmatmul.bf16.gmra.mxu0 %v1996
      %v2027 = vpop.f32.mrf.mxu0
      %v2028 = vadd.f32 0.0, %v2027
      %v2029 = vpop.f32.mrf.mxu0
      %v2030 = vadd.f32 0.0, %v2029
      %2031 = vdwg.mxu0
      %v2032 = vadd.f32 %v1912, %v2008
      %v2033 = vadd.f32 %v1913, %v2010
      %v2034 = vadd.f32 %v1914, %v2013
      %v2035 = vadd.f32 %v1915, %v2015
      %v2036 = vadd.f32 %v1916, %v2018
      %v2037 = vadd.f32 %v1917, %v2020
      %v2038 = vadd.f32 %v1918, %v2023
      %v2039 = vadd.f32 %v1919, %v2025
      %v2040 = vadd.f32 %v1920, %v2028
      %v2041 = vadd.f32 %v1921, %v2030
      %v2042 = vld [vmem:[#allocation2 + $0x4] sm:$0xe]
      %v2043 = vld [vmem:[#allocation2 + $0x8] sm:$0xf]
      %v2044 = vld [vmem:[#allocation2 + $0xc] sm:$0xf]
      %v2045 = vld [vmem:[#allocation2 + $0x10] sm:$0xf]
      %v2046 = vld [vmem:[#allocation2 + $0x14] sm:$0xf]
      %v2047 = vld [vmem:[#allocation2 + $0x18] sm:$0xf]
      %v2048 = vld [vmem:[#allocation2 + $0x1c] sm:$0xf]
      %v2049 = vld [vmem:[#allocation2 + $0x20] sm:$0xf]
      %v2050 = vld [vmem:[#allocation2 + $0x24] sm:$0xf]
      %v2051 = vld [vmem:[#allocation2 + $0x28] sm:$0xf]
      %v2052 = vld [vmem:[#allocation2 + $0x2c] sm:$0x1]
      %s2053 = scalar_lea.vmem %s5, 64
      %v2054 = vld [vmem:[%s2053] sm:$0xf]
      %v2055 = vld [vmem:[%s2053 + $0x4] sm:$0xf]
      %v2056 = vld [vmem:[%s2053 + $0x8] sm:$0xf]
      %v2057 = vld [vmem:[%s2053 + $0xc] sm:$0xf]
      %v2069 = vunpack.c.l.b16 %v2042
      %v2070 = vunpack.c.l.b16 %v2043
      %v2071 = vunpack.c.l.b16 %v2044
      %v2072 = vunpack.c.l.b16 %v2045
      %v2073 = vunpack.c.l.b16 %v2046
      %v2074 = vunpack.c.l.b16 %v2047
      %v2075 = vunpack.c.l.b16 %v2048
      %v2076 = vunpack.c.l.b16 %v2049
      %v2077 = vunpack.c.l.b16 %v2050
      %v2078 = vunpack.c.l.b16 %v2051
      %v2079 = vunpack.c.l.b16 %v2052
      %v2080 = vpack.c.b16 %v2070, %v2069
      %v2081 = vpack.c.b16 %v2072, %v2071
      %v2082 = vpack.c.b16 %v2074, %v2073
      %v2083 = vpack.c.b16 %v2076, %v2075
      %v2084 = vpack.c.b16 %v2078, %v2077
      %v2085 = vpack.c.b16 %v2079, %v2079
      %v2087 = vshrl.u32 %v2080, 16
      %v2089 = vrot.slane %v2087, 1
      %v2090 = vshll.u32 %v2080, 16
      %v2092 = vrot.slane %v2090, 2
      %v2093 = vor.u32 %v2089, %v2092
      %v2095 = vshrl.u32 %v2081, 16
      %v2097 = vrot.slane %v2095, 1
      %v2098 = vshll.u32 %v2081, 16
      %v2100 = vrot.slane %v2098, 2
      %v2101 = vor.u32 %v2097, %v2100
      %v2102 = vsel %vm753, %v2093, %v2101
      %v2104 = vshrl.u32 %v2082, 16
      %v2106 = vrot.slane %v2104, 1
      %v2107 = vshll.u32 %v2082, 16
      %v2109 = vrot.slane %v2107, 2
      %v2110 = vor.u32 %v2106, %v2109
      %v2111 = vsel %vm753, %v2101, %v2110
      %v2113 = vshrl.u32 %v2083, 16
      %v2115 = vrot.slane %v2113, 1
      %v2116 = vshll.u32 %v2083, 16
      %v2118 = vrot.slane %v2116, 2
      %v2119 = vor.u32 %v2115, %v2118
      %v2120 = vsel %vm753, %v2110, %v2119
      %v2122 = vshrl.u32 %v2084, 16
      %v2124 = vrot.slane %v2122, 1
      %v2125 = vshll.u32 %v2084, 16
      %v2127 = vrot.slane %v2125, 2
      %v2128 = vor.u32 %v2124, %v2127
      %v2129 = vsel %vm753, %v2119, %v2128
      %v2131 = vshll.u32 %v2085, 16
      %v2133 = vrot.slane %v2131, 2
      %v2134 = vsel %vm753, %v2128, %v2133
      %v2139 = vunpack.c.l.b16 %v2054
      %v2140 = vunpack.c.l.b16 %v2055
      %v2141 = vunpack.c.l.b16 %v2056
      %v2142 = vunpack.c.l.b16 %v2057
      %v2143 = vpack.c.b16 %v2140, %v2139
      %v2144 = vpack.c.b16 %v2142, %v2141
      %v2148 = vsel %vm1723, %v2102, 0
      %v2151 = vsel %vm1723, %v2111, 0
      %v2154 = vsel %vm1723, %v2120, 0
      %v2157 = vsel %vm1723, %v2129, 0
      %v2160 = vsel %vm1723, %v2134, 0
      %2162 = vmatpush.bf16.msra.mxu0 0
      %2163 = vmatpush.bf16.msra.mxu0 0
      %2164 = vmatpush.bf16.msra.mxu0 0
      %2165 = vmatpush.bf16.msra.mxu0 0
      %2166 = vmatpush.bf16.msra.mxu0 0
      %2167 = vmatpush.bf16.msra.mxu0 0
      %2168 = vmatpush.bf16.msra.mxu0 %v2144
      %2169 = vmatpush.bf16.msra.mxu0 %v2143
      %2170 = vmatmul.bf16.gmra.mxu0 %v2148
      %v2171 = vpop.f32.mrf.mxu0
      %v2172 = vadd.f32 0.0, %v2171
      %v2173 = vpop.f32.mrf.mxu0
      %v2174 = vadd.f32 0.0, %v2173
      %2175 = vmatmul.bf16.gmra.mxu0 %v2151
      %v2176 = vpop.f32.mrf.mxu0
      %v2177 = vadd.f32 0.0, %v2176
      %v2178 = vpop.f32.mrf.mxu0
      %v2179 = vadd.f32 0.0, %v2178
      %2180 = vmatmul.bf16.gmra.mxu0 %v2154
      %v2181 = vpop.f32.mrf.mxu0
      %v2182 = vadd.f32 0.0, %v2181
      %v2183 = vpop.f32.mrf.mxu0
      %v2184 = vadd.f32 0.0, %v2183
      %2185 = vmatmul.bf16.gmra.mxu0 %v2157
      %v2186 = vpop.f32.mrf.mxu0
      %v2187 = vadd.f32 0.0, %v2186
      %v2188 = vpop.f32.mrf.mxu0
      %v2189 = vadd.f32 0.0, %v2188
      %2190 = vmatmul.bf16.gmra.mxu0 %v2160
      %v2191 = vpop.f32.mrf.mxu0
      %v2192 = vadd.f32 0.0, %v2191
      %v2193 = vpop.f32.mrf.mxu0
      %v2194 = vadd.f32 0.0, %v2193
      %2195 = vdwg.mxu0
      %v2196 = vadd.f32 %v2032, %v2172
      %v2197 = vadd.f32 %v2033, %v2174
      %v2198 = vadd.f32 %v2034, %v2177
      %v2199 = vadd.f32 %v2035, %v2179
      %v2200 = vadd.f32 %v2036, %v2182
      %v2201 = vadd.f32 %v2037, %v2184
      %v2202 = vadd.f32 %v2038, %v2187
      %v2203 = vadd.f32 %v2039, %v2189
      %v2204 = vadd.f32 %v2040, %v2192
      %v2205 = vadd.f32 %v2041, %v2194
      %v2206 = vld [vmem:[#allocation2 + $0x4] sm:$0xc]
      %s2207 = scalar_lea.vmem %s5, 80
      %v2208 = vld [vmem:[%s2207] sm:$0xf]
      %v2209 = vld [vmem:[%s2207 + $0x4] sm:$0xf]
      %v2210 = vld [vmem:[%s2207 + $0x8] sm:$0xf]
      %v2211 = vld [vmem:[%s2207 + $0xc] sm:$0xf]
      %v2213 = vunpack.c.l.b16 %v2206
      %v2214 = vpack.c.b16 %v2070, %v2213
      %v2215 = vrot.slane %v2214, 2
      %v2216 = vrot.slane %v2081, 2
      %v2217 = vsel %vm877, %v2215, %v2216
      %v2218 = vrot.slane %v2082, 2
      %v2219 = vsel %vm877, %v2216, %v2218
      %v2220 = vrot.slane %v2083, 2
      %v2221 = vsel %vm877, %v2218, %v2220
      %v2222 = vrot.slane %v2084, 2
      %v2223 = vsel %vm877, %v2220, %v2222
      %v2224 = vrot.slane %v2085, 2
      %v2225 = vsel %vm877, %v2222, %v2224
      %v2230 = vunpack.c.l.b16 %v2208
      %v2231 = vunpack.c.l.b16 %v2209
      %v2232 = vunpack.c.l.b16 %v2210
      %v2233 = vunpack.c.l.b16 %v2211
      %v2234 = vpack.c.b16 %v2231, %v2230
      %v2235 = vpack.c.b16 %v2233, %v2232
      %v2239 = vsel %vm1723, %v2217, 0
      %v2242 = vsel %vm1723, %v2219, 0
      %v2245 = vsel %vm1723, %v2221, 0
      %v2248 = vsel %vm1723, %v2223, 0
      %v2251 = vsel %vm1723, %v2225, 0
      %2253 = vmatpush.bf16.msra.mxu0 0
      %2254 = vmatpush.bf16.msra.mxu0 0
      %2255 = vmatpush.bf16.msra.mxu0 0
      %2256 = vmatpush.bf16.msra.mxu0 0
      %2257 = vmatpush.bf16.msra.mxu0 0
      %2258 = vmatpush.bf16.msra.mxu0 0
      %2259 = vmatpush.bf16.msra.mxu0 %v2235
      %2260 = vmatpush.bf16.msra.mxu0 %v2234
      %2261 = vmatmul.bf16.gmra.mxu0 %v2239
      %v2262 = vpop.f32.mrf.mxu0
      %v2263 = vadd.f32 0.0, %v2262
      %v2264 = vpop.f32.mrf.mxu0
      %v2265 = vadd.f32 0.0, %v2264
      %2266 = vmatmul.bf16.gmra.mxu0 %v2242
      %v2267 = vpop.f32.mrf.mxu0
      %v2268 = vadd.f32 0.0, %v2267
      %v2269 = vpop.f32.mrf.mxu0
      %v2270 = vadd.f32 0.0, %v2269
      %2271 = vmatmul.bf16.gmra.mxu0 %v2245
      %v2272 = vpop.f32.mrf.mxu0
      %v2273 = vadd.f32 0.0, %v2272
      %v2274 = vpop.f32.mrf.mxu0
      %v2275 = vadd.f32 0.0, %v2274
      %2276 = vmatmul.bf16.gmra.mxu0 %v2248
      %v2277 = vpop.f32.mrf.mxu0
      %v2278 = vadd.f32 0.0, %v2277
      %v2279 = vpop.f32.mrf.mxu0
      %v2280 = vadd.f32 0.0, %v2279
      %2281 = vmatmul.bf16.gmra.mxu0 %v2251
      %v2282 = vpop.f32.mrf.mxu0
      %v2283 = vadd.f32 0.0, %v2282
      %v2284 = vpop.f32.mrf.mxu0
      %v2285 = vadd.f32 0.0, %v2284
      %2286 = vdwg.mxu0
      %v2287 = vadd.f32 %v2196, %v2263
      %v2288 = vadd.f32 %v2197, %v2265
      %v2289 = vadd.f32 %v2198, %v2268
      %v2290 = vadd.f32 %v2199, %v2270
      %v2291 = vadd.f32 %v2200, %v2273
      %v2292 = vadd.f32 %v2201, %v2275
      %v2293 = vadd.f32 %v2202, %v2278
      %v2294 = vadd.f32 %v2203, %v2280
      %v2295 = vadd.f32 %v2204, %v2283
      %v2296 = vadd.f32 %v2205, %v2285
      %v2297 = vld [vmem:[#allocation2 + $0x8] sm:$0xc]
      %v2298 = vld [vmem:[#allocation2 + $0xc] sm:$0xf]
      %v2299 = vld [vmem:[#allocation2 + $0x10] sm:$0xf]
      %v2300 = vld [vmem:[#allocation2 + $0x14] sm:$0xf]
      %v2301 = vld [vmem:[#allocation2 + $0x18] sm:$0xf]
      %v2302 = vld [vmem:[#allocation2 + $0x1c] sm:$0xf]
      %v2303 = vld [vmem:[#allocation2 + $0x20] sm:$0xf]
      %v2304 = vld [vmem:[#allocation2 + $0x24] sm:$0xf]
      %v2305 = vld [vmem:[#allocation2 + $0x28] sm:$0xf]
      %v2306 = vld [vmem:[#allocation2 + $0x2c] sm:$0xf]
      %v2307 = vld [vmem:[#allocation2 + $0x30] sm:$0x1]
      %s2308 = scalar_lea.vmem %s5, 96
      %v2309 = vld [vmem:[%s2308] sm:$0xf]
      %v2310 = vld [vmem:[%s2308 + $0x4] sm:$0xf]
      %v2311 = vld [vmem:[%s2308 + $0x8] sm:$0xf]
      %v2312 = vld [vmem:[%s2308 + $0xc] sm:$0xf]
      %v2324 = vunpack.c.l.b16 %v2297
      %v2325 = vunpack.c.l.b16 %v2298
      %v2326 = vunpack.c.l.b16 %v2299
      %v2327 = vunpack.c.l.b16 %v2300
      %v2328 = vunpack.c.l.b16 %v2301
      %v2329 = vunpack.c.l.b16 %v2302
      %v2330 = vunpack.c.l.b16 %v2303
      %v2331 = vunpack.c.l.b16 %v2304
      %v2332 = vunpack.c.l.b16 %v2305
      %v2333 = vunpack.c.l.b16 %v2306
      %v2334 = vunpack.c.l.b16 %v2307
      %v2335 = vpack.c.b16 %v2325, %v2324
      %v2336 = vpack.c.b16 %v2327, %v2326
      %v2337 = vpack.c.b16 %v2329, %v2328
      %v2338 = vpack.c.b16 %v2331, %v2330
      %v2339 = vpack.c.b16 %v2333, %v2332
      %v2340 = vpack.c.b16 %v2334, %v2334
      %v2341 = vrot.slane %v2335, 2
      %v2342 = vrot.slane %v2336, 2
      %v2343 = vsel %vm877, %v2341, %v2342
      %v2344 = vrot.slane %v2337, 2
      %v2345 = vsel %vm877, %v2342, %v2344
      %v2346 = vrot.slane %v2338, 2
      %v2347 = vsel %vm877, %v2344, %v2346
      %v2348 = vrot.slane %v2339, 2
      %v2349 = vsel %vm877, %v2346, %v2348
      %v2350 = vrot.slane %v2340, 2
      %v2351 = vsel %vm877, %v2348, %v2350
      %v2356 = vunpack.c.l.b16 %v2309
      %v2357 = vunpack.c.l.b16 %v2310
      %v2358 = vunpack.c.l.b16 %v2311
      %v2359 = vunpack.c.l.b16 %v2312
      %v2360 = vpack.c.b16 %v2357, %v2356
      %v2361 = vpack.c.b16 %v2359, %v2358
      %v2365 = vsel %vm1723, %v2343, 0
      %v2368 = vsel %vm1723, %v2345, 0
      %v2371 = vsel %vm1723, %v2347, 0
      %v2374 = vsel %vm1723, %v2349, 0
      %v2377 = vsel %vm1723, %v2351, 0
      %2379 = vmatpush.bf16.msra.mxu0 0
      %2380 = vmatpush.bf16.msra.mxu0 0
      %2381 = vmatpush.bf16.msra.mxu0 0
      %2382 = vmatpush.bf16.msra.mxu0 0
      %2383 = vmatpush.bf16.msra.mxu0 0
      %2384 = vmatpush.bf16.msra.mxu0 0
      %2385 = vmatpush.bf16.msra.mxu0 %v2361
      %2386 = vmatpush.bf16.msra.mxu0 %v2360
      %2387 = vmatmul.bf16.gmra.mxu0 %v2365
      %v2388 = vpop.f32.mrf.mxu0
      %v2389 = vadd.f32 0.0, %v2388
      %v2390 = vpop.f32.mrf.mxu0
      %v2391 = vadd.f32 0.0, %v2390
      %2392 = vmatmul.bf16.gmra.mxu0 %v2368
      %v2393 = vpop.f32.mrf.mxu0
      %v2394 = vadd.f32 0.0, %v2393
      %v2395 = vpop.f32.mrf.mxu0
      %v2396 = vadd.f32 0.0, %v2395
      %2397 = vmatmul.bf16.gmra.mxu0 %v2371
      %v2398 = vpop.f32.mrf.mxu0
      %v2399 = vadd.f32 0.0, %v2398
      %v2400 = vpop.f32.mrf.mxu0
      %v2401 = vadd.f32 0.0, %v2400
      %2402 = vmatmul.bf16.gmra.mxu0 %v2374
      %v2403 = vpop.f32.mrf.mxu0
      %v2404 = vadd.f32 0.0, %v2403
      %v2405 = vpop.f32.mrf.mxu0
      %v2406 = vadd.f32 0.0, %v2405
      %2407 = vmatmul.bf16.gmra.mxu0 %v2377
      %v2408 = vpop.f32.mrf.mxu0
      %v2409 = vadd.f32 0.0, %v2408
      %v2410 = vpop.f32.mrf.mxu0
      %v2411 = vadd.f32 0.0, %v2410
      %2412 = vdwg.mxu0
      %v2413 = vadd.f32 %v2287, %v2389
      %v2414 = vadd.f32 %v2288, %v2391
      %v2415 = vadd.f32 %v2289, %v2394
      %v2416 = vadd.f32 %v2290, %v2396
      %v2417 = vadd.f32 %v2291, %v2399
      %v2418 = vadd.f32 %v2292, %v2401
      %v2419 = vadd.f32 %v2293, %v2404
      %v2420 = vadd.f32 %v2294, %v2406
      %v2421 = vadd.f32 %v2295, %v2409
      %v2422 = vadd.f32 %v2296, %v2411
      %v2423 = vld [vmem:[#allocation2 + $0x30] sm:$0x3]
      %s2424 = scalar_lea.vmem %s5, 112
      %v2425 = vld [vmem:[%s2424] sm:$0xf]
      %v2426 = vld [vmem:[%s2424 + $0x4] sm:$0xf]
      %v2427 = vld [vmem:[%s2424 + $0x8] sm:$0xf]
      %v2428 = vld [vmem:[%s2424 + $0xc] sm:$0xf]
      %v2430 = vunpack.c.l.b16 %v2423
      %v2431 = vpack.c.b16 %v2430, %v2430
      %v2433 = vshrl.u32 %v2335, 16
      %v2435 = vrot.slane %v2433, 2
      %v2436 = vshll.u32 %v2335, 16
      %v2438 = vrot.slane %v2436, 3
      %v2439 = vor.u32 %v2435, %v2438
      %v2441 = vshrl.u32 %v2336, 16
      %v2443 = vrot.slane %v2441, 2
      %v2444 = vshll.u32 %v2336, 16
      %v2446 = vrot.slane %v2444, 3
      %v2447 = vor.u32 %v2443, %v2446
      %v2448 = vsel %vm1083, %v2439, %v2447
      %v2450 = vshrl.u32 %v2337, 16
      %v2452 = vrot.slane %v2450, 2
      %v2453 = vshll.u32 %v2337, 16
      %v2455 = vrot.slane %v2453, 3
      %v2456 = vor.u32 %v2452, %v2455
      %v2457 = vsel %vm1083, %v2447, %v2456
      %v2459 = vshrl.u32 %v2338, 16
      %v2461 = vrot.slane %v2459, 2
      %v2462 = vshll.u32 %v2338, 16
      %v2464 = vrot.slane %v2462, 3
      %v2465 = vor.u32 %v2461, %v2464
      %v2466 = vsel %vm1083, %v2456, %v2465
      %v2468 = vshrl.u32 %v2339, 16
      %v2470 = vrot.slane %v2468, 2
      %v2471 = vshll.u32 %v2339, 16
      %v2473 = vrot.slane %v2471, 3
      %v2474 = vor.u32 %v2470, %v2473
      %v2475 = vsel %vm1083, %v2465, %v2474
      %v2477 = vshrl.u32 %v2431, 16
      %v2479 = vrot.slane %v2477, 2
      %v2480 = vshll.u32 %v2431, 16
      %v2482 = vrot.slane %v2480, 3
      %v2483 = vor.u32 %v2479, %v2482
      %v2484 = vsel %vm1083, %v2474, %v2483
      %v2489 = vunpack.c.l.b16 %v2425
      %v2490 = vunpack.c.l.b16 %v2426
      %v2491 = vunpack.c.l.b16 %v2427
      %v2492 = vunpack.c.l.b16 %v2428
      %v2493 = vpack.c.b16 %v2490, %v2489
      %v2494 = vpack.c.b16 %v2492, %v2491
      %v2498 = vsel %vm1723, %v2448, 0
      %v2501 = vsel %vm1723, %v2457, 0
      %v2504 = vsel %vm1723, %v2466, 0
      %v2507 = vsel %vm1723, %v2475, 0
      %v2510 = vsel %vm1723, %v2484, 0
      %2512 = vmatpush.bf16.msra.mxu0 0
      %2513 = vmatpush.bf16.msra.mxu0 0
      %2514 = vmatpush.bf16.msra.mxu0 0
      %2515 = vmatpush.bf16.msra.mxu0 0
      %2516 = vmatpush.bf16.msra.mxu0 0
      %2517 = vmatpush.bf16.msra.mxu0 0
      %2518 = vmatpush.bf16.msra.mxu0 %v2494
      %2519 = vmatpush.bf16.msra.mxu0 %v2493
      %2520 = vmatmul.bf16.gmra.mxu0 %v2498
      %v2521 = vpop.f32.mrf.mxu0
      %v2522 = vadd.f32 0.0, %v2521
      %v2523 = vpop.f32.mrf.mxu0
      %v2524 = vadd.f32 0.0, %v2523
      %2525 = vmatmul.bf16.gmra.mxu0 %v2501
      %v2526 = vpop.f32.mrf.mxu0
      %v2527 = vadd.f32 0.0, %v2526
      %v2528 = vpop.f32.mrf.mxu0
      %v2529 = vadd.f32 0.0, %v2528
      %2530 = vmatmul.bf16.gmra.mxu0 %v2504
      %v2531 = vpop.f32.mrf.mxu0
      %v2532 = vadd.f32 0.0, %v2531
      %v2533 = vpop.f32.mrf.mxu0
      %v2534 = vadd.f32 0.0, %v2533
      %2535 = vmatmul.bf16.gmra.mxu0 %v2507
      %v2536 = vpop.f32.mrf.mxu0
      %v2537 = vadd.f32 0.0, %v2536
      %v2538 = vpop.f32.mrf.mxu0
      %v2539 = vadd.f32 0.0, %v2538
      %2540 = vmatmul.bf16.gmra.mxu0 %v2510
      %v2541 = vpop.f32.mrf.mxu0
      %v2542 = vadd.f32 0.0, %v2541
      %v2543 = vpop.f32.mrf.mxu0
      %v2544 = vadd.f32 0.0, %v2543
      %2545 = vdwg.mxu0
      %v2546 = vadd.f32 %v2413, %v2522
      %v2547 = vadd.f32 %v2414, %v2524
      %v2548 = vadd.f32 %v2415, %v2527
      %v2549 = vadd.f32 %v2416, %v2529
      %v2550 = vadd.f32 %v2417, %v2532
      %v2551 = vadd.f32 %v2418, %v2534
      %v2552 = vadd.f32 %v2419, %v2537
      %v2553 = vadd.f32 %v2420, %v2539
      %v2554 = vadd.f32 %v2421, %v2542
      %v2555 = vadd.f32 %v2422, %v2544
      %v2556 = vld [vmem:[#allocation2 + $0x8] sm:$0x8]
      %s2557 = scalar_lea.vmem %s5, 128
      %v2558 = vld [vmem:[%s2557] sm:$0xf]
      %v2559 = vld [vmem:[%s2557 + $0x4] sm:$0xf]
      %v2560 = vld [vmem:[%s2557 + $0x8] sm:$0xf]
      %v2561 = vld [vmem:[%s2557 + $0xc] sm:$0xf]
      %v2563 = vunpack.c.l.b16 %v2556
      %v2564 = vpack.c.b16 %v2325, %v2563
      %v2565 = vrot.slane %v2564, 3
      %v2566 = vrot.slane %v2336, 3
      %v2567 = vsel %vm1211, %v2565, %v2566
      %v2568 = vrot.slane %v2337, 3
      %v2569 = vsel %vm1211, %v2566, %v2568
      %v2570 = vrot.slane %v2338, 3
      %v2571 = vsel %vm1211, %v2568, %v2570
      %v2572 = vrot.slane %v2339, 3
      %v2573 = vsel %vm1211, %v2570, %v2572
      %v2574 = vrot.slane %v2431, 3
      %v2575 = vsel %vm1211, %v2572, %v2574
      %v2580 = vunpack.c.l.b16 %v2558
      %v2581 = vunpack.c.l.b16 %v2559
      %v2582 = vunpack.c.l.b16 %v2560
      %v2583 = vunpack.c.l.b16 %v2561
      %v2584 = vpack.c.b16 %v2581, %v2580
      %v2585 = vpack.c.b16 %v2583, %v2582
      %v2589 = vsel %vm1723, %v2567, 0
      %v2592 = vsel %vm1723, %v2569, 0
      %v2595 = vsel %vm1723, %v2571, 0
      %v2598 = vsel %vm1723, %v2573, 0
      %v2601 = vsel %vm1723, %v2575, 0
      %2603 = vmatpush.bf16.msra.mxu0 0
      %2604 = vmatpush.bf16.msra.mxu0 0
      %2605 = vmatpush.bf16.msra.mxu0 0
      %2606 = vmatpush.bf16.msra.mxu0 0
      %2607 = vmatpush.bf16.msra.mxu0 0
      %2608 = vmatpush.bf16.msra.mxu0 0
      %2609 = vmatpush.bf16.msra.mxu0 %v2585
      %2610 = vmatpush.bf16.msra.mxu0 %v2584
      %2611 = vmatmul.bf16.gmra.mxu0 %v2589
      %v2612 = vpop.f32.mrf.mxu0
      %v2613 = vadd.f32 0.0, %v2612
      %v2614 = vpop.f32.mrf.mxu0
      %v2615 = vadd.f32 0.0, %v2614
      %2616 = vmatmul.bf16.gmra.mxu0 %v2592
      %v2617 = vpop.f32.mrf.mxu0
      %v2618 = vadd.f32 0.0, %v2617
      %v2619 = vpop.f32.mrf.mxu0
      %v2620 = vadd.f32 0.0, %v2619
      %2621 = vmatmul.bf16.gmra.mxu0 %v2595
      %v2622 = vpop.f32.mrf.mxu0
      %v2623 = vadd.f32 0.0, %v2622
      %v2624 = vpop.f32.mrf.mxu0
      %v2625 = vadd.f32 0.0, %v2624
      %2626 = vmatmul.bf16.gmra.mxu0 %v2598
      %v2627 = vpop.f32.mrf.mxu0
      %v2628 = vadd.f32 0.0, %v2627
      %v2629 = vpop.f32.mrf.mxu0
      %v2630 = vadd.f32 0.0, %v2629
      %2631 = vmatmul.bf16.gmra.mxu0 %v2601
      %v2632 = vpop.f32.mrf.mxu0
      %v2633 = vadd.f32 0.0, %v2632
      %v2634 = vpop.f32.mrf.mxu0
      %v2635 = vadd.f32 0.0, %v2634
      %2636 = vdwg.mxu0
      %v2637 = vadd.f32 %v2546, %v2613
      %v2638 = vadd.f32 %v2547, %v2615
      %v2639 = vadd.f32 %v2548, %v2618
      %v2640 = vadd.f32 %v2549, %v2620
      %v2641 = vadd.f32 %v2550, %v2623
      %v2642 = vadd.f32 %v2551, %v2625
      %v2643 = vadd.f32 %v2552, %v2628
      %v2644 = vadd.f32 %v2553, %v2630
      %v2645 = vadd.f32 %v2554, %v2633
      %v2646 = vadd.f32 %v2555, %v2635
      %v2647 = vld [vmem:[%s6] sm:$0x1]
      %v2649 = vperm.slane %v2647, 0
      %v2651 = vmul.f32 %v2637, %v2649
      %v2652 = vmul.f32 %v2638, %v2649
      %v2653 = vmul.f32 %v2639, %v2649
      %v2654 = vmul.f32 %v2640, %v2649
      %v2655 = vmul.f32 %v2641, %v2649
      %v2656 = vmul.f32 %v2642, %v2649
      %v2657 = vmul.f32 %v2643, %v2649
      %v2658 = vmul.f32 %v2644, %v2649
      %v2659 = vmul.f32 %v2645, %v2649
      %v2660 = vmul.f32 %v2646, %v2649
      %v2661 = vld [vmem:[%s7] sm:$0x1]
      %v2663 = vperm.slane %v2661, 0
      %v2665 = vadd.f32 %v2651, %v2663
      %v2666 = vadd.f32 %v2652, %v2663
      %v2667 = vadd.f32 %v2653, %v2663
      %v2668 = vadd.f32 %v2654, %v2663
      %v2669 = vadd.f32 %v2655, %v2663
      %v2670 = vadd.f32 %v2656, %v2663
      %v2671 = vadd.f32 %v2657, %v2663
      %v2672 = vadd.f32 %v2658, %v2663
      %v2673 = vadd.f32 %v2659, %v2663
      %v2674 = vadd.f32 %v2660, %v2663
      %v2675 = vmul.f32 %v2665, 0.5
      %v2676 = vmul.f32 %v2666, 0.5
      %v2677 = vmul.f32 %v2667, 0.5
      %v2678 = vmul.f32 %v2668, 0.5
      %v2679 = vmul.f32 %v2669, 0.5
      %v2680 = vmul.f32 %v2670, 0.5
      %v2681 = vmul.f32 %v2671, 0.5
      %v2682 = vmul.f32 %v2672, 0.5
      %v2683 = vmul.f32 %v2673, 0.5
      %v2684 = vmul.f32 %v2674, 0.5
      %v2685 = vmul.f32 %v2665, 0.044715
      %v2686 = vmul.f32 %v2666, 0.044715
      %v2687 = vmul.f32 %v2667, 0.044715
      %v2688 = vmul.f32 %v2668, 0.044715
      %v2689 = vmul.f32 %v2669, 0.044715
      %v2690 = vmul.f32 %v2670, 0.044715
      %v2691 = vmul.f32 %v2671, 0.044715
      %v2692 = vmul.f32 %v2672, 0.044715
      %v2693 = vmul.f32 %v2673, 0.044715
      %v2694 = vmul.f32 %v2674, 0.044715
      %v2695 = vmul.f32 %v2685, %v2665
      %v2696 = vmul.f32 %v2686, %v2666
      %v2697 = vmul.f32 %v2687, %v2667
      %v2698 = vmul.f32 %v2688, %v2668
      %v2699 = vmul.f32 %v2689, %v2669
      %v2700 = vmul.f32 %v2690, %v2670
      %v2701 = vmul.f32 %v2691, %v2671
      %v2702 = vmul.f32 %v2692, %v2672
      %v2703 = vmul.f32 %v2693, %v2673
      %v2704 = vmul.f32 %v2694, %v2674
      %v2705 = vmul.f32 %v2695, %v2665
      %v2706 = vmul.f32 %v2696, %v2666
      %v2707 = vmul.f32 %v2697, %v2667
      %v2708 = vmul.f32 %v2698, %v2668
      %v2709 = vmul.f32 %v2699, %v2669
      %v2710 = vmul.f32 %v2700, %v2670
      %v2711 = vmul.f32 %v2701, %v2671
      %v2712 = vmul.f32 %v2702, %v2672
      %v2713 = vmul.f32 %v2703, %v2673
      %v2714 = vmul.f32 %v2704, %v2674
      %v2715 = vadd.f32 %v2665, %v2705
      %v2716 = vadd.f32 %v2666, %v2706
      %v2717 = vadd.f32 %v2667, %v2707
      %v2718 = vadd.f32 %v2668, %v2708
      %v2719 = vadd.f32 %v2669, %v2709
      %v2720 = vadd.f32 %v2670, %v2710
      %v2721 = vadd.f32 %v2671, %v2711
      %v2722 = vadd.f32 %v2672, %v2712
      %v2723 = vadd.f32 %v2673, %v2713
      %v2724 = vadd.f32 %v2674, %v2714
      %v2725 = vmul.f32 %v2715, 0.7978846
      %v2726 = vmul.f32 %v2716, 0.7978846
      %v2727 = vmul.f32 %v2717, 0.7978846
      %v2728 = vmul.f32 %v2718, 0.7978846
      %v2729 = vmul.f32 %v2719, 0.7978846
      %v2730 = vmul.f32 %v2720, 0.7978846
      %v2731 = vmul.f32 %v2721, 0.7978846
      %v2732 = vmul.f32 %v2722, 0.7978846
      %v2733 = vmul.f32 %v2723, 0.7978846
      %v2734 = vmul.f32 %v2724, 0.7978846
      %v2735 = vtanh.pop %v2725
      %v2736 = vtanh.pop %v2726
      %v2737 = vtanh.pop %v2727
      %v2738 = vtanh.pop %v2728
      %v2739 = vtanh.pop %v2729
      %v2740 = vtanh.pop %v2730
      %v2741 = vtanh.pop %v2731
      %v2742 = vtanh.pop %v2732
      %v2743 = vtanh.pop %v2733
      %v2744 = vtanh.pop %v2734
      %v2745 = vadd.f32 %v2735, 1.0
      %v2746 = vadd.f32 %v2736, 1.0
      %v2747 = vadd.f32 %v2737, 1.0
      %v2748 = vadd.f32 %v2738, 1.0
      %v2749 = vadd.f32 %v2739, 1.0
      %v2750 = vadd.f32 %v2740, 1.0
      %v2751 = vadd.f32 %v2741, 1.0
      %v2752 = vadd.f32 %v2742, 1.0
      %v2753 = vadd.f32 %v2743, 1.0
      %v2754 = vadd.f32 %v2744, 1.0
      %v2755 = vmul.f32 %v2675, %v2745
      %v2756 = vmul.f32 %v2676, %v2746
      %v2757 = vmul.f32 %v2677, %v2747
      %v2758 = vmul.f32 %v2678, %v2748
      %v2759 = vmul.f32 %v2679, %v2749
      %v2760 = vmul.f32 %v2680, %v2750
      %v2761 = vmul.f32 %v2681, %v2751
      %v2762 = vmul.f32 %v2682, %v2752
      %v2763 = vmul.f32 %v2683, %v2753
      %v2764 = vmul.f32 %v2684, %v2754
      %v2765 = vmax.f32 %v2755, 0.0
      %v2766 = vmax.f32 %v2756, 0.0
      %v2767 = vmax.f32 %v2757, 0.0
      %v2768 = vmax.f32 %v2758, 0.0
      %v2769 = vmax.f32 %v2759, 0.0
      %v2770 = vmax.f32 %v2760, 0.0
      %v2771 = vmax.f32 %v2761, 0.0
      %v2772 = vmax.f32 %v2762, 0.0
      %v2773 = vmax.f32 %v2763, 0.0
      %v2774 = vmax.f32 %v2764, 0.0
      %2775 = vst.msk [vmem:[%s305] sm:$0xf] %vm1468, 0
      %2776 = vst.msk [vmem:[%s305 + $0x4] sm:$0xf] %vm1468, 0
      %2777 = vst.msk [vmem:[%s305 + $0x8] sm:$0xf] %vm1468, 0
      %2778 = vst.msk [vmem:[%s305 + $0xc] sm:$0xf] %vm1468, 0
      %2779 = vst.msk [vmem:[%s305 + $0x10] sm:$0xf] %vm1468, 0
      %2780 = vst.msk [vmem:[%s305 + $0x14] sm:$0xf] %vm1468, 0
      %2781 = vst.msk [vmem:[%s305 + $0x18] sm:$0xf] %vm1468, 0
      %2782 = vst.msk [vmem:[%s305 + $0x1c] sm:$0xf] %vm1468, 0
      %2783 = vst.msk [vmem:[%s305 + $0x20] sm:$0xf] %vm1468, 0
      %2784 = vst.msk [vmem:[%s305 + $0x24] sm:$0xf] %vm1468, 0
      %2785 = vst.msk [vmem:[%s305 + $0x28] sm:$0xf] %vm1468, 0
      %2786 = vst.msk [vmem:[%s305 + $0x2c] sm:$0xf] %vm1468, 0
      %2787 = vst.msk [vmem:[%s305 + $0x30] sm:$0x3] %vm1481, 0
      %v2788 = vmul.f32 %v2765, %v1411
      %v2789 = vmul.f32 %v2766, %v1416
      %v2790 = vmul.f32 %v2767, %v1421
      %v2791 = vmul.f32 %v2768, %v1426
      %v2792 = vmul.f32 %v2769, %v1431
      %v2793 = vmul.f32 %v2770, %v1436
      %v2794 = vmul.f32 %v2771, %v1441
      %v2795 = vmul.f32 %v2772, %v1446
      %v2796 = vmul.f32 %v2773, %v1451
      %v2797 = vmul.f32 %v2774, %v1456
      %v2798 = vpack.c.bf16 %v2788, %v2788
      %v2799 = vpack.c.bf16 %v2789, %v2789
      %v2800 = vpack.c.bf16 %v2790, %v2790
      %v2801 = vpack.c.bf16 %v2791, %v2791
      %v2802 = vpack.c.bf16 %v2792, %v2792
      %v2803 = vpack.c.bf16 %v2793, %v2793
      %v2804 = vpack.c.bf16 %v2794, %v2794
      %v2805 = vpack.c.bf16 %v2795, %v2795
      %v2806 = vpack.c.bf16 %v2796, %v2796
      %v2807 = vpack.c.bf16 %v2797, %v2797
      %v2809 = vshrl.u32 %v2798, 16
      %v2811 = vrot.slane %v2809, 6
      %v2812 = vshll.u32 %v2798, 16
      %v2814 = vrot.slane %v2812, 7
      %v2815 = vor.u32 %v2811, %v2814
      %v2816 = vrot.slane %v2815, 4
      %v2818 = vshrl.u32 %v2799, 16
      %v2820 = vrot.slane %v2818, 6
      %v2821 = vshll.u32 %v2799, 16
      %v2823 = vrot.slane %v2821, 7
      %v2824 = vor.u32 %v2820, %v2823
      %v2825 = vsel %vm1495, %v2816, %v2824
      %v2826 = vrot.slane %v2824, 4
      %v2828 = vshrl.u32 %v2800, 16
      %v2830 = vrot.slane %v2828, 6
      %v2831 = vshll.u32 %v2800, 16
      %v2833 = vrot.slane %v2831, 7
      %v2834 = vor.u32 %v2830, %v2833
      %v2835 = vsel %vm1495, %v2826, %v2834
      %v2836 = vrot.slane %v2834, 4
      %v2838 = vshrl.u32 %v2801, 16
      %v2840 = vrot.slane %v2838, 6
      %v2841 = vshll.u32 %v2801, 16
      %v2843 = vrot.slane %v2841, 7
      %v2844 = vor.u32 %v2840, %v2843
      %v2845 = vsel %vm1495, %v2836, %v2844
      %v2846 = vrot.slane %v2844, 4
      %v2848 = vshrl.u32 %v2802, 16
      %v2850 = vrot.slane %v2848, 6
      %v2851 = vshll.u32 %v2802, 16
      %v2853 = vrot.slane %v2851, 7
      %v2854 = vor.u32 %v2850, %v2853
      %v2855 = vsel %vm1495, %v2846, %v2854
      %v2856 = vrot.slane %v2854, 4
      %v2858 = vshrl.u32 %v2803, 16
      %v2860 = vrot.slane %v2858, 6
      %v2861 = vshll.u32 %v2803, 16
      %v2863 = vrot.slane %v2861, 7
      %v2864 = vor.u32 %v2860, %v2863
      %v2865 = vsel %vm1495, %v2856, %v2864
      %v2866 = vrot.slane %v2864, 4
      %v2868 = vshrl.u32 %v2804, 16
      %v2870 = vrot.slane %v2868, 6
      %v2871 = vshll.u32 %v2804, 16
      %v2873 = vrot.slane %v2871, 7
      %v2874 = vor.u32 %v2870, %v2873
      %v2875 = vsel %vm1495, %v2866, %v2874
      %v2876 = vrot.slane %v2874, 4
      %v2878 = vshrl.u32 %v2805, 16
      %v2880 = vrot.slane %v2878, 6
      %v2881 = vshll.u32 %v2805, 16
      %v2883 = vrot.slane %v2881, 7
      %v2884 = vor.u32 %v2880, %v2883
      %v2885 = vsel %vm1495, %v2876, %v2884
      %v2886 = vrot.slane %v2884, 4
      %v2888 = vshrl.u32 %v2806, 16
      %v2890 = vrot.slane %v2888, 6
      %v2891 = vshll.u32 %v2806, 16
      %v2893 = vrot.slane %v2891, 7
      %v2894 = vor.u32 %v2890, %v2893
      %v2895 = vsel %vm1495, %v2886, %v2894
      %v2896 = vrot.slane %v2894, 4
      %v2898 = vshrl.u32 %v2807, 16
      %v2900 = vrot.slane %v2898, 6
      %v2901 = vshll.u32 %v2807, 16
      %v2903 = vrot.slane %v2901, 7
      %v2904 = vor.u32 %v2900, %v2903
      %v2905 = vsel %vm1495, %v2896, %v2904
      %v2906 = vrot.slane %v2900, 4
      %v2918 = vld [vmem:[%s305 + $0x4] sm:$0xe]
      %v2919 = vsel %vm1608, %v2815, %v2918
      %2920 = vst [vmem:[%s305 + $0x4] sm:$0xe] %v2919
      %2921 = vst.msk [vmem:[%s305 + $0x8] sm:$0xf] %vm1468, %v2825
      %2922 = vst.msk [vmem:[%s305 + $0xc] sm:$0xf] %vm1468, %v2835
      %2923 = vst.msk [vmem:[%s305 + $0x10] sm:$0xf] %vm1468, %v2845
      %2924 = vst.msk [vmem:[%s305 + $0x14] sm:$0xf] %vm1468, %v2855
      %2925 = vst.msk [vmem:[%s305 + $0x18] sm:$0xf] %vm1468, %v2865
      %2926 = vst.msk [vmem:[%s305 + $0x1c] sm:$0xf] %vm1468, %v2875
      %2927 = vst.msk [vmem:[%s305 + $0x20] sm:$0xf] %vm1468, %v2885
      %2928 = vst.msk [vmem:[%s305 + $0x24] sm:$0xf] %vm1468, %v2895
      %2929 = vst.msk [vmem:[%s305 + $0x28] sm:$0xf] %vm1468, %v2905
      %v2930 = vld [vmem:[%s305 + $0x2c] sm:$0x1]
      %v2931 = vsel %vm1623, %v2906, %v2930
      %2932 = vst [vmem:[%s305 + $0x2c] sm:$0x1] %v2931
      %p2933 = scmp.lt.s32.totalorder %s19, 7
      %s2934 = scalar_select %p2933, %s19, 7
      %s2935 = smul.addr %s2934, 13
      %s2936 = smul.addr %s2935, 4
      %s2937 = scalar_lea.vmem %s8, %s2936
      // Predicated region
      $region53: #{encoder_identity_forward.4} parent=51 // pred_check
        %p2938 = pneg %p210
      $region54: #{encoder_identity_forward.4} parent=51 // pred_check_branch
        %2940 = sbr.rel (%p2938) target = $region56
      $region55: #{encoder_identity_forward.4} parent=51 // pred_region
        _
      $region56: #{encoder_identity_forward.4} parent=51 // pred_fallthru
        _
    $region52: #{encoder_identity_forward.4} parent=5 // pred_fallthru
      _
    %p2941 = scmp.le.s32.totalorder 2, %s14
    // Predicated region
    $region57: #{encoder_identity_forward.4} parent=5 // pred_check
      %p2942 = pneg %p2941
    $region58: #{encoder_identity_forward.4} parent=5 // pred_check_branch
      %2944 = sbr.rel (%p2942) target = $region60
    $region59: #{encoder_identity_forward.4} parent=5 // pred_region
      %s2945 = ssub.s32 %s14, 2
      // Predicated region
      $region61: #{encoder_identity_forward.4} parent=59 // pred_check
        %p2946 = pneg %p216
      $region62: #{encoder_identity_forward.4} parent=59 // pred_check_branch
        %2948 = sbr.rel (%p2946) target = $region64
      $region63: #{encoder_identity_forward.4} parent=59 // pred_region
        %p2949 = scmp.lt.s32.totalorder %s20, 7
        %s2950 = scalar_select %p2949, %s20, 7
        %s2951 = smul.addr %s2950, 13
        %s2952 = smul.addr %s2951, 4
        %s2953 = scalar_lea.vmem %s8, %s2952
      $region64: #{encoder_identity_forward.4} parent=59 // pred_fallthru
        _
    $region60: #{encoder_identity_forward.4} parent=5 // pred_fallthru
      _
  $region6: #{encoder_identity_forward.4} parent=0 // loop_footer
    %s18 = sadd.s32 1, %s14
  $region7: #{encoder_identity_forward.4} parent=0 // loop_footer_branch
    %13 = sbr.rel target = $region3
  $region8: #{encoder_identity_forward.4} parent=0 // loop_exit
    _

// kernel: encoder_identity_forward.5
$region0: #{encoder_identity_forward.5}
  #allocation0 [shape = 'u32[]', space=smem, size = 0x4, offset = 0x4, fixed_abs, tag = 'smem constant byte address 0x4 - core index']
  #allocation1 [shape = 'u32[72,128]{1,0:T(1,128)}', space=vmem, size = 0x9000, scoped, tag = 'internal scratch']
  #allocation2 [shape = 'bf16[36,32]{1,0:T(8,128)(2,1)}', space=vmem, size = 0x2800, scoped, tag = 'scratch operand']
  #allocation3 [shape = 'f32[22,32]{1,0:T(8,128)}', space=vmem, size = 0x3000, scoped, tag = 'scratch operand']
  %s0 = inlined_call_operand.vmem [shape: bf16[2,4,36,128], index: 0, kind: input, shape index: {}]
  %s1 = inlined_call_operand.vmem [shape: f32[22,1], index: 1, kind: input, shape index: {}]
  %s2 = inlined_call_operand.vmem [shape: bf16[9,128,32], index: 2, kind: input, shape index: {}]
  %s3 = inlined_call_operand.vmem [shape: f32[1,32], index: 3, kind: input, shape index: {}]
  %s4 = inlined_call_operand.vmem [shape: f32[1,32], index: 4, kind: input, shape index: {}]
  %s5 = inlined_call_operand.vmem [shape: bf16[9,32,32], index: 5, kind: input, shape index: {}]
  %s6 = inlined_call_operand.vmem [shape: f32[1,32], index: 6, kind: input, shape index: {}]
  %s7 = inlined_call_operand.vmem [shape: f32[1,32], index: 7, kind: input, shape index: {}]
  %s8 = inlined_call_operand.vmem [shape: bf16[2,36,32], index: 8, kind: output, shape index: {}]
  %s9 = sld [smem:[#allocation0]]
  $region73: #{encoder_identity_forward.5} parent=0
    _
  %s11 = ssub.s32 1, %s9
  %s12 = scalar_select 0, %s11, %s9
  loop: start=0, step=1, limit=10
  $region2: #{encoder_identity_forward.5} parent=0 // loop_pre_header
    _
  $region3: #{encoder_identity_forward.5} parent=0 // loop_header
    %s14 = sphi 0, %s18
    %p15 = scmp.ge.s32.totalorder %s14, 10
    %s21 = sphi 0, %s33
    %s22 = sphi 0, %s29
    %s23 = sphi 0, %s21
    %s24 = sphi 0, %s22
    %s25 = sphi 0, %s23
    %s26 = sphi 0, %s24
    %s38 = sphi 0, %s40
    %s41 = sphi 0, %s38
    %s42 = sphi 0, %s41
    %s58 = sphi 0, %s42
    %s62 = sphi 0, %s62
    %s64 = sphi 0, %s62
    %s65 = sphi 0, %s64
    %s79 = sphi 0, %s65
    %s83 = sphi 0, %s83
    %s85 = sphi 0, %s83
    %s86 = sphi 0, %s85
    %s100 = sphi 0, %s86
    %s104 = sphi 0, %s104
    %s106 = sphi 0, %s104
    %s107 = sphi 0, %s106
    %s121 = sphi 0, %s107
    %s125 = sphi 0, %s125
    %s127 = sphi 0, %s125
    %s128 = sphi 0, %s127
    %s142 = sphi 0, %s128
    %s146 = sphi 0, %s146
    %s148 = sphi 0, %s146
    %s149 = sphi 0, %s148
    %s163 = sphi 0, %s149
    %s167 = sphi 0, %s167
    %s169 = sphi 0, %s167
    %s170 = sphi 0, %s169
    %s184 = sphi 0, %s170
    %s188 = sphi 0, %s188
    %s190 = sphi 0, %s188
    %s191 = sphi 0, %s190
    %s205 = sphi 0, %s191
    %s211 = sphi 0, %s213
    %s214 = sphi 0, %s211
    %s215 = sphi 0, %s214
    %s231 = sphi 0, %s215
  $region4: #{encoder_identity_forward.5} parent=0 // loop_header_branch
    %17 = sbr.rel (%p15) target = $region8
  $region5: #{encoder_identity_forward.5} parent=0 // loop_body
    %s19 = ssub.s32 %s14, 1
    %s20 = ssub.s32 %s14, 2
    %s27 = sadd.s32 1, %s22
    %p28 = scmp.ge.s32.totalorder %s27, 4
    %s29 = scalar_select %p28, 0, %s27
    %s30 = sadd.s32 1, %s21
    %s31 = scalar_select %p28, %s30, %s21
    %p32 = scmp.ge.s32.totalorder %s31, 2
    %s33 = scalar_select %p32, 0, %s31
    %s34 = ssub.s32 %s21, %s33
    %s35 = ssub.s32 %s22, %s29
    %s36 = sor.u32 %s34, %s35
    %p37 = scmp.eq.s32.totalorder %s36, 0
    %s39 = sadd.s32 %s38, 1
    %s40 = scalar_select %p37, %s38, %s39
    %p43 = pneg %p37
    %p44 = scmp.eq.s32.totalorder %s14, 7
    %p45 = por %p43, %p44
    %p46 = scmp.ne.s32.totalorder %s38, %s41
    %p47 = scmp.eq.s32.totalorder %s14, 0
    %p48 = por %p46, %p47
    %p49 = scmp.ne.s32.totalorder %s38, %s41
    %p50 = scmp.eq.s32.totalorder %s19, 7
    %p51 = por %p49, %p50
    %p52 = scmp.ne.s32.totalorder %s41, %s42
    %p53 = scmp.eq.s32.totalorder %s19, 0
    %p54 = por %p52, %p53
    %p55 = scmp.ne.s32.totalorder %s41, %s42
    %p56 = scmp.eq.s32.totalorder %s20, 7
    %p57 = por %p55, %p56
    %p59 = scmp.ne.s32.totalorder %s42, %s58
    %p60 = scmp.eq.s32.totalorder %s20, 0
    %p61 = por %p59, %p60
    %s63 = sadd.s32 %s62, 1
    %p66 = scmp.eq.s32.totalorder %s14, 7
    %p67 = scmp.ne.s32.totalorder %s62, %s64
    %p68 = scmp.eq.s32.totalorder %s14, 0
    %p69 = por %p67, %p68
    %p70 = scmp.ne.s32.totalorder %s62, %s64
    %p71 = scmp.eq.s32.totalorder %s19, 7
    %p72 = por %p70, %p71
    %p73 = scmp.ne.s32.totalorder %s64, %s65
    %p74 = scmp.eq.s32.totalorder %s19, 0
    %p75 = por %p73, %p74
    %p76 = scmp.ne.s32.totalorder %s64, %s65
    %p77 = scmp.eq.s32.totalorder %s20, 7
    %p78 = por %p76, %p77
    %p80 = scmp.ne.s32.totalorder %s65, %s79
    %p81 = scmp.eq.s32.totalorder %s20, 0
    %p82 = por %p80, %p81
    %s84 = sadd.s32 %s83, 1
    %p87 = scmp.eq.s32.totalorder %s14, 7
    %p88 = scmp.ne.s32.totalorder %s83, %s85
    %p89 = scmp.eq.s32.totalorder %s14, 0
    %p90 = por %p88, %p89
    %p91 = scmp.ne.s32.totalorder %s83, %s85
    %p92 = scmp.eq.s32.totalorder %s19, 7
    %p93 = por %p91, %p92
    %p94 = scmp.ne.s32.totalorder %s85, %s86
    %p95 = scmp.eq.s32.totalorder %s19, 0
    %p96 = por %p94, %p95
    %p97 = scmp.ne.s32.totalorder %s85, %s86
    %p98 = scmp.eq.s32.totalorder %s20, 7
    %p99 = por %p97, %p98
    %p101 = scmp.ne.s32.totalorder %s86, %s100
    %p102 = scmp.eq.s32.totalorder %s20, 0
    %p103 = por %p101, %p102
    %s105 = sadd.s32 %s104, 1
    %p108 = scmp.eq.s32.totalorder %s14, 7
    %p109 = scmp.ne.s32.totalorder %s104, %s106
    %p110 = scmp.eq.s32.totalorder %s14, 0
    %p111 = por %p109, %p110
    %p112 = scmp.ne.s32.totalorder %s104, %s106
    %p113 = scmp.eq.s32.totalorder %s19, 7
    %p114 = por %p112, %p113
    %p115 = scmp.ne.s32.totalorder %s106, %s107
    %p116 = scmp.eq.s32.totalorder %s19, 0
    %p117 = por %p115, %p116
    %p118 = scmp.ne.s32.totalorder %s106, %s107
    %p119 = scmp.eq.s32.totalorder %s20, 7
    %p120 = por %p118, %p119
    %p122 = scmp.ne.s32.totalorder %s107, %s121
    %p123 = scmp.eq.s32.totalorder %s20, 0
    %p124 = por %p122, %p123
    %s126 = sadd.s32 %s125, 1
    %p129 = scmp.eq.s32.totalorder %s14, 7
    %p130 = scmp.ne.s32.totalorder %s125, %s127
    %p131 = scmp.eq.s32.totalorder %s14, 0
    %p132 = por %p130, %p131
    %p133 = scmp.ne.s32.totalorder %s125, %s127
    %p134 = scmp.eq.s32.totalorder %s19, 7
    %p135 = por %p133, %p134
    %p136 = scmp.ne.s32.totalorder %s127, %s128
    %p137 = scmp.eq.s32.totalorder %s19, 0
    %p138 = por %p136, %p137
    %p139 = scmp.ne.s32.totalorder %s127, %s128
    %p140 = scmp.eq.s32.totalorder %s20, 7
    %p141 = por %p139, %p140
    %p143 = scmp.ne.s32.totalorder %s128, %s142
    %p144 = scmp.eq.s32.totalorder %s20, 0
    %p145 = por %p143, %p144
    %s147 = sadd.s32 %s146, 1
    %p150 = scmp.eq.s32.totalorder %s14, 7
    %p151 = scmp.ne.s32.totalorder %s146, %s148
    %p152 = scmp.eq.s32.totalorder %s14, 0
    %p153 = por %p151, %p152
    %p154 = scmp.ne.s32.totalorder %s146, %s148
    %p155 = scmp.eq.s32.totalorder %s19, 7
    %p156 = por %p154, %p155
    %p157 = scmp.ne.s32.totalorder %s148, %s149
    %p158 = scmp.eq.s32.totalorder %s19, 0
    %p159 = por %p157, %p158
    %p160 = scmp.ne.s32.totalorder %s148, %s149
    %p161 = scmp.eq.s32.totalorder %s20, 7
    %p162 = por %p160, %p161
    %p164 = scmp.ne.s32.totalorder %s149, %s163
    %p165 = scmp.eq.s32.totalorder %s20, 0
    %p166 = por %p164, %p165
    %s168 = sadd.s32 %s167, 1
    %p171 = scmp.eq.s32.totalorder %s14, 7
    %p172 = scmp.ne.s32.totalorder %s167, %s169
    %p173 = scmp.eq.s32.totalorder %s14, 0
    %p174 = por %p172, %p173
    %p175 = scmp.ne.s32.totalorder %s167, %s169
    %p176 = scmp.eq.s32.totalorder %s19, 7
    %p177 = por %p175, %p176
    %p178 = scmp.ne.s32.totalorder %s169, %s170
    %p179 = scmp.eq.s32.totalorder %s19, 0
    %p180 = por %p178, %p179
    %p181 = scmp.ne.s32.totalorder %s169, %s170
    %p182 = scmp.eq.s32.totalorder %s20, 7
    %p183 = por %p181, %p182
    %p185 = scmp.ne.s32.totalorder %s170, %s184
    %p186 = scmp.eq.s32.totalorder %s20, 0
    %p187 = por %p185, %p186
    %s189 = sadd.s32 %s188, 1
    %p192 = scmp.eq.s32.totalorder %s14, 7
    %p193 = scmp.ne.s32.totalorder %s188, %s190
    %p194 = scmp.eq.s32.totalorder %s14, 0
    %p195 = por %p193, %p194
    %p196 = scmp.ne.s32.totalorder %s188, %s190
    %p197 = scmp.eq.s32.totalorder %s19, 7
    %p198 = por %p196, %p197
    %p199 = scmp.ne.s32.totalorder %s190, %s191
    %p200 = scmp.eq.s32.totalorder %s19, 0
    %p201 = por %p199, %p200
    %p202 = scmp.ne.s32.totalorder %s190, %s191
    %p203 = scmp.eq.s32.totalorder %s20, 7
    %p204 = por %p202, %p203
    %p206 = scmp.ne.s32.totalorder %s191, %s205
    %p207 = scmp.eq.s32.totalorder %s20, 0
    %p208 = por %p206, %p207
    %s209 = ssub.s32 %s21, %s33
    %p210 = scmp.eq.s32.totalorder %s209, 0
    %s212 = sadd.s32 %s211, 1
    %s213 = scalar_select %p210, %s211, %s212
    %p216 = pneg %p210
    %p217 = scmp.eq.s32.totalorder %s14, 7
    %p218 = por %p216, %p217
    %p219 = scmp.ne.s32.totalorder %s211, %s214
    %p220 = scmp.eq.s32.totalorder %s14, 0
    %p221 = por %p219, %p220
    %p222 = scmp.ne.s32.totalorder %s211, %s214
    %p223 = scmp.eq.s32.totalorder %s19, 7
    %p224 = por %p222, %p223
    %p225 = scmp.ne.s32.totalorder %s214, %s215
    %p226 = scmp.eq.s32.totalorder %s19, 0
    %p227 = por %p225, %p226
    %p228 = scmp.ne.s32.totalorder %s214, %s215
    %p229 = scmp.eq.s32.totalorder %s20, 7
    %p230 = por %p228, %p229
    %p232 = scmp.ne.s32.totalorder %s215, %s231
    %p233 = scmp.eq.s32.totalorder %s20, 0
    %p234 = por %p232, %p233
    %p235 = scmp.le.s32.totalorder 1, %s14
    %p236 = scmp.lt.s32.totalorder %s14, 9
    %p237 = pnand %p235, %p236
    %p238 = pneg %p237
    // Predicated region
    $region9: #{encoder_identity_forward.5} parent=5 // pred_check
      _
    $region10: #{encoder_identity_forward.5} parent=5 // pred_check_branch
      %240 = sbr.rel (%p237) target = $region12
    $region11: #{encoder_identity_forward.5} parent=5 // pred_region
      %s241 = ssub.s32 %s14, 1
      // Predicated region
      $region13: #{encoder_identity_forward.5} parent=11 // pred_check
        %p242 = pneg %p75
      $region14: #{encoder_identity_forward.5} parent=11 // pred_check_branch
        %244 = sbr.rel (%p242) target = $region16
      $region15: #{encoder_identity_forward.5} parent=11 // pred_region
        _
      $region16: #{encoder_identity_forward.5} parent=11 // pred_fallthru
        _
      // Predicated region
      $region17: #{encoder_identity_forward.5} parent=11 // pred_check
        %p245 = pneg %p96
      $region18: #{encoder_identity_forward.5} parent=11 // pred_check_branch
        %247 = sbr.rel (%p245) target = $region20
      $region19: #{encoder_identity_forward.5} parent=11 // pred_region
        _
      $region20: #{encoder_identity_forward.5} parent=11 // pred_fallthru
        _
      // Predicated region
      $region21: #{encoder_identity_forward.5} parent=11 // pred_check
        %p248 = pneg %p117
      $region22: #{encoder_identity_forward.5} parent=11 // pred_check_branch
        %250 = sbr.rel (%p248) target = $region24
      $region23: #{encoder_identity_forward.5} parent=11 // pred_region
        _
      $region24: #{encoder_identity_forward.5} parent=11 // pred_fallthru
        _
      // Predicated region
      $region25: #{encoder_identity_forward.5} parent=11 // pred_check
        %p251 = pneg %p138
      $region26: #{encoder_identity_forward.5} parent=11 // pred_check_branch
        %253 = sbr.rel (%p251) target = $region28
      $region27: #{encoder_identity_forward.5} parent=11 // pred_region
        _
      $region28: #{encoder_identity_forward.5} parent=11 // pred_fallthru
        _
      // Predicated region
      $region29: #{encoder_identity_forward.5} parent=11 // pred_check
        %p254 = pneg %p159
      $region30: #{encoder_identity_forward.5} parent=11 // pred_check_branch
        %256 = sbr.rel (%p254) target = $region32
      $region31: #{encoder_identity_forward.5} parent=11 // pred_region
        _
      $region32: #{encoder_identity_forward.5} parent=11 // pred_fallthru
        _
      // Predicated region
      $region33: #{encoder_identity_forward.5} parent=11 // pred_check
        %p257 = pneg %p180
      $region34: #{encoder_identity_forward.5} parent=11 // pred_check_branch
        %259 = sbr.rel (%p257) target = $region36
      $region35: #{encoder_identity_forward.5} parent=11 // pred_region
        _
      $region36: #{encoder_identity_forward.5} parent=11 // pred_fallthru
        _
      // Predicated region
      $region37: #{encoder_identity_forward.5} parent=11 // pred_check
        %p260 = pneg %p201
      $region38: #{encoder_identity_forward.5} parent=11 // pred_check_branch
        %262 = sbr.rel (%p260) target = $region40
      $region39: #{encoder_identity_forward.5} parent=11 // pred_region
        _
      $region40: #{encoder_identity_forward.5} parent=11 // pred_fallthru
        _
    $region12: #{encoder_identity_forward.5} parent=5 // pred_fallthru
      _
    %p263 = scmp.lt.s32.totalorder %s14, 8
    // Predicated region
    $region41: #{encoder_identity_forward.5} parent=5 // pred_check
      %p264 = pneg %p263
    $region42: #{encoder_identity_forward.5} parent=5 // pred_check_branch
      %266 = sbr.rel (%p264) target = $region44
    $region43: #{encoder_identity_forward.5} parent=5 // pred_region
      // Predicated region
      $region45: #{encoder_identity_forward.5} parent=43 // pred_check
        %p267 = pneg %p48
      $region46: #{encoder_identity_forward.5} parent=43 // pred_check_branch
        %269 = sbr.rel (%p267) target = $region48
      $region47: #{encoder_identity_forward.5} parent=43 // pred_region
        %p270 = scmp.lt.s32.totalorder %s21, 1
        %s271 = scalar_select %p270, %s21, 1
        %p272 = scmp.lt.s32.totalorder %s22, 3
        %s273 = scalar_select %p272, %s22, 3
        %s274 = smul.addr %s273, 5
        %s275 = smul.addr %s271, 20
        %s276 = sadd.s32 %s274, %s275
        %s277 = smul.addr %s276, 4
        %s278 = scalar_lea.vmem %s0, %s277
      $region48: #{encoder_identity_forward.5} parent=43 // pred_fallthru
        _
    $region44: #{encoder_identity_forward.5} parent=5 // pred_fallthru
      _
    %p279 = scmp.le.s32.totalorder 1, %s14
    %p280 = scmp.lt.s32.totalorder %s14, 9
    %p281 = pnand %p279, %p280
    %p282 = pneg %p281
    // Predicated region
    $region49: #{encoder_identity_forward.5} parent=5 // pred_check
      _
    $region50: #{encoder_identity_forward.5} parent=5 // pred_check_branch
      %284 = sbr.rel (%p281) target = $region52
    $region51: #{encoder_identity_forward.5} parent=5 // pred_region
      %s285 = ssub.s32 %s14, 1
      %p286 = scmp.lt.s32.totalorder %s23, 1
      %s287 = scalar_select %p286, %s23, 1
      %p288 = scmp.lt.s32.totalorder %s24, 3
      %s289 = scalar_select %p288, %s24, 3
      %s290 = smul.addr %s289, 5
      %s291 = smul.addr %s287, 20
      %s292 = sadd.s32 %s290, %s291
      %s293 = smul.addr %s292, 4
      %s294 = scalar_lea.vmem %s0, %s293
      %p295 = pneg %p54
      %p296 = pneg %p51
      %p297 = pneg %p75
      %p298 = pneg %p72
      %p299 = pneg %p96
      %p300 = pneg %p93
      %p301 = pneg %p117
      %p302 = pneg %p114
      %p303 = pneg %p138
      %p304 = pneg %p135
      %p305 = pneg %p159
      %p306 = pneg %p156
      %p307 = pneg %p180
      %p308 = pneg %p177
      %p309 = pneg %p201
      %p310 = pneg %p198
      %p311 = pneg %p227
      %p312 = pneg %p224
      %p313 = scmp.lt.s32.totalorder %s23, 1
      %s314 = scalar_select %p313, %s23, 1
      %s315 = smul.addr %s314, 5
      %s316 = smul.addr %s315, 4
      %s317 = scalar_lea.vmem %s8, %s316
      %p318 = scmp.lt.s32.totalorder %s23, 1
      %s319 = scalar_select %p318, %s23, 1
      %p320 = scmp.lt.s32.totalorder %s24, 3
      %s321 = scalar_select %p320, %s24, 3
      %s322 = smul.addr %s321, 5
      %s323 = smul.addr %s319, 20
      %s324 = sadd.s32 %s322, %s323
      %s325 = smul.addr %s324, 4
      %s326 = scalar_lea.vmem %s0, %s325
      %p327 = scmp.lt.s32.totalorder %s23, 1
      %s328 = scalar_select %p327, %s23, 1
      %s329 = smul.addr %s328, 5
      %s330 = smul.addr %s329, 4
      %s331 = scalar_lea.vmem %s8, %s330
      %v333 = vld [vmem:[%s1] sm:$0xff]
      %v334 = vld [vmem:[%s1 + $0x8] sm:$0xff]
      %v335 = vld [vmem:[%s1 + $0x10] sm:$0x3f]
      %v336 = vld [vmem:[%s326] sm:$0xf]
      %v337 = vld [vmem:[%s326 + $0x4] sm:$0xf]
      %v338 = vld [vmem:[%s326 + $0x8] sm:$0x7]
      %v339 = vld [vmem:[%s2] sm:$0xf]
      %v340 = vld [vmem:[%s2 + $0x4] sm:$0xf]
      %v341 = vld [vmem:[%s2 + $0x8] sm:$0xf]
      %v342 = vld [vmem:[%s2 + $0xc] sm:$0xf]
      %v343 = vld [vmem:[%s2 + $0x10] sm:$0xf]
      %v344 = vld [vmem:[%s2 + $0x14] sm:$0xf]
      %v345 = vld [vmem:[%s2 + $0x18] sm:$0xf]
      %v346 = vld [vmem:[%s2 + $0x1c] sm:$0xf]
      %v347 = vld [vmem:[%s2 + $0x20] sm:$0xf]
      %v348 = vld [vmem:[%s2 + $0x24] sm:$0xf]
      %v349 = vld [vmem:[%s2 + $0x28] sm:$0xf]
      %v350 = vld [vmem:[%s2 + $0x2c] sm:$0xf]
      %v351 = vld [vmem:[%s2 + $0x30] sm:$0xf]
      %v352 = vld [vmem:[%s2 + $0x34] sm:$0xf]
      %v353 = vld [vmem:[%s2 + $0x38] sm:$0xf]
      %v354 = vld [vmem:[%s2 + $0x3c] sm:$0xf]
      %v355 = vld [vmem:[%s326 + $0x8] sm:$0xf]
      %s356 = scalar_lea.vmem %s2, 64
      %v357 = vld [vmem:[%s356] sm:$0xf]
      %v358 = vld [vmem:[%s356 + $0x4] sm:$0xf]
      %v359 = vld [vmem:[%s356 + $0x8] sm:$0xf]
      %v360 = vld [vmem:[%s356 + $0xc] sm:$0xf]
      %v361 = vld [vmem:[%s356 + $0x10] sm:$0xf]
      %v362 = vld [vmem:[%s356 + $0x14] sm:$0xf]
      %v363 = vld [vmem:[%s356 + $0x18] sm:$0xf]
      %v364 = vld [vmem:[%s356 + $0x1c] sm:$0xf]
      %v365 = vld [vmem:[%s356 + $0x20] sm:$0xf]
      %v366 = vld [vmem:[%s356 + $0x24] sm:$0xf]
      %v367 = vld [vmem:[%s356 + $0x28] sm:$0xf]
      %v368 = vld [vmem:[%s356 + $0x2c] sm:$0xf]
      %v369 = vld [vmem:[%s356 + $0x30] sm:$0xf]
      %v370 = vld [vmem:[%s356 + $0x34] sm:$0xf]
      %v371 = vld [vmem:[%s356 + $0x38] sm:$0xf]
      %v372 = vld [vmem:[%s356 + $0x3c] sm:$0xf]
      %v376 = vunpack.c.l.b16 %v336
      %v377 = vunpack.c.l.b16 %v337
      %v378 = vunpack.c.l.b16 %v355
      %v379 = vpack.c.b16 %v377, %v376
      %v380 = vpack.c.b16 %v378, %v378
      %vm381 = vsmask.f32 7424
      %v383 = vshrl.u32 %v379, 16
      %v385 = vshll.u32 %v379, 16
      %v387 = vrot.slane %v385, 1
      %v388 = vor.u32 %v383, %v387
      %v390 = vshll.u32 %v380, 16
      %v392 = vrot.slane %v390, 1
      %v393 = vsel %vm381, %v388, %v392
      %v394 = vshrl.u32 %v380, 16
      %v396 = vor.u32 %v394, %v392
      %v415 = vunpack.c.l.b16 %v357
      %v416 = vunpack.c.l.b16 %v358
      %v417 = vunpack.c.l.b16 %v359
      %v418 = vunpack.c.l.b16 %v360
      %v419 = vunpack.c.l.b16 %v361
      %v420 = vunpack.c.l.b16 %v362
      %v421 = vunpack.c.l.b16 %v363
      %v422 = vunpack.c.l.b16 %v364
      %v423 = vunpack.c.l.b16 %v365
      %v424 = vunpack.c.l.b16 %v366
      %v425 = vunpack.c.l.b16 %v367
      %v426 = vunpack.c.l.b16 %v368
      %v427 = vunpack.c.l.b16 %v369
      %v428 = vunpack.c.l.b16 %v370
      %v429 = vunpack.c.l.b16 %v371
      %v430 = vunpack.c.l.b16 %v372
      %v431 = vpack.c.b16 %v416, %v415
      %v432 = vpack.c.b16 %v418, %v417
      %v433 = vpack.c.b16 %v420, %v419
      %v434 = vpack.c.b16 %v422, %v421
      %v435 = vpack.c.b16 %v424, %v423
      %v436 = vpack.c.b16 %v426, %v425
      %v437 = vpack.c.b16 %v428, %v427
      %v438 = vpack.c.b16 %v430, %v429
      %447 = vmatpush.bf16.msra.mxu0 %v438
      %448 = vmatpush.bf16.msra.mxu0 %v437
      %449 = vmatpush.bf16.msra.mxu0 %v436
      %450 = vmatpush.bf16.msra.mxu0 %v435
      %451 = vmatpush.bf16.msra.mxu0 %v434
      %452 = vmatpush.bf16.msra.mxu0 %v433
      %453 = vmatpush.bf16.msra.mxu0 %v432
      %454 = vmatpush.bf16.msra.mxu0 %v431
      %455 = vmatmul.bf16.gmra.mxu0 %v393
      %v456 = vpop.f32.mrf.mxu0
      %v457 = vadd.f32 0.0, %v456
      %v458 = vpop.f32.mrf.mxu0
      %v459 = vadd.f32 0.0, %v458
      %460 = vmatmul.bf16.gmra.mxu0 %v396
      %v461 = vpop.f32.mrf.mxu0
      %v462 = vadd.f32 0.0, %v461
      %v463 = vpop.f32.mrf.mxu0
      %464 = vdwg.mxu0
      %v466 = vunpack.c.l.b16 %v338
      %v467 = vpack.c.b16 %v466, %v466
      %v486 = vunpack.c.l.b16 %v339
      %v487 = vunpack.c.l.b16 %v340
      %v488 = vunpack.c.l.b16 %v341
      %v489 = vunpack.c.l.b16 %v342
      %v490 = vunpack.c.l.b16 %v343
      %v491 = vunpack.c.l.b16 %v344
      %v492 = vunpack.c.l.b16 %v345
      %v493 = vunpack.c.l.b16 %v346
      %v494 = vunpack.c.l.b16 %v347
      %v495 = vunpack.c.l.b16 %v348
      %v496 = vunpack.c.l.b16 %v349
      %v497 = vunpack.c.l.b16 %v350
      %v498 = vunpack.c.l.b16 %v351
      %v499 = vunpack.c.l.b16 %v352
      %v500 = vunpack.c.l.b16 %v353
      %v501 = vunpack.c.l.b16 %v354
      %v502 = vpack.c.b16 %v487, %v486
      %v503 = vpack.c.b16 %v489, %v488
      %v504 = vpack.c.b16 %v491, %v490
      %v505 = vpack.c.b16 %v493, %v492
      %v506 = vpack.c.b16 %v495, %v494
      %v507 = vpack.c.b16 %v497, %v496
      %v508 = vpack.c.b16 %v499, %v498
      %v509 = vpack.c.b16 %v501, %v500
      %518 = vmatpush.bf16.msra.mxu0 %v509
      %519 = vmatpush.bf16.msra.mxu0 %v508
      %520 = vmatpush.bf16.msra.mxu0 %v507
      %521 = vmatpush.bf16.msra.mxu0 %v506
      %522 = vmatpush.bf16.msra.mxu0 %v505
      %523 = vmatpush.bf16.msra.mxu0 %v504
      %524 = vmatpush.bf16.msra.mxu0 %v503
      %525 = vmatpush.bf16.msra.mxu0 %v502
      %526 = vmatmul.bf16.gmra.mxu0 %v379
      %v527 = vpop.f32.mrf.mxu0
      %v528 = vadd.f32 %v457, %v527
      %v529 = vpop.f32.mrf.mxu0
      %v530 = vadd.f32 %v459, %v529
      %531 = vmatmul.bf16.gmra.mxu0 %v467
      %v532 = vpop.f32.mrf.mxu0
      %v533 = vadd.f32 %v462, %v532
      %v534 = vpop.f32.mrf.mxu0
      %535 = vdwg.mxu0
      %v536 = vld [vmem:[%s326] sm:$0xe]
      %s537 = scalar_lea.vmem %s2, 128
      %v538 = vld [vmem:[%s537] sm:$0xf]
      %v539 = vld [vmem:[%s537 + $0x4] sm:$0xf]
      %v540 = vld [vmem:[%s537 + $0x8] sm:$0xf]
      %v541 = vld [vmem:[%s537 + $0xc] sm:$0xf]
      %v542 = vld [vmem:[%s537 + $0x10] sm:$0xf]
      %v543 = vld [vmem:[%s537 + $0x14] sm:$0xf]
      %v544 = vld [vmem:[%s537 + $0x18] sm:$0xf]
      %v545 = vld [vmem:[%s537 + $0x1c] sm:$0xf]
      %v546 = vld [vmem:[%s537 + $0x20] sm:$0xf]
      %v547 = vld [vmem:[%s537 + $0x24] sm:$0xf]
      %v548 = vld [vmem:[%s537 + $0x28] sm:$0xf]
      %v549 = vld [vmem:[%s537 + $0x2c] sm:$0xf]
      %v550 = vld [vmem:[%s537 + $0x30] sm:$0xf]
      %v551 = vld [vmem:[%s537 + $0x34] sm:$0xf]
      %v552 = vld [vmem:[%s537 + $0x38] sm:$0xf]
      %v553 = vld [vmem:[%s537 + $0x3c] sm:$0xf]
      %v555 = vunpack.c.l.b16 %v536
      %v556 = vpack.c.b16 %v377, %v555
      %vm557 = vcmask 1046528
      %v558 = vrot.slane %v556, 1
      %v559 = vrot.slane %v380, 1
      %v560 = vsel %vm557, %v558, %v559
      %v579 = vunpack.c.l.b16 %v538
      %v580 = vunpack.c.l.b16 %v539
      %v581 = vunpack.c.l.b16 %v540
      %v582 = vunpack.c.l.b16 %v541
      %v583 = vunpack.c.l.b16 %v542
      %v584 = vunpack.c.l.b16 %v543
      %v585 = vunpack.c.l.b16 %v544
      %v586 = vunpack.c.l.b16 %v545
      %v587 = vunpack.c.l.b16 %v546
      %v588 = vunpack.c.l.b16 %v547
      %v589 = vunpack.c.l.b16 %v548
      %v590 = vunpack.c.l.b16 %v549
      %v591 = vunpack.c.l.b16 %v550
      %v592 = vunpack.c.l.b16 %v551
      %v593 = vunpack.c.l.b16 %v552
      %v594 = vunpack.c.l.b16 %v553
      %v595 = vpack.c.b16 %v580, %v579
      %v596 = vpack.c.b16 %v582, %v581
      %v597 = vpack.c.b16 %v584, %v583
      %v598 = vpack.c.b16 %v586, %v585
      %v599 = vpack.c.b16 %v588, %v587
      %v600 = vpack.c.b16 %v590, %v589
      %v601 = vpack.c.b16 %v592, %v591
      %v602 = vpack.c.b16 %v594, %v593
      %611 = vmatpush.bf16.msra.mxu0 %v602
      %612 = vmatpush.bf16.msra.mxu0 %v601
      %613 = vmatpush.bf16.msra.mxu0 %v600
      %614 = vmatpush.bf16.msra.mxu0 %v599
      %615 = vmatpush.bf16.msra.mxu0 %v598
      %616 = vmatpush.bf16.msra.mxu0 %v597
      %617 = vmatpush.bf16.msra.mxu0 %v596
      %618 = vmatpush.bf16.msra.mxu0 %v595
      %619 = vmatmul.bf16.gmra.mxu0 %v560
      %v620 = vpop.f32.mrf.mxu0
      %v621 = vadd.f32 0.0, %v620
      %v622 = vpop.f32.mrf.mxu0
      %v623 = vadd.f32 0.0, %v622
      %624 = vmatmul.bf16.gmra.mxu0 %v559
      %v625 = vpop.f32.mrf.mxu0
      %v626 = vadd.f32 0.0, %v625
      %v627 = vpop.f32.mrf.mxu0
      %628 = vdwg.mxu0
      %v629 = vadd.f32 %v528, %v621
      %v630 = vadd.f32 %v530, %v623
      %v631 = vadd.f32 %v533, %v626
      %v632 = vld [vmem:[%s326] sm:$0x8]
      %v633 = vld [vmem:[%s326 + $0x4] sm:$0xf]
      %v634 = vld [vmem:[%s326 + $0x8] sm:$0xf]
      %v635 = vld [vmem:[%s326 + $0xc] sm:$0x3]
      %s636 = scalar_lea.vmem %s2, 192
      %v637 = vld [vmem:[%s636] sm:$0xf]
      %v638 = vld [vmem:[%s636 + $0x4] sm:$0xf]
      %v639 = vld [vmem:[%s636 + $0x8] sm:$0xf]
      %v640 = vld [vmem:[%s636 + $0xc] sm:$0xf]
      %v641 = vld [vmem:[%s636 + $0x10] sm:$0xf]
      %v642 = vld [vmem:[%s636 + $0x14] sm:$0xf]
      %v643 = vld [vmem:[%s636 + $0x18] sm:$0xf]
      %v644 = vld [vmem:[%s636 + $0x1c] sm:$0xf]
      %v645 = vld [vmem:[%s636 + $0x20] sm:$0xf]
      %v646 = vld [vmem:[%s636 + $0x24] sm:$0xf]
      %v647 = vld [vmem:[%s636 + $0x28] sm:$0xf]
      %v648 = vld [vmem:[%s636 + $0x2c] sm:$0xf]
      %v649 = vld [vmem:[%s636 + $0x30] sm:$0xf]
      %v650 = vld [vmem:[%s636 + $0x34] sm:$0xf]
      %v651 = vld [vmem:[%s636 + $0x38] sm:$0xf]
      %v652 = vld [vmem:[%s636 + $0x3c] sm:$0xf]
      %v657 = vunpack.c.l.b16 %v632
      %v658 = vunpack.c.l.b16 %v633
      %v659 = vunpack.c.l.b16 %v634
      %v660 = vunpack.c.l.b16 %v635
      %v661 = vpack.c.b16 %v658, %v657
      %v662 = vpack.c.b16 %v660, %v659
      %vm663 = vcmask 1044480
      %v664 = vrot.slane %v661, 3
      %v665 = vrot.slane %v662, 3
      %v666 = vsel %vm663, %v664, %v665
      %v685 = vunpack.c.l.b16 %v637
      %v686 = vunpack.c.l.b16 %v638
      %v687 = vunpack.c.l.b16 %v639
      %v688 = vunpack.c.l.b16 %v640
      %v689 = vunpack.c.l.b16 %v641
      %v690 = vunpack.c.l.b16 %v642
      %v691 = vunpack.c.l.b16 %v643
      %v692 = vunpack.c.l.b16 %v644
      %v693 = vunpack.c.l.b16 %v645
      %v694 = vunpack.c.l.b16 %v646
      %v695 = vunpack.c.l.b16 %v647
      %v696 = vunpack.c.l.b16 %v648
      %v697 = vunpack.c.l.b16 %v649
      %v698 = vunpack.c.l.b16 %v650
      %v699 = vunpack.c.l.b16 %v651
      %v700 = vunpack.c.l.b16 %v652
      %v701 = vpack.c.b16 %v686, %v685
      %v702 = vpack.c.b16 %v688, %v687
      %v703 = vpack.c.b16 %v690, %v689
      %v704 = vpack.c.b16 %v692, %v691
      %v705 = vpack.c.b16 %v694, %v693
      %v706 = vpack.c.b16 %v696, %v695
      %v707 = vpack.c.b16 %v698, %v697
      %v708 = vpack.c.b16 %v700, %v699
      %717 = vmatpush.bf16.msra.mxu0 %v708
      %718 = vmatpush.bf16.msra.mxu0 %v707
      %719 = vmatpush.bf16.msra.mxu0 %v706
      %720 = vmatpush.bf16.msra.mxu0 %v705
      %721 = vmatpush.bf16.msra.mxu0 %v704
      %722 = vmatpush.bf16.msra.mxu0 %v703
      %723 = vmatpush.bf16.msra.mxu0 %v702
      %724 = vmatpush.bf16.msra.mxu0 %v701
      %725 = vmatmul.bf16.gmra.mxu0 %v666
      %v726 = vpop.f32.mrf.mxu0
      %v727 = vadd.f32 0.0, %v726
      %v728 = vpop.f32.mrf.mxu0
      %v729 = vadd.f32 0.0, %v728
      %730 = vmatmul.bf16.gmra.mxu0 %v665
      %v731 = vpop.f32.mrf.mxu0
      %v732 = vadd.f32 0.0, %v731
      %v733 = vpop.f32.mrf.mxu0
      %734 = vdwg.mxu0
      %v735 = vadd.f32 %v629, %v727
      %v736 = vadd.f32 %v630, %v729
      %v737 = vadd.f32 %v631, %v732
      %v738 = vld [vmem:[%s326 + $0xc] sm:$0x7]
      %s739 = scalar_lea.vmem %s2, 256
      %v740 = vld [vmem:[%s739] sm:$0xf]
      %v741 = vld [vmem:[%s739 + $0x4] sm:$0xf]
      %v742 = vld [vmem:[%s739 + $0x8] sm:$0xf]
      %v743 = vld [vmem:[%s739 + $0xc] sm:$0xf]
      %v744 = vld [vmem:[%s739 + $0x10] sm:$0xf]
      %v745 = vld [vmem:[%s739 + $0x14] sm:$0xf]
      %v746 = vld [vmem:[%s739 + $0x18] sm:$0xf]
      %v747 = vld [vmem:[%s739 + $0x1c] sm:$0xf]
      %v748 = vld [vmem:[%s739 + $0x20] sm:$0xf]
      %v749 = vld [vmem:[%s739 + $0x24] sm:$0xf]
      %v750 = vld [vmem:[%s739 + $0x28] sm:$0xf]
      %v751 = vld [vmem:[%s739 + $0x2c] sm:$0xf]
      %v752 = vld [vmem:[%s739 + $0x30] sm:$0xf]
      %v753 = vld [vmem:[%s739 + $0x34] sm:$0xf]
      %v754 = vld [vmem:[%s739 + $0x38] sm:$0xf]
      %v755 = vld [vmem:[%s739 + $0x3c] sm:$0xf]
      %v757 = vunpack.c.l.b16 %v738
      %v758 = vpack.c.b16 %v757, %v659
      %vm759 = vsmask.f32 4352
      %v761 = vshrl.u32 %v661, 16
      %v763 = vrot.slane %v761, 3
      %v764 = vshll.u32 %v661, 16
      %v766 = vrot.slane %v764, 4
      %v767 = vor.u32 %v763, %v766
      %v769 = vshrl.u32 %v758, 16
      %v771 = vrot.slane %v769, 3
      %v772 = vshll.u32 %v758, 16
      %v774 = vrot.slane %v772, 4
      %v775 = vor.u32 %v771, %v774
      %v776 = vsel %vm759, %v767, %v775
      %v795 = vunpack.c.l.b16 %v740
      %v796 = vunpack.c.l.b16 %v741
      %v797 = vunpack.c.l.b16 %v742
      %v798 = vunpack.c.l.b16 %v743
      %v799 = vunpack.c.l.b16 %v744
      %v800 = vunpack.c.l.b16 %v745
      %v801 = vunpack.c.l.b16 %v746
      %v802 = vunpack.c.l.b16 %v747
      %v803 = vunpack.c.l.b16 %v748
      %v804 = vunpack.c.l.b16 %v749
      %v805 = vunpack.c.l.b16 %v750
      %v806 = vunpack.c.l.b16 %v751
      %v807 = vunpack.c.l.b16 %v752
      %v808 = vunpack.c.l.b16 %v753
      %v809 = vunpack.c.l.b16 %v754
      %v810 = vunpack.c.l.b16 %v755
      %v811 = vpack.c.b16 %v796, %v795
      %v812 = vpack.c.b16 %v798, %v797
      %v813 = vpack.c.b16 %v800, %v799
      %v814 = vpack.c.b16 %v802, %v801
      %v815 = vpack.c.b16 %v804, %v803
      %v816 = vpack.c.b16 %v806, %v805
      %v817 = vpack.c.b16 %v808, %v807
      %v818 = vpack.c.b16 %v810, %v809
      %827 = vmatpush.bf16.msra.mxu0 %v818
      %828 = vmatpush.bf16.msra.mxu0 %v817
      %829 = vmatpush.bf16.msra.mxu0 %v816
      %830 = vmatpush.bf16.msra.mxu0 %v815
      %831 = vmatpush.bf16.msra.mxu0 %v814
      %832 = vmatpush.bf16.msra.mxu0 %v813
      %833 = vmatpush.bf16.msra.mxu0 %v812
      %834 = vmatpush.bf16.msra.mxu0 %v811
      %835 = vmatmul.bf16.gmra.mxu0 %v776
      %v836 = vpop.f32.mrf.mxu0
      %v837 = vadd.f32 0.0, %v836
      %v838 = vpop.f32.mrf.mxu0
      %v839 = vadd.f32 0.0, %v838
      %840 = vmatmul.bf16.gmra.mxu0 %v775
      %v841 = vpop.f32.mrf.mxu0
      %v842 = vadd.f32 0.0, %v841
      %v843 = vpop.f32.mrf.mxu0
      %844 = vdwg.mxu0
      %v845 = vadd.f32 %v735, %v837
      %v846 = vadd.f32 %v736, %v839
      %v847 = vadd.f32 %v737, %v842
      %s848 = scalar_lea.vmem %s2, 320
      %v849 = vld [vmem:[%s848] sm:$0xf]
      %v850 = vld [vmem:[%s848 + $0x4] sm:$0xf]
      %v851 = vld [vmem:[%s848 + $0x8] sm:$0xf]
      %v852 = vld [vmem:[%s848 + $0xc] sm:$0xf]
      %v853 = vld [vmem:[%s848 + $0x10] sm:$0xf]
      %v854 = vld [vmem:[%s848 + $0x14] sm:$0xf]
      %v855 = vld [vmem:[%s848 + $0x18] sm:$0xf]
      %v856 = vld [vmem:[%s848 + $0x1c] sm:$0xf]
      %v857 = vld [vmem:[%s848 + $0x20] sm:$0xf]
      %v858 = vld [vmem:[%s848 + $0x24] sm:$0xf]
      %v859 = vld [vmem:[%s848 + $0x28] sm:$0xf]
      %v860 = vld [vmem:[%s848 + $0x2c] sm:$0xf]
      %v861 = vld [vmem:[%s848 + $0x30] sm:$0xf]
      %v862 = vld [vmem:[%s848 + $0x34] sm:$0xf]
      %v863 = vld [vmem:[%s848 + $0x38] sm:$0xf]
      %v864 = vld [vmem:[%s848 + $0x3c] sm:$0xf]
      %v865 = vpack.c.b16 %v659, %v658
      %v866 = vpack.c.b16 %v757, %v757
      %v885 = vunpack.c.l.b16 %v849
      %v886 = vunpack.c.l.b16 %v850
      %v887 = vunpack.c.l.b16 %v851
      %v888 = vunpack.c.l.b16 %v852
      %v889 = vunpack.c.l.b16 %v853
      %v890 = vunpack.c.l.b16 %v854
      %v891 = vunpack.c.l.b16 %v855
      %v892 = vunpack.c.l.b16 %v856
      %v893 = vunpack.c.l.b16 %v857
      %v894 = vunpack.c.l.b16 %v858
      %v895 = vunpack.c.l.b16 %v859
      %v896 = vunpack.c.l.b16 %v860
      %v897 = vunpack.c.l.b16 %v861
      %v898 = vunpack.c.l.b16 %v862
      %v899 = vunpack.c.l.b16 %v863
      %v900 = vunpack.c.l.b16 %v864
      %v901 = vpack.c.b16 %v886, %v885
      %v902 = vpack.c.b16 %v888, %v887
      %v903 = vpack.c.b16 %v890, %v889
      %v904 = vpack.c.b16 %v892, %v891
      %v905 = vpack.c.b16 %v894, %v893
      %v906 = vpack.c.b16 %v896, %v895
      %v907 = vpack.c.b16 %v898, %v897
      %v908 = vpack.c.b16 %v900, %v899
      %917 = vmatpush.bf16.msra.mxu0 %v908
      %918 = vmatpush.bf16.msra.mxu0 %v907
      %919 = vmatpush.bf16.msra.mxu0 %v906
      %920 = vmatpush.bf16.msra.mxu0 %v905
      %921 = vmatpush.bf16.msra.mxu0 %v904
      %922 = vmatpush.bf16.msra.mxu0 %v903
      %923 = vmatpush.bf16.msra.mxu0 %v902
      %924 = vmatpush.bf16.msra.mxu0 %v901
      %925 = vmatmul.bf16.gmra.mxu0 %v865
      %v926 = vpop.f32.mrf.mxu0
      %v927 = vadd.f32 0.0, %v926
      %v928 = vpop.f32.mrf.mxu0
      %v929 = vadd.f32 0.0, %v928
      %930 = vmatmul.bf16.gmra.mxu0 %v866
      %v931 = vpop.f32.mrf.mxu0
      %v932 = vadd.f32 0.0, %v931
      %v933 = vpop.f32.mrf.mxu0
      %934 = vdwg.mxu0
      %v935 = vadd.f32 %v845, %v927
      %v936 = vadd.f32 %v846, %v929
      %v937 = vadd.f32 %v847, %v932
      %v938 = vld [vmem:[%s326 + $0x4] sm:$0xc]
      %v939 = vld [vmem:[%s326 + $0x8] sm:$0xf]
      %v940 = vld [vmem:[%s326 + $0xc] sm:$0xf]
      %v941 = vld [vmem:[%s326 + $0x10] sm:$0x1]
      %s942 = scalar_lea.vmem %s2, 384
      %v943 = vld [vmem:[%s942] sm:$0xf]
      %v944 = vld [vmem:[%s942 + $0x4] sm:$0xf]
      %v945 = vld [vmem:[%s942 + $0x8] sm:$0xf]
      %v946 = vld [vmem:[%s942 + $0xc] sm:$0xf]
      %v947 = vld [vmem:[%s942 + $0x10] sm:$0xf]
      %v948 = vld [vmem:[%s942 + $0x14] sm:$0xf]
      %v949 = vld [vmem:[%s942 + $0x18] sm:$0xf]
      %v950 = vld [vmem:[%s942 + $0x1c] sm:$0xf]
      %v951 = vld [vmem:[%s942 + $0x20] sm:$0xf]
      %v952 = vld [vmem:[%s942 + $0x24] sm:$0xf]
      %v953 = vld [vmem:[%s942 + $0x28] sm:$0xf]
      %v954 = vld [vmem:[%s942 + $0x2c] sm:$0xf]
      %v955 = vld [vmem:[%s942 + $0x30] sm:$0xf]
      %v956 = vld [vmem:[%s942 + $0x34] sm:$0xf]
      %v957 = vld [vmem:[%s942 + $0x38] sm:$0xf]
      %v958 = vld [vmem:[%s942 + $0x3c] sm:$0xf]
      %v963 = vunpack.c.l.b16 %v938
      %v964 = vunpack.c.l.b16 %v939
      %v965 = vunpack.c.l.b16 %v940
      %v966 = vunpack.c.l.b16 %v941
      %v967 = vpack.c.b16 %v964, %v963
      %v968 = vpack.c.b16 %v966, %v965
      %vm969 = vcmask 1045504
      %v970 = vrot.slane %v967, 2
      %v971 = vrot.slane %v968, 2
      %v972 = vsel %vm969, %v970, %v971
      %v991 = vunpack.c.l.b16 %v943
      %v992 = vunpack.c.l.b16 %v944
      %v993 = vunpack.c.l.b16 %v945
      %v994 = vunpack.c.l.b16 %v946
      %v995 = vunpack.c.l.b16 %v947
      %v996 = vunpack.c.l.b16 %v948
      %v997 = vunpack.c.l.b16 %v949
      %v998 = vunpack.c.l.b16 %v950
      %v999 = vunpack.c.l.b16 %v951
      %v1000 = vunpack.c.l.b16 %v952
      %v1001 = vunpack.c.l.b16 %v953
      %v1002 = vunpack.c.l.b16 %v954
      %v1003 = vunpack.c.l.b16 %v955
      %v1004 = vunpack.c.l.b16 %v956
      %v1005 = vunpack.c.l.b16 %v957
      %v1006 = vunpack.c.l.b16 %v958
      %v1007 = vpack.c.b16 %v992, %v991
      %v1008 = vpack.c.b16 %v994, %v993
      %v1009 = vpack.c.b16 %v996, %v995
      %v1010 = vpack.c.b16 %v998, %v997
      %v1011 = vpack.c.b16 %v1000, %v999
      %v1012 = vpack.c.b16 %v1002, %v1001
      %v1013 = vpack.c.b16 %v1004, %v1003
      %v1014 = vpack.c.b16 %v1006, %v1005
      %1023 = vmatpush.bf16.msra.mxu0 %v1014
      %1024 = vmatpush.bf16.msra.mxu0 %v1013
      %1025 = vmatpush.bf16.msra.mxu0 %v1012
      %1026 = vmatpush.bf16.msra.mxu0 %v1011
      %1027 = vmatpush.bf16.msra.mxu0 %v1010
      %1028 = vmatpush.bf16.msra.mxu0 %v1009
      %1029 = vmatpush.bf16.msra.mxu0 %v1008
      %1030 = vmatpush.bf16.msra.mxu0 %v1007
      %1031 = vmatmul.bf16.gmra.mxu0 %v972
      %v1032 = vpop.f32.mrf.mxu0
      %v1033 = vadd.f32 0.0, %v1032
      %v1034 = vpop.f32.mrf.mxu0
      %v1035 = vadd.f32 0.0, %v1034
      %1036 = vmatmul.bf16.gmra.mxu0 %v971
      %v1037 = vpop.f32.mrf.mxu0
      %v1038 = vadd.f32 0.0, %v1037
      %v1039 = vpop.f32.mrf.mxu0
      %1040 = vdwg.mxu0
      %v1041 = vadd.f32 %v935, %v1033
      %v1042 = vadd.f32 %v936, %v1035
      %v1043 = vadd.f32 %v937, %v1038
      %v1044 = vld [vmem:[%s326 + $0x10] sm:$0x3]
      %s1045 = scalar_lea.vmem %s2, 448
      %v1046 = vld [vmem:[%s1045] sm:$0xf]
      %v1047 = vld [vmem:[%s1045 + $0x4] sm:$0xf]
      %v1048 = vld [vmem:[%s1045 + $0x8] sm:$0xf]
      %v1049 = vld [vmem:[%s1045 + $0xc] sm:$0xf]
      %v1050 = vld [vmem:[%s1045 + $0x10] sm:$0xf]
      %v1051 = vld [vmem:[%s1045 + $0x14] sm:$0xf]
      %v1052 = vld [vmem:[%s1045 + $0x18] sm:$0xf]
      %v1053 = vld [vmem:[%s1045 + $0x1c] sm:$0xf]
      %v1054 = vld [vmem:[%s1045 + $0x20] sm:$0xf]
      %v1055 = vld [vmem:[%s1045 + $0x24] sm:$0xf]
      %v1056 = vld [vmem:[%s1045 + $0x28] sm:$0xf]
      %v1057 = vld [vmem:[%s1045 + $0x2c] sm:$0xf]
      %v1058 = vld [vmem:[%s1045 + $0x30] sm:$0xf]
      %v1059 = vld [vmem:[%s1045 + $0x34] sm:$0xf]
      %v1060 = vld [vmem:[%s1045 + $0x38] sm:$0xf]
      %v1061 = vld [vmem:[%s1045 + $0x3c] sm:$0xf]
      %v1063 = vunpack.c.l.b16 %v1044
      %v1064 = vpack.c.b16 %v1063, %v965
      %vm1065 = vsmask.f32 5376
      %v1067 = vshrl.u32 %v967, 16
      %v1069 = vrot.slane %v1067, 2
      %v1070 = vshll.u32 %v967, 16
      %v1072 = vrot.slane %v1070, 3
      %v1073 = vor.u32 %v1069, %v1072
      %v1075 = vshrl.u32 %v1064, 16
      %v1077 = vrot.slane %v1075, 2
      %v1078 = vshll.u32 %v1064, 16
      %v1080 = vrot.slane %v1078, 3
      %v1081 = vor.u32 %v1077, %v1080
      %v1082 = vsel %vm1065, %v1073, %v1081
      %v1101 = vunpack.c.l.b16 %v1046
      %v1102 = vunpack.c.l.b16 %v1047
      %v1103 = vunpack.c.l.b16 %v1048
      %v1104 = vunpack.c.l.b16 %v1049
      %v1105 = vunpack.c.l.b16 %v1050
      %v1106 = vunpack.c.l.b16 %v1051
      %v1107 = vunpack.c.l.b16 %v1052
      %v1108 = vunpack.c.l.b16 %v1053
      %v1109 = vunpack.c.l.b16 %v1054
      %v1110 = vunpack.c.l.b16 %v1055
      %v1111 = vunpack.c.l.b16 %v1056
      %v1112 = vunpack.c.l.b16 %v1057
      %v1113 = vunpack.c.l.b16 %v1058
      %v1114 = vunpack.c.l.b16 %v1059
      %v1115 = vunpack.c.l.b16 %v1060
      %v1116 = vunpack.c.l.b16 %v1061
      %v1117 = vpack.c.b16 %v1102, %v1101
      %v1118 = vpack.c.b16 %v1104, %v1103
      %v1119 = vpack.c.b16 %v1106, %v1105
      %v1120 = vpack.c.b16 %v1108, %v1107
      %v1121 = vpack.c.b16 %v1110, %v1109
      %v1122 = vpack.c.b16 %v1112, %v1111
      %v1123 = vpack.c.b16 %v1114, %v1113
      %v1124 = vpack.c.b16 %v1116, %v1115
      %1133 = vmatpush.bf16.msra.mxu0 %v1124
      %1134 = vmatpush.bf16.msra.mxu0 %v1123
      %1135 = vmatpush.bf16.msra.mxu0 %v1122
      %1136 = vmatpush.bf16.msra.mxu0 %v1121
      %1137 = vmatpush.bf16.msra.mxu0 %v1120
      %1138 = vmatpush.bf16.msra.mxu0 %v1119
      %1139 = vmatpush.bf16.msra.mxu0 %v1118
      %1140 = vmatpush.bf16.msra.mxu0 %v1117
      %1141 = vmatmul.bf16.gmra.mxu0 %v1082
      %v1142 = vpop.f32.mrf.mxu0
      %v1143 = vadd.f32 0.0, %v1142
      %v1144 = vpop.f32.mrf.mxu0
      %v1145 = vadd.f32 0.0, %v1144
      %1146 = vmatmul.bf16.gmra.mxu0 %v1081
      %v1147 = vpop.f32.mrf.mxu0
      %v1148 = vadd.f32 0.0, %v1147
      %v1149 = vpop.f32.mrf.mxu0
      %1150 = vdwg.mxu0
      %v1151 = vadd.f32 %v1041, %v1143
      %v1152 = vadd.f32 %v1042, %v1145
      %v1153 = vadd.f32 %v1043, %v1148
      %v1154 = vld [vmem:[%s326 + $0x4] sm:$0x8]
      %s1155 = scalar_lea.vmem %s2, 512
      %v1156 = vld [vmem:[%s1155] sm:$0xf]
      %v1157 = vld [vmem:[%s1155 + $0x4] sm:$0xf]
      %v1158 = vld [vmem:[%s1155 + $0x8] sm:$0xf]
      %v1159 = vld [vmem:[%s1155 + $0xc] sm:$0xf]
      %v1160 = vld [vmem:[%s1155 + $0x10] sm:$0xf]
      %v1161 = vld [vmem:[%s1155 + $0x14] sm:$0xf]
      %v1162 = vld [vmem:[%s1155 + $0x18] sm:$0xf]
      %v1163 = vld [vmem:[%s1155 + $0x1c] sm:$0xf]
      %v1164 = vld [vmem:[%s1155 + $0x20] sm:$0xf]
      %v1165 = vld [vmem:[%s1155 + $0x24] sm:$0xf]
      %v1166 = vld [vmem:[%s1155 + $0x28] sm:$0xf]
      %v1167 = vld [vmem:[%s1155 + $0x2c] sm:$0xf]
      %v1168 = vld [vmem:[%s1155 + $0x30] sm:$0xf]
      %v1169 = vld [vmem:[%s1155 + $0x34] sm:$0xf]
      %v1170 = vld [vmem:[%s1155 + $0x38] sm:$0xf]
      %v1171 = vld [vmem:[%s1155 + $0x3c] sm:$0xf]
      %v1173 = vunpack.c.l.b16 %v1154
      %v1174 = vpack.c.b16 %v964, %v1173
      %v1175 = vrot.slane %v1174, 3
      %v1176 = vrot.slane %v1064, 3
      %v1177 = vsel %vm663, %v1175, %v1176
      %v1196 = vunpack.c.l.b16 %v1156
      %v1197 = vunpack.c.l.b16 %v1157
      %v1198 = vunpack.c.l.b16 %v1158
      %v1199 = vunpack.c.l.b16 %v1159
      %v1200 = vunpack.c.l.b16 %v1160
      %v1201 = vunpack.c.l.b16 %v1161
      %v1202 = vunpack.c.l.b16 %v1162
      %v1203 = vunpack.c.l.b16 %v1163
      %v1204 = vunpack.c.l.b16 %v1164
      %v1205 = vunpack.c.l.b16 %v1165
      %v1206 = vunpack.c.l.b16 %v1166
      %v1207 = vunpack.c.l.b16 %v1167
      %v1208 = vunpack.c.l.b16 %v1168
      %v1209 = vunpack.c.l.b16 %v1169
      %v1210 = vunpack.c.l.b16 %v1170
      %v1211 = vunpack.c.l.b16 %v1171
      %v1212 = vpack.c.b16 %v1197, %v1196
      %v1213 = vpack.c.b16 %v1199, %v1198
      %v1214 = vpack.c.b16 %v1201, %v1200
      %v1215 = vpack.c.b16 %v1203, %v1202
      %v1216 = vpack.c.b16 %v1205, %v1204
      %v1217 = vpack.c.b16 %v1207, %v1206
      %v1218 = vpack.c.b16 %v1209, %v1208
      %v1219 = vpack.c.b16 %v1211, %v1210
      %1228 = vmatpush.bf16.msra.mxu0 %v1219
      %1229 = vmatpush.bf16.msra.mxu0 %v1218
      %1230 = vmatpush.bf16.msra.mxu0 %v1217
      %1231 = vmatpush.bf16.msra.mxu0 %v1216
      %1232 = vmatpush.bf16.msra.mxu0 %v1215
      %1233 = vmatpush.bf16.msra.mxu0 %v1214
      %1234 = vmatpush.bf16.msra.mxu0 %v1213
      %1235 = vmatpush.bf16.msra.mxu0 %v1212
      %1236 = vmatmul.bf16.gmra.mxu0 %v1177
      %v1237 = vpop.f32.mrf.mxu0
      %v1238 = vadd.f32 0.0, %v1237
      %v1239 = vpop.f32.mrf.mxu0
      %v1240 = vadd.f32 0.0, %v1239
      %1241 = vmatmul.bf16.gmra.mxu0 %v1176
      %v1242 = vpop.f32.mrf.mxu0
      %v1243 = vadd.f32 0.0, %v1242
      %v1244 = vpop.f32.mrf.mxu0
      %1245 = vdwg.mxu0
      %v1246 = vadd.f32 %v1151, %v1238
      %v1247 = vadd.f32 %v1152, %v1240
      %v1248 = vadd.f32 %v1153, %v1243
      %v1249 = vld [vmem:[%s3] sm:$0x1]
      %v1251 = vperm.slane %v1249, 0
      %v1253 = vmul.f32 %v1246, %v1251
      %v1254 = vmul.f32 %v1247, %v1251
      %v1255 = vmul.f32 %v1248, %v1251
      %v1256 = vld [vmem:[%s4] sm:$0x1]
      %v1258 = vperm.slane %v1256, 0
      %v1260 = vadd.f32 %v1253, %v1258
      %v1261 = vadd.f32 %v1254, %v1258
      %v1262 = vadd.f32 %v1255, %v1258
      %v1263 = vmul.f32 %v1260, 0.5
      %v1264 = vmul.f32 %v1261, 0.5
      %v1265 = vmul.f32 %v1262, 0.5
      %v1266 = vmul.f32 %v1260, 0.044715
      %v1267 = vmul.f32 %v1261, 0.044715
      %v1268 = vmul.f32 %v1262, 0.044715
      %v1269 = vmul.f32 %v1266, %v1260
      %v1270 = vmul.f32 %v1267, %v1261
      %v1271 = vmul.f32 %v1268, %v1262
      %v1272 = vmul.f32 %v1269, %v1260
      %v1273 = vmul.f32 %v1270, %v1261
      %v1274 = vmul.f32 %v1271, %v1262
      %v1275 = vadd.f32 %v1260, %v1272
      %v1276 = vadd.f32 %v1261, %v1273
      %v1277 = vadd.f32 %v1262, %v1274
      %v1278 = vmul.f32 %v1275, 0.7978846
      %v1279 = vmul.f32 %v1276, 0.7978846
      %v1280 = vmul.f32 %v1277, 0.7978846
      %v1281 = vtanh.pop %v1278
      %v1282 = vtanh.pop %v1279
      %v1283 = vtanh.pop %v1280
      %v1284 = vadd.f32 %v1281, 1.0
      %v1285 = vadd.f32 %v1282, 1.0
      %v1286 = vadd.f32 %v1283, 1.0
      %v1287 = vmul.f32 %v1263, %v1284
      %v1288 = vmul.f32 %v1264, %v1285
      %v1289 = vmul.f32 %v1265, %v1286
      %1291 = vset.pattern.permute.xlu0 0
      %1292 = vperm.xlu0 %1291, %v333
      %v1293 = vpop.permute.xlu0 %1292
      %1296 = vset.pattern.permute.xlu0 0
      %1297 = vperm.xlu0 %1296, %v334
      %v1298 = vpop.permute.xlu0 %1297
      %1301 = vset.pattern.permute.xlu0 0
      %1302 = vperm.xlu0 %1301, %v335
      %v1303 = vpop.permute.xlu0 %1302
      %v1305 = vmul.f32 %v1287, %v1293
      %v1306 = vmul.f32 %v1288, %v1298
      %v1307 = vmul.f32 %v1289, %v1303
      %vm1308 = vcmask 257024
      %1309 = vst.msk [vmem:[#allocation2] sm:$0xf] %vm1308, 0
      %1310 = vst.msk [vmem:[#allocation2 + $0x4] sm:$0xf] %vm1308, 0
      %1311 = vst.msk [vmem:[#allocation2 + $0x8] sm:$0xf] %vm1308, 0
      %1312 = vst.msk [vmem:[#allocation2 + $0xc] sm:$0xf] %vm1308, 0
      %vm1313 = vcmask 254976
      %1314 = vst.msk [vmem:[#allocation2 + $0x10] sm:$0x3] %vm1313, 0
      %v1315 = vpack.c.bf16 %v1305, %v1305
      %v1316 = vpack.c.bf16 %v1306, %v1306
      %v1317 = vpack.c.bf16 %v1307, %v1307
      %vm1318 = vsmask.f32 3328
      %vm1319 = vsmask.f32 7440
      %vm1320 = vmor %vm1318, %vm1319
      %v1322 = vshll.u32 %v1315, 16
      %v1324 = vrot.slane %v1322, 5
      %v1325 = vshrl.u32 %v1315, 16
      %v1327 = vrot.slane %v1325, 4
      %v1328 = vor.u32 %v1327, %v1324
      %v1329 = vrot.slane %v1328, 4
      %v1331 = vshll.u32 %v1316, 16
      %v1333 = vrot.slane %v1331, 5
      %v1334 = vsel %vm1320, %v1329, %v1333
      %v1335 = vshrl.u32 %v1316, 16
      %v1337 = vrot.slane %v1335, 4
      %v1338 = vor.u32 %v1337, %v1333
      %v1339 = vrot.slane %v1338, 4
      %v1341 = vshll.u32 %v1317, 16
      %v1343 = vrot.slane %v1341, 5
      %v1344 = vsel %vm1320, %v1339, %v1343
      %v1345 = vshrl.u32 %v1317, 16
      %v1347 = vrot.slane %v1345, 4
      %v1348 = vor.u32 %v1347, %v1343
      %v1349 = vrot.slane %v1348, 4
      %vm1354 = vcmask 257027
      %vm1355 = vsmask.f32 7950
      %vm1356 = vmand %vm1354, %vm1355
      %v1357 = vld [vmem:[#allocation2] sm:$0x8]
      %v1358 = vsel %vm1356, %v1324, %v1357
      %1359 = vst [vmem:[#allocation2] sm:$0x8] %v1358
      %1360 = vst.msk [vmem:[#allocation2 + $0x4] sm:$0xf] %vm1308, %v1334
      %1361 = vst.msk [vmem:[#allocation2 + $0x8] sm:$0xf] %vm1308, %v1344
      %vm1362 = vcmask 256000
      %vm1363 = vsmask.f32 2304
      %vm1364 = vmand %vm1362, %vm1363
      %v1365 = vld [vmem:[#allocation2 + $0xc] sm:$0x7]
      %v1366 = vsel %vm1364, %v1349, %v1365
      %1367 = vst [vmem:[#allocation2 + $0xc] sm:$0x7] %v1366
      %v1368 = vld [vmem:[#allocation2] sm:$0xf]
      %v1369 = vld [vmem:[#allocation2 + $0x4] sm:$0xf]
      %v1370 = vld [vmem:[#allocation2 + $0x8] sm:$0x7]
      %v1371 = vld [vmem:[%s5] sm:$0xf]
      %v1372 = vld [vmem:[%s5 + $0x4] sm:$0xf]
      %v1373 = vld [vmem:[%s5 + $0x8] sm:$0xf]
      %v1374 = vld [vmem:[%s5 + $0xc] sm:$0xf]
      %v1375 = vld [vmem:[#allocation2 + $0x8] sm:$0xf]
      %s1376 = scalar_lea.vmem %s5, 16
      %v1377 = vld [vmem:[%s1376] sm:$0xf]
      %v1378 = vld [vmem:[%s1376 + $0x4] sm:$0xf]
      %v1379 = vld [vmem:[%s1376 + $0x8] sm:$0xf]
      %v1380 = vld [vmem:[%s1376 + $0xc] sm:$0xf]
      %v1384 = vunpack.c.l.b16 %v1368
      %v1385 = vunpack.c.l.b16 %v1369
      %v1386 = vunpack.c.l.b16 %v1375
      %v1387 = vpack.c.b16 %v1385, %v1384
      %v1388 = vpack.c.b16 %v1386, %v1386
      %v1390 = vshrl.u32 %v1387, 16
      %v1392 = vshll.u32 %v1387, 16
      %v1394 = vrot.slane %v1392, 1
      %v1395 = vor.u32 %v1390, %v1394
      %v1397 = vshll.u32 %v1388, 16
      %v1399 = vrot.slane %v1397, 1
      %v1400 = vsel %vm381, %v1395, %v1399
      %v1401 = vshrl.u32 %v1388, 16
      %v1403 = vor.u32 %v1401, %v1399
      %v1408 = vunpack.c.l.b16 %v1377
      %v1409 = vunpack.c.l.b16 %v1378
      %v1410 = vunpack.c.l.b16 %v1379
      %v1411 = vunpack.c.l.b16 %v1380
      %v1412 = vpack.c.b16 %v1409, %v1408
      %v1413 = vpack.c.b16 %v1411, %v1410
      %vm1416 = vcmask 261120
      %v1418 = vsel %vm1416, %v1400, 0
      %v1421 = vsel %vm1416, %v1403, 0
      %1423 = vmatpush.bf16.msra.mxu0 0
      %1424 = vmatpush.bf16.msra.mxu0 0
      %1425 = vmatpush.bf16.msra.mxu0 0
      %1426 = vmatpush.bf16.msra.mxu0 0
      %1427 = vmatpush.bf16.msra.mxu0 0
      %1428 = vmatpush.bf16.msra.mxu0 0
      %1429 = vmatpush.bf16.msra.mxu0 %v1413
      %1430 = vmatpush.bf16.msra.mxu0 %v1412
      %1431 = vmatmul.bf16.gmra.mxu0 %v1418
      %v1432 = vpop.f32.mrf.mxu0
      %v1433 = vadd.f32 0.0, %v1432
      %v1434 = vpop.f32.mrf.mxu0
      %v1435 = vadd.f32 0.0, %v1434
      %1436 = vmatmul.bf16.gmra.mxu0 %v1421
      %v1437 = vpop.f32.mrf.mxu0
      %v1438 = vadd.f32 0.0, %v1437
      %v1439 = vpop.f32.mrf.mxu0
      %1440 = vdwg.mxu0
      %v1442 = vunpack.c.l.b16 %v1370
      %v1443 = vpack.c.b16 %v1442, %v1442
      %v1448 = vunpack.c.l.b16 %v1371
      %v1449 = vunpack.c.l.b16 %v1372
      %v1450 = vunpack.c.l.b16 %v1373
      %v1451 = vunpack.c.l.b16 %v1374
      %v1452 = vpack.c.b16 %v1449, %v1448
      %v1453 = vpack.c.b16 %v1451, %v1450
      %v1456 = vsel %vm1416, %v1387, 0
      %v1459 = vsel %vm1416, %v1443, 0
      %1461 = vmatpush.bf16.msra.mxu0 0
      %1462 = vmatpush.bf16.msra.mxu0 0
      %1463 = vmatpush.bf16.msra.mxu0 0
      %1464 = vmatpush.bf16.msra.mxu0 0
      %1465 = vmatpush.bf16.msra.mxu0 0
      %1466 = vmatpush.bf16.msra.mxu0 0
      %1467 = vmatpush.bf16.msra.mxu0 %v1453
      %1468 = vmatpush.bf16.msra.mxu0 %v1452
      %1469 = vmatmul.bf16.gmra.mxu0 %v1456
      %v1470 = vpop.f32.mrf.mxu0
      %v1471 = vadd.f32 %v1433, %v1470
      %v1472 = vpop.f32.mrf.mxu0
      %v1473 = vadd.f32 %v1435, %v1472
      %1474 = vmatmul.bf16.gmra.mxu0 %v1459
      %v1475 = vpop.f32.mrf.mxu0
      %v1476 = vadd.f32 %v1438, %v1475
      %v1477 = vpop.f32.mrf.mxu0
      %1478 = vdwg.mxu0
      %v1479 = vld [vmem:[#allocation2] sm:$0xe]
      %s1480 = scalar_lea.vmem %s5, 32
      %v1481 = vld [vmem:[%s1480] sm:$0xf]
      %v1482 = vld [vmem:[%s1480 + $0x4] sm:$0xf]
      %v1483 = vld [vmem:[%s1480 + $0x8] sm:$0xf]
      %v1484 = vld [vmem:[%s1480 + $0xc] sm:$0xf]
      %v1486 = vunpack.c.l.b16 %v1479
      %v1487 = vpack.c.b16 %v1385, %v1486
      %v1488 = vrot.slane %v1487, 1
      %v1489 = vrot.slane %v1388, 1
      %v1490 = vsel %vm557, %v1488, %v1489
      %v1495 = vunpack.c.l.b16 %v1481
      %v1496 = vunpack.c.l.b16 %v1482
      %v1497 = vunpack.c.l.b16 %v1483
      %v1498 = vunpack.c.l.b16 %v1484
      %v1499 = vpack.c.b16 %v1496, %v1495
      %v1500 = vpack.c.b16 %v1498, %v1497
      %v1504 = vsel %vm1416, %v1490, 0
      %v1507 = vsel %vm1416, %v1489, 0
      %1509 = vmatpush.bf16.msra.mxu0 0
      %1510 = vmatpush.bf16.msra.mxu0 0
      %1511 = vmatpush.bf16.msra.mxu0 0
      %1512 = vmatpush.bf16.msra.mxu0 0
      %1513 = vmatpush.bf16.msra.mxu0 0
      %1514 = vmatpush.bf16.msra.mxu0 0
      %1515 = vmatpush.bf16.msra.mxu0 %v1500
      %1516 = vmatpush.bf16.msra.mxu0 %v1499
      %1517 = vmatmul.bf16.gmra.mxu0 %v1504
      %v1518 = vpop.f32.mrf.mxu0
      %v1519 = vadd.f32 0.0, %v1518
      %v1520 = vpop.f32.mrf.mxu0
      %v1521 = vadd.f32 0.0, %v1520
      %1522 = vmatmul.bf16.gmra.mxu0 %v1507
      %v1523 = vpop.f32.mrf.mxu0
      %v1524 = vadd.f32 0.0, %v1523
      %v1525 = vpop.f32.mrf.mxu0
      %1526 = vdwg.mxu0
      %v1527 = vadd.f32 %v1471, %v1519
      %v1528 = vadd.f32 %v1473, %v1521
      %v1529 = vadd.f32 %v1476, %v1524
      %v1530 = vld [vmem:[#allocation2] sm:$0x8]
      %v1531 = vld [vmem:[#allocation2 + $0x4] sm:$0xf]
      %v1532 = vld [vmem:[#allocation2 + $0x8] sm:$0xf]
      %v1533 = vld [vmem:[#allocation2 + $0xc] sm:$0x3]
      %s1534 = scalar_lea.vmem %s5, 48
      %v1535 = vld [vmem:[%s1534] sm:$0xf]
      %v1536 = vld [vmem:[%s1534 + $0x4] sm:$0xf]
      %v1537 = vld [vmem:[%s1534 + $0x8] sm:$0xf]
      %v1538 = vld [vmem:[%s1534 + $0xc] sm:$0xf]
      %v1543 = vunpack.c.l.b16 %v1530
      %v1544 = vunpack.c.l.b16 %v1531
      %v1545 = vunpack.c.l.b16 %v1532
      %v1546 = vunpack.c.l.b16 %v1533
      %v1547 = vpack.c.b16 %v1544, %v1543
      %v1548 = vpack.c.b16 %v1546, %v1545
      %v1549 = vrot.slane %v1547, 3
      %v1550 = vrot.slane %v1548, 3
      %v1551 = vsel %vm663, %v1549, %v1550
      %v1556 = vunpack.c.l.b16 %v1535
      %v1557 = vunpack.c.l.b16 %v1536
      %v1558 = vunpack.c.l.b16 %v1537
      %v1559 = vunpack.c.l.b16 %v1538
      %v1560 = vpack.c.b16 %v1557, %v1556
      %v1561 = vpack.c.b16 %v1559, %v1558
      %v1565 = vsel %vm1416, %v1551, 0
      %v1568 = vsel %vm1416, %v1550, 0
      %1570 = vmatpush.bf16.msra.mxu0 0
      %1571 = vmatpush.bf16.msra.mxu0 0
      %1572 = vmatpush.bf16.msra.mxu0 0
      %1573 = vmatpush.bf16.msra.mxu0 0
      %1574 = vmatpush.bf16.msra.mxu0 0
      %1575 = vmatpush.bf16.msra.mxu0 0
      %1576 = vmatpush.bf16.msra.mxu0 %v1561
      %1577 = vmatpush.bf16.msra.mxu0 %v1560
      %1578 = vmatmul.bf16.gmra.mxu0 %v1565
      %v1579 = vpop.f32.mrf.mxu0
      %v1580 = vadd.f32 0.0, %v1579
      %v1581 = vpop.f32.mrf.mxu0
      %v1582 = vadd.f32 0.0, %v1581
      %1583 = vmatmul.bf16.gmra.mxu0 %v1568
      %v1584 = vpop.f32.mrf.mxu0
      %v1585 = vadd.f32 0.0, %v1584
      %v1586 = vpop.f32.mrf.mxu0
      %1587 = vdwg.mxu0
      %v1588 = vadd.f32 %v1527, %v1580
      %v1589 = vadd.f32 %v1528, %v1582
      %v1590 = vadd.f32 %v1529, %v1585
      %v1591 = vld [vmem:[#allocation2 + $0xc] sm:$0x7]
      %s1592 = scalar_lea.vmem %s5, 64
      %v1593 = vld [vmem:[%s1592] sm:$0xf]
      %v1594 = vld [vmem:[%s1592 + $0x4] sm:$0xf]
      %v1595 = vld [vmem:[%s1592 + $0x8] sm:$0xf]
      %v1596 = vld [vmem:[%s1592 + $0xc] sm:$0xf]
      %v1598 = vunpack.c.l.b16 %v1591
      %v1599 = vpack.c.b16 %v1598, %v1545
      %v1601 = vshrl.u32 %v1547, 16
      %v1603 = vrot.slane %v1601, 3
      %v1604 = vshll.u32 %v1547, 16
      %v1606 = vrot.slane %v1604, 4
      %v1607 = vor.u32 %v1603, %v1606
      %v1609 = vshrl.u32 %v1599, 16
      %v1611 = vrot.slane %v1609, 3
      %v1612 = vshll.u32 %v1599, 16
      %v1614 = vrot.slane %v1612, 4
      %v1615 = vor.u32 %v1611, %v1614
      %v1616 = vsel %vm759, %v1607, %v1615
      %v1621 = vunpack.c.l.b16 %v1593
      %v1622 = vunpack.c.l.b16 %v1594
      %v1623 = vunpack.c.l.b16 %v1595
      %v1624 = vunpack.c.l.b16 %v1596
      %v1625 = vpack.c.b16 %v1622, %v1621
      %v1626 = vpack.c.b16 %v1624, %v1623
      %v1630 = vsel %vm1416, %v1616, 0
      %v1633 = vsel %vm1416, %v1615, 0
      %1635 = vmatpush.bf16.msra.mxu0 0
      %1636 = vmatpush.bf16.msra.mxu0 0
      %1637 = vmatpush.bf16.msra.mxu0 0
      %1638 = vmatpush.bf16.msra.mxu0 0
      %1639 = vmatpush.bf16.msra.mxu0 0
      %1640 = vmatpush.bf16.msra.mxu0 0
      %1641 = vmatpush.bf16.msra.mxu0 %v1626
      %1642 = vmatpush.bf16.msra.mxu0 %v1625
      %1643 = vmatmul.bf16.gmra.mxu0 %v1630
      %v1644 = vpop.f32.mrf.mxu0
      %v1645 = vadd.f32 0.0, %v1644
      %v1646 = vpop.f32.mrf.mxu0
      %v1647 = vadd.f32 0.0, %v1646
      %1648 = vmatmul.bf16.gmra.mxu0 %v1633
      %v1649 = vpop.f32.mrf.mxu0
      %v1650 = vadd.f32 0.0, %v1649
      %v1651 = vpop.f32.mrf.mxu0
      %1652 = vdwg.mxu0
      %v1653 = vadd.f32 %v1588, %v1645
      %v1654 = vadd.f32 %v1589, %v1647
      %v1655 = vadd.f32 %v1590, %v1650
      %s1656 = scalar_lea.vmem %s5, 80
      %v1657 = vld [vmem:[%s1656] sm:$0xf]
      %v1658 = vld [vmem:[%s1656 + $0x4] sm:$0xf]
      %v1659 = vld [vmem:[%s1656 + $0x8] sm:$0xf]
      %v1660 = vld [vmem:[%s1656 + $0xc] sm:$0xf]
      %v1661 = vpack.c.b16 %v1545, %v1544
      %v1662 = vpack.c.b16 %v1598, %v1598
      %v1667 = vunpack.c.l.b16 %v1657
      %v1668 = vunpack.c.l.b16 %v1658
      %v1669 = vunpack.c.l.b16 %v1659
      %v1670 = vunpack.c.l.b16 %v1660
      %v1671 = vpack.c.b16 %v1668, %v1667
      %v1672 = vpack.c.b16 %v1670, %v1669
      %v1676 = vsel %vm1416, %v1661, 0
      %v1679 = vsel %vm1416, %v1662, 0
      %1681 = vmatpush.bf16.msra.mxu0 0
      %1682 = vmatpush.bf16.msra.mxu0 0
      %1683 = vmatpush.bf16.msra.mxu0 0
      %1684 = vmatpush.bf16.msra.mxu0 0
      %1685 = vmatpush.bf16.msra.mxu0 0
      %1686 = vmatpush.bf16.msra.mxu0 0
      %1687 = vmatpush.bf16.msra.mxu0 %v1672
      %1688 = vmatpush.bf16.msra.mxu0 %v1671
      %1689 = vmatmul.bf16.gmra.mxu0 %v1676
      %v1690 = vpop.f32.mrf.mxu0
      %v1691 = vadd.f32 0.0, %v1690
      %v1692 = vpop.f32.mrf.mxu0
      %v1693 = vadd.f32 0.0, %v1692
      %1694 = vmatmul.bf16.gmra.mxu0 %v1679
      %v1695 = vpop.f32.mrf.mxu0
      %v1696 = vadd.f32 0.0, %v1695
      %v1697 = vpop.f32.mrf.mxu0
      %1698 = vdwg.mxu0
      %v1699 = vadd.f32 %v1653, %v1691
      %v1700 = vadd.f32 %v1654, %v1693
      %v1701 = vadd.f32 %v1655, %v1696
      %v1702 = vld [vmem:[#allocation2 + $0x4] sm:$0xc]
      %v1703 = vld [vmem:[#allocation2 + $0x8] sm:$0xf]
      %v1704 = vld [vmem:[#allocation2 + $0xc] sm:$0xf]
      %v1705 = vld [vmem:[#allocation2 + $0x10] sm:$0x1]
      %s1706 = scalar_lea.vmem %s5, 96
      %v1707 = vld [vmem:[%s1706] sm:$0xf]
      %v1708 = vld [vmem:[%s1706 + $0x4] sm:$0xf]
      %v1709 = vld [vmem:[%s1706 + $0x8] sm:$0xf]
      %v1710 = vld [vmem:[%s1706 + $0xc] sm:$0xf]
      %v1715 = vunpack.c.l.b16 %v1702
      %v1716 = vunpack.c.l.b16 %v1703
      %v1717 = vunpack.c.l.b16 %v1704
      %v1718 = vunpack.c.l.b16 %v1705
      %v1719 = vpack.c.b16 %v1716, %v1715
      %v1720 = vpack.c.b16 %v1718, %v1717
      %v1721 = vrot.slane %v1719, 2
      %v1722 = vrot.slane %v1720, 2
      %v1723 = vsel %vm969, %v1721, %v1722
      %v1728 = vunpack.c.l.b16 %v1707
      %v1729 = vunpack.c.l.b16 %v1708
      %v1730 = vunpack.c.l.b16 %v1709
      %v1731 = vunpack.c.l.b16 %v1710
      %v1732 = vpack.c.b16 %v1729, %v1728
      %v1733 = vpack.c.b16 %v1731, %v1730
      %v1737 = vsel %vm1416, %v1723, 0
      %v1740 = vsel %vm1416, %v1722, 0
      %1742 = vmatpush.bf16.msra.mxu0 0
      %1743 = vmatpush.bf16.msra.mxu0 0
      %1744 = vmatpush.bf16.msra.mxu0 0
      %1745 = vmatpush.bf16.msra.mxu0 0
      %1746 = vmatpush.bf16.msra.mxu0 0
      %1747 = vmatpush.bf16.msra.mxu0 0
      %1748 = vmatpush.bf16.msra.mxu0 %v1733
      %1749 = vmatpush.bf16.msra.mxu0 %v1732
      %1750 = vmatmul.bf16.gmra.mxu0 %v1737
      %v1751 = vpop.f32.mrf.mxu0
      %v1752 = vadd.f32 0.0, %v1751
      %v1753 = vpop.f32.mrf.mxu0
      %v1754 = vadd.f32 0.0, %v1753
      %1755 = vmatmul.bf16.gmra.mxu0 %v1740
      %v1756 = vpop.f32.mrf.mxu0
      %v1757 = vadd.f32 0.0, %v1756
      %v1758 = vpop.f32.mrf.mxu0
      %1759 = vdwg.mxu0
      %v1760 = vadd.f32 %v1699, %v1752
      %v1761 = vadd.f32 %v1700, %v1754
      %v1762 = vadd.f32 %v1701, %v1757
      %v1763 = vld [vmem:[#allocation2 + $0x10] sm:$0x3]
      %s1764 = scalar_lea.vmem %s5, 112
      %v1765 = vld [vmem:[%s1764] sm:$0xf]
      %v1766 = vld [vmem:[%s1764 + $0x4] sm:$0xf]
      %v1767 = vld [vmem:[%s1764 + $0x8] sm:$0xf]
      %v1768 = vld [vmem:[%s1764 + $0xc] sm:$0xf]
      %v1770 = vunpack.c.l.b16 %v1763
      %v1771 = vpack.c.b16 %v1770, %v1717
      %v1773 = vshrl.u32 %v1719, 16
      %v1775 = vrot.slane %v1773, 2
      %v1776 = vshll.u32 %v1719, 16
      %v1778 = vrot.slane %v1776, 3
      %v1779 = vor.u32 %v1775, %v1778
      %v1781 = vshrl.u32 %v1771, 16
      %v1783 = vrot.slane %v1781, 2
      %v1784 = vshll.u32 %v1771, 16
      %v1786 = vrot.slane %v1784, 3
      %v1787 = vor.u32 %v1783, %v1786
      %v1788 = vsel %vm1065, %v1779, %v1787
      %v1793 = vunpack.c.l.b16 %v1765
      %v1794 = vunpack.c.l.b16 %v1766
      %v1795 = vunpack.c.l.b16 %v1767
      %v1796 = vunpack.c.l.b16 %v1768
      %v1797 = vpack.c.b16 %v1794, %v1793
      %v1798 = vpack.c.b16 %v1796, %v1795
      %v1802 = vsel %vm1416, %v1788, 0
      %v1805 = vsel %vm1416, %v1787, 0
      %1807 = vmatpush.bf16.msra.mxu0 0
      %1808 = vmatpush.bf16.msra.mxu0 0
      %1809 = vmatpush.bf16.msra.mxu0 0
      %1810 = vmatpush.bf16.msra.mxu0 0
      %1811 = vmatpush.bf16.msra.mxu0 0
      %1812 = vmatpush.bf16.msra.mxu0 0
      %1813 = vmatpush.bf16.msra.mxu0 %v1798
      %1814 = vmatpush.bf16.msra.mxu0 %v1797
      %1815 = vmatmul.bf16.gmra.mxu0 %v1802
      %v1816 = vpop.f32.mrf.mxu0
      %v1817 = vadd.f32 0.0, %v1816
      %v1818 = vpop.f32.mrf.mxu0
      %v1819 = vadd.f32 0.0, %v1818
      %1820 = vmatmul.bf16.gmra.mxu0 %v1805
      %v1821 = vpop.f32.mrf.mxu0
      %v1822 = vadd.f32 0.0, %v1821
      %v1823 = vpop.f32.mrf.mxu0
      %1824 = vdwg.mxu0
      %v1825 = vadd.f32 %v1760, %v1817
      %v1826 = vadd.f32 %v1761, %v1819
      %v1827 = vadd.f32 %v1762, %v1822
      %v1828 = vld [vmem:[#allocation2 + $0x4] sm:$0x8]
      %s1829 = scalar_lea.vmem %s5, 128
      %v1830 = vld [vmem:[%s1829] sm:$0xf]
      %v1831 = vld [vmem:[%s1829 + $0x4] sm:$0xf]
      %v1832 = vld [vmem:[%s1829 + $0x8] sm:$0xf]
      %v1833 = vld [vmem:[%s1829 + $0xc] sm:$0xf]
      %v1835 = vunpack.c.l.b16 %v1828
      %v1836 = vpack.c.b16 %v1716, %v1835
      %v1837 = vrot.slane %v1836, 3
      %v1838 = vrot.slane %v1771, 3
      %v1839 = vsel %vm663, %v1837, %v1838
      %v1844 = vunpack.c.l.b16 %v1830
      %v1845 = vunpack.c.l.b16 %v1831
      %v1846 = vunpack.c.l.b16 %v1832
      %v1847 = vunpack.c.l.b16 %v1833
      %v1848 = vpack.c.b16 %v1845, %v1844
      %v1849 = vpack.c.b16 %v1847, %v1846
      %v1853 = vsel %vm1416, %v1839, 0
      %v1856 = vsel %vm1416, %v1838, 0
      %1858 = vmatpush.bf16.msra.mxu0 0
      %1859 = vmatpush.bf16.msra.mxu0 0
      %1860 = vmatpush.bf16.msra.mxu0 0
      %1861 = vmatpush.bf16.msra.mxu0 0
      %1862 = vmatpush.bf16.msra.mxu0 0
      %1863 = vmatpush.bf16.msra.mxu0 0
      %1864 = vmatpush.bf16.msra.mxu0 %v1849
      %1865 = vmatpush.bf16.msra.mxu0 %v1848
      %1866 = vmatmul.bf16.gmra.mxu0 %v1853
      %v1867 = vpop.f32.mrf.mxu0
      %v1868 = vadd.f32 0.0, %v1867
      %v1869 = vpop.f32.mrf.mxu0
      %v1870 = vadd.f32 0.0, %v1869
      %1871 = vmatmul.bf16.gmra.mxu0 %v1856
      %v1872 = vpop.f32.mrf.mxu0
      %v1873 = vadd.f32 0.0, %v1872
      %v1874 = vpop.f32.mrf.mxu0
      %1875 = vdwg.mxu0
      %v1876 = vadd.f32 %v1825, %v1868
      %v1877 = vadd.f32 %v1826, %v1870
      %v1878 = vadd.f32 %v1827, %v1873
      %v1879 = vld [vmem:[%s6] sm:$0x1]
      %v1881 = vperm.slane %v1879, 0
      %v1883 = vmul.f32 %v1876, %v1881
      %v1884 = vmul.f32 %v1877, %v1881
      %v1885 = vmul.f32 %v1878, %v1881
      %v1886 = vld [vmem:[%s7] sm:$0x1]
      %v1888 = vperm.slane %v1886, 0
      %v1890 = vadd.f32 %v1883, %v1888
      %v1891 = vadd.f32 %v1884, %v1888
      %v1892 = vadd.f32 %v1885, %v1888
      %v1893 = vmul.f32 %v1890, 0.5
      %v1894 = vmul.f32 %v1891, 0.5
      %v1895 = vmul.f32 %v1892, 0.5
      %v1896 = vmul.f32 %v1890, 0.044715
      %v1897 = vmul.f32 %v1891, 0.044715
      %v1898 = vmul.f32 %v1892, 0.044715
      %v1899 = vmul.f32 %v1896, %v1890
      %v1900 = vmul.f32 %v1897, %v1891
      %v1901 = vmul.f32 %v1898, %v1892
      %v1902 = vmul.f32 %v1899, %v1890
      %v1903 = vmul.f32 %v1900, %v1891
      %v1904 = vmul.f32 %v1901, %v1892
      %v1905 = vadd.f32 %v1890, %v1902
      %v1906 = vadd.f32 %v1891, %v1903
      %v1907 = vadd.f32 %v1892, %v1904
      %v1908 = vmul.f32 %v1905, 0.7978846
      %v1909 = vmul.f32 %v1906, 0.7978846
      %v1910 = vmul.f32 %v1907, 0.7978846
      %v1911 = vtanh.pop %v1908
      %v1912 = vtanh.pop %v1909
      %v1913 = vtanh.pop %v1910
      %v1914 = vadd.f32 %v1911, 1.0
      %v1915 = vadd.f32 %v1912, 1.0
      %v1916 = vadd.f32 %v1913, 1.0
      %v1917 = vmul.f32 %v1893, %v1914
      %v1918 = vmul.f32 %v1894, %v1915
      %v1919 = vmul.f32 %v1895, %v1916
      %v1920 = vmax.f32 %v1917, 0.0
      %v1921 = vmax.f32 %v1918, 0.0
      %v1922 = vmax.f32 %v1919, 0.0
      %p1923 = scmp.eq.s32.totalorder %s24, 0
      // Predicated region
      $region53: #{encoder_identity_forward.5} parent=51 // pred_check
        %p1924 = pneg %p1923
      $region54: #{encoder_identity_forward.5} parent=51 // pred_check_branch
        %1926 = sbr.rel (%p1924) target = $region56
      $region55: #{encoder_identity_forward.5} parent=51 // pred_region
        %1927 = vst.msk [vmem:[#allocation3] sm:$0xff] %vm1416, 0.0
        %1928 = vst.msk [vmem:[#allocation3 + $0x8] sm:$0xff] %vm1416, 0.0
        %vm1929 = vcmask 259072
        %1930 = vst.msk [vmem:[#allocation3 + $0x10] sm:$0x3f] %vm1929, 0.0
      $region56: #{encoder_identity_forward.5} parent=51 // pred_fallthru
        _
      %v1931 = vld [vmem:[#allocation3] sm:$0xff]
      %v1932 = vld [vmem:[#allocation3 + $0x8] sm:$0xff]
      %v1933 = vld [vmem:[#allocation3 + $0x10] sm:$0x3f]
      %v1934 = vmul.f32 %v1920, 0.25
      %v1935 = vmul.f32 %v1921, 0.25
      %v1936 = vmul.f32 %v1922, 0.25
      %v1937 = vadd.f32 %v1931, %v1934
      %v1938 = vadd.f32 %v1932, %v1935
      %v1939 = vadd.f32 %v1933, %v1936
      %1940 = vst.msk [vmem:[#allocation3] sm:$0xff] %vm1416, %v1937
      %1941 = vst.msk [vmem:[#allocation3 + $0x8] sm:$0xff] %vm1416, %v1938
      %vm1942 = vcmask 259072
      %1943 = vst.msk [vmem:[#allocation3 + $0x10] sm:$0x3f] %vm1942, %v1939
      %p1944 = scmp.eq.s32.totalorder %s24, 3
      // Predicated region
      $region57: #{encoder_identity_forward.5} parent=51 // pred_check
        %p1945 = pneg %p1944
      $region58: #{encoder_identity_forward.5} parent=51 // pred_check_branch
        %1947 = sbr.rel (%p1945) target = $region60
      $region59: #{encoder_identity_forward.5} parent=51 // pred_region
        %1948 = vst.msk [vmem:[%s331] sm:$0xf] %vm1308, 0
        %1949 = vst.msk [vmem:[%s331 + $0x4] sm:$0xf] %vm1308, 0
        %1950 = vst.msk [vmem:[%s331 + $0x8] sm:$0xf] %vm1308, 0
        %1951 = vst.msk [vmem:[%s331 + $0xc] sm:$0xf] %vm1308, 0
        %1952 = vst.msk [vmem:[%s331 + $0x10] sm:$0x3] %vm1313, 0
        %v1953 = vld [vmem:[#allocation3] sm:$0xff]
        %v1954 = vld [vmem:[#allocation3 + $0x8] sm:$0xff]
        %v1955 = vld [vmem:[#allocation3 + $0x10] sm:$0x3f]
        %v1956 = vmul.f32 %v1953, %v1293
        %v1957 = vmul.f32 %v1954, %v1298
        %v1958 = vmul.f32 %v1955, %v1303
        %v1959 = vpack.c.bf16 %v1956, %v1956
        %v1960 = vpack.c.bf16 %v1957, %v1957
        %v1961 = vpack.c.bf16 %v1958, %v1958
        %v1963 = vshll.u32 %v1959, 16
        %v1965 = vrot.slane %v1963, 5
        %v1966 = vshrl.u32 %v1959, 16
        %v1968 = vrot.slane %v1966, 4
        %v1969 = vor.u32 %v1968, %v1965
        %v1970 = vrot.slane %v1969, 4
        %v1972 = vshll.u32 %v1960, 16
        %v1974 = vrot.slane %v1972, 5
        %v1975 = vsel %vm1320, %v1970, %v1974
        %v1976 = vshrl.u32 %v1960, 16
        %v1978 = vrot.slane %v1976, 4
        %v1979 = vor.u32 %v1978, %v1974
        %v1980 = vrot.slane %v1979, 4
        %v1982 = vshll.u32 %v1961, 16
        %v1984 = vrot.slane %v1982, 5
        %v1985 = vsel %vm1320, %v1980, %v1984
        %v1986 = vshrl.u32 %v1961, 16
        %v1988 = vrot.slane %v1986, 4
        %v1989 = vor.u32 %v1988, %v1984
        %v1990 = vrot.slane %v1989, 4
        %v1995 = vld [vmem:[%s331] sm:$0x8]
        %v1996 = vsel %vm1356, %v1965, %v1995
        %1997 = vst [vmem:[%s331] sm:$0x8] %v1996
        %1998 = vst.msk [vmem:[%s331 + $0x4] sm:$0xf] %vm1308, %v1975
        %1999 = vst.msk [vmem:[%s331 + $0x8] sm:$0xf] %vm1308, %v1985
        %v2000 = vld [vmem:[%s331 + $0xc] sm:$0x7]
        %v2001 = vsel %vm1364, %v1990, %v2000
        %2002 = vst [vmem:[%s331 + $0xc] sm:$0x7] %v2001
      $region60: #{encoder_identity_forward.5} parent=51 // pred_fallthru
        _
      %p2003 = scmp.lt.s32.totalorder %s23, 1
      %s2004 = scalar_select %p2003, %s23, 1
      %s2005 = smul.addr %s2004, 5
      %s2006 = smul.addr %s2005, 4
      %s2007 = scalar_lea.vmem %s8, %s2006
      // Predicated region
      $region61: #{encoder_identity_forward.5} parent=51 // pred_check
        %p2008 = pneg %p224
      $region62: #{encoder_identity_forward.5} parent=51 // pred_check_branch
        %2010 = sbr.rel (%p2008) target = $region64
      $region63: #{encoder_identity_forward.5} parent=51 // pred_region
        _
      $region64: #{encoder_identity_forward.5} parent=51 // pred_fallthru
        _
    $region52: #{encoder_identity_forward.5} parent=5 // pred_fallthru
      _
    %p2011 = scmp.le.s32.totalorder 2, %s14
    // Predicated region
    $region65: #{encoder_identity_forward.5} parent=5 // pred_check
      %p2012 = pneg %p2011
    $region66: #{encoder_identity_forward.5} parent=5 // pred_check_branch
      %2014 = sbr.rel (%p2012) target = $region68
    $region67: #{encoder_identity_forward.5} parent=5 // pred_region
      %s2015 = ssub.s32 %s14, 2
      // Predicated region
      $region69: #{encoder_identity_forward.5} parent=67 // pred_check
        %p2016 = pneg %p230
      $region70: #{encoder_identity_forward.5} parent=67 // pred_check_branch
        %2018 = sbr.rel (%p2016) target = $region72
      $region71: #{encoder_identity_forward.5} parent=67 // pred_region
        %p2019 = scmp.lt.s32.totalorder %s25, 1
        %s2020 = scalar_select %p2019, %s25, 1
        %s2021 = smul.addr %s2020, 5
        %s2022 = smul.addr %s2021, 4
        %s2023 = scalar_lea.vmem %s8, %s2022
      $region72: #{encoder_identity_forward.5} parent=67 // pred_fallthru
        _
    $region68: #{encoder_identity_forward.5} parent=5 // pred_fallthru
      _
  $region6: #{encoder_identity_forward.5} parent=0 // loop_footer
    %s18 = sadd.s32 1, %s14
  $region7: #{encoder_identity_forward.5} parent=0 // loop_footer_branch
    %13 = sbr.rel target = $region3
  $region8: #{encoder_identity_forward.5} parent=0 // loop_exit
    _

// kernel: encoder_identity_forward.6
$region0: #{encoder_identity_forward.6}
  #allocation0 [shape = 'u32[]', space=smem, size = 0x4, offset = 0x4, fixed_abs, tag = 'smem constant byte address 0x4 - core index']
  #allocation1 [shape = 'u32[72,128]{1,0:T(1,128)}', space=vmem, size = 0x9000, scoped, tag = 'internal scratch']
  %s0 = inlined_call_operand.vmem [shape: bf16[2,36,32], index: 0, kind: input, shape index: {}, may-alias: {0,4}]
  %s1 = inlined_call_operand.vmem [shape: f32[22,1], index: 1, kind: input, shape index: {}]
  %s2 = inlined_call_operand.vmem [shape: bf16[9,32,16], index: 2, kind: input, shape index: {}]
  %s3 = inlined_call_operand.vmem [shape: bf16[16,32], index: 3, kind: input, shape index: {}]
  %s4 = inlined_call_operand.vmem [shape: bf16[2,36,32], index: 4, kind: output, shape index: {}, may-alias: {0,4}]
  %s5 = sld [smem:[#allocation0]]
  $region49: #{encoder_identity_forward.6} parent=0
    _
  %s7 = ssub.s32 1, %s5
  %s8 = scalar_select 0, %s7, %s5
  loop: start=0, step=1, limit=4
  $region2: #{encoder_identity_forward.6} parent=0 // loop_pre_header
    _
  $region3: #{encoder_identity_forward.6} parent=0 // loop_header
    %s10 = sphi 0, %s14
    %p11 = scmp.ge.s32.totalorder %s10, 4
    %s20 = sphi 0, %s22
    %s23 = sphi 0, %s20
    %s24 = sphi 0, %s23
    %s40 = sphi 0, %s24
    %s44 = sphi 0, %s44
    %s46 = sphi 0, %s44
    %s47 = sphi 0, %s46
    %s61 = sphi 0, %s47
    %s65 = sphi 0, %s65
    %s67 = sphi 0, %s65
    %s68 = sphi 0, %s67
    %s82 = sphi 0, %s68
    %s86 = sphi 0, %s86
    %s88 = sphi 0, %s86
    %s89 = sphi 0, %s88
    %s103 = sphi 0, %s89
    %s109 = sphi 0, %s111
    %s112 = sphi 0, %s109
    %s113 = sphi 0, %s112
    %s129 = sphi 0, %s113
  $region4: #{encoder_identity_forward.6} parent=0 // loop_header_branch
    %13 = sbr.rel (%p11) target = $region8
  $region5: #{encoder_identity_forward.6} parent=0 // loop_body
    %s15 = ssub.s32 %s10, 1
    %s16 = ssub.s32 %s10, 2
    %s17 = sadd.s32 %s10, 1
    %s18 = ssub.s32 %s10, %s17
    %p19 = scmp.eq.s32.totalorder %s18, 0
    %s21 = sadd.s32 %s20, 1
    %s22 = scalar_select %p19, %s20, %s21
    %p25 = pneg %p19
    %p26 = scmp.eq.s32.totalorder %s10, 1
    %p27 = por %p25, %p26
    %p28 = scmp.ne.s32.totalorder %s20, %s23
    %p29 = scmp.eq.s32.totalorder %s10, 0
    %p30 = por %p28, %p29
    %p31 = scmp.ne.s32.totalorder %s20, %s23
    %p32 = scmp.eq.s32.totalorder %s15, 1
    %p33 = por %p31, %p32
    %p34 = scmp.ne.s32.totalorder %s23, %s24
    %p35 = scmp.eq.s32.totalorder %s15, 0
    %p36 = por %p34, %p35
    %p37 = scmp.ne.s32.totalorder %s23, %s24
    %p38 = scmp.eq.s32.totalorder %s16, 1
    %p39 = por %p37, %p38
    %p41 = scmp.ne.s32.totalorder %s24, %s40
    %p42 = scmp.eq.s32.totalorder %s16, 0
    %p43 = por %p41, %p42
    %s45 = sadd.s32 %s44, 1
    %p48 = scmp.eq.s32.totalorder %s10, 1
    %p49 = scmp.ne.s32.totalorder %s44, %s46
    %p50 = scmp.eq.s32.totalorder %s10, 0
    %p51 = por %p49, %p50
    %p52 = scmp.ne.s32.totalorder %s44, %s46
    %p53 = scmp.eq.s32.totalorder %s15, 1
    %p54 = por %p52, %p53
    %p55 = scmp.ne.s32.totalorder %s46, %s47
    %p56 = scmp.eq.s32.totalorder %s15, 0
    %p57 = por %p55, %p56
    %p58 = scmp.ne.s32.totalorder %s46, %s47
    %p59 = scmp.eq.s32.totalorder %s16, 1
    %p60 = por %p58, %p59
    %p62 = scmp.ne.s32.totalorder %s47, %s61
    %p63 = scmp.eq.s32.totalorder %s16, 0
    %p64 = por %p62, %p63
    %s66 = sadd.s32 %s65, 1
    %p69 = scmp.eq.s32.totalorder %s10, 1
    %p70 = scmp.ne.s32.totalorder %s65, %s67
    %p71 = scmp.eq.s32.totalorder %s10, 0
    %p72 = por %p70, %p71
    %p73 = scmp.ne.s32.totalorder %s65, %s67
    %p74 = scmp.eq.s32.totalorder %s15, 1
    %p75 = por %p73, %p74
    %p76 = scmp.ne.s32.totalorder %s67, %s68
    %p77 = scmp.eq.s32.totalorder %s15, 0
    %p78 = por %p76, %p77
    %p79 = scmp.ne.s32.totalorder %s67, %s68
    %p80 = scmp.eq.s32.totalorder %s16, 1
    %p81 = por %p79, %p80
    %p83 = scmp.ne.s32.totalorder %s68, %s82
    %p84 = scmp.eq.s32.totalorder %s16, 0
    %p85 = por %p83, %p84
    %s87 = sadd.s32 %s86, 1
    %p90 = scmp.eq.s32.totalorder %s10, 1
    %p91 = scmp.ne.s32.totalorder %s86, %s88
    %p92 = scmp.eq.s32.totalorder %s10, 0
    %p93 = por %p91, %p92
    %p94 = scmp.ne.s32.totalorder %s86, %s88
    %p95 = scmp.eq.s32.totalorder %s15, 1
    %p96 = por %p94, %p95
    %p97 = scmp.ne.s32.totalorder %s88, %s89
    %p98 = scmp.eq.s32.totalorder %s15, 0
    %p99 = por %p97, %p98
    %p100 = scmp.ne.s32.totalorder %s88, %s89
    %p101 = scmp.eq.s32.totalorder %s16, 1
    %p102 = por %p100, %p101
    %p104 = scmp.ne.s32.totalorder %s89, %s103
    %p105 = scmp.eq.s32.totalorder %s16, 0
    %p106 = por %p104, %p105
    %s107 = ssub.s32 %s10, %s17
    %p108 = scmp.eq.s32.totalorder %s107, 0
    %s110 = sadd.s32 %s109, 1
    %s111 = scalar_select %p108, %s109, %s110
    %p114 = pneg %p108
    %p115 = scmp.eq.s32.totalorder %s10, 1
    %p116 = por %p114, %p115
    %p117 = scmp.ne.s32.totalorder %s109, %s112
    %p118 = scmp.eq.s32.totalorder %s10, 0
    %p119 = por %p117, %p118
    %p120 = scmp.ne.s32.totalorder %s109, %s112
    %p121 = scmp.eq.s32.totalorder %s15, 1
    %p122 = por %p120, %p121
    %p123 = scmp.ne.s32.totalorder %s112, %s113
    %p124 = scmp.eq.s32.totalorder %s15, 0
    %p125 = por %p123, %p124
    %p126 = scmp.ne.s32.totalorder %s112, %s113
    %p127 = scmp.eq.s32.totalorder %s16, 1
    %p128 = por %p126, %p127
    %p130 = scmp.ne.s32.totalorder %s113, %s129
    %p131 = scmp.eq.s32.totalorder %s16, 0
    %p132 = por %p130, %p131
    %p133 = scmp.le.s32.totalorder 1, %s10
    %p134 = scmp.lt.s32.totalorder %s10, 3
    %p135 = pnand %p133, %p134
    %p136 = pneg %p135
    // Predicated region
    $region9: #{encoder_identity_forward.6} parent=5 // pred_check
      _
    $region10: #{encoder_identity_forward.6} parent=5 // pred_check_branch
      %138 = sbr.rel (%p135) target = $region12
    $region11: #{encoder_identity_forward.6} parent=5 // pred_region
      %s139 = ssub.s32 %s10, 1
      // Predicated region
      $region13: #{encoder_identity_forward.6} parent=11 // pred_check
        %p140 = pneg %p57
      $region14: #{encoder_identity_forward.6} parent=11 // pred_check_branch
        %142 = sbr.rel (%p140) target = $region16
      $region15: #{encoder_identity_forward.6} parent=11 // pred_region
        _
      $region16: #{encoder_identity_forward.6} parent=11 // pred_fallthru
        _
      // Predicated region
      $region17: #{encoder_identity_forward.6} parent=11 // pred_check
        %p143 = pneg %p78
      $region18: #{encoder_identity_forward.6} parent=11 // pred_check_branch
        %145 = sbr.rel (%p143) target = $region20
      $region19: #{encoder_identity_forward.6} parent=11 // pred_region
        _
      $region20: #{encoder_identity_forward.6} parent=11 // pred_fallthru
        _
      // Predicated region
      $region21: #{encoder_identity_forward.6} parent=11 // pred_check
        %p146 = pneg %p99
      $region22: #{encoder_identity_forward.6} parent=11 // pred_check_branch
        %148 = sbr.rel (%p146) target = $region24
      $region23: #{encoder_identity_forward.6} parent=11 // pred_region
        _
      $region24: #{encoder_identity_forward.6} parent=11 // pred_fallthru
        _
    $region12: #{encoder_identity_forward.6} parent=5 // pred_fallthru
      _
    %p149 = scmp.lt.s32.totalorder %s10, 2
    // Predicated region
    $region25: #{encoder_identity_forward.6} parent=5 // pred_check
      %p150 = pneg %p149
    $region26: #{encoder_identity_forward.6} parent=5 // pred_check_branch
      %152 = sbr.rel (%p150) target = $region28
    $region27: #{encoder_identity_forward.6} parent=5 // pred_region
      // Predicated region
      $region29: #{encoder_identity_forward.6} parent=27 // pred_check
        %p153 = pneg %p30
      $region30: #{encoder_identity_forward.6} parent=27 // pred_check_branch
        %155 = sbr.rel (%p153) target = $region32
      $region31: #{encoder_identity_forward.6} parent=27 // pred_region
        %p156 = scmp.lt.s32.totalorder %s10, 1
        %s157 = scalar_select %p156, %s10, 1
        %s158 = smul.addr %s157, 5
        %s159 = smul.addr %s158, 4
        %s160 = scalar_lea.vmem %s0, %s159
      $region32: #{encoder_identity_forward.6} parent=27 // pred_fallthru
        _
    $region28: #{encoder_identity_forward.6} parent=5 // pred_fallthru
      _
    %p161 = scmp.le.s32.totalorder 1, %s10
    %p162 = scmp.lt.s32.totalorder %s10, 3
    %p163 = pnand %p161, %p162
    %p164 = pneg %p163
    // Predicated region
    $region33: #{encoder_identity_forward.6} parent=5 // pred_check
      _
    $region34: #{encoder_identity_forward.6} parent=5 // pred_check_branch
      %166 = sbr.rel (%p163) target = $region36
    $region35: #{encoder_identity_forward.6} parent=5 // pred_region
      %s167 = ssub.s32 %s10, 1
      %p168 = scmp.lt.s32.totalorder %s15, 1
      %s169 = scalar_select %p168, %s15, 1
      %s170 = smul.addr %s169, 5
      %s171 = smul.addr %s170, 4
      %s172 = scalar_lea.vmem %s0, %s171
      %p173 = pneg %p36
      %p174 = pneg %p33
      %p175 = pneg %p57
      %p176 = pneg %p54
      %p177 = pneg %p78
      %p178 = pneg %p75
      %p179 = pneg %p99
      %p180 = pneg %p96
      %p181 = pneg %p125
      %p182 = pneg %p122
      %p183 = scmp.lt.s32.totalorder %s15, 1
      %s184 = scalar_select %p183, %s15, 1
      %s185 = smul.addr %s184, 5
      %s186 = smul.addr %s185, 4
      %s187 = scalar_lea.vmem %s4, %s186
      %p188 = scmp.lt.s32.totalorder %s15, 1
      %s189 = scalar_select %p188, %s15, 1
      %s190 = smul.addr %s189, 5
      %s191 = smul.addr %s190, 4
      %s192 = scalar_lea.vmem %s0, %s191
      %p193 = scmp.lt.s32.totalorder %s15, 1
      %s194 = scalar_select %p193, %s15, 1
      %s195 = smul.addr %s194, 5
      %s196 = smul.addr %s195, 4
      %s197 = scalar_lea.vmem %s4, %s196
      %v199 = vld [vmem:[%s1] sm:$0xff]
      %v200 = vld [vmem:[%s1 + $0x8] sm:$0xff]
      %v201 = vld [vmem:[%s1 + $0x10] sm:$0x3f]
      %v202 = vld [vmem:[%s192] sm:$0xf]
      %v203 = vld [vmem:[%s192 + $0x4] sm:$0xf]
      %v204 = vld [vmem:[%s192 + $0x8] sm:$0xf]
      %v205 = vld [vmem:[%s192 + $0xc] sm:$0xf]
      %v206 = vld [vmem:[%s192 + $0x10] sm:$0x3]
      %v207 = vunpack.c.l.bf16 %v202
      %v208 = vunpack.c.l.bf16 %v203
      %v209 = vunpack.c.l.bf16 %v204
      %v210 = vunpack.c.l.bf16 %v205
      %v211 = vunpack.c.l.bf16 %v206
      %v212 = vmax.f32 %v207, 0.0
      %v213 = vmax.f32 %v208, 0.0
      %v214 = vmax.f32 %v209, 0.0
      %v215 = vmax.f32 %v210, 0.0
      %v216 = vmax.f32 %v211, 0.0
      %v217 = vpack.c.bf16 %v212, %v212
      %v218 = vpack.c.bf16 %v213, %v213
      %v219 = vpack.c.bf16 %v214, %v214
      %v220 = vpack.c.bf16 %v215, %v215
      %v221 = vpack.c.bf16 %v216, %v216
      %v222 = vld [vmem:[%s2] sm:$0xf]
      %v223 = vld [vmem:[%s2 + $0x4] sm:$0xf]
      %v224 = vld [vmem:[%s2 + $0x8] sm:$0xf]
      %v225 = vld [vmem:[%s2 + $0xc] sm:$0xf]
      %s226 = scalar_lea.vmem %s2, 16
      %v227 = vld [vmem:[%s226] sm:$0xf]
      %v228 = vld [vmem:[%s226 + $0x4] sm:$0xf]
      %v229 = vld [vmem:[%s226 + $0x8] sm:$0xf]
      %v230 = vld [vmem:[%s226 + $0xc] sm:$0xf]
      %v234 = vunpack.c.l.b16 %v217
      %v235 = vunpack.c.l.b16 %v218
      %v236 = vunpack.c.l.b16 %v219
      %v237 = vpack.c.b16 %v235, %v234
      %v238 = vpack.c.b16 %v236, %v236
      %vm239 = vsmask.f32 7424
      %v241 = vshrl.u32 %v237, 16
      %v243 = vshll.u32 %v237, 16
      %v245 = vrot.slane %v243, 1
      %v246 = vor.u32 %v241, %v245
      %v248 = vshll.u32 %v238, 16
      %v250 = vrot.slane %v248, 1
      %v251 = vsel %vm239, %v246, %v250
      %v252 = vshrl.u32 %v238, 16
      %v254 = vor.u32 %v252, %v250
      %v259 = vunpack.c.l.b16 %v227
      %v260 = vunpack.c.l.b16 %v228
      %v261 = vunpack.c.l.b16 %v229
      %v262 = vunpack.c.l.b16 %v230
      %v263 = vpack.c.b16 %v260, %v259
      %v264 = vpack.c.b16 %v262, %v261
      %vm267 = vcmask 261120
      %v269 = vsel %vm267, %v251, 0
      %v272 = vsel %vm267, %v254, 0
      %274 = vmatpush.bf16.msra.mxu0 0
      %275 = vmatpush.bf16.msra.mxu0 0
      %276 = vmatpush.bf16.msra.mxu0 0
      %277 = vmatpush.bf16.msra.mxu0 0
      %278 = vmatpush.bf16.msra.mxu0 0
      %279 = vmatpush.bf16.msra.mxu0 0
      %280 = vmatpush.bf16.msra.mxu0 %v264
      %281 = vmatpush.bf16.msra.mxu0 %v263
      %282 = vmatmul.bf16.gmra.mxu0 %v269
      %v283 = vpop.f32.mrf.mxu0
      %v284 = vadd.f32 0.0, %v283
      %v285 = vpop.f32.mrf.mxu0
      %v286 = vadd.f32 0.0, %v285
      %287 = vmatmul.bf16.gmra.mxu0 %v272
      %v288 = vpop.f32.mrf.mxu0
      %v289 = vadd.f32 0.0, %v288
      %v290 = vpop.f32.mrf.mxu0
      %291 = vdwg.mxu0
      %v296 = vunpack.c.l.b16 %v222
      %v297 = vunpack.c.l.b16 %v223
      %v298 = vunpack.c.l.b16 %v224
      %v299 = vunpack.c.l.b16 %v225
      %v300 = vpack.c.b16 %v297, %v296
      %v301 = vpack.c.b16 %v299, %v298
      %v304 = vsel %vm267, %v237, 0
      %v306 = vsel %vm267, %v238, 0
      %308 = vmatpush.bf16.msra.mxu0 0
      %309 = vmatpush.bf16.msra.mxu0 0
      %310 = vmatpush.bf16.msra.mxu0 0
      %311 = vmatpush.bf16.msra.mxu0 0
      %312 = vmatpush.bf16.msra.mxu0 0
      %313 = vmatpush.bf16.msra.mxu0 0
      %314 = vmatpush.bf16.msra.mxu0 %v301
      %315 = vmatpush.bf16.msra.mxu0 %v300
      %316 = vmatmul.bf16.gmra.mxu0 %v304
      %v317 = vpop.f32.mrf.mxu0
      %v318 = vadd.f32 %v284, %v317
      %v319 = vpop.f32.mrf.mxu0
      %v320 = vadd.f32 %v286, %v319
      %321 = vmatmul.bf16.gmra.mxu0 %v306
      %v322 = vpop.f32.mrf.mxu0
      %v323 = vadd.f32 %v289, %v322
      %v324 = vpop.f32.mrf.mxu0
      %325 = vdwg.mxu0
      %s326 = scalar_lea.vmem %s2, 32
      %v327 = vld [vmem:[%s326] sm:$0xf]
      %v328 = vld [vmem:[%s326 + $0x4] sm:$0xf]
      %v329 = vld [vmem:[%s326 + $0x8] sm:$0xf]
      %v330 = vld [vmem:[%s326 + $0xc] sm:$0xf]
      %vm331 = vcmask 1046528
      %v332 = vrot.slane %v237, 1
      %v333 = vrot.slane %v238, 1
      %v334 = vsel %vm331, %v332, %v333
      %v339 = vunpack.c.l.b16 %v327
      %v340 = vunpack.c.l.b16 %v328
      %v341 = vunpack.c.l.b16 %v329
      %v342 = vunpack.c.l.b16 %v330
      %v343 = vpack.c.b16 %v340, %v339
      %v344 = vpack.c.b16 %v342, %v341
      %v348 = vsel %vm267, %v334, 0
      %v351 = vsel %vm267, %v333, 0
      %353 = vmatpush.bf16.msra.mxu0 0
      %354 = vmatpush.bf16.msra.mxu0 0
      %355 = vmatpush.bf16.msra.mxu0 0
      %356 = vmatpush.bf16.msra.mxu0 0
      %357 = vmatpush.bf16.msra.mxu0 0
      %358 = vmatpush.bf16.msra.mxu0 0
      %359 = vmatpush.bf16.msra.mxu0 %v344
      %360 = vmatpush.bf16.msra.mxu0 %v343
      %361 = vmatmul.bf16.gmra.mxu0 %v348
      %v362 = vpop.f32.mrf.mxu0
      %v363 = vadd.f32 0.0, %v362
      %v364 = vpop.f32.mrf.mxu0
      %v365 = vadd.f32 0.0, %v364
      %366 = vmatmul.bf16.gmra.mxu0 %v351
      %v367 = vpop.f32.mrf.mxu0
      %v368 = vadd.f32 0.0, %v367
      %v369 = vpop.f32.mrf.mxu0
      %370 = vdwg.mxu0
      %v371 = vadd.f32 %v318, %v363
      %v372 = vadd.f32 %v320, %v365
      %v373 = vadd.f32 %v323, %v368
      %s374 = scalar_lea.vmem %s2, 48
      %v375 = vld [vmem:[%s374] sm:$0xf]
      %v376 = vld [vmem:[%s374 + $0x4] sm:$0xf]
      %v377 = vld [vmem:[%s374 + $0x8] sm:$0xf]
      %v378 = vld [vmem:[%s374 + $0xc] sm:$0xf]
      %v380 = vunpack.c.l.b16 %v220
      %v381 = vpack.c.b16 %v380, %v236
      %vm382 = vcmask 1044480
      %v383 = vrot.slane %v237, 3
      %v384 = vrot.slane %v381, 3
      %v385 = vsel %vm382, %v383, %v384
      %v390 = vunpack.c.l.b16 %v375
      %v391 = vunpack.c.l.b16 %v376
      %v392 = vunpack.c.l.b16 %v377
      %v393 = vunpack.c.l.b16 %v378
      %v394 = vpack.c.b16 %v391, %v390
      %v395 = vpack.c.b16 %v393, %v392
      %v399 = vsel %vm267, %v385, 0
      %v402 = vsel %vm267, %v384, 0
      %404 = vmatpush.bf16.msra.mxu0 0
      %405 = vmatpush.bf16.msra.mxu0 0
      %406 = vmatpush.bf16.msra.mxu0 0
      %407 = vmatpush.bf16.msra.mxu0 0
      %408 = vmatpush.bf16.msra.mxu0 0
      %409 = vmatpush.bf16.msra.mxu0 0
      %410 = vmatpush.bf16.msra.mxu0 %v395
      %411 = vmatpush.bf16.msra.mxu0 %v394
      %412 = vmatmul.bf16.gmra.mxu0 %v399
      %v413 = vpop.f32.mrf.mxu0
      %v414 = vadd.f32 0.0, %v413
      %v415 = vpop.f32.mrf.mxu0
      %v416 = vadd.f32 0.0, %v415
      %417 = vmatmul.bf16.gmra.mxu0 %v402
      %v418 = vpop.f32.mrf.mxu0
      %v419 = vadd.f32 0.0, %v418
      %v420 = vpop.f32.mrf.mxu0
      %421 = vdwg.mxu0
      %v422 = vadd.f32 %v371, %v414
      %v423 = vadd.f32 %v372, %v416
      %v424 = vadd.f32 %v373, %v419
      %s425 = scalar_lea.vmem %s2, 64
      %v426 = vld [vmem:[%s425] sm:$0xf]
      %v427 = vld [vmem:[%s425 + $0x4] sm:$0xf]
      %v428 = vld [vmem:[%s425 + $0x8] sm:$0xf]
      %v429 = vld [vmem:[%s425 + $0xc] sm:$0xf]
      %vm430 = vsmask.f32 4352
      %v431 = vrot.slane %v241, 3
      %v432 = vrot.slane %v243, 4
      %v433 = vor.u32 %v431, %v432
      %v435 = vshrl.u32 %v381, 16
      %v437 = vrot.slane %v435, 3
      %v438 = vshll.u32 %v381, 16
      %v440 = vrot.slane %v438, 4
      %v441 = vor.u32 %v437, %v440
      %v442 = vsel %vm430, %v433, %v441
      %v447 = vunpack.c.l.b16 %v426
      %v448 = vunpack.c.l.b16 %v427
      %v449 = vunpack.c.l.b16 %v428
      %v450 = vunpack.c.l.b16 %v429
      %v451 = vpack.c.b16 %v448, %v447
      %v452 = vpack.c.b16 %v450, %v449
      %v456 = vsel %vm267, %v442, 0
      %v459 = vsel %vm267, %v441, 0
      %461 = vmatpush.bf16.msra.mxu0 0
      %462 = vmatpush.bf16.msra.mxu0 0
      %463 = vmatpush.bf16.msra.mxu0 0
      %464 = vmatpush.bf16.msra.mxu0 0
      %465 = vmatpush.bf16.msra.mxu0 0
      %466 = vmatpush.bf16.msra.mxu0 0
      %467 = vmatpush.bf16.msra.mxu0 %v452
      %468 = vmatpush.bf16.msra.mxu0 %v451
      %469 = vmatmul.bf16.gmra.mxu0 %v456
      %v470 = vpop.f32.mrf.mxu0
      %v471 = vadd.f32 0.0, %v470
      %v472 = vpop.f32.mrf.mxu0
      %v473 = vadd.f32 0.0, %v472
      %474 = vmatmul.bf16.gmra.mxu0 %v459
      %v475 = vpop.f32.mrf.mxu0
      %v476 = vadd.f32 0.0, %v475
      %v477 = vpop.f32.mrf.mxu0
      %478 = vdwg.mxu0
      %v479 = vadd.f32 %v422, %v471
      %v480 = vadd.f32 %v423, %v473
      %v481 = vadd.f32 %v424, %v476
      %s482 = scalar_lea.vmem %s2, 80
      %v483 = vld [vmem:[%s482] sm:$0xf]
      %v484 = vld [vmem:[%s482 + $0x4] sm:$0xf]
      %v485 = vld [vmem:[%s482 + $0x8] sm:$0xf]
      %v486 = vld [vmem:[%s482 + $0xc] sm:$0xf]
      %v487 = vpack.c.b16 %v236, %v235
      %v488 = vpack.c.b16 %v380, %v380
      %v493 = vunpack.c.l.b16 %v483
      %v494 = vunpack.c.l.b16 %v484
      %v495 = vunpack.c.l.b16 %v485
      %v496 = vunpack.c.l.b16 %v486
      %v497 = vpack.c.b16 %v494, %v493
      %v498 = vpack.c.b16 %v496, %v495
      %v502 = vsel %vm267, %v487, 0
      %v505 = vsel %vm267, %v488, 0
      %507 = vmatpush.bf16.msra.mxu0 0
      %508 = vmatpush.bf16.msra.mxu0 0
      %509 = vmatpush.bf16.msra.mxu0 0
      %510 = vmatpush.bf16.msra.mxu0 0
      %511 = vmatpush.bf16.msra.mxu0 0
      %512 = vmatpush.bf16.msra.mxu0 0
      %513 = vmatpush.bf16.msra.mxu0 %v498
      %514 = vmatpush.bf16.msra.mxu0 %v497
      %515 = vmatmul.bf16.gmra.mxu0 %v502
      %v516 = vpop.f32.mrf.mxu0
      %v517 = vadd.f32 0.0, %v516
      %v518 = vpop.f32.mrf.mxu0
      %v519 = vadd.f32 0.0, %v518
      %520 = vmatmul.bf16.gmra.mxu0 %v505
      %v521 = vpop.f32.mrf.mxu0
      %v522 = vadd.f32 0.0, %v521
      %v523 = vpop.f32.mrf.mxu0
      %524 = vdwg.mxu0
      %v525 = vadd.f32 %v479, %v517
      %v526 = vadd.f32 %v480, %v519
      %v527 = vadd.f32 %v481, %v522
      %s528 = scalar_lea.vmem %s2, 96
      %v529 = vld [vmem:[%s528] sm:$0xf]
      %v530 = vld [vmem:[%s528 + $0x4] sm:$0xf]
      %v531 = vld [vmem:[%s528 + $0x8] sm:$0xf]
      %v532 = vld [vmem:[%s528 + $0xc] sm:$0xf]
      %v534 = vunpack.c.l.b16 %v221
      %v535 = vpack.c.b16 %v534, %v380
      %vm536 = vcmask 1045504
      %v537 = vrot.slane %v487, 2
      %v538 = vrot.slane %v535, 2
      %v539 = vsel %vm536, %v537, %v538
      %v544 = vunpack.c.l.b16 %v529
      %v545 = vunpack.c.l.b16 %v530
      %v546 = vunpack.c.l.b16 %v531
      %v547 = vunpack.c.l.b16 %v532
      %v548 = vpack.c.b16 %v545, %v544
      %v549 = vpack.c.b16 %v547, %v546
      %v553 = vsel %vm267, %v539, 0
      %v556 = vsel %vm267, %v538, 0
      %558 = vmatpush.bf16.msra.mxu0 0
      %559 = vmatpush.bf16.msra.mxu0 0
      %560 = vmatpush.bf16.msra.mxu0 0
      %561 = vmatpush.bf16.msra.mxu0 0
      %562 = vmatpush.bf16.msra.mxu0 0
      %563 = vmatpush.bf16.msra.mxu0 0
      %564 = vmatpush.bf16.msra.mxu0 %v549
      %565 = vmatpush.bf16.msra.mxu0 %v548
      %566 = vmatmul.bf16.gmra.mxu0 %v553
      %v567 = vpop.f32.mrf.mxu0
      %v568 = vadd.f32 0.0, %v567
      %v569 = vpop.f32.mrf.mxu0
      %v570 = vadd.f32 0.0, %v569
      %571 = vmatmul.bf16.gmra.mxu0 %v556
      %v572 = vpop.f32.mrf.mxu0
      %v573 = vadd.f32 0.0, %v572
      %v574 = vpop.f32.mrf.mxu0
      %575 = vdwg.mxu0
      %v576 = vadd.f32 %v525, %v568
      %v577 = vadd.f32 %v526, %v570
      %v578 = vadd.f32 %v527, %v573
      %s579 = scalar_lea.vmem %s2, 112
      %v580 = vld [vmem:[%s579] sm:$0xf]
      %v581 = vld [vmem:[%s579 + $0x4] sm:$0xf]
      %v582 = vld [vmem:[%s579 + $0x8] sm:$0xf]
      %v583 = vld [vmem:[%s579 + $0xc] sm:$0xf]
      %vm584 = vsmask.f32 5376
      %v585 = vshrl.u32 %v487, 16
      %v587 = vrot.slane %v585, 2
      %v588 = vshll.u32 %v487, 16
      %v590 = vrot.slane %v588, 3
      %v591 = vor.u32 %v587, %v590
      %v593 = vshrl.u32 %v535, 16
      %v595 = vrot.slane %v593, 2
      %v596 = vshll.u32 %v535, 16
      %v598 = vrot.slane %v596, 3
      %v599 = vor.u32 %v595, %v598
      %v600 = vsel %vm584, %v591, %v599
      %v605 = vunpack.c.l.b16 %v580
      %v606 = vunpack.c.l.b16 %v581
      %v607 = vunpack.c.l.b16 %v582
      %v608 = vunpack.c.l.b16 %v583
      %v609 = vpack.c.b16 %v606, %v605
      %v610 = vpack.c.b16 %v608, %v607
      %v614 = vsel %vm267, %v600, 0
      %v617 = vsel %vm267, %v599, 0
      %619 = vmatpush.bf16.msra.mxu0 0
      %620 = vmatpush.bf16.msra.mxu0 0
      %621 = vmatpush.bf16.msra.mxu0 0
      %622 = vmatpush.bf16.msra.mxu0 0
      %623 = vmatpush.bf16.msra.mxu0 0
      %624 = vmatpush.bf16.msra.mxu0 0
      %625 = vmatpush.bf16.msra.mxu0 %v610
      %626 = vmatpush.bf16.msra.mxu0 %v609
      %627 = vmatmul.bf16.gmra.mxu0 %v614
      %v628 = vpop.f32.mrf.mxu0
      %v629 = vadd.f32 0.0, %v628
      %v630 = vpop.f32.mrf.mxu0
      %v631 = vadd.f32 0.0, %v630
      %632 = vmatmul.bf16.gmra.mxu0 %v617
      %v633 = vpop.f32.mrf.mxu0
      %v634 = vadd.f32 0.0, %v633
      %v635 = vpop.f32.mrf.mxu0
      %636 = vdwg.mxu0
      %v637 = vadd.f32 %v576, %v629
      %v638 = vadd.f32 %v577, %v631
      %v639 = vadd.f32 %v578, %v634
      %s640 = scalar_lea.vmem %s2, 128
      %v641 = vld [vmem:[%s640] sm:$0xf]
      %v642 = vld [vmem:[%s640 + $0x4] sm:$0xf]
      %v643 = vld [vmem:[%s640 + $0x8] sm:$0xf]
      %v644 = vld [vmem:[%s640 + $0xc] sm:$0xf]
      %v645 = vrot.slane %v487, 3
      %v646 = vrot.slane %v535, 3
      %v647 = vsel %vm382, %v645, %v646
      %v652 = vunpack.c.l.b16 %v641
      %v653 = vunpack.c.l.b16 %v642
      %v654 = vunpack.c.l.b16 %v643
      %v655 = vunpack.c.l.b16 %v644
      %v656 = vpack.c.b16 %v653, %v652
      %v657 = vpack.c.b16 %v655, %v654
      %v661 = vsel %vm267, %v647, 0
      %v664 = vsel %vm267, %v646, 0
      %666 = vmatpush.bf16.msra.mxu0 0
      %667 = vmatpush.bf16.msra.mxu0 0
      %668 = vmatpush.bf16.msra.mxu0 0
      %669 = vmatpush.bf16.msra.mxu0 0
      %670 = vmatpush.bf16.msra.mxu0 0
      %671 = vmatpush.bf16.msra.mxu0 0
      %672 = vmatpush.bf16.msra.mxu0 %v657
      %673 = vmatpush.bf16.msra.mxu0 %v656
      %674 = vmatmul.bf16.gmra.mxu0 %v661
      %v675 = vpop.f32.mrf.mxu0
      %v676 = vadd.f32 0.0, %v675
      %v677 = vpop.f32.mrf.mxu0
      %v678 = vadd.f32 0.0, %v677
      %679 = vmatmul.bf16.gmra.mxu0 %v664
      %v680 = vpop.f32.mrf.mxu0
      %v681 = vadd.f32 0.0, %v680
      %v682 = vpop.f32.mrf.mxu0
      %683 = vdwg.mxu0
      %v684 = vadd.f32 %v637, %v676
      %v685 = vadd.f32 %v638, %v678
      %v686 = vadd.f32 %v639, %v681
      %v687 = vmax.f32 %v684, 0.0
      %v688 = vmax.f32 %v685, 0.0
      %v689 = vmax.f32 %v686, 0.0
      %v690 = vpack.c.bf16 %v688, %v687
      %v691 = vpack.c.bf16 %v689, %v689
      %v692 = vld [vmem:[%s3] sm:$0xf]
      %v693 = vld [vmem:[%s3 + $0x4] sm:$0xf]
      %v696 = vunpack.c.l.b16 %v692
      %v697 = vunpack.c.l.b16 %v693
      %v698 = vpack.c.b16 %v697, %v696
      %vm700 = vcmask 130048
      %v702 = vsel %vm700, %v690, 0
      %v705 = vsel %vm700, %v691, 0
      %707 = vmatpush.bf16.msra.mxu0 0
      %708 = vmatpush.bf16.msra.mxu0 0
      %709 = vmatpush.bf16.msra.mxu0 0
      %710 = vmatpush.bf16.msra.mxu0 0
      %711 = vmatpush.bf16.msra.mxu0 0
      %712 = vmatpush.bf16.msra.mxu0 0
      %713 = vmatpush.bf16.msra.mxu0 0
      %714 = vmatpush.bf16.msra.mxu0 %v698
      %715 = vmatmul.bf16.gmra.mxu0 %v702
      %v716 = vpop.f32.mrf.mxu0
      %v717 = vadd.f32 0.0, %v716
      %v718 = vpop.f32.mrf.mxu0
      %v719 = vadd.f32 0.0, %v718
      %720 = vmatmul.bf16.gmra.mxu0 %v705
      %v721 = vpop.f32.mrf.mxu0
      %v722 = vadd.f32 0.0, %v721
      %v723 = vpop.f32.mrf.mxu0
      %724 = vdwg.mxu0
      %726 = vset.pattern.permute.xlu0 0
      %727 = vperm.xlu0 %726, %v199
      %v728 = vpop.permute.xlu0 %727
      %731 = vset.pattern.permute.xlu0 0
      %732 = vperm.xlu0 %731, %v200
      %v733 = vpop.permute.xlu0 %732
      %736 = vset.pattern.permute.xlu0 0
      %737 = vperm.xlu0 %736, %v201
      %v738 = vpop.permute.xlu0 %737
      %v740 = vmul.f32 %v717, %v728
      %v741 = vmul.f32 %v719, %v733
      %v742 = vmul.f32 %v722, %v738
      %vm746 = vcmask 1046528
      %v747 = vrot.slane %v740, 1
      %v748 = vrot.slane %v741, 1
      %v749 = vsel %vm746, %v747, %v748
      %v750 = vrot.slane %v742, 1
      %v751 = vsel %vm746, %v748, %v750
      %v756 = vadd.f32 %v207, %v747
      %v757 = vadd.f32 %v208, %v749
      %v758 = vadd.f32 %v209, %v751
      %v759 = vadd.f32 %v210, %v750
      %vm760 = vcmask 257024
      %761 = vst.msk [vmem:[%s197] sm:$0xf] %vm760, 0
      %762 = vst.msk [vmem:[%s197 + $0x4] sm:$0xf] %vm760, 0
      %763 = vst.msk [vmem:[%s197 + $0x8] sm:$0xf] %vm760, 0
      %764 = vst.msk [vmem:[%s197 + $0xc] sm:$0xf] %vm760, 0
      %vm765 = vcmask 254976
      %766 = vst.msk [vmem:[%s197 + $0x10] sm:$0x3] %vm765, 0
      %v767 = vpack.c.bf16 %v756, %v756
      %v768 = vpack.c.bf16 %v757, %v757
      %v769 = vpack.c.bf16 %v758, %v758
      %v770 = vpack.c.bf16 %v759, %v759
      %vm771 = vcmask 257027
      %vm772 = vsmask.f32 7950
      %vm773 = vmand %vm771, %vm772
      %v774 = vld [vmem:[%s197] sm:$0x8]
      %v775 = vsel %vm773, %v767, %v774
      %776 = vst [vmem:[%s197] sm:$0x8] %v775
      %777 = vst.msk [vmem:[%s197 + $0x4] sm:$0xf] %vm760, %v768
      %778 = vst.msk [vmem:[%s197 + $0x8] sm:$0xf] %vm760, %v769
      %vm779 = vcmask 256000
      %vm780 = vsmask.f32 2304
      %vm781 = vmand %vm779, %vm780
      %v782 = vld [vmem:[%s197 + $0xc] sm:$0x7]
      %v783 = vsel %vm781, %v770, %v782
      %784 = vst [vmem:[%s197 + $0xc] sm:$0x7] %v783
      %p785 = scmp.lt.s32.totalorder %s15, 1
      %s786 = scalar_select %p785, %s15, 1
      %s787 = smul.addr %s786, 5
      %s788 = smul.addr %s787, 4
      %s789 = scalar_lea.vmem %s4, %s788
      // Predicated region
      $region37: #{encoder_identity_forward.6} parent=35 // pred_check
        %p790 = pneg %p122
      $region38: #{encoder_identity_forward.6} parent=35 // pred_check_branch
        %792 = sbr.rel (%p790) target = $region40
      $region39: #{encoder_identity_forward.6} parent=35 // pred_region
        _
      $region40: #{encoder_identity_forward.6} parent=35 // pred_fallthru
        _
    $region36: #{encoder_identity_forward.6} parent=5 // pred_fallthru
      _
    %p793 = scmp.le.s32.totalorder 2, %s10
    // Predicated region
    $region41: #{encoder_identity_forward.6} parent=5 // pred_check
      %p794 = pneg %p793
    $region42: #{encoder_identity_forward.6} parent=5 // pred_check_branch
      %796 = sbr.rel (%p794) target = $region44
    $region43: #{encoder_identity_forward.6} parent=5 // pred_region
      %s797 = ssub.s32 %s10, 2
      // Predicated region
      $region45: #{encoder_identity_forward.6} parent=43 // pred_check
        %p798 = pneg %p128
      $region46: #{encoder_identity_forward.6} parent=43 // pred_check_branch
        %800 = sbr.rel (%p798) target = $region48
      $region47: #{encoder_identity_forward.6} parent=43 // pred_region
        %p801 = scmp.lt.s32.totalorder %s16, 1
        %s802 = scalar_select %p801, %s16, 1
        %s803 = smul.addr %s802, 5
        %s804 = smul.addr %s803, 4
        %s805 = scalar_lea.vmem %s4, %s804
      $region48: #{encoder_identity_forward.6} parent=43 // pred_fallthru
        _
    $region44: #{encoder_identity_forward.6} parent=5 // pred_fallthru
      _
  $region6: #{encoder_identity_forward.6} parent=0 // loop_footer
    %s14 = sadd.s32 1, %s10
  $region7: #{encoder_identity_forward.6} parent=0 // loop_footer_branch
    %9 = sbr.rel target = $region3
  $region8: #{encoder_identity_forward.6} parent=0 // loop_exit
    _

// kernel: encoder_identity_forward.7
$region0: #{encoder_identity_forward.7}
  #allocation0 [shape = 'u32[]', space=smem, size = 0x4, offset = 0x4, fixed_abs, tag = 'smem constant byte address 0x4 - core index']
  #allocation1 [shape = 'u32[72,128]{1,0:T(1,128)}', space=vmem, size = 0x9000, scoped, tag = 'internal scratch']
  %s0 = inlined_call_operand.vmem [shape: bf16[2,36,32], index: 0, kind: input, shape index: {}, may-alias: {0,4}]
  %s1 = inlined_call_operand.vmem [shape: f32[22,1], index: 1, kind: input, shape index: {}]
  %s2 = inlined_call_operand.vmem [shape: bf16[9,32,16], index: 2, kind: input, shape index: {}]
  %s3 = inlined_call_operand.vmem [shape: bf16[16,32], index: 3, kind: input, shape index: {}]
  %s4 = inlined_call_operand.vmem [shape: bf16[2,36,32], index: 4, kind: output, shape index: {}, may-alias: {0,4}]
  %s5 = sld [smem:[#allocation0]]
  $region49: #{encoder_identity_forward.7} parent=0
    _
  %s7 = ssub.s32 1, %s5
  %s8 = scalar_select 0, %s7, %s5
  loop: start=0, step=1, limit=4
  $region2: #{encoder_identity_forward.7} parent=0 // loop_pre_header
    _
  $region3: #{encoder_identity_forward.7} parent=0 // loop_header
    %s10 = sphi 0, %s14
    %p11 = scmp.ge.s32.totalorder %s10, 4
    %s20 = sphi 0, %s22
    %s23 = sphi 0, %s20
    %s24 = sphi 0, %s23
    %s40 = sphi 0, %s24
    %s44 = sphi 0, %s44
    %s46 = sphi 0, %s44
    %s47 = sphi 0, %s46
    %s61 = sphi 0, %s47
    %s65 = sphi 0, %s65
    %s67 = sphi 0, %s65
    %s68 = sphi 0, %s67
    %s82 = sphi 0, %s68
    %s86 = sphi 0, %s86
    %s88 = sphi 0, %s86
    %s89 = sphi 0, %s88
    %s103 = sphi 0, %s89
    %s109 = sphi 0, %s111
    %s112 = sphi 0, %s109
    %s113 = sphi 0, %s112
    %s129 = sphi 0, %s113
  $region4: #{encoder_identity_forward.7} parent=0 // loop_header_branch
    %13 = sbr.rel (%p11) target = $region8
  $region5: #{encoder_identity_forward.7} parent=0 // loop_body
    %s15 = ssub.s32 %s10, 1
    %s16 = ssub.s32 %s10, 2
    %s17 = sadd.s32 %s10, 1
    %s18 = ssub.s32 %s10, %s17
    %p19 = scmp.eq.s32.totalorder %s18, 0
    %s21 = sadd.s32 %s20, 1
    %s22 = scalar_select %p19, %s20, %s21
    %p25 = pneg %p19
    %p26 = scmp.eq.s32.totalorder %s10, 1
    %p27 = por %p25, %p26
    %p28 = scmp.ne.s32.totalorder %s20, %s23
    %p29 = scmp.eq.s32.totalorder %s10, 0
    %p30 = por %p28, %p29
    %p31 = scmp.ne.s32.totalorder %s20, %s23
    %p32 = scmp.eq.s32.totalorder %s15, 1
    %p33 = por %p31, %p32
    %p34 = scmp.ne.s32.totalorder %s23, %s24
    %p35 = scmp.eq.s32.totalorder %s15, 0
    %p36 = por %p34, %p35
    %p37 = scmp.ne.s32.totalorder %s23, %s24
    %p38 = scmp.eq.s32.totalorder %s16, 1
    %p39 = por %p37, %p38
    %p41 = scmp.ne.s32.totalorder %s24, %s40
    %p42 = scmp.eq.s32.totalorder %s16, 0
    %p43 = por %p41, %p42
    %s45 = sadd.s32 %s44, 1
    %p48 = scmp.eq.s32.totalorder %s10, 1
    %p49 = scmp.ne.s32.totalorder %s44, %s46
    %p50 = scmp.eq.s32.totalorder %s10, 0
    %p51 = por %p49, %p50
    %p52 = scmp.ne.s32.totalorder %s44, %s46
    %p53 = scmp.eq.s32.totalorder %s15, 1
    %p54 = por %p52, %p53
    %p55 = scmp.ne.s32.totalorder %s46, %s47
    %p56 = scmp.eq.s32.totalorder %s15, 0
    %p57 = por %p55, %p56
    %p58 = scmp.ne.s32.totalorder %s46, %s47
    %p59 = scmp.eq.s32.totalorder %s16, 1
    %p60 = por %p58, %p59
    %p62 = scmp.ne.s32.totalorder %s47, %s61
    %p63 = scmp.eq.s32.totalorder %s16, 0
    %p64 = por %p62, %p63
    %s66 = sadd.s32 %s65, 1
    %p69 = scmp.eq.s32.totalorder %s10, 1
    %p70 = scmp.ne.s32.totalorder %s65, %s67
    %p71 = scmp.eq.s32.totalorder %s10, 0
    %p72 = por %p70, %p71
    %p73 = scmp.ne.s32.totalorder %s65, %s67
    %p74 = scmp.eq.s32.totalorder %s15, 1
    %p75 = por %p73, %p74
    %p76 = scmp.ne.s32.totalorder %s67, %s68
    %p77 = scmp.eq.s32.totalorder %s15, 0
    %p78 = por %p76, %p77
    %p79 = scmp.ne.s32.totalorder %s67, %s68
    %p80 = scmp.eq.s32.totalorder %s16, 1
    %p81 = por %p79, %p80
    %p83 = scmp.ne.s32.totalorder %s68, %s82
    %p84 = scmp.eq.s32.totalorder %s16, 0
    %p85 = por %p83, %p84
    %s87 = sadd.s32 %s86, 1
    %p90 = scmp.eq.s32.totalorder %s10, 1
    %p91 = scmp.ne.s32.totalorder %s86, %s88
    %p92 = scmp.eq.s32.totalorder %s10, 0
    %p93 = por %p91, %p92
    %p94 = scmp.ne.s32.totalorder %s86, %s88
    %p95 = scmp.eq.s32.totalorder %s15, 1
    %p96 = por %p94, %p95
    %p97 = scmp.ne.s32.totalorder %s88, %s89
    %p98 = scmp.eq.s32.totalorder %s15, 0
    %p99 = por %p97, %p98
    %p100 = scmp.ne.s32.totalorder %s88, %s89
    %p101 = scmp.eq.s32.totalorder %s16, 1
    %p102 = por %p100, %p101
    %p104 = scmp.ne.s32.totalorder %s89, %s103
    %p105 = scmp.eq.s32.totalorder %s16, 0
    %p106 = por %p104, %p105
    %s107 = ssub.s32 %s10, %s17
    %p108 = scmp.eq.s32.totalorder %s107, 0
    %s110 = sadd.s32 %s109, 1
    %s111 = scalar_select %p108, %s109, %s110
    %p114 = pneg %p108
    %p115 = scmp.eq.s32.totalorder %s10, 1
    %p116 = por %p114, %p115
    %p117 = scmp.ne.s32.totalorder %s109, %s112
    %p118 = scmp.eq.s32.totalorder %s10, 0
    %p119 = por %p117, %p118
    %p120 = scmp.ne.s32.totalorder %s109, %s112
    %p121 = scmp.eq.s32.totalorder %s15, 1
    %p122 = por %p120, %p121
    %p123 = scmp.ne.s32.totalorder %s112, %s113
    %p124 = scmp.eq.s32.totalorder %s15, 0
    %p125 = por %p123, %p124
    %p126 = scmp.ne.s32.totalorder %s112, %s113
    %p127 = scmp.eq.s32.totalorder %s16, 1
    %p128 = por %p126, %p127
    %p130 = scmp.ne.s32.totalorder %s113, %s129
    %p131 = scmp.eq.s32.totalorder %s16, 0
    %p132 = por %p130, %p131
    %p133 = scmp.le.s32.totalorder 1, %s10
    %p134 = scmp.lt.s32.totalorder %s10, 3
    %p135 = pnand %p133, %p134
    %p136 = pneg %p135
    // Predicated region
    $region9: #{encoder_identity_forward.7} parent=5 // pred_check
      _
    $region10: #{encoder_identity_forward.7} parent=5 // pred_check_branch
      %138 = sbr.rel (%p135) target = $region12
    $region11: #{encoder_identity_forward.7} parent=5 // pred_region
      %s139 = ssub.s32 %s10, 1
      // Predicated region
      $region13: #{encoder_identity_forward.7} parent=11 // pred_check
        %p140 = pneg %p57
      $region14: #{encoder_identity_forward.7} parent=11 // pred_check_branch
        %142 = sbr.rel (%p140) target = $region16
      $region15: #{encoder_identity_forward.7} parent=11 // pred_region
        _
      $region16: #{encoder_identity_forward.7} parent=11 // pred_fallthru
        _
      // Predicated region
      $region17: #{encoder_identity_forward.7} parent=11 // pred_check
        %p143 = pneg %p78
      $region18: #{encoder_identity_forward.7} parent=11 // pred_check_branch
        %145 = sbr.rel (%p143) target = $region20
      $region19: #{encoder_identity_forward.7} parent=11 // pred_region
        _
      $region20: #{encoder_identity_forward.7} parent=11 // pred_fallthru
        _
      // Predicated region
      $region21: #{encoder_identity_forward.7} parent=11 // pred_check
        %p146 = pneg %p99
      $region22: #{encoder_identity_forward.7} parent=11 // pred_check_branch
        %148 = sbr.rel (%p146) target = $region24
      $region23: #{encoder_identity_forward.7} parent=11 // pred_region
        _
      $region24: #{encoder_identity_forward.7} parent=11 // pred_fallthru
        _
    $region12: #{encoder_identity_forward.7} parent=5 // pred_fallthru
      _
    %p149 = scmp.lt.s32.totalorder %s10, 2
    // Predicated region
    $region25: #{encoder_identity_forward.7} parent=5 // pred_check
      %p150 = pneg %p149
    $region26: #{encoder_identity_forward.7} parent=5 // pred_check_branch
      %152 = sbr.rel (%p150) target = $region28
    $region27: #{encoder_identity_forward.7} parent=5 // pred_region
      // Predicated region
      $region29: #{encoder_identity_forward.7} parent=27 // pred_check
        %p153 = pneg %p30
      $region30: #{encoder_identity_forward.7} parent=27 // pred_check_branch
        %155 = sbr.rel (%p153) target = $region32
      $region31: #{encoder_identity_forward.7} parent=27 // pred_region
        %p156 = scmp.lt.s32.totalorder %s10, 1
        %s157 = scalar_select %p156, %s10, 1
        %s158 = smul.addr %s157, 5
        %s159 = smul.addr %s158, 4
        %s160 = scalar_lea.vmem %s0, %s159
      $region32: #{encoder_identity_forward.7} parent=27 // pred_fallthru
        _
    $region28: #{encoder_identity_forward.7} parent=5 // pred_fallthru
      _
    %p161 = scmp.le.s32.totalorder 1, %s10
    %p162 = scmp.lt.s32.totalorder %s10, 3
    %p163 = pnand %p161, %p162
    %p164 = pneg %p163
    // Predicated region
    $region33: #{encoder_identity_forward.7} parent=5 // pred_check
      _
    $region34: #{encoder_identity_forward.7} parent=5 // pred_check_branch
      %166 = sbr.rel (%p163) target = $region36
    $region35: #{encoder_identity_forward.7} parent=5 // pred_region
      %s167 = ssub.s32 %s10, 1
      %p168 = scmp.lt.s32.totalorder %s15, 1
      %s169 = scalar_select %p168, %s15, 1
      %s170 = smul.addr %s169, 5
      %s171 = smul.addr %s170, 4
      %s172 = scalar_lea.vmem %s0, %s171
      %p173 = pneg %p36
      %p174 = pneg %p33
      %p175 = pneg %p57
      %p176 = pneg %p54
      %p177 = pneg %p78
      %p178 = pneg %p75
      %p179 = pneg %p99
      %p180 = pneg %p96
      %p181 = pneg %p125
      %p182 = pneg %p122
      %p183 = scmp.lt.s32.totalorder %s15, 1
      %s184 = scalar_select %p183, %s15, 1
      %s185 = smul.addr %s184, 5
      %s186 = smul.addr %s185, 4
      %s187 = scalar_lea.vmem %s4, %s186
      %p188 = scmp.lt.s32.totalorder %s15, 1
      %s189 = scalar_select %p188, %s15, 1
      %s190 = smul.addr %s189, 5
      %s191 = smul.addr %s190, 4
      %s192 = scalar_lea.vmem %s0, %s191
      %p193 = scmp.lt.s32.totalorder %s15, 1
      %s194 = scalar_select %p193, %s15, 1
      %s195 = smul.addr %s194, 5
      %s196 = smul.addr %s195, 4
      %s197 = scalar_lea.vmem %s4, %s196
      %v199 = vld [vmem:[%s1] sm:$0xff]
      %v200 = vld [vmem:[%s1 + $0x8] sm:$0xff]
      %v201 = vld [vmem:[%s1 + $0x10] sm:$0x3f]
      %v202 = vld [vmem:[%s192] sm:$0xf]
      %v203 = vld [vmem:[%s192 + $0x4] sm:$0xf]
      %v204 = vld [vmem:[%s192 + $0x8] sm:$0xf]
      %v205 = vld [vmem:[%s192 + $0xc] sm:$0xf]
      %v206 = vld [vmem:[%s192 + $0x10] sm:$0x3]
      %v207 = vunpack.c.l.bf16 %v202
      %v208 = vunpack.c.l.bf16 %v203
      %v209 = vunpack.c.l.bf16 %v204
      %v210 = vunpack.c.l.bf16 %v205
      %v211 = vunpack.c.l.bf16 %v206
      %v212 = vmax.f32 %v207, 0.0
      %v213 = vmax.f32 %v208, 0.0
      %v214 = vmax.f32 %v209, 0.0
      %v215 = vmax.f32 %v210, 0.0
      %v216 = vmax.f32 %v211, 0.0
      %v217 = vpack.c.bf16 %v212, %v212
      %v218 = vpack.c.bf16 %v213, %v213
      %v219 = vpack.c.bf16 %v214, %v214
      %v220 = vpack.c.bf16 %v215, %v215
      %v221 = vpack.c.bf16 %v216, %v216
      %v222 = vld [vmem:[%s2] sm:$0xf]
      %v223 = vld [vmem:[%s2 + $0x4] sm:$0xf]
      %v224 = vld [vmem:[%s2 + $0x8] sm:$0xf]
      %v225 = vld [vmem:[%s2 + $0xc] sm:$0xf]
      %s226 = scalar_lea.vmem %s2, 16
      %v227 = vld [vmem:[%s226] sm:$0xf]
      %v228 = vld [vmem:[%s226 + $0x4] sm:$0xf]
      %v229 = vld [vmem:[%s226 + $0x8] sm:$0xf]
      %v230 = vld [vmem:[%s226 + $0xc] sm:$0xf]
      %v234 = vunpack.c.l.b16 %v217
      %v235 = vunpack.c.l.b16 %v218
      %v236 = vunpack.c.l.b16 %v219
      %v237 = vpack.c.b16 %v235, %v234
      %v238 = vpack.c.b16 %v236, %v236
      %vm239 = vsmask.f32 7424
      %v241 = vshrl.u32 %v237, 16
      %v243 = vshll.u32 %v237, 16
      %v245 = vrot.slane %v243, 1
      %v246 = vor.u32 %v241, %v245
      %v248 = vshll.u32 %v238, 16
      %v250 = vrot.slane %v248, 1
      %v251 = vsel %vm239, %v246, %v250
      %v252 = vshrl.u32 %v238, 16
      %v254 = vor.u32 %v252, %v250
      %v259 = vunpack.c.l.b16 %v227
      %v260 = vunpack.c.l.b16 %v228
      %v261 = vunpack.c.l.b16 %v229
      %v262 = vunpack.c.l.b16 %v230
      %v263 = vpack.c.b16 %v260, %v259
      %v264 = vpack.c.b16 %v262, %v261
      %vm267 = vcmask 261120
      %v269 = vsel %vm267, %v251, 0
      %v272 = vsel %vm267, %v254, 0
      %274 = vmatpush.bf16.msra.mxu0 0
      %275 = vmatpush.bf16.msra.mxu0 0
      %276 = vmatpush.bf16.msra.mxu0 0
      %277 = vmatpush.bf16.msra.mxu0 0
      %278 = vmatpush.bf16.msra.mxu0 0
      %279 = vmatpush.bf16.msra.mxu0 0
      %280 = vmatpush.bf16.msra.mxu0 %v264
      %281 = vmatpush.bf16.msra.mxu0 %v263
      %282 = vmatmul.bf16.gmra.mxu0 %v269
      %v283 = vpop.f32.mrf.mxu0
      %v284 = vadd.f32 0.0, %v283
      %v285 = vpop.f32.mrf.mxu0
      %v286 = vadd.f32 0.0, %v285
      %287 = vmatmul.bf16.gmra.mxu0 %v272
      %v288 = vpop.f32.mrf.mxu0
      %v289 = vadd.f32 0.0, %v288
      %v290 = vpop.f32.mrf.mxu0
      %291 = vdwg.mxu0
      %v296 = vunpack.c.l.b16 %v222
      %v297 = vunpack.c.l.b16 %v223
      %v298 = vunpack.c.l.b16 %v224
      %v299 = vunpack.c.l.b16 %v225
      %v300 = vpack.c.b16 %v297, %v296
      %v301 = vpack.c.b16 %v299, %v298
      %v304 = vsel %vm267, %v237, 0
      %v306 = vsel %vm267, %v238, 0
      %308 = vmatpush.bf16.msra.mxu0 0
      %309 = vmatpush.bf16.msra.mxu0 0
      %310 = vmatpush.bf16.msra.mxu0 0
      %311 = vmatpush.bf16.msra.mxu0 0
      %312 = vmatpush.bf16.msra.mxu0 0
      %313 = vmatpush.bf16.msra.mxu0 0
      %314 = vmatpush.bf16.msra.mxu0 %v301
      %315 = vmatpush.bf16.msra.mxu0 %v300
      %316 = vmatmul.bf16.gmra.mxu0 %v304
      %v317 = vpop.f32.mrf.mxu0
      %v318 = vadd.f32 %v284, %v317
      %v319 = vpop.f32.mrf.mxu0
      %v320 = vadd.f32 %v286, %v319
      %321 = vmatmul.bf16.gmra.mxu0 %v306
      %v322 = vpop.f32.mrf.mxu0
      %v323 = vadd.f32 %v289, %v322
      %v324 = vpop.f32.mrf.mxu0
      %325 = vdwg.mxu0
      %s326 = scalar_lea.vmem %s2, 32
      %v327 = vld [vmem:[%s326] sm:$0xf]
      %v328 = vld [vmem:[%s326 + $0x4] sm:$0xf]
      %v329 = vld [vmem:[%s326 + $0x8] sm:$0xf]
      %v330 = vld [vmem:[%s326 + $0xc] sm:$0xf]
      %vm331 = vcmask 1046528
      %v332 = vrot.slane %v237, 1
      %v333 = vrot.slane %v238, 1
      %v334 = vsel %vm331, %v332, %v333
      %v339 = vunpack.c.l.b16 %v327
      %v340 = vunpack.c.l.b16 %v328
      %v341 = vunpack.c.l.b16 %v329
      %v342 = vunpack.c.l.b16 %v330
      %v343 = vpack.c.b16 %v340, %v339
      %v344 = vpack.c.b16 %v342, %v341
      %v348 = vsel %vm267, %v334, 0
      %v351 = vsel %vm267, %v333, 0
      %353 = vmatpush.bf16.msra.mxu0 0
      %354 = vmatpush.bf16.msra.mxu0 0
      %355 = vmatpush.bf16.msra.mxu0 0
      %356 = vmatpush.bf16.msra.mxu0 0
      %357 = vmatpush.bf16.msra.mxu0 0
      %358 = vmatpush.bf16.msra.mxu0 0
      %359 = vmatpush.bf16.msra.mxu0 %v344
      %360 = vmatpush.bf16.msra.mxu0 %v343
      %361 = vmatmul.bf16.gmra.mxu0 %v348
      %v362 = vpop.f32.mrf.mxu0
      %v363 = vadd.f32 0.0, %v362
      %v364 = vpop.f32.mrf.mxu0
      %v365 = vadd.f32 0.0, %v364
      %366 = vmatmul.bf16.gmra.mxu0 %v351
      %v367 = vpop.f32.mrf.mxu0
      %v368 = vadd.f32 0.0, %v367
      %v369 = vpop.f32.mrf.mxu0
      %370 = vdwg.mxu0
      %v371 = vadd.f32 %v318, %v363
      %v372 = vadd.f32 %v320, %v365
      %v373 = vadd.f32 %v323, %v368
      %s374 = scalar_lea.vmem %s2, 48
      %v375 = vld [vmem:[%s374] sm:$0xf]
      %v376 = vld [vmem:[%s374 + $0x4] sm:$0xf]
      %v377 = vld [vmem:[%s374 + $0x8] sm:$0xf]
      %v378 = vld [vmem:[%s374 + $0xc] sm:$0xf]
      %v380 = vunpack.c.l.b16 %v220
      %v381 = vpack.c.b16 %v380, %v236
      %vm382 = vcmask 1044480
      %v383 = vrot.slane %v237, 3
      %v384 = vrot.slane %v381, 3
      %v385 = vsel %vm382, %v383, %v384
      %v390 = vunpack.c.l.b16 %v375
      %v391 = vunpack.c.l.b16 %v376
      %v392 = vunpack.c.l.b16 %v377
      %v393 = vunpack.c.l.b16 %v378
      %v394 = vpack.c.b16 %v391, %v390
      %v395 = vpack.c.b16 %v393, %v392
      %v399 = vsel %vm267, %v385, 0
      %v402 = vsel %vm267, %v384, 0
      %404 = vmatpush.bf16.msra.mxu0 0
      %405 = vmatpush.bf16.msra.mxu0 0
      %406 = vmatpush.bf16.msra.mxu0 0
      %407 = vmatpush.bf16.msra.mxu0 0
      %408 = vmatpush.bf16.msra.mxu0 0
      %409 = vmatpush.bf16.msra.mxu0 0
      %410 = vmatpush.bf16.msra.mxu0 %v395
      %411 = vmatpush.bf16.msra.mxu0 %v394
      %412 = vmatmul.bf16.gmra.mxu0 %v399
      %v413 = vpop.f32.mrf.mxu0
      %v414 = vadd.f32 0.0, %v413
      %v415 = vpop.f32.mrf.mxu0
      %v416 = vadd.f32 0.0, %v415
      %417 = vmatmul.bf16.gmra.mxu0 %v402
      %v418 = vpop.f32.mrf.mxu0
      %v419 = vadd.f32 0.0, %v418
      %v420 = vpop.f32.mrf.mxu0
      %421 = vdwg.mxu0
      %v422 = vadd.f32 %v371, %v414
      %v423 = vadd.f32 %v372, %v416
      %v424 = vadd.f32 %v373, %v419
      %s425 = scalar_lea.vmem %s2, 64
      %v426 = vld [vmem:[%s425] sm:$0xf]
      %v427 = vld [vmem:[%s425 + $0x4] sm:$0xf]
      %v428 = vld [vmem:[%s425 + $0x8] sm:$0xf]
      %v429 = vld [vmem:[%s425 + $0xc] sm:$0xf]
      %vm430 = vsmask.f32 4352
      %v431 = vrot.slane %v241, 3
      %v432 = vrot.slane %v243, 4
      %v433 = vor.u32 %v431, %v432
      %v435 = vshrl.u32 %v381, 16
      %v437 = vrot.slane %v435, 3
      %v438 = vshll.u32 %v381, 16
      %v440 = vrot.slane %v438, 4
      %v441 = vor.u32 %v437, %v440
      %v442 = vsel %vm430, %v433, %v441
      %v447 = vunpack.c.l.b16 %v426
      %v448 = vunpack.c.l.b16 %v427
      %v449 = vunpack.c.l.b16 %v428
      %v450 = vunpack.c.l.b16 %v429
      %v451 = vpack.c.b16 %v448, %v447
      %v452 = vpack.c.b16 %v450, %v449
      %v456 = vsel %vm267, %v442, 0
      %v459 = vsel %vm267, %v441, 0
      %461 = vmatpush.bf16.msra.mxu0 0
      %462 = vmatpush.bf16.msra.mxu0 0
      %463 = vmatpush.bf16.msra.mxu0 0
      %464 = vmatpush.bf16.msra.mxu0 0
      %465 = vmatpush.bf16.msra.mxu0 0
      %466 = vmatpush.bf16.msra.mxu0 0
      %467 = vmatpush.bf16.msra.mxu0 %v452
      %468 = vmatpush.bf16.msra.mxu0 %v451
      %469 = vmatmul.bf16.gmra.mxu0 %v456
      %v470 = vpop.f32.mrf.mxu0
      %v471 = vadd.f32 0.0, %v470
      %v472 = vpop.f32.mrf.mxu0
      %v473 = vadd.f32 0.0, %v472
      %474 = vmatmul.bf16.gmra.mxu0 %v459
      %v475 = vpop.f32.mrf.mxu0
      %v476 = vadd.f32 0.0, %v475
      %v477 = vpop.f32.mrf.mxu0
      %478 = vdwg.mxu0
      %v479 = vadd.f32 %v422, %v471
      %v480 = vadd.f32 %v423, %v473
      %v481 = vadd.f32 %v424, %v476
      %s482 = scalar_lea.vmem %s2, 80
      %v483 = vld [vmem:[%s482] sm:$0xf]
      %v484 = vld [vmem:[%s482 + $0x4] sm:$0xf]
      %v485 = vld [vmem:[%s482 + $0x8] sm:$0xf]
      %v486 = vld [vmem:[%s482 + $0xc] sm:$0xf]
      %v487 = vpack.c.b16 %v236, %v235
      %v488 = vpack.c.b16 %v380, %v380
      %v493 = vunpack.c.l.b16 %v483
      %v494 = vunpack.c.l.b16 %v484
      %v495 = vunpack.c.l.b16 %v485
      %v496 = vunpack.c.l.b16 %v486
      %v497 = vpack.c.b16 %v494, %v493
      %v498 = vpack.c.b16 %v496, %v495
      %v502 = vsel %vm267, %v487, 0
      %v505 = vsel %vm267, %v488, 0
      %507 = vmatpush.bf16.msra.mxu0 0
      %508 = vmatpush.bf16.msra.mxu0 0
      %509 = vmatpush.bf16.msra.mxu0 0
      %510 = vmatpush.bf16.msra.mxu0 0
      %511 = vmatpush.bf16.msra.mxu0 0
      %512 = vmatpush.bf16.msra.mxu0 0
      %513 = vmatpush.bf16.msra.mxu0 %v498
      %514 = vmatpush.bf16.msra.mxu0 %v497
      %515 = vmatmul.bf16.gmra.mxu0 %v502
      %v516 = vpop.f32.mrf.mxu0
      %v517 = vadd.f32 0.0, %v516
      %v518 = vpop.f32.mrf.mxu0
      %v519 = vadd.f32 0.0, %v518
      %520 = vmatmul.bf16.gmra.mxu0 %v505
      %v521 = vpop.f32.mrf.mxu0
      %v522 = vadd.f32 0.0, %v521
      %v523 = vpop.f32.mrf.mxu0
      %524 = vdwg.mxu0
      %v525 = vadd.f32 %v479, %v517
      %v526 = vadd.f32 %v480, %v519
      %v527 = vadd.f32 %v481, %v522
      %s528 = scalar_lea.vmem %s2, 96
      %v529 = vld [vmem:[%s528] sm:$0xf]
      %v530 = vld [vmem:[%s528 + $0x4] sm:$0xf]
      %v531 = vld [vmem:[%s528 + $0x8] sm:$0xf]
      %v532 = vld [vmem:[%s528 + $0xc] sm:$0xf]
      %v534 = vunpack.c.l.b16 %v221
      %v535 = vpack.c.b16 %v534, %v380
      %vm536 = vcmask 1045504
      %v537 = vrot.slane %v487, 2
      %v538 = vrot.slane %v535, 2
      %v539 = vsel %vm536, %v537, %v538
      %v544 = vunpack.c.l.b16 %v529
      %v545 = vunpack.c.l.b16 %v530
      %v546 = vunpack.c.l.b16 %v531
      %v547 = vunpack.c.l.b16 %v532
      %v548 = vpack.c.b16 %v545, %v544
      %v549 = vpack.c.b16 %v547, %v546
      %v553 = vsel %vm267, %v539, 0
      %v556 = vsel %vm267, %v538, 0
      %558 = vmatpush.bf16.msra.mxu0 0
      %559 = vmatpush.bf16.msra.mxu0 0
      %560 = vmatpush.bf16.msra.mxu0 0
      %561 = vmatpush.bf16.msra.mxu0 0
      %562 = vmatpush.bf16.msra.mxu0 0
      %563 = vmatpush.bf16.msra.mxu0 0
      %564 = vmatpush.bf16.msra.mxu0 %v549
      %565 = vmatpush.bf16.msra.mxu0 %v548
      %566 = vmatmul.bf16.gmra.mxu0 %v553
      %v567 = vpop.f32.mrf.mxu0
      %v568 = vadd.f32 0.0, %v567
      %v569 = vpop.f32.mrf.mxu0
      %v570 = vadd.f32 0.0, %v569
      %571 = vmatmul.bf16.gmra.mxu0 %v556
      %v572 = vpop.f32.mrf.mxu0
      %v573 = vadd.f32 0.0, %v572
      %v574 = vpop.f32.mrf.mxu0
      %575 = vdwg.mxu0
      %v576 = vadd.f32 %v525, %v568
      %v577 = vadd.f32 %v526, %v570
      %v578 = vadd.f32 %v527, %v573
      %s579 = scalar_lea.vmem %s2, 112
      %v580 = vld [vmem:[%s579] sm:$0xf]
      %v581 = vld [vmem:[%s579 + $0x4] sm:$0xf]
      %v582 = vld [vmem:[%s579 + $0x8] sm:$0xf]
      %v583 = vld [vmem:[%s579 + $0xc] sm:$0xf]
      %vm584 = vsmask.f32 5376
      %v585 = vshrl.u32 %v487, 16
      %v587 = vrot.slane %v585, 2
      %v588 = vshll.u32 %v487, 16
      %v590 = vrot.slane %v588, 3
      %v591 = vor.u32 %v587, %v590
      %v593 = vshrl.u32 %v535, 16
      %v595 = vrot.slane %v593, 2
      %v596 = vshll.u32 %v535, 16
      %v598 = vrot.slane %v596, 3
      %v599 = vor.u32 %v595, %v598
      %v600 = vsel %vm584, %v591, %v599
      %v605 = vunpack.c.l.b16 %v580
      %v606 = vunpack.c.l.b16 %v581
      %v607 = vunpack.c.l.b16 %v582
      %v608 = vunpack.c.l.b16 %v583
      %v609 = vpack.c.b16 %v606, %v605
      %v610 = vpack.c.b16 %v608, %v607
      %v614 = vsel %vm267, %v600, 0
      %v617 = vsel %vm267, %v599, 0
      %619 = vmatpush.bf16.msra.mxu0 0
      %620 = vmatpush.bf16.msra.mxu0 0
      %621 = vmatpush.bf16.msra.mxu0 0
      %622 = vmatpush.bf16.msra.mxu0 0
      %623 = vmatpush.bf16.msra.mxu0 0
      %624 = vmatpush.bf16.msra.mxu0 0
      %625 = vmatpush.bf16.msra.mxu0 %v610
      %626 = vmatpush.bf16.msra.mxu0 %v609
      %627 = vmatmul.bf16.gmra.mxu0 %v614
      %v628 = vpop.f32.mrf.mxu0
      %v629 = vadd.f32 0.0, %v628
      %v630 = vpop.f32.mrf.mxu0
      %v631 = vadd.f32 0.0, %v630
      %632 = vmatmul.bf16.gmra.mxu0 %v617
      %v633 = vpop.f32.mrf.mxu0
      %v634 = vadd.f32 0.0, %v633
      %v635 = vpop.f32.mrf.mxu0
      %636 = vdwg.mxu0
      %v637 = vadd.f32 %v576, %v629
      %v638 = vadd.f32 %v577, %v631
      %v639 = vadd.f32 %v578, %v634
      %s640 = scalar_lea.vmem %s2, 128
      %v641 = vld [vmem:[%s640] sm:$0xf]
      %v642 = vld [vmem:[%s640 + $0x4] sm:$0xf]
      %v643 = vld [vmem:[%s640 + $0x8] sm:$0xf]
      %v644 = vld [vmem:[%s640 + $0xc] sm:$0xf]
      %v645 = vrot.slane %v487, 3
      %v646 = vrot.slane %v535, 3
      %v647 = vsel %vm382, %v645, %v646
      %v652 = vunpack.c.l.b16 %v641
      %v653 = vunpack.c.l.b16 %v642
      %v654 = vunpack.c.l.b16 %v643
      %v655 = vunpack.c.l.b16 %v644
      %v656 = vpack.c.b16 %v653, %v652
      %v657 = vpack.c.b16 %v655, %v654
      %v661 = vsel %vm267, %v647, 0
      %v664 = vsel %vm267, %v646, 0
      %666 = vmatpush.bf16.msra.mxu0 0
      %667 = vmatpush.bf16.msra.mxu0 0
      %668 = vmatpush.bf16.msra.mxu0 0
      %669 = vmatpush.bf16.msra.mxu0 0
      %670 = vmatpush.bf16.msra.mxu0 0
      %671 = vmatpush.bf16.msra.mxu0 0
      %672 = vmatpush.bf16.msra.mxu0 %v657
      %673 = vmatpush.bf16.msra.mxu0 %v656
      %674 = vmatmul.bf16.gmra.mxu0 %v661
      %v675 = vpop.f32.mrf.mxu0
      %v676 = vadd.f32 0.0, %v675
      %v677 = vpop.f32.mrf.mxu0
      %v678 = vadd.f32 0.0, %v677
      %679 = vmatmul.bf16.gmra.mxu0 %v664
      %v680 = vpop.f32.mrf.mxu0
      %v681 = vadd.f32 0.0, %v680
      %v682 = vpop.f32.mrf.mxu0
      %683 = vdwg.mxu0
      %v684 = vadd.f32 %v637, %v676
      %v685 = vadd.f32 %v638, %v678
      %v686 = vadd.f32 %v639, %v681
      %v687 = vmax.f32 %v684, 0.0
      %v688 = vmax.f32 %v685, 0.0
      %v689 = vmax.f32 %v686, 0.0
      %v690 = vpack.c.bf16 %v688, %v687
      %v691 = vpack.c.bf16 %v689, %v689
      %v692 = vld [vmem:[%s3] sm:$0xf]
      %v693 = vld [vmem:[%s3 + $0x4] sm:$0xf]
      %v696 = vunpack.c.l.b16 %v692
      %v697 = vunpack.c.l.b16 %v693
      %v698 = vpack.c.b16 %v697, %v696
      %vm700 = vcmask 130048
      %v702 = vsel %vm700, %v690, 0
      %v705 = vsel %vm700, %v691, 0
      %707 = vmatpush.bf16.msra.mxu0 0
      %708 = vmatpush.bf16.msra.mxu0 0
      %709 = vmatpush.bf16.msra.mxu0 0
      %710 = vmatpush.bf16.msra.mxu0 0
      %711 = vmatpush.bf16.msra.mxu0 0
      %712 = vmatpush.bf16.msra.mxu0 0
      %713 = vmatpush.bf16.msra.mxu0 0
      %714 = vmatpush.bf16.msra.mxu0 %v698
      %715 = vmatmul.bf16.gmra.mxu0 %v702
      %v716 = vpop.f32.mrf.mxu0
      %v717 = vadd.f32 0.0, %v716
      %v718 = vpop.f32.mrf.mxu0
      %v719 = vadd.f32 0.0, %v718
      %720 = vmatmul.bf16.gmra.mxu0 %v705
      %v721 = vpop.f32.mrf.mxu0
      %v722 = vadd.f32 0.0, %v721
      %v723 = vpop.f32.mrf.mxu0
      %724 = vdwg.mxu0
      %726 = vset.pattern.permute.xlu0 0
      %727 = vperm.xlu0 %726, %v199
      %v728 = vpop.permute.xlu0 %727
      %731 = vset.pattern.permute.xlu0 0
      %732 = vperm.xlu0 %731, %v200
      %v733 = vpop.permute.xlu0 %732
      %736 = vset.pattern.permute.xlu0 0
      %737 = vperm.xlu0 %736, %v201
      %v738 = vpop.permute.xlu0 %737
      %v740 = vmul.f32 %v717, %v728
      %v741 = vmul.f32 %v719, %v733
      %v742 = vmul.f32 %v722, %v738
      %vm746 = vcmask 1046528
      %v747 = vrot.slane %v740, 1
      %v748 = vrot.slane %v741, 1
      %v749 = vsel %vm746, %v747, %v748
      %v750 = vrot.slane %v742, 1
      %v751 = vsel %vm746, %v748, %v750
      %v756 = vadd.f32 %v207, %v747
      %v757 = vadd.f32 %v208, %v749
      %v758 = vadd.f32 %v209, %v751
      %v759 = vadd.f32 %v210, %v750
      %v760 = vmax.f32 %v756, 0.0
      %v761 = vmax.f32 %v757, 0.0
      %v762 = vmax.f32 %v758, 0.0
      %v763 = vmax.f32 %v759, 0.0
      %vm764 = vcmask 257024
      %765 = vst.msk [vmem:[%s197] sm:$0xf] %vm764, 0
      %766 = vst.msk [vmem:[%s197 + $0x4] sm:$0xf] %vm764, 0
      %767 = vst.msk [vmem:[%s197 + $0x8] sm:$0xf] %vm764, 0
      %768 = vst.msk [vmem:[%s197 + $0xc] sm:$0xf] %vm764, 0
      %vm769 = vcmask 254976
      %770 = vst.msk [vmem:[%s197 + $0x10] sm:$0x3] %vm769, 0
      %v771 = vpack.c.bf16 %v760, %v760
      %v772 = vpack.c.bf16 %v761, %v761
      %v773 = vpack.c.bf16 %v762, %v762
      %v774 = vpack.c.bf16 %v763, %v763
      %vm775 = vcmask 257027
      %vm776 = vsmask.f32 7950
      %vm777 = vmand %vm775, %vm776
      %v778 = vld [vmem:[%s197] sm:$0x8]
      %v779 = vsel %vm777, %v771, %v778
      %780 = vst [vmem:[%s197] sm:$0x8] %v779
      %781 = vst.msk [vmem:[%s197 + $0x4] sm:$0xf] %vm764, %v772
      %782 = vst.msk [vmem:[%s197 + $0x8] sm:$0xf] %vm764, %v773
      %vm783 = vcmask 256000
      %vm784 = vsmask.f32 2304
      %vm785 = vmand %vm783, %vm784
      %v786 = vld [vmem:[%s197 + $0xc] sm:$0x7]
      %v787 = vsel %vm785, %v774, %v786
      %788 = vst [vmem:[%s197 + $0xc] sm:$0x7] %v787
      %p789 = scmp.lt.s32.totalorder %s15, 1
      %s790 = scalar_select %p789, %s15, 1
      %s791 = smul.addr %s790, 5
      %s792 = smul.addr %s791, 4
      %s793 = scalar_lea.vmem %s4, %s792
      // Predicated region
      $region37: #{encoder_identity_forward.7} parent=35 // pred_check
        %p794 = pneg %p122
      $region38: #{encoder_identity_forward.7} parent=35 // pred_check_branch
        %796 = sbr.rel (%p794) target = $region40
      $region39: #{encoder_identity_forward.7} parent=35 // pred_region
        _
      $region40: #{encoder_identity_forward.7} parent=35 // pred_fallthru
        _
    $region36: #{encoder_identity_forward.7} parent=5 // pred_fallthru
      _
    %p797 = scmp.le.s32.totalorder 2, %s10
    // Predicated region
    $region41: #{encoder_identity_forward.7} parent=5 // pred_check
      %p798 = pneg %p797
    $region42: #{encoder_identity_forward.7} parent=5 // pred_check_branch
      %800 = sbr.rel (%p798) target = $region44
    $region43: #{encoder_identity_forward.7} parent=5 // pred_region
      %s801 = ssub.s32 %s10, 2
      // Predicated region
      $region45: #{encoder_identity_forward.7} parent=43 // pred_check
        %p802 = pneg %p128
      $region46: #{encoder_identity_forward.7} parent=43 // pred_check_branch
        %804 = sbr.rel (%p802) target = $region48
      $region47: #{encoder_identity_forward.7} parent=43 // pred_region
        %p805 = scmp.lt.s32.totalorder %s16, 1
        %s806 = scalar_select %p805, %s16, 1
        %s807 = smul.addr %s806, 5
        %s808 = smul.addr %s807, 4
        %s809 = scalar_lea.vmem %s4, %s808
      $region48: #{encoder_identity_forward.7} parent=43 // pred_fallthru
        _
    $region44: #{encoder_identity_forward.7} parent=5 // pred_fallthru
      _
  $region6: #{encoder_identity_forward.7} parent=0 // loop_footer
    %s14 = sadd.s32 1, %s10
  $region7: #{encoder_identity_forward.7} parent=0 // loop_footer_branch
    %9 = sbr.rel target = $region3
  $region8: #{encoder_identity_forward.7} parent=0 // loop_exit
    _

</llo_original>
